<compile_context>
chip_gen: v7x
topology: tpu7x:2x2x1
jax: 0.10.0
libtpu: 0.0.40
codegen_flags: <defaults>
</compile_context>

<pallas_src>
import math
import functools

import jax
import jax.numpy as jnp
from jax.experimental import pallas as pl
from jax.experimental.pallas import tpu as pltpu

jax.config.update("jax_default_matmul_precision", "highest")

_SUBLANE = 8
_MAX_TILE_M = 512                   # large row tiles amortize ~0.35us/grid-step overhead
_VMEM_BUDGET = 48 * 1024 * 1024     # stay under v7x's 64 MiB physical VMEM


def _round_up(x, m):
    return ((x + m - 1) // m) * m


def _pick_tile_m(m, fixed_bytes, per_row_bytes, max_tile=_MAX_TILE_M):
    """Largest row tile (multiple of 8, <= max_tile) whose working set fits the budget."""
    m_padded = _round_up(max(int(m), 1), _SUBLANE)
    tile = _round_up(min(max_tile, m_padded), _SUBLANE)
    while tile > _SUBLANE and fixed_bytes + tile * per_row_bytes > _VMEM_BUDGET:
        tile = _round_up(tile // 2, _SUBLANE)
    return tile


def _vmem_limit(need_bytes):
    # generous margin, never below 32 MiB, capped at v7x physical VMEM (64 MiB)
    return int(min(64 * 1024 * 1024, max(32 * 1024 * 1024, 2 * int(need_bytes))))


def _gelu_new(x):
    # GPT-2 "gelu_new" (tanh approximation); tanh runs on the otherwise-idle EUP.
    return 0.5 * x * (1.0 + jnp.tanh(
        math.sqrt(2.0 / math.pi) * (x + 0.044715 * x * x * x)))


# ---------------------------------------------------------------------------
# Kernels
# ---------------------------------------------------------------------------

def layernorm_kernel(x_ref, g_ref, b_ref, o_ref, *, eps):
    x = x_ref[...].astype(jnp.float32)
    mean = jnp.mean(x, axis=-1, keepdims=True)
    xc = x - mean
    var = jnp.mean(xc * xc, axis=-1, keepdims=True)
    y = xc * jax.lax.rsqrt(var + eps)
    y = y * g_ref[...].astype(jnp.float32) + b_ref[...].astype(jnp.float32)
    o_ref[...] = y.astype(o_ref.dtype)


def linear_kernel(x_ref, w_ref, b_ref, o_ref):
    # Conv1D: y = x @ W + b   (W is [in_features, out_features])
    y = jnp.dot(x_ref[...], w_ref[...], preferred_element_type=jnp.float32)
    y = y + b_ref[...].astype(jnp.float32)
    o_ref[...] = y.astype(o_ref.dtype)


def mlp_kernel(x_ref, wfc_ref, bfc_ref, wproj_ref, bproj_ref, o_ref):
    # fused c_fc -> gelu_new -> c_proj (resid dropout is identity in eval mode)
    h = jnp.dot(x_ref[...], wfc_ref[...], preferred_element_type=jnp.float32)
    h = h + bfc_ref[...].astype(jnp.float32)
    h = _gelu_new(h)                                   # f32 activation (v5e-safe)
    h = h.astype(wproj_ref.dtype)
    out = jnp.dot(h, wproj_ref[...], preferred_element_type=jnp.float32)
    out = out + bproj_ref[...].astype(jnp.float32)
    # TODO(synk): training-mode dropout would need pltpu.prng_seed/prng_random_bits.
    o_ref[...] = out.astype(o_ref.dtype)


def attention_kernel(q_ref, k_ref, v_ref, o_ref, *, scale):
    # one batch element, all heads: q/k/v blocks are (1, nh, S, dh)
    q = q_ref[0].astype(jnp.float32)
    k = k_ref[0].astype(jnp.float32)
    v = v_ref[0]
    s = jnp.einsum("hqd,hkd->hqk", q, k,
                   preferred_element_type=jnp.float32) * scale
    rows = jax.lax.broadcasted_iota(jnp.int32, s.shape, 1)
    cols = jax.lax.broadcasted_iota(jnp.int32, s.shape, 2)
    s = jnp.where(rows >= cols, s, jnp.finfo(jnp.float32).min)
    s = s - jnp.max(s, axis=-1, keepdims=True)
    p = jnp.exp(s)
    p = p / jnp.sum(p, axis=-1, keepdims=True)
    o = jnp.einsum("hqk,hkd->hqd", p.astype(v.dtype), v,
                   preferred_element_type=jnp.float32)
    # TODO(synk): non-None attention_mask / head_mask and attn dropout not implemented.
    o_ref[0] = o.astype(o_ref.dtype)


# ---------------------------------------------------------------------------
# Pallas-call wrappers
# ---------------------------------------------------------------------------

def layernorm_forward(x2d, gamma, beta, *, eps):
    M, H = x2d.shape
    itemsize = jnp.dtype(x2d.dtype).itemsize
    fixed = 2 * 2 * H * 4
    per_row = 2 * H * itemsize * 2 + 2 * H * 4
    tile_m = _pick_tile_m(M, fixed, per_row, max_tile=1024)
    Mp = _round_up(M, tile_m)
    xp = jnp.pad(x2d, ((0, Mp - M), (0, 0))) if Mp != M else x2d

    out = pl.pallas_call(
        functools.partial(layernorm_kernel, eps=eps),
        out_shape=jax.ShapeDtypeStruct((Mp, H), x2d.dtype),
        grid_spec=pl.GridSpec(
            grid=(Mp // tile_m,),
            in_specs=[
                pl.BlockSpec((tile_m, H), lambda i: (i, 0)),
                pl.BlockSpec((1, H), lambda i: (0, 0)),
                pl.BlockSpec((1, H), lambda i: (0, 0)),
            ],
            out_specs=pl.BlockSpec((tile_m, H), lambda i: (i, 0)),
        ),
        compiler_params=pltpu.CompilerParams(dimension_semantics=("parallel",)),
        cost_estimate=pl.CostEstimate(flops=int(8 * M * H), transcendentals=int(M),
                                      bytes_accessed=int(2 * M * H * itemsize)),
    )(xp, gamma.reshape(1, H), beta.reshape(1, H))
    return out[:M]


def conv1d_forward(x2d, w, b, *, compute_dtype=None):
    M, IN = x2d.shape
    OUT = w.shape[1]
    out_dtype = x2d.dtype
    cd = out_dtype if compute_dtype is None else compute_dtype
    cd_size = jnp.dtype(cd).itemsize
    out_size = jnp.dtype(out_dtype).itemsize

    xc = x2d.astype(cd)
    wc = w.astype(cd)
    b2 = b.reshape(1, OUT).astype(jnp.float32)

    # VMEM budget: resident weight (2x buffers by default) + double-buffered x/out
    # row tiles + f32 accumulator slab.
    fixed = 2 * IN * OUT * cd_size + 2 * OUT * 4
    per_row = 2 * IN * cd_size + 2 * OUT * out_size + OUT * 4
    tile_m = _pick_tile_m(M, fixed, per_row)
    Mp = _round_up(M, tile_m)
    if Mp != M:
        xc = jnp.pad(xc, ((0, Mp - M), (0, 0)))

    out = pl.pallas_call(
        linear_kernel,
        out_shape=jax.ShapeDtypeStruct((Mp, OUT), out_dtype),
        grid_spec=pl.GridSpec(
            grid=(Mp // tile_m,),
            in_specs=[
                pl.BlockSpec((tile_m, IN), lambda i: (i, 0)),
                pl.BlockSpec((IN, OUT), lambda i: (0, 0)),      # resident weight
                pl.BlockSpec((1, OUT), lambda i: (0, 0)),
            ],
            out_specs=pl.BlockSpec((tile_m, OUT), lambda i: (i, 0)),
        ),
        compiler_params=pltpu.CompilerParams(
            dimension_semantics=("parallel",),
            vmem_limit_bytes=_vmem_limit(fixed + tile_m * per_row)),
        cost_estimate=pl.CostEstimate(
            flops=int(2 * M * IN * OUT), transcendentals=0,
            bytes_accessed=int((M * IN + IN * OUT + OUT) * cd_size + M * OUT * out_size)),
    )(xc, wc, b2)
    return out[:M]


def mlp_forward(x2d, w_fc, b_fc, w_proj, b_proj, *, compute_dtype=None):
    M, H = x2d.shape
    I = w_fc.shape[1]
    out_dtype = x2d.dtype
    cd = out_dtype if compute_dtype is None else compute_dtype
    cd_size = jnp.dtype(cd).itemsize
    out_size = jnp.dtype(out_dtype).itemsize

    xc = x2d.astype(cd)
    wfc = w_fc.astype(cd)
    wpj = w_proj.astype(cd)
    bfc = b_fc.reshape(1, I).astype(jnp.float32)
    bpj = b_proj.reshape(1, H).astype(jnp.float32)

    # VMEM budget (v7x-safe, 64 MiB): both weights resident (2x buffers), double-
    # buffered x/out row tiles, plus the (tile_m, I) f32 intermediate.
    fixed = 2 * (H * I + I * H) * cd_size + 2 * (I + H) * 4
    per_row = 2 * H * cd_size + 2 * H * out_size + I * 4 + I * cd_size + H * 4
    tile_m = _pick_tile_m(M, fixed, per_row)
    Mp = _round_up(M, tile_m)
    if Mp != M:
        xc = jnp.pad(xc, ((0, Mp - M), (0, 0)))

    # TODO(synk): for very large H where the weights are not VMEM-resident even in
    # bf16, add a second grid axis over I with a (tile_m, H) f32 accumulator
    # (init/finalize via pl.when, that axis marked "arbitrary").

    out = pl.pallas_call(
        mlp_kernel,
        out_shape=jax.ShapeDtypeStruct((Mp, H), out_dtype),
        grid_spec=pl.GridSpec(
            grid=(Mp // tile_m,),
            in_specs=[
                pl.BlockSpec((tile_m, H), lambda i: (i, 0)),
                pl.BlockSpec((H, I), lambda i: (0, 0)),         # resident weights
                pl.BlockSpec((1, I), lambda i: (0, 0)),
                pl.BlockSpec((I, H), lambda i: (0, 0)),
                pl.BlockSpec((1, H), lambda i: (0, 0)),
            ],
            out_specs=pl.BlockSpec((tile_m, H), lambda i: (i, 0)),  # lane-dense full H
        ),
        compiler_params=pltpu.CompilerParams(
            dimension_semantics=("parallel",),                  # v7x megacore sharding
            vmem_limit_bytes=_vmem_limit(fixed + tile_m * per_row)),
        cost_estimate=pl.CostEstimate(
            flops=int(4 * M * H * I), transcendentals=int(M * I),
            bytes_accessed=int((M * H + 2 * H * I + I + H) * cd_size + M * H * out_size)),
    )(xc, wfc, bfc, wpj, bpj)
    return out[:M]


def causal_attention_forward(q, k, v):
    B, nh, S, dh = q.shape
    scale = 1.0 / math.sqrt(dh)
    itemsize = jnp.dtype(q.dtype).itemsize
    in_spec = pl.BlockSpec((1, nh, S, dh), lambda b: (b, 0, 0, 0))
    out_spec = pl.BlockSpec((1, nh, S, dh), lambda b: (b, 0, 0, 0))
    return pl.pallas_call(
        functools.partial(attention_kernel, scale=scale),
        out_shape=jax.ShapeDtypeStruct((B, nh, S, dh), q.dtype),
        grid_spec=pl.GridSpec(
            grid=(B,),
            in_specs=[in_spec, in_spec, in_spec],
            out_specs=out_spec,
        ),
        compiler_params=pltpu.CompilerParams(dimension_semantics=("parallel",)),
        cost_estimate=pl.CostEstimate(
            flops=int(4 * B * nh * S * S * dh),
            transcendentals=int(B * nh * S * S),
            bytes_accessed=int(4 * B * nh * S * dh * itemsize)),
    )(q, k, v)


# ---------------------------------------------------------------------------
# Transformer forward (eval mode) built from the kernels above
# ---------------------------------------------------------------------------

def encoder_block_forward(hidden, p, *, num_heads, eps, compute_dtype):
    B, S, H = hidden.shape
    dh = H // num_heads
    x2 = hidden.reshape(B * S, H)

    # ---- attention sub-block ----
    ln1 = layernorm_forward(x2, p["ln1_g"], p["ln1_b"], eps=eps)
    qkv = conv1d_forward(ln1, p["attn_qkv_w"], p["attn_qkv_b"],
                         compute_dtype=compute_dtype)
    q, k, v = jnp.split(qkv.reshape(B, S, 3 * H), 3, axis=-1)

    def split_heads(t):
        return t.reshape(B, S, num_heads, dh).transpose(0, 2, 1, 3)

    attn = causal_attention_forward(split_heads(q), split_heads(k), split_heads(v))
    attn = attn.transpose(0, 2, 1, 3).reshape(B * S, H)
    attn = conv1d_forward(attn, p["attn_proj_w"], p["attn_proj_b"],
                          compute_dtype=compute_dtype)
    h1 = x2 + attn                      # attn dropout: identity (eval)

    # ---- MLP sub-block ----
    ln2 = layernorm_forward(h1, p["ln2_g"], p["ln2_b"], eps=eps)
    mlp = mlp_forward(ln2, p["fc_w"], p["fc_b"], p["proj_w"], p["proj_b"],
                      compute_dtype=compute_dtype)
    return (h1 + mlp).reshape(B, S, H)  # resid dropout: identity (eval)


@functools.partial(jax.jit, static_argnames=("num_heads", "eps", "compute_dtype"))
def transformer_forward(params, input_ids, *, num_heads, eps=1e-5, compute_dtype=None):
    wte, wpe = params["wte"], params["wpe"]
    B, S = input_ids.shape
    H = wte.shape[1]
    # token/position embedding gather kept in plain JAX (see notes); embd dropout = identity
    h = jnp.take(wte, input_ids, axis=0) + jnp.take(wpe, jnp.arange(S), axis=0)[None, :, :]
    for p in params["layers"]:
        h = encoder_block_forward(h, p, num_heads=num_heads, eps=eps,
                                  compute_dtype=compute_dtype)
    out = layernorm_forward(h.reshape(B * S, H), params["ln_f_g"], params["ln_f_b"], eps=eps)
    return out.reshape(B, S, H)


# ---------------------------------------------------------------------------
# Pure-JAX reference and parameter init
# ---------------------------------------------------------------------------

def reference_transformer(params, input_ids, *, num_heads, eps=1e-5):
    wte, wpe = params["wte"], params["wpe"]
    B, S = input_ids.shape
    H = wte.shape[1]
    dh = H // num_heads

    def ln(x, g, b):
        mu = jnp.mean(x, axis=-1, keepdims=True)
        var = jnp.mean((x - mu) ** 2, axis=-1, keepdims=True)
        return (x - mu) * jax.lax.rsqrt(var + eps) * g + b

    h = jnp.take(wte, input_ids, axis=0) + jnp.take(wpe, jnp.arange(S), axis=0)[None, :, :]
    for p in params["layers"]:
        x = ln(h, p["ln1_g"], p["ln1_b"])
        qkv = x.reshape(-1, H) @ p["attn_qkv_w"] + p["attn_qkv_b"]
        q, k, v = jnp.split(qkv.reshape(B, S, 3 * H), 3, axis=-1)
        sh = lambda t: t.reshape(B, S, num_heads, dh).transpose(0, 2, 1, 3)
        q, k, v = sh(q), sh(k), sh(v)
        s = jnp.einsum("bhqd,bhkd->bhqk", q, k) / math.sqrt(dh)
        mask = jnp.tril(jnp.ones((S, S), dtype=bool))
        s = jnp.where(mask[None, None], s, jnp.finfo(s.dtype).min)
        a = jax.nn.softmax(s, axis=-1)
        o = jnp.einsum("bhqk,bhkd->bhqd", a, v).transpose(0, 2, 1, 3).reshape(-1, H)
        o = o @ p["attn_proj_w"] + p["attn_proj_b"]
        h = h + o.reshape(B, S, H)
        x = ln(h, p["ln2_g"], p["ln2_b"])
        m = x.reshape(-1, H) @ p["fc_w"] + p["fc_b"]
        m = _gelu_new(m)
        m = m @ p["proj_w"] + p["proj_b"]
        h = h + m.reshape(B, S, H)
    return ln(h, params["ln_f_g"], params["ln_f_b"])


def init_params(key, *, vocab_size, max_pos, hidden, num_layers):
    inner = hidden  # encoderBlock builds MLP(self.hidden_size, config)
    keys = jax.random.split(key, 2 + num_layers)
    params = {
        "wte": 0.02 * jax.random.normal(keys[0], (vocab_size, hidden), jnp.float32),
        "wpe": 0.02 * jax.random.normal(keys[1], (max_pos, hidden), jnp.float32),
        "ln_f_g": jnp.ones((hidden,), jnp.float32),
        "ln_f_b": jnp.zeros((hidden,), jnp.float32),
        "layers": [],
    }
    proj_std = 0.02 / math.sqrt(2 * num_layers)
    for l in range(num_layers):
        k = jax.random.split(keys[2 + l], 4)
        params["layers"].append({
            "ln1_g": jnp.ones((hidden,), jnp.float32),
            "ln1_b": jnp.zeros((hidden,), jnp.float32),
            "ln2_g": jnp.ones((hidden,), jnp.float32),
            "ln2_b": jnp.zeros((hidden,), jnp.float32),
            "attn_qkv_w": 0.02 * jax.random.normal(k[0], (hidden, 3 * hidden), jnp.float32),
            "attn_qkv_b": jnp.zeros((3 * hidden,), jnp.float32),
            "attn_proj_w": proj_std * jax.random.normal(k[1], (hidden, hidden), jnp.float32),
            "attn_proj_b": jnp.zeros((hidden,), jnp.float32),
            "fc_w": 0.02 * jax.random.normal(k[2], (hidden, inner), jnp.float32),
            "fc_b": jnp.zeros((inner,), jnp.float32),
            "proj_w": proj_std * jax.random.normal(k[3], (inner, hidden), jnp.float32),
            "proj_b": jnp.zeros((hidden,), jnp.float32),
        })
    return params


if __name__ == "__main__":
    key = jax.random.PRNGKey(0)
    B, S = 2, 8
    vocab_size, max_pos = 128, 16
    hidden, num_heads, num_layers = 32, 4, 2
    eps = 1e-5

    k_params, k_ids = jax.random.split(key)
    params = init_params(k_params, vocab_size=vocab_size, max_pos=max_pos,
                         hidden=hidden, num_layers=num_layers)
    input_ids = jax.random.randint(k_ids, (B, S), 0, vocab_size, dtype=jnp.int32)

    # f32 path: checked tightly against the pure-JAX reference.
    out = transformer_forward(params, input_ids, num_heads=num_heads, eps=eps)
    out = jax.block_until_ready(out)
    ref = reference_transformer(params, input_ids, num_heads=num_heads, eps=eps)
    assert out.shape == (B, S, hidden)
    assert jnp.allclose(out, ref, atol=1e-3, rtol=1e-3), "mismatch vs reference"

    # bf16 matmul-operand path (the big MXU-throughput lever from the perf review);
    # verify it runs and produces finite outputs.
    out_bf16 = transformer_forward(params, input_ids, num_heads=num_heads, eps=eps,
                                   compute_dtype=jnp.bfloat16)
    out_bf16 = jax.block_until_ready(out_bf16)
    assert out_bf16.shape == (B, S, hidden)
    assert bool(jnp.all(jnp.isfinite(out_bf16)))

    print("KERNEL_OK")
</pallas_src>

<mosaic_0001>
module attributes {stable_mosaic.version = 11 : i64} {
  func.func @linear_kernel(%arg0: i32, %arg1: memref<16x32xf32, #tpu.memory_space<vmem>>, %arg2: memref<32x96xf32, #tpu.memory_space<vmem>>, %arg3: memref<1x96xf32, #tpu.memory_space<vmem>>, %arg4: memref<16x96xf32, #tpu.memory_space<vmem>>) attributes {dimension_semantics = [#tpu.dimension_semantics<parallel>], iteration_bounds = array<i64: 1>, scalar_prefetch = 0 : i64, scratch_operands = 0 : i64, tpu.core_type = #tpu.core_type<tc>, window_params = [{transform_indices = @transform_0, window_bounds = array<i64: 16, 32>}, {pipeline_mode = #tpu.pipeline_mode<synchronous>, transform_indices = @transform_1, window_bounds = array<i64: 32, 96>}, {pipeline_mode = #tpu.pipeline_mode<synchronous>, transform_indices = @transform_2, window_bounds = array<i64: 1, 96>}, {transform_indices = @transform_3, window_bounds = array<i64: 16, 96>}]} {
    %c0 = arith.constant 0 : index
    %c0_0 = arith.constant 0 : index
    %0 = vector.load %arg1[%c0, %c0_0] : memref<16x32xf32, #tpu.memory_space<vmem>>, vector<16x32xf32>
    %c0_1 = arith.constant 0 : index
    %c0_2 = arith.constant 0 : index
    %1 = vector.load %arg2[%c0_1, %c0_2] : memref<32x96xf32, #tpu.memory_space<vmem>>, vector<32x96xf32>
    %cst = arith.constant dense<0.000000e+00> : vector<16x96xf32>
    %2 = tpu.matmul %0, %1, %cst {dimension_numbers = #tpu.dot_dimension_numbers<[1], [0], [0], [1], [0, 0, 1, 1], [], []>, precision = #tpu.contract_precision<fp32>} : vector<16x32xf32>, vector<32x96xf32>, vector<16x96xf32> -> vector<16x96xf32>
    %c0_3 = arith.constant 0 : index
    %c0_4 = arith.constant 0 : index
    %3 = vector.load %arg3[%c0_3, %c0_4] : memref<1x96xf32, #tpu.memory_space<vmem>>, vector<1x96xf32>
    %4 = vector.broadcast %3 : vector<1x96xf32> to vector<16x96xf32>
    %5 = arith.addf %2, %4 : vector<16x96xf32>
    %c0_5 = arith.constant 0 : index
    %c0_6 = arith.constant 0 : index
    %6 = vector.load %arg4[%c0_5, %c0_6] : memref<16x96xf32, #tpu.memory_space<vmem>>, vector<16x96xf32>
    tpu.vector_store %arg4[%c0_5, %c0_6], %5 {strides = array<i32>} : memref<16x96xf32, #tpu.memory_space<vmem>>, vector<16x96xf32>,
    return
  }
  func.func @transform_0(%arg0: i32) -> (i32, i32) {
    %c0_i32 = arith.constant 0 : i32
    %c0_i32_0 = arith.constant 0 : i32
    return %arg0, %c0_i32 : i32, i32
  }
  func.func @transform_1(%arg0: i32) -> (i32, i32) {
    %c0_i32 = arith.constant 0 : i32
    %c0_i32_0 = arith.constant 0 : i32
    %c0_i32_1 = arith.constant 0 : i32
    return %c0_i32, %c0_i32_0 : i32, i32
  }
  func.func @transform_2(%arg0: i32) -> (i32, i32) {
    %c0_i32 = arith.constant 0 : i32
    %c0_i32_0 = arith.constant 0 : i32
    %c0_i32_1 = arith.constant 0 : i32
    return %c0_i32, %c0_i32_0 : i32, i32
  }
  func.func @transform_3(%arg0: i32) -> (i32, i32) {
    %c0_i32 = arith.constant 0 : i32
    %c0_i32_0 = arith.constant 0 : i32
    return %arg0, %c0_i32 : i32, i32
  }
}

module attributes {stable_mosaic.version = 11 : i64} {
  func.func @layernorm_kernel(%arg0: i32, %arg1: memref<16x32xf32, #tpu.memory_space<vmem>>, %arg2: memref<1x32xf32, #tpu.memory_space<vmem>>, %arg3: memref<1x32xf32, #tpu.memory_space<vmem>>, %arg4: memref<16x32xf32, #tpu.memory_space<vmem>>) attributes {dimension_semantics = [#tpu.dimension_semantics<parallel>], iteration_bounds = array<i64: 1>, scalar_prefetch = 0 : i64, scratch_operands = 0 : i64, tpu.core_type = #tpu.core_type<tc>, window_params = [{transform_indices = @transform_0, window_bounds = array<i64: 16, 32>}, {pipeline_mode = #tpu.pipeline_mode<synchronous>, transform_indices = @transform_1, window_bounds = array<i64: 1, 32>}, {pipeline_mode = #tpu.pipeline_mode<synchronous>, transform_indices = @transform_2, window_bounds = array<i64: 1, 32>}, {transform_indices = @transform_3, window_bounds = array<i64: 16, 32>}]} {
    %c0 = arith.constant 0 : index
    %c0_0 = arith.constant 0 : index
    %0 = vector.load %arg1[%c0, %c0_0] : memref<16x32xf32, #tpu.memory_space<vmem>>, vector<16x32xf32>
    %cst = arith.constant dense<0.000000e+00> : vector<16xf32>
    %1 = vector.multi_reduction <add>, %0, %cst [1] : vector<16x32xf32> to vector<16xf32>
    %2 = vector.shape_cast %1 : vector<16xf32> to vector<16x1xf32>
    %cst_1 = arith.constant 3.200000e+01 : f32
    %3 = vector.broadcast %cst_1 : f32 to vector<16x1xf32>
    %4 = arith.divf %2, %3 : vector<16x1xf32>
    %5 = vector.broadcast %4 : vector<16x1xf32> to vector<16x32xf32>
    %6 = arith.subf %0, %5 : vector<16x32xf32>
    %7 = arith.mulf %6, %6 : vector<16x32xf32>
    %cst_2 = arith.constant dense<0.000000e+00> : vector<16xf32>
    %8 = vector.multi_reduction <add>, %7, %cst_2 [1] : vector<16x32xf32> to vector<16xf32>
    %9 = vector.shape_cast %8 : vector<16xf32> to vector<16x1xf32>
    %cst_3 = arith.constant 3.200000e+01 : f32
    %10 = vector.broadcast %cst_3 : f32 to vector<16x1xf32>
    %11 = arith.divf %9, %10 : vector<16x1xf32>
    %cst_4 = arith.constant 9.99999974E-6 : f32
    %12 = vector.broadcast %cst_4 : f32 to vector<16x1xf32>
    %13 = arith.addf %11, %12 : vector<16x1xf32>
    %14 = math.rsqrt %13 : vector<16x1xf32>
    %15 = vector.broadcast %14 : vector<16x1xf32> to vector<16x32xf32>
    %16 = arith.mulf %6, %15 : vector<16x32xf32>
    %c0_5 = arith.constant 0 : index
    %c0_6 = arith.constant 0 : index
    %17 = vector.load %arg2[%c0_5, %c0_6] : memref<1x32xf32, #tpu.memory_space<vmem>>, vector<1x32xf32>
    %18 = vector.broadcast %17 : vector<1x32xf32> to vector<16x32xf32>
    %19 = arith.mulf %16, %18 : vector<16x32xf32>
    %c0_7 = arith.constant 0 : index
    %c0_8 = arith.constant 0 : index
    %20 = vector.load %arg3[%c0_7, %c0_8] : memref<1x32xf32, #tpu.memory_space<vmem>>, vector<1x32xf32>
    %21 = vector.broadcast %20 : vector<1x32xf32> to vector<16x32xf32>
    %22 = arith.addf %19, %21 : vector<16x32xf32>
    %c0_9 = arith.constant 0 : index
    %c0_10 = arith.constant 0 : index
    %23 = vector.load %arg4[%c0_9, %c0_10] : memref<16x32xf32, #tpu.memory_space<vmem>>, vector<16x32xf32>
    tpu.vector_store %arg4[%c0_9, %c0_10], %22 {strides = array<i32>} : memref<16x32xf32, #tpu.memory_space<vmem>>, vector<16x32xf32>,
    return
  }
  func.func @transform_0(%arg0: i32) -> (i32, i32) {
    %c0_i32 = arith.constant 0 : i32
    %c0_i32_0 = arith.constant 0 : i32
    return %arg0, %c0_i32 : i32, i32
  }
  func.func @transform_1(%arg0: i32) -> (i32, i32) {
    %c0_i32 = arith.constant 0 : i32
    %c0_i32_0 = arith.constant 0 : i32
    %c0_i32_1 = arith.constant 0 : i32
    return %c0_i32, %c0_i32_0 : i32, i32
  }
  func.func @transform_2(%arg0: i32) -> (i32, i32) {
    %c0_i32 = arith.constant 0 : i32
    %c0_i32_0 = arith.constant 0 : i32
    %c0_i32_1 = arith.constant 0 : i32
    return %c0_i32, %c0_i32_0 : i32, i32
  }
  func.func @transform_3(%arg0: i32) -> (i32, i32) {
    %c0_i32 = arith.constant 0 : i32
    %c0_i32_0 = arith.constant 0 : i32
    return %arg0, %c0_i32 : i32, i32
  }
}

module attributes {stable_mosaic.version = 11 : i64} {
  func.func @attention_kernel(%arg0: i32, %arg1: memref<1x4x8x8xf32, #tpu.memory_space<vmem>>, %arg2: memref<1x4x8x8xf32, #tpu.memory_space<vmem>>, %arg3: memref<1x4x8x8xf32, #tpu.memory_space<vmem>>, %arg4: memref<1x4x8x8xf32, #tpu.memory_space<vmem>>) attributes {dimension_semantics = [#tpu.dimension_semantics<parallel>], iteration_bounds = array<i64: 2>, scalar_prefetch = 0 : i64, scratch_operands = 0 : i64, tpu.core_type = #tpu.core_type<tc>, window_params = [{transform_indices = @transform_0, window_bounds = array<i64: 1, 4, 8, 8>}, {transform_indices = @transform_1, window_bounds = array<i64: 1, 4, 8, 8>}, {transform_indices = @transform_2, window_bounds = array<i64: 1, 4, 8, 8>}, {transform_indices = @transform_3, window_bounds = array<i64: 1, 4, 8, 8>}]} {
    %c0 = arith.constant 0 : index
    %c0_0 = arith.constant 0 : index
    %c0_1 = arith.constant 0 : index
    %c0_2 = arith.constant 0 : index
    %0 = vector.load %arg1[%c0, %c0_0, %c0_1, %c0_2] : memref<1x4x8x8xf32, #tpu.memory_space<vmem>>, vector<1x4x8x8xf32>
    %1 = vector.shape_cast %0 : vector<1x4x8x8xf32> to vector<4x8x8xf32>
    %c0_3 = arith.constant 0 : index
    %c0_4 = arith.constant 0 : index
    %c0_5 = arith.constant 0 : index
    %c0_6 = arith.constant 0 : index
    %2 = vector.load %arg2[%c0_3, %c0_4, %c0_5, %c0_6] : memref<1x4x8x8xf32, #tpu.memory_space<vmem>>, vector<1x4x8x8xf32>
    %3 = vector.shape_cast %2 : vector<1x4x8x8xf32> to vector<4x8x8xf32>
    %c0_7 = arith.constant 0 : index
    %c0_8 = arith.constant 0 : index
    %c0_9 = arith.constant 0 : index
    %c0_10 = arith.constant 0 : index
    %4 = vector.load %arg3[%c0_7, %c0_8, %c0_9, %c0_10] : memref<1x4x8x8xf32, #tpu.memory_space<vmem>>, vector<1x4x8x8xf32>
    %5 = vector.shape_cast %4 : vector<1x4x8x8xf32> to vector<4x8x8xf32>
    "tpu.trace_start"() <{level = 10 : i32, message = "hqd,hkd->hqk"}> : () -> ()
    %cst = arith.constant dense<0.000000e+00> : vector<4x8x8xf32>
    %6 = tpu.matmul %1, %3, %cst {dimension_numbers = #tpu.dot_dimension_numbers<[2], [2], [1], [1], [0, 0, 0, 1, 1, 1], [0], [0]>, precision = #tpu.contract_precision<fp32>} : vector<4x8x8xf32>, vector<4x8x8xf32>, vector<4x8x8xf32> -> vector<4x8x8xf32>
    "tpu.trace_stop"() : () -> ()
    %cst_11 = arith.constant 0.353553385 : f32
    %7 = vector.broadcast %cst_11 : f32 to vector<4x8x8xf32>
    %8 = arith.mulf %6, %7 : vector<4x8x8xf32>
    %9 = tpu.iota {dimensions = array<i32: 1>} : vector<4x8x8xi32>
    %10 = tpu.iota {dimensions = array<i32: 2>} : vector<4x8x8xi32>
    %11 = arith.cmpi sge, %9, %10 : vector<4x8x8xi32>
    %cst_12 = arith.constant -3.40282347E+38 : f32
    %12 = vector.broadcast %cst_12 : f32 to vector<4x8x8xf32>
    %13 = arith.select %11, %8, %12 : vector<4x8x8xi1>, vector<4x8x8xf32>
    %cst_13 = arith.constant dense<0xFF800000> : vector<4x8xf32>
    %14 = vector.multi_reduction <maximumf>, %13, %cst_13 [2] : vector<4x8x8xf32> to vector<4x8xf32>
    %15 = vector.shape_cast %14 : vector<4x8xf32> to vector<4x8x1xf32>
    %16 = vector.broadcast %15 : vector<4x8x1xf32> to vector<4x8x8xf32>
    %17 = arith.subf %13, %16 : vector<4x8x8xf32>
    %18 = math.exp %17 : vector<4x8x8xf32>
    %cst_14 = arith.constant dense<0.000000e+00> : vector<4x8xf32>
    %19 = vector.multi_reduction <add>, %18, %cst_14 [2] : vector<4x8x8xf32> to vector<4x8xf32>
    %20 = vector.shape_cast %19 : vector<4x8xf32> to vector<4x8x1xf32>
    %21 = vector.broadcast %20 : vector<4x8x1xf32> to vector<4x8x8xf32>
    %22 = arith.divf %18, %21 : vector<4x8x8xf32>
    "tpu.trace_start"() <{level = 10 : i32, message = "hqk,hkd->hqd"}> : () -> ()
    %cst_15 = arith.constant dense<0.000000e+00> : vector<4x8x8xf32>
    %23 = tpu.matmul %22, %5, %cst_15 {dimension_numbers = #tpu.dot_dimension_numbers<[2], [1], [1], [2], [0, 0, 0, 1, 1, 2], [0], [0]>, precision = #tpu.contract_precision<fp32>} : vector<4x8x8xf32>, vector<4x8x8xf32>, vector<4x8x8xf32> -> vector<4x8x8xf32>
    "tpu.trace_stop"() : () -> ()
    %c0_16 = arith.constant 0 : index
    %c0_17 = arith.constant 0 : index
    %c0_18 = arith.constant 0 : index
    %c0_19 = arith.constant 0 : index
    %24 = vector.load %arg4[%c0_16, %c0_17, %c0_18, %c0_19] : memref<1x4x8x8xf32, #tpu.memory_space<vmem>>, vector<1x4x8x8xf32>
    %25 = vector.shape_cast %24 : vector<1x4x8x8xf32> to vector<4x8x8xf32>
    %26 = vector.shape_cast %23 : vector<4x8x8xf32> to vector<1x4x8x8xf32>
    tpu.vector_store %arg4[%c0_16, %c0_17, %c0_18, %c0_19], %26 {strides = array<i32>} : memref<1x4x8x8xf32, #tpu.memory_space<vmem>>, vector<1x4x8x8xf32>,
    return
  }
  func.func @transform_0(%arg0: i32) -> (i32, i32, i32, i32) {
    %c0_i32 = arith.constant 0 : i32
    %c0_i32_0 = arith.constant 0 : i32
    %c0_i32_1 = arith.constant 0 : i32
    %c0_i32_2 = arith.constant 0 : i32
    return %arg0, %c0_i32, %c0_i32_0, %c0_i32_1 : i32, i32, i32, i32
  }
  func.func @transform_1(%arg0: i32) -> (i32, i32, i32, i32) {
    %c0_i32 = arith.constant 0 : i32
    %c0_i32_0 = arith.constant 0 : i32
    %c0_i32_1 = arith.constant 0 : i32
    %c0_i32_2 = arith.constant 0 : i32
    return %arg0, %c0_i32, %c0_i32_0, %c0_i32_1 : i32, i32, i32, i32
  }
  func.func @transform_2(%arg0: i32) -> (i32, i32, i32, i32) {
    %c0_i32 = arith.constant 0 : i32
    %c0_i32_0 = arith.constant 0 : i32
    %c0_i32_1 = arith.constant 0 : i32
    %c0_i32_2 = arith.constant 0 : i32
    return %arg0, %c0_i32, %c0_i32_0, %c0_i32_1 : i32, i32, i32, i32
  }
  func.func @transform_3(%arg0: i32) -> (i32, i32, i32, i32) {
    %c0_i32 = arith.constant 0 : i32
    %c0_i32_0 = arith.constant 0 : i32
    %c0_i32_1 = arith.constant 0 : i32
    %c0_i32_2 = arith.constant 0 : i32
    return %arg0, %c0_i32, %c0_i32_0, %c0_i32_1 : i32, i32, i32, i32
  }
}

module attributes {stable_mosaic.version = 11 : i64} {
  func.func @linear_kernel(%arg0: i32, %arg1: memref<16x32xf32, #tpu.memory_space<vmem>>, %arg2: memref<32x32xf32, #tpu.memory_space<vmem>>, %arg3: memref<1x32xf32, #tpu.memory_space<vmem>>, %arg4: memref<16x32xf32, #tpu.memory_space<vmem>>) attributes {dimension_semantics = [#tpu.dimension_semantics<parallel>], iteration_bounds = array<i64: 1>, scalar_prefetch = 0 : i64, scratch_operands = 0 : i64, tpu.core_type = #tpu.core_type<tc>, window_params = [{transform_indices = @transform_0, window_bounds = array<i64: 16, 32>}, {pipeline_mode = #tpu.pipeline_mode<synchronous>, transform_indices = @transform_1, window_bounds = array<i64: 32, 32>}, {pipeline_mode = #tpu.pipeline_mode<synchronous>, transform_indices = @transform_2, window_bounds = array<i64: 1, 32>}, {transform_indices = @transform_3, window_bounds = array<i64: 16, 32>}]} {
    %c0 = arith.constant 0 : index
    %c0_0 = arith.constant 0 : index
    %0 = vector.load %arg1[%c0, %c0_0] : memref<16x32xf32, #tpu.memory_space<vmem>>, vector<16x32xf32>
    %c0_1 = arith.constant 0 : index
    %c0_2 = arith.constant 0 : index
    %1 = vector.load %arg2[%c0_1, %c0_2] : memref<32x32xf32, #tpu.memory_space<vmem>>, vector<32x32xf32>
    %cst = arith.constant dense<0.000000e+00> : vector<16x32xf32>
    %2 = tpu.matmul %0, %1, %cst {dimension_numbers = #tpu.dot_dimension_numbers<[1], [0], [0], [1], [0, 0, 1, 1], [], []>, precision = #tpu.contract_precision<fp32>} : vector<16x32xf32>, vector<32x32xf32>, vector<16x32xf32> -> vector<16x32xf32>
    %c0_3 = arith.constant 0 : index
    %c0_4 = arith.constant 0 : index
    %3 = vector.load %arg3[%c0_3, %c0_4] : memref<1x32xf32, #tpu.memory_space<vmem>>, vector<1x32xf32>
    %4 = vector.broadcast %3 : vector<1x32xf32> to vector<16x32xf32>
    %5 = arith.addf %2, %4 : vector<16x32xf32>
    %c0_5 = arith.constant 0 : index
    %c0_6 = arith.constant 0 : index
    %6 = vector.load %arg4[%c0_5, %c0_6] : memref<16x32xf32, #tpu.memory_space<vmem>>, vector<16x32xf32>
    tpu.vector_store %arg4[%c0_5, %c0_6], %5 {strides = array<i32>} : memref<16x32xf32, #tpu.memory_space<vmem>>, vector<16x32xf32>,
    return
  }
  func.func @transform_0(%arg0: i32) -> (i32, i32) {
    %c0_i32 = arith.constant 0 : i32
    %c0_i32_0 = arith.constant 0 : i32
    return %arg0, %c0_i32 : i32, i32
  }
  func.func @transform_1(%arg0: i32) -> (i32, i32) {
    %c0_i32 = arith.constant 0 : i32
    %c0_i32_0 = arith.constant 0 : i32
    %c0_i32_1 = arith.constant 0 : i32
    return %c0_i32, %c0_i32_0 : i32, i32
  }
  func.func @transform_2(%arg0: i32) -> (i32, i32) {
    %c0_i32 = arith.constant 0 : i32
    %c0_i32_0 = arith.constant 0 : i32
    %c0_i32_1 = arith.constant 0 : i32
    return %c0_i32, %c0_i32_0 : i32, i32
  }
  func.func @transform_3(%arg0: i32) -> (i32, i32) {
    %c0_i32 = arith.constant 0 : i32
    %c0_i32_0 = arith.constant 0 : i32
    return %arg0, %c0_i32 : i32, i32
  }
}

module attributes {stable_mosaic.version = 11 : i64} {
  func.func @layernorm_kernel(%arg0: i32, %arg1: memref<16x32xf32, #tpu.memory_space<vmem>>, %arg2: memref<1x32xf32, #tpu.memory_space<vmem>>, %arg3: memref<1x32xf32, #tpu.memory_space<vmem>>, %arg4: memref<16x32xf32, #tpu.memory_space<vmem>>) attributes {dimension_semantics = [#tpu.dimension_semantics<parallel>], iteration_bounds = array<i64: 1>, scalar_prefetch = 0 : i64, scratch_operands = 0 : i64, tpu.core_type = #tpu.core_type<tc>, window_params = [{transform_indices = @transform_0, window_bounds = array<i64: 16, 32>}, {pipeline_mode = #tpu.pipeline_mode<synchronous>, transform_indices = @transform_1, window_bounds = array<i64: 1, 32>}, {pipeline_mode = #tpu.pipeline_mode<synchronous>, transform_indices = @transform_2, window_bounds = array<i64: 1, 32>}, {transform_indices = @transform_3, window_bounds = array<i64: 16, 32>}]} {
    %c0 = arith.constant 0 : index
    %c0_0 = arith.constant 0 : index
    %0 = vector.load %arg1[%c0, %c0_0] : memref<16x32xf32, #tpu.memory_space<vmem>>, vector<16x32xf32>
    %cst = arith.constant dense<0.000000e+00> : vector<16xf32>
    %1 = vector.multi_reduction <add>, %0, %cst [1] : vector<16x32xf32> to vector<16xf32>
    %2 = vector.shape_cast %1 : vector<16xf32> to vector<16x1xf32>
    %cst_1 = arith.constant 3.200000e+01 : f32
    %3 = vector.broadcast %cst_1 : f32 to vector<16x1xf32>
    %4 = arith.divf %2, %3 : vector<16x1xf32>
    %5 = vector.broadcast %4 : vector<16x1xf32> to vector<16x32xf32>
    %6 = arith.subf %0, %5 : vector<16x32xf32>
    %7 = arith.mulf %6, %6 : vector<16x32xf32>
    %cst_2 = arith.constant dense<0.000000e+00> : vector<16xf32>
    %8 = vector.multi_reduction <add>, %7, %cst_2 [1] : vector<16x32xf32> to vector<16xf32>
    %9 = vector.shape_cast %8 : vector<16xf32> to vector<16x1xf32>
    %cst_3 = arith.constant 3.200000e+01 : f32
    %10 = vector.broadcast %cst_3 : f32 to vector<16x1xf32>
    %11 = arith.divf %9, %10 : vector<16x1xf32>
    %cst_4 = arith.constant 9.99999974E-6 : f32
    %12 = vector.broadcast %cst_4 : f32 to vector<16x1xf32>
    %13 = arith.addf %11, %12 : vector<16x1xf32>
    %14 = math.rsqrt %13 : vector<16x1xf32>
    %15 = vector.broadcast %14 : vector<16x1xf32> to vector<16x32xf32>
    %16 = arith.mulf %6, %15 : vector<16x32xf32>
    %c0_5 = arith.constant 0 : index
    %c0_6 = arith.constant 0 : index
    %17 = vector.load %arg2[%c0_5, %c0_6] : memref<1x32xf32, #tpu.memory_space<vmem>>, vector<1x32xf32>
    %18 = vector.broadcast %17 : vector<1x32xf32> to vector<16x32xf32>
    %19 = arith.mulf %16, %18 : vector<16x32xf32>
    %c0_7 = arith.constant 0 : index
    %c0_8 = arith.constant 0 : index
    %20 = vector.load %arg3[%c0_7, %c0_8] : memref<1x32xf32, #tpu.memory_space<vmem>>, vector<1x32xf32>
    %21 = vector.broadcast %20 : vector<1x32xf32> to vector<16x32xf32>
    %22 = arith.addf %19, %21 : vector<16x32xf32>
    %c0_9 = arith.constant 0 : index
    %c0_10 = arith.constant 0 : index
    %23 = vector.load %arg4[%c0_9, %c0_10] : memref<16x32xf32, #tpu.memory_space<vmem>>, vector<16x32xf32>
    tpu.vector_store %arg4[%c0_9, %c0_10], %22 {strides = array<i32>} : memref<16x32xf32, #tpu.memory_space<vmem>>, vector<16x32xf32>,
    return
  }
  func.func @transform_0(%arg0: i32) -> (i32, i32) {
    %c0_i32 = arith.constant 0 : i32
    %c0_i32_0 = arith.constant 0 : i32
    return %arg0, %c0_i32 : i32, i32
  }
  func.func @transform_1(%arg0: i32) -> (i32, i32) {
    %c0_i32 = arith.constant 0 : i32
    %c0_i32_0 = arith.constant 0 : i32
    %c0_i32_1 = arith.constant 0 : i32
    return %c0_i32, %c0_i32_0 : i32, i32
  }
  func.func @transform_2(%arg0: i32) -> (i32, i32) {
    %c0_i32 = arith.constant 0 : i32
    %c0_i32_0 = arith.constant 0 : i32
    %c0_i32_1 = arith.constant 0 : i32
    return %c0_i32, %c0_i32_0 : i32, i32
  }
  func.func @transform_3(%arg0: i32) -> (i32, i32) {
    %c0_i32 = arith.constant 0 : i32
    %c0_i32_0 = arith.constant 0 : i32
    return %arg0, %c0_i32 : i32, i32
  }
}

module attributes {stable_mosaic.version = 11 : i64} {
  func.func @mlp_kernel(%arg0: i32, %arg1: memref<16x32xf32, #tpu.memory_space<vmem>>, %arg2: memref<32x32xf32, #tpu.memory_space<vmem>>, %arg3: memref<1x32xf32, #tpu.memory_space<vmem>>, %arg4: memref<32x32xf32, #tpu.memory_space<vmem>>, %arg5: memref<1x32xf32, #tpu.memory_space<vmem>>, %arg6: memref<16x32xf32, #tpu.memory_space<vmem>>) attributes {dimension_semantics = [#tpu.dimension_semantics<parallel>], iteration_bounds = array<i64: 1>, scalar_prefetch = 0 : i64, scratch_operands = 0 : i64, tpu.core_type = #tpu.core_type<tc>, window_params = [{transform_indices = @transform_0, window_bounds = array<i64: 16, 32>}, {pipeline_mode = #tpu.pipeline_mode<synchronous>, transform_indices = @transform_1, window_bounds = array<i64: 32, 32>}, {pipeline_mode = #tpu.pipeline_mode<synchronous>, transform_indices = @transform_2, window_bounds = array<i64: 1, 32>}, {pipeline_mode = #tpu.pipeline_mode<synchronous>, transform_indices = @transform_3, window_bounds = array<i64: 32, 32>}, {pipeline_mode = #tpu.pipeline_mode<synchronous>, transform_indices = @transform_4, window_bounds = array<i64: 1, 32>}, {transform_indices = @transform_5, window_bounds = array<i64: 16, 32>}]} {
    %c0 = arith.constant 0 : index
    %c0_0 = arith.constant 0 : index
    %0 = vector.load %arg1[%c0, %c0_0] : memref<16x32xf32, #tpu.memory_space<vmem>>, vector<16x32xf32>
    %c0_1 = arith.constant 0 : index
    %c0_2 = arith.constant 0 : index
    %1 = vector.load %arg2[%c0_1, %c0_2] : memref<32x32xf32, #tpu.memory_space<vmem>>, vector<32x32xf32>
    %cst = arith.constant dense<0.000000e+00> : vector<16x32xf32>
    %2 = tpu.matmul %0, %1, %cst {dimension_numbers = #tpu.dot_dimension_numbers<[1], [0], [0], [1], [0, 0, 1, 1], [], []>, precision = #tpu.contract_precision<fp32>} : vector<16x32xf32>, vector<32x32xf32>, vector<16x32xf32> -> vector<16x32xf32>
    %c0_3 = arith.constant 0 : index
    %c0_4 = arith.constant 0 : index
    %3 = vector.load %arg3[%c0_3, %c0_4] : memref<1x32xf32, #tpu.memory_space<vmem>>, vector<1x32xf32>
    %4 = vector.broadcast %3 : vector<1x32xf32> to vector<16x32xf32>
    %5 = arith.addf %2, %4 : vector<16x32xf32>
    %cst_5 = arith.constant 5.000000e-01 : f32
    %6 = vector.broadcast %cst_5 : f32 to vector<16x32xf32>
    %7 = arith.mulf %6, %5 : vector<16x32xf32>
    %cst_6 = arith.constant 4.471500e-02 : f32
    %8 = vector.broadcast %cst_6 : f32 to vector<16x32xf32>
    %9 = arith.mulf %8, %5 : vector<16x32xf32>
    %10 = arith.mulf %9, %5 : vector<16x32xf32>
    %11 = arith.mulf %10, %5 : vector<16x32xf32>
    %12 = arith.addf %5, %11 : vector<16x32xf32>
    %cst_7 = arith.constant 0.797884583 : f32
    %13 = vector.broadcast %cst_7 : f32 to vector<16x32xf32>
    %14 = arith.mulf %13, %12 : vector<16x32xf32>
    %15 = math.tanh %14 : vector<16x32xf32>
    %cst_8 = arith.constant 1.000000e+00 : f32
    %16 = vector.broadcast %cst_8 : f32 to vector<16x32xf32>
    %17 = arith.addf %16, %15 : vector<16x32xf32>
    %18 = arith.mulf %7, %17 : vector<16x32xf32>
    %c0_9 = arith.constant 0 : index
    %c0_10 = arith.constant 0 : index
    %19 = vector.load %arg4[%c0_9, %c0_10] : memref<32x32xf32, #tpu.memory_space<vmem>>, vector<32x32xf32>
    %cst_11 = arith.constant dense<0.000000e+00> : vector<16x32xf32>
    %20 = tpu.matmul %18, %19, %cst_11 {dimension_numbers = #tpu.dot_dimension_numbers<[1], [0], [0], [1], [0, 0, 1, 1], [], []>, precision = #tpu.contract_precision<fp32>} : vector<16x32xf32>, vector<32x32xf32>, vector<16x32xf32> -> vector<16x32xf32>
    %c0_12 = arith.constant 0 : index
    %c0_13 = arith.constant 0 : index
    %21 = vector.load %arg5[%c0_12, %c0_13] : memref<1x32xf32, #tpu.memory_space<vmem>>, vector<1x32xf32>
    %22 = vector.broadcast %21 : vector<1x32xf32> to vector<16x32xf32>
    %23 = arith.addf %20, %22 : vector<16x32xf32>
    %c0_14 = arith.constant 0 : index
    %c0_15 = arith.constant 0 : index
    %24 = vector.load %arg6[%c0_14, %c0_15] : memref<16x32xf32, #tpu.memory_space<vmem>>, vector<16x32xf32>
    tpu.vector_store %arg6[%c0_14, %c0_15], %23 {strides = array<i32>} : memref<16x32xf32, #tpu.memory_space<vmem>>, vector<16x32xf32>,
    return
  }
  func.func @transform_0(%arg0: i32) -> (i32, i32) {
    %c0_i32 = arith.constant 0 : i32
    %c0_i32_0 = arith.constant 0 : i32
    return %arg0, %c0_i32 : i32, i32
  }
  func.func @transform_1(%arg0: i32) -> (i32, i32) {
    %c0_i32 = arith.constant 0 : i32
    %c0_i32_0 = arith.constant 0 : i32
    %c0_i32_1 = arith.constant 0 : i32
    return %c0_i32, %c0_i32_0 : i32, i32
  }
  func.func @transform_2(%arg0: i32) -> (i32, i32) {
    %c0_i32 = arith.constant 0 : i32
    %c0_i32_0 = arith.constant 0 : i32
    %c0_i32_1 = arith.constant 0 : i32
    return %c0_i32, %c0_i32_0 : i32, i32
  }
  func.func @transform_3(%arg0: i32) -> (i32, i32) {
    %c0_i32 = arith.constant 0 : i32
    %c0_i32_0 = arith.constant 0 : i32
    %c0_i32_1 = arith.constant 0 : i32
    return %c0_i32, %c0_i32_0 : i32, i32
  }
  func.func @transform_4(%arg0: i32) -> (i32, i32) {
    %c0_i32 = arith.constant 0 : i32
    %c0_i32_0 = arith.constant 0 : i32
    %c0_i32_1 = arith.constant 0 : i32
    return %c0_i32, %c0_i32_0 : i32, i32
  }
  func.func @transform_5(%arg0: i32) -> (i32, i32) {
    %c0_i32 = arith.constant 0 : i32
    %c0_i32_0 = arith.constant 0 : i32
    return %arg0, %c0_i32 : i32, i32
  }
}

</mosaic_0001>

<llo_original>
// kernel: transformer_forward.13
$region0: #{transformer_forward.13}
  #allocation0 [shape = 'u32[]', space=smem, size = 0x4, offset = 0x4, fixed_abs, tag = 'smem constant byte address 0x4 - core index']
  #allocation1 [shape = 'u32[144,128]{1,0:T(1,128)}', space=vmem, size = 0x12000, scoped, tag = 'internal scratch']
  %s0 = inlined_call_operand.vmem [shape: f32[16,32], index: 0, kind: input, shape index: {}]
  %s1 = inlined_call_operand.vmem [shape: f32[1,32], index: 1, kind: input, shape index: {}]
  %s2 = inlined_call_operand.vmem [shape: f32[1,32], index: 2, kind: input, shape index: {}]
  %s3 = inlined_call_operand.vmem [shape: f32[16,32], index: 3, kind: output, shape index: {}]
  %s4 = sld [smem:[#allocation0]]
  $region22: #{transformer_forward.13} parent=0
    _
  %s6 = ssub.s32 1, %s4
  %s7 = scalar_select 0, %s6, %s4
  // Predicated region
  $region2: #{transformer_forward.13} parent=0 // pred_check
    _
  $region3: #{transformer_forward.13} parent=0 // pred_check_branch
    %9 = sbr.rel (0) target = $region5
  $region4: #{transformer_forward.13} parent=0 // pred_region
    _
  $region5: #{transformer_forward.13} parent=0 // pred_fallthru
    _
  // Predicated region
  $region6: #{transformer_forward.13} parent=0 // pred_check
    _
  $region7: #{transformer_forward.13} parent=0 // pred_check_branch
    %11 = sbr.rel (0) target = $region9
  $region8: #{transformer_forward.13} parent=0 // pred_region
    _
  $region9: #{transformer_forward.13} parent=0 // pred_fallthru
    _
  // Predicated region
  $region10: #{transformer_forward.13} parent=0 // pred_check
    _
  $region11: #{transformer_forward.13} parent=0 // pred_check_branch
    %13 = sbr.rel (0) target = $region13
  $region12: #{transformer_forward.13} parent=0 // pred_region
    _
  $region13: #{transformer_forward.13} parent=0 // pred_fallthru
    _
  %v14 = vld [vmem:[%s0] sm:$0xff]
  %v15 = vld [vmem:[%s0 + $0x8] sm:$0xff]
  %vm16 = vcmask 261120
  %v17 = vsel %vm16, %v14, 0.0
  %18 = vadd.xlane.f32.xlu0 %v17
  %v19 = vpop.xlane.xlu0 %18
  %v20 = vsel %vm16, %v15, 0.0
  %21 = vadd.xlane.f32.xlu0 %v20
  %v22 = vpop.xlane.xlu0 %21
  %v23 = vrcp.pop 32.0
  %v24 = vmul.f32 %v19, %v23
  %v25 = vmul.f32 %v22, %v23
  %v26 = vsub.f32 %v14, %v24
  %v27 = vsub.f32 %v15, %v25
  %v28 = vmul.f32 %v26, %v26
  %v29 = vmul.f32 %v27, %v27
  %v30 = vsel %vm16, %v28, 0.0
  %31 = vadd.xlane.f32.xlu0 %v30
  %v32 = vpop.xlane.xlu0 %31
  %v33 = vsel %vm16, %v29, 0.0
  %34 = vadd.xlane.f32.xlu0 %v33
  %v35 = vpop.xlane.xlu0 %34
  %v36 = vmul.f32 %v32, %v23
  %v37 = vmul.f32 %v35, %v23
  %v38 = vadd.f32 %v36, 1e-05
  %v39 = vadd.f32 %v37, 1e-05
  %v40 = vrsqrt.pop %v38
  %v41 = vrsqrt.pop %v39
  %v42 = vmul.f32 %v26, %v40
  %v43 = vmul.f32 %v27, %v41
  %v44 = vld [vmem:[%s1] sm:$0x1]
  %v46 = vlaneseq
  %v47 = vshrl.u32 %v46, 7
  %v48 = vsub.s32 0, %v47
  %v49 = vrot.slane %v44, %v48
  %v51 = vmul.f32 %v42, %v49
  %v52 = vmul.f32 %v43, %v49
  %v53 = vld [vmem:[%s2] sm:$0x1]
  %v55 = vlaneseq
  %v56 = vshrl.u32 %v55, 7
  %v57 = vsub.s32 0, %v56
  %v58 = vrot.slane %v53, %v57
  %v60 = vadd.f32 %v51, %v58
  %v61 = vadd.f32 %v52, %v58
  %62 = vst.msk [vmem:[%s3] sm:$0xff] %vm16, %v60
  %63 = vst.msk [vmem:[%s3 + $0x8] sm:$0xff] %vm16, %v61
  // Predicated region
  $region14: #{transformer_forward.13} parent=0 // pred_check
    _
  $region15: #{transformer_forward.13} parent=0 // pred_check_branch
    %65 = sbr.rel (0) target = $region17
  $region16: #{transformer_forward.13} parent=0 // pred_region
    _
  $region17: #{transformer_forward.13} parent=0 // pred_fallthru
    _
  // Predicated region
  $region18: #{transformer_forward.13} parent=0 // pred_check
    _
  $region19: #{transformer_forward.13} parent=0 // pred_check_branch
    %67 = sbr.rel (0) target = $region21
  $region20: #{transformer_forward.13} parent=0 // pred_region
    _
  $region21: #{transformer_forward.13} parent=0 // pred_fallthru
    _

// kernel: transformer_forward.16
$region0: #{transformer_forward.16}
  #allocation0 [shape = 'u32[]', space=smem, size = 0x4, offset = 0x4, fixed_abs, tag = 'smem constant byte address 0x4 - core index']
  #allocation1 [shape = 'u32[144,128]{1,0:T(1,128)}', space=vmem, size = 0x12000, scoped, tag = 'internal scratch']
  %s0 = inlined_call_operand.vmem [shape: f32[16,32], index: 0, kind: input, shape index: {}]
  %s1 = inlined_call_operand.vmem [shape: f32[32,32], index: 1, kind: input, shape index: {}]
  %s2 = inlined_call_operand.vmem [shape: f32[1,32], index: 2, kind: input, shape index: {}]
  %s3 = inlined_call_operand.vmem [shape: f32[16,32], index: 3, kind: output, shape index: {}]
  %s4 = sld [smem:[#allocation0]]
  $region22: #{transformer_forward.16} parent=0
    _
  %s6 = ssub.s32 1, %s4
  %s7 = scalar_select 0, %s6, %s4
  // Predicated region
  $region2: #{transformer_forward.16} parent=0 // pred_check
    _
  $region3: #{transformer_forward.16} parent=0 // pred_check_branch
    %9 = sbr.rel (0) target = $region5
  $region4: #{transformer_forward.16} parent=0 // pred_region
    _
  $region5: #{transformer_forward.16} parent=0 // pred_fallthru
    _
  // Predicated region
  $region6: #{transformer_forward.16} parent=0 // pred_check
    _
  $region7: #{transformer_forward.16} parent=0 // pred_check_branch
    %11 = sbr.rel (0) target = $region9
  $region8: #{transformer_forward.16} parent=0 // pred_region
    _
  $region9: #{transformer_forward.16} parent=0 // pred_fallthru
    _
  // Predicated region
  $region10: #{transformer_forward.16} parent=0 // pred_check
    _
  $region11: #{transformer_forward.16} parent=0 // pred_check_branch
    %13 = sbr.rel (0) target = $region13
  $region12: #{transformer_forward.16} parent=0 // pred_region
    _
  $region13: #{transformer_forward.16} parent=0 // pred_fallthru
    _
  %v14 = vld [vmem:[%s0] sm:$0xff]
  %v15 = vld [vmem:[%s0 + $0x8] sm:$0xff]
  %v16 = vld [vmem:[%s1] sm:$0xff]
  %v17 = vld [vmem:[%s1 + $0x8] sm:$0xff]
  %v18 = vld [vmem:[%s1 + $0x10] sm:$0xff]
  %v19 = vld [vmem:[%s1 + $0x18] sm:$0xff]
  %v20 = vld [vmem:[%s2] sm:$0x1]
  %v22 = vlaneseq
  %v23 = vshrl.u32 %v22, 7
  %v24 = vsub.s32 0, %v23
  %v25 = vrot.slane %v20, %v24
  %vm27 = vcmask 261120
  %v29 = vsel %vm27, %v14, 0
  %v32 = vsel %vm27, %v15, 0
  %34 = vmatprep.subr.mxu0 0.0
  %v35 = vand.u32 %v16, 4294901760
  %36 = vmatpush1.msra.mxu0 %v35
  %37 = vmatprep.subr.mxu0 0.0
  %v38 = vand.u32 %v17, 4294901760
  %39 = vmatpush1.msra.mxu0 %v38
  %40 = vmatprep.subr.mxu0 0.0
  %v41 = vand.u32 %v18, 4294901760
  %42 = vmatpush1.msra.mxu0 %v41
  %43 = vmatprep.subr.mxu0 0.0
  %v44 = vand.u32 %v19, 4294901760
  %45 = vmatpush1.msra.mxu0 %v44
  %46 = vmatprep.subr.mxu0 0.0
  %47 = vmatpush1.msra.mxu0 0.0
  %48 = vmatprep.subr.mxu0 0.0
  %49 = vmatpush1.msra.mxu0 0.0
  %50 = vmatprep.subr.mxu0 0.0
  %51 = vmatpush1.msra.mxu0 0.0
  %52 = vmatprep.subr.mxu0 0.0
  %53 = vmatpush1.msra.mxu0 0.0
  %54 = vmatprep.subr.mxu0 0.0
  %55 = vmatpush1.msra.mxu0 0.0
  %56 = vmatprep.subr.mxu0 0.0
  %57 = vmatpush1.msra.mxu0 0.0
  %58 = vmatprep.subr.mxu0 0.0
  %59 = vmatpush1.msra.mxu0 0.0
  %60 = vmatprep.subr.mxu0 0.0
  %61 = vmatpush1.msra.mxu0 0.0
  %62 = vmatprep.subr.mxu0 0.0
  %63 = vmatpush1.msra.mxu0 0.0
  %64 = vmatprep.subr.mxu0 0.0
  %65 = vmatpush1.msra.mxu0 0.0
  %66 = vmatprep.subr.mxu0 0.0
  %67 = vmatpush1.msra.mxu0 0.0
  %68 = vmatprep.subr.mxu0 0.0
  %69 = vmatpush1.msra.mxu0 0.0
  %70 = vmatprep.subr.mxu0 0.0
  %71 = vmatpush1.msra.mxu0 0.0
  %72 = vmatprep.subr.mxu0 0.0
  %73 = vmatpush1.msra.mxu0 0.0
  %74 = vmatprep.subr.mxu0 0.0
  %75 = vmatpush1.msra.mxu0 0.0
  %76 = vmatprep.subr.mxu0 0.0
  %77 = vmatpush1.msra.mxu0 0.0
  %78 = vmatprep.subr.mxu0 0.0
  %79 = vmatpush1.msra.mxu0 0.0
  %80 = vmatprep.subr.mxu0 0.0
  %81 = vmatpush1.msra.mxu0 0.0
  %82 = vmatprep.subr.mxu0 0.0
  %83 = vmatpush1.msra.mxu0 0.0
  %84 = vmatprep.subr.mxu0 0.0
  %85 = vmatpush1.msra.mxu0 0.0
  %86 = vmatprep.subr.mxu0 0.0
  %87 = vmatpush1.msra.mxu0 0.0
  %88 = vmatprep.subr.mxu0 0.0
  %89 = vmatpush1.msra.mxu0 0.0
  %90 = vmatprep.subr.mxu0 0.0
  %91 = vmatpush1.msra.mxu0 0.0
  %92 = vmatprep.subr.mxu0 0.0
  %93 = vmatpush1.msra.mxu0 0.0
  %94 = vmatprep.subr.mxu0 0.0
  %95 = vmatpush1.msra.mxu0 0.0
  %96 = vmatprep.subr.mxu0 0.0
  %97 = vmatpush1.msra.mxu0 0.0
  %98 = vmatprep.subr.mxu0 0.0
  %99 = vmatpush1.msra.mxu0 0.0
  %100 = vmatprep.subr.mxu0 0.0
  %101 = vmatpush1.msra.mxu0 0.0
  %102 = vmatprep.mubr.f32.mxu0 0.0
  %v103 = vand.u32 %v29, 4294901760
  %v104 = vsub.f32 %v29, %v103
  %v105 = vand.u32 %v104, 4294901760
  %v106 = vsub.f32 %v104, %v105
  %v107 = vand.u32 %v106, 4294901760
  %108 = vmatmul.mubr.f32.gmra.mrb[0].mxu0 %v107
  %v109 = vpop.f32.mrb[0].mxu0
  %v110 = vadd.f32 %v25, %v109
  %v111 = vpop.f32.mrb[0].mxu0
  %112 = vmatprep.mubr.f32.mxu0 0.0
  %v113 = vand.u32 %v32, 4294901760
  %v114 = vsub.f32 %v32, %v113
  %v115 = vand.u32 %v114, 4294901760
  %v116 = vsub.f32 %v114, %v115
  %v117 = vand.u32 %v116, 4294901760
  %118 = vmatmul.mubr.f32.gmra.mrb[0].mxu0 %v117
  %v119 = vpop.f32.mrb[0].mxu0
  %v120 = vadd.f32 %v25, %v119
  %v121 = vpop.f32.mrb[0].mxu0
  %122 = vdwg.mxu0
  %123 = vmatprep.subr.mxu0 0.0
  %v124 = vand.u32 %v16, 4294901760
  %v125 = vsub.f32 %v16, %v124
  %v126 = vand.u32 %v125, 4294901760
  %v127 = vsub.f32 %v125, %v126
  %v128 = vand.u32 %v127, 4294901760
  %129 = vmatpush1.msra.mxu0 %v128
  %130 = vmatprep.subr.mxu0 0.0
  %v131 = vand.u32 %v17, 4294901760
  %v132 = vsub.f32 %v17, %v131
  %v133 = vand.u32 %v132, 4294901760
  %v134 = vsub.f32 %v132, %v133
  %v135 = vand.u32 %v134, 4294901760
  %136 = vmatpush1.msra.mxu0 %v135
  %137 = vmatprep.subr.mxu0 0.0
  %v138 = vand.u32 %v18, 4294901760
  %v139 = vsub.f32 %v18, %v138
  %v140 = vand.u32 %v139, 4294901760
  %v141 = vsub.f32 %v139, %v140
  %v142 = vand.u32 %v141, 4294901760
  %143 = vmatpush1.msra.mxu0 %v142
  %144 = vmatprep.subr.mxu0 0.0
  %v145 = vand.u32 %v19, 4294901760
  %v146 = vsub.f32 %v19, %v145
  %v147 = vand.u32 %v146, 4294901760
  %v148 = vsub.f32 %v146, %v147
  %v149 = vand.u32 %v148, 4294901760
  %150 = vmatpush1.msra.mxu0 %v149
  %151 = vmatprep.subr.mxu0 0.0
  %152 = vmatpush1.msra.mxu0 0.0
  %153 = vmatprep.subr.mxu0 0.0
  %154 = vmatpush1.msra.mxu0 0.0
  %155 = vmatprep.subr.mxu0 0.0
  %156 = vmatpush1.msra.mxu0 0.0
  %157 = vmatprep.subr.mxu0 0.0
  %158 = vmatpush1.msra.mxu0 0.0
  %159 = vmatprep.subr.mxu0 0.0
  %160 = vmatpush1.msra.mxu0 0.0
  %161 = vmatprep.subr.mxu0 0.0
  %162 = vmatpush1.msra.mxu0 0.0
  %163 = vmatprep.subr.mxu0 0.0
  %164 = vmatpush1.msra.mxu0 0.0
  %165 = vmatprep.subr.mxu0 0.0
  %166 = vmatpush1.msra.mxu0 0.0
  %167 = vmatprep.subr.mxu0 0.0
  %168 = vmatpush1.msra.mxu0 0.0
  %169 = vmatprep.subr.mxu0 0.0
  %170 = vmatpush1.msra.mxu0 0.0
  %171 = vmatprep.subr.mxu0 0.0
  %172 = vmatpush1.msra.mxu0 0.0
  %173 = vmatprep.subr.mxu0 0.0
  %174 = vmatpush1.msra.mxu0 0.0
  %175 = vmatprep.subr.mxu0 0.0
  %176 = vmatpush1.msra.mxu0 0.0
  %177 = vmatprep.subr.mxu0 0.0
  %178 = vmatpush1.msra.mxu0 0.0
  %179 = vmatprep.subr.mxu0 0.0
  %180 = vmatpush1.msra.mxu0 0.0
  %181 = vmatprep.subr.mxu0 0.0
  %182 = vmatpush1.msra.mxu0 0.0
  %183 = vmatprep.subr.mxu0 0.0
  %184 = vmatpush1.msra.mxu0 0.0
  %185 = vmatprep.subr.mxu0 0.0
  %186 = vmatpush1.msra.mxu0 0.0
  %187 = vmatprep.subr.mxu0 0.0
  %188 = vmatpush1.msra.mxu0 0.0
  %189 = vmatprep.subr.mxu0 0.0
  %190 = vmatpush1.msra.mxu0 0.0
  %191 = vmatprep.subr.mxu0 0.0
  %192 = vmatpush1.msra.mxu0 0.0
  %193 = vmatprep.subr.mxu0 0.0
  %194 = vmatpush1.msra.mxu0 0.0
  %195 = vmatprep.subr.mxu0 0.0
  %196 = vmatpush1.msra.mxu0 0.0
  %197 = vmatprep.subr.mxu0 0.0
  %198 = vmatpush1.msra.mxu0 0.0
  %199 = vmatprep.subr.mxu0 0.0
  %200 = vmatpush1.msra.mxu0 0.0
  %201 = vmatprep.subr.mxu0 0.0
  %202 = vmatpush1.msra.mxu0 0.0
  %203 = vmatprep.subr.mxu0 0.0
  %204 = vmatpush1.msra.mxu0 0.0
  %205 = vmatprep.subr.mxu0 0.0
  %206 = vmatpush1.msra.mxu0 0.0
  %207 = vmatprep.mubr.f32.mxu0 0.0
  %v208 = vand.u32 %v29, 4294901760
  %209 = vmatmul.mubr.f32.gmra.mrb[0].mxu0 %v208
  %v210 = vpop.f32.mrb[0].mxu0
  %v211 = vadd.f32 %v110, %v210
  %v212 = vpop.f32.mrb[0].mxu0
  %213 = vmatprep.mubr.f32.mxu0 0.0
  %v214 = vand.u32 %v32, 4294901760
  %215 = vmatmul.mubr.f32.gmra.mrb[0].mxu0 %v214
  %v216 = vpop.f32.mrb[0].mxu0
  %v217 = vadd.f32 %v120, %v216
  %v218 = vpop.f32.mrb[0].mxu0
  %219 = vdwg.mxu0
  %220 = vmatprep.subr.mxu0 0.0
  %v221 = vand.u32 %v16, 4294901760
  %v222 = vsub.f32 %v16, %v221
  %223 = vmatpush1.msra.mxu0 %v222
  %224 = vmatprep.subr.mxu0 0.0
  %v225 = vand.u32 %v17, 4294901760
  %v226 = vsub.f32 %v17, %v225
  %227 = vmatpush1.msra.mxu0 %v226
  %228 = vmatprep.subr.mxu0 0.0
  %v229 = vand.u32 %v18, 4294901760
  %v230 = vsub.f32 %v18, %v229
  %231 = vmatpush1.msra.mxu0 %v230
  %232 = vmatprep.subr.mxu0 0.0
  %v233 = vand.u32 %v19, 4294901760
  %v234 = vsub.f32 %v19, %v233
  %235 = vmatpush1.msra.mxu0 %v234
  %236 = vmatprep.subr.mxu0 0.0
  %237 = vmatpush1.msra.mxu0 0.0
  %238 = vmatprep.subr.mxu0 0.0
  %239 = vmatpush1.msra.mxu0 0.0
  %240 = vmatprep.subr.mxu0 0.0
  %241 = vmatpush1.msra.mxu0 0.0
  %242 = vmatprep.subr.mxu0 0.0
  %243 = vmatpush1.msra.mxu0 0.0
  %244 = vmatprep.subr.mxu0 0.0
  %245 = vmatpush1.msra.mxu0 0.0
  %246 = vmatprep.subr.mxu0 0.0
  %247 = vmatpush1.msra.mxu0 0.0
  %248 = vmatprep.subr.mxu0 0.0
  %249 = vmatpush1.msra.mxu0 0.0
  %250 = vmatprep.subr.mxu0 0.0
  %251 = vmatpush1.msra.mxu0 0.0
  %252 = vmatprep.subr.mxu0 0.0
  %253 = vmatpush1.msra.mxu0 0.0
  %254 = vmatprep.subr.mxu0 0.0
  %255 = vmatpush1.msra.mxu0 0.0
  %256 = vmatprep.subr.mxu0 0.0
  %257 = vmatpush1.msra.mxu0 0.0
  %258 = vmatprep.subr.mxu0 0.0
  %259 = vmatpush1.msra.mxu0 0.0
  %260 = vmatprep.subr.mxu0 0.0
  %261 = vmatpush1.msra.mxu0 0.0
  %262 = vmatprep.subr.mxu0 0.0
  %263 = vmatpush1.msra.mxu0 0.0
  %264 = vmatprep.subr.mxu0 0.0
  %265 = vmatpush1.msra.mxu0 0.0
  %266 = vmatprep.subr.mxu0 0.0
  %267 = vmatpush1.msra.mxu0 0.0
  %268 = vmatprep.subr.mxu0 0.0
  %269 = vmatpush1.msra.mxu0 0.0
  %270 = vmatprep.subr.mxu0 0.0
  %271 = vmatpush1.msra.mxu0 0.0
  %272 = vmatprep.subr.mxu0 0.0
  %273 = vmatpush1.msra.mxu0 0.0
  %274 = vmatprep.subr.mxu0 0.0
  %275 = vmatpush1.msra.mxu0 0.0
  %276 = vmatprep.subr.mxu0 0.0
  %277 = vmatpush1.msra.mxu0 0.0
  %278 = vmatprep.subr.mxu0 0.0
  %279 = vmatpush1.msra.mxu0 0.0
  %280 = vmatprep.subr.mxu0 0.0
  %281 = vmatpush1.msra.mxu0 0.0
  %282 = vmatprep.subr.mxu0 0.0
  %283 = vmatpush1.msra.mxu0 0.0
  %284 = vmatprep.subr.mxu0 0.0
  %285 = vmatpush1.msra.mxu0 0.0
  %286 = vmatprep.subr.mxu0 0.0
  %287 = vmatpush1.msra.mxu0 0.0
  %288 = vmatprep.subr.mxu0 0.0
  %289 = vmatpush1.msra.mxu0 0.0
  %290 = vmatprep.subr.mxu0 0.0
  %291 = vmatpush1.msra.mxu0 0.0
  %292 = vmatprep.mubr.f32.mxu0 0.0
  %v293 = vand.u32 %v29, 4294901760
  %v294 = vsub.f32 %v29, %v293
  %295 = vmatmul.mubr.f32.gmra.mrb[0].mxu0 %v294
  %v296 = vpop.f32.mrb[0].mxu0
  %v297 = vadd.f32 %v211, %v296
  %v298 = vpop.f32.mrb[0].mxu0
  %299 = vmatprep.mubr.f32.mxu0 0.0
  %v300 = vand.u32 %v32, 4294901760
  %v301 = vsub.f32 %v32, %v300
  %302 = vmatmul.mubr.f32.gmra.mrb[0].mxu0 %v301
  %v303 = vpop.f32.mrb[0].mxu0
  %v304 = vadd.f32 %v217, %v303
  %v305 = vpop.f32.mrb[0].mxu0
  %306 = vdwg.mxu0
  %307 = vmatprep.subr.mxu0 0.0
  %v308 = vand.u32 %v16, 4294901760
  %309 = vmatpush1.msra.mxu0 %v308
  %310 = vmatprep.subr.mxu0 0.0
  %v311 = vand.u32 %v17, 4294901760
  %312 = vmatpush1.msra.mxu0 %v311
  %313 = vmatprep.subr.mxu0 0.0
  %v314 = vand.u32 %v18, 4294901760
  %315 = vmatpush1.msra.mxu0 %v314
  %316 = vmatprep.subr.mxu0 0.0
  %v317 = vand.u32 %v19, 4294901760
  %318 = vmatpush1.msra.mxu0 %v317
  %319 = vmatprep.subr.mxu0 0.0
  %320 = vmatpush1.msra.mxu0 0.0
  %321 = vmatprep.subr.mxu0 0.0
  %322 = vmatpush1.msra.mxu0 0.0
  %323 = vmatprep.subr.mxu0 0.0
  %324 = vmatpush1.msra.mxu0 0.0
  %325 = vmatprep.subr.mxu0 0.0
  %326 = vmatpush1.msra.mxu0 0.0
  %327 = vmatprep.subr.mxu0 0.0
  %328 = vmatpush1.msra.mxu0 0.0
  %329 = vmatprep.subr.mxu0 0.0
  %330 = vmatpush1.msra.mxu0 0.0
  %331 = vmatprep.subr.mxu0 0.0
  %332 = vmatpush1.msra.mxu0 0.0
  %333 = vmatprep.subr.mxu0 0.0
  %334 = vmatpush1.msra.mxu0 0.0
  %335 = vmatprep.subr.mxu0 0.0
  %336 = vmatpush1.msra.mxu0 0.0
  %337 = vmatprep.subr.mxu0 0.0
  %338 = vmatpush1.msra.mxu0 0.0
  %339 = vmatprep.subr.mxu0 0.0
  %340 = vmatpush1.msra.mxu0 0.0
  %341 = vmatprep.subr.mxu0 0.0
  %342 = vmatpush1.msra.mxu0 0.0
  %343 = vmatprep.subr.mxu0 0.0
  %344 = vmatpush1.msra.mxu0 0.0
  %345 = vmatprep.subr.mxu0 0.0
  %346 = vmatpush1.msra.mxu0 0.0
  %347 = vmatprep.subr.mxu0 0.0
  %348 = vmatpush1.msra.mxu0 0.0
  %349 = vmatprep.subr.mxu0 0.0
  %350 = vmatpush1.msra.mxu0 0.0
  %351 = vmatprep.subr.mxu0 0.0
  %352 = vmatpush1.msra.mxu0 0.0
  %353 = vmatprep.subr.mxu0 0.0
  %354 = vmatpush1.msra.mxu0 0.0
  %355 = vmatprep.subr.mxu0 0.0
  %356 = vmatpush1.msra.mxu0 0.0
  %357 = vmatprep.subr.mxu0 0.0
  %358 = vmatpush1.msra.mxu0 0.0
  %359 = vmatprep.subr.mxu0 0.0
  %360 = vmatpush1.msra.mxu0 0.0
  %361 = vmatprep.subr.mxu0 0.0
  %362 = vmatpush1.msra.mxu0 0.0
  %363 = vmatprep.subr.mxu0 0.0
  %364 = vmatpush1.msra.mxu0 0.0
  %365 = vmatprep.subr.mxu0 0.0
  %366 = vmatpush1.msra.mxu0 0.0
  %367 = vmatprep.subr.mxu0 0.0
  %368 = vmatpush1.msra.mxu0 0.0
  %369 = vmatprep.subr.mxu0 0.0
  %370 = vmatpush1.msra.mxu0 0.0
  %371 = vmatprep.subr.mxu0 0.0
  %372 = vmatpush1.msra.mxu0 0.0
  %373 = vmatprep.subr.mxu0 0.0
  %374 = vmatpush1.msra.mxu0 0.0
  %375 = vmatprep.mubr.f32.mxu0 0.0
  %v376 = vand.u32 %v29, 4294901760
  %v377 = vsub.f32 %v29, %v376
  %v378 = vand.u32 %v377, 4294901760
  %379 = vmatmul.mubr.f32.gmra.mrb[0].mxu0 %v378
  %v380 = vpop.f32.mrb[0].mxu0
  %v381 = vadd.f32 %v297, %v380
  %v382 = vpop.f32.mrb[0].mxu0
  %383 = vmatprep.mubr.f32.mxu0 0.0
  %v384 = vand.u32 %v32, 4294901760
  %v385 = vsub.f32 %v32, %v384
  %v386 = vand.u32 %v385, 4294901760
  %387 = vmatmul.mubr.f32.gmra.mrb[0].mxu0 %v386
  %v388 = vpop.f32.mrb[0].mxu0
  %v389 = vadd.f32 %v304, %v388
  %v390 = vpop.f32.mrb[0].mxu0
  %391 = vdwg.mxu0
  %392 = vmatprep.subr.mxu0 0.0
  %v393 = vand.u32 %v16, 4294901760
  %v394 = vsub.f32 %v16, %v393
  %v395 = vand.u32 %v394, 4294901760
  %396 = vmatpush1.msra.mxu0 %v395
  %397 = vmatprep.subr.mxu0 0.0
  %v398 = vand.u32 %v17, 4294901760
  %v399 = vsub.f32 %v17, %v398
  %v400 = vand.u32 %v399, 4294901760
  %401 = vmatpush1.msra.mxu0 %v400
  %402 = vmatprep.subr.mxu0 0.0
  %v403 = vand.u32 %v18, 4294901760
  %v404 = vsub.f32 %v18, %v403
  %v405 = vand.u32 %v404, 4294901760
  %406 = vmatpush1.msra.mxu0 %v405
  %407 = vmatprep.subr.mxu0 0.0
  %v408 = vand.u32 %v19, 4294901760
  %v409 = vsub.f32 %v19, %v408
  %v410 = vand.u32 %v409, 4294901760
  %411 = vmatpush1.msra.mxu0 %v410
  %412 = vmatprep.subr.mxu0 0.0
  %413 = vmatpush1.msra.mxu0 0.0
  %414 = vmatprep.subr.mxu0 0.0
  %415 = vmatpush1.msra.mxu0 0.0
  %416 = vmatprep.subr.mxu0 0.0
  %417 = vmatpush1.msra.mxu0 0.0
  %418 = vmatprep.subr.mxu0 0.0
  %419 = vmatpush1.msra.mxu0 0.0
  %420 = vmatprep.subr.mxu0 0.0
  %421 = vmatpush1.msra.mxu0 0.0
  %422 = vmatprep.subr.mxu0 0.0
  %423 = vmatpush1.msra.mxu0 0.0
  %424 = vmatprep.subr.mxu0 0.0
  %425 = vmatpush1.msra.mxu0 0.0
  %426 = vmatprep.subr.mxu0 0.0
  %427 = vmatpush1.msra.mxu0 0.0
  %428 = vmatprep.subr.mxu0 0.0
  %429 = vmatpush1.msra.mxu0 0.0
  %430 = vmatprep.subr.mxu0 0.0
  %431 = vmatpush1.msra.mxu0 0.0
  %432 = vmatprep.subr.mxu0 0.0
  %433 = vmatpush1.msra.mxu0 0.0
  %434 = vmatprep.subr.mxu0 0.0
  %435 = vmatpush1.msra.mxu0 0.0
  %436 = vmatprep.subr.mxu0 0.0
  %437 = vmatpush1.msra.mxu0 0.0
  %438 = vmatprep.subr.mxu0 0.0
  %439 = vmatpush1.msra.mxu0 0.0
  %440 = vmatprep.subr.mxu0 0.0
  %441 = vmatpush1.msra.mxu0 0.0
  %442 = vmatprep.subr.mxu0 0.0
  %443 = vmatpush1.msra.mxu0 0.0
  %444 = vmatprep.subr.mxu0 0.0
  %445 = vmatpush1.msra.mxu0 0.0
  %446 = vmatprep.subr.mxu0 0.0
  %447 = vmatpush1.msra.mxu0 0.0
  %448 = vmatprep.subr.mxu0 0.0
  %449 = vmatpush1.msra.mxu0 0.0
  %450 = vmatprep.subr.mxu0 0.0
  %451 = vmatpush1.msra.mxu0 0.0
  %452 = vmatprep.subr.mxu0 0.0
  %453 = vmatpush1.msra.mxu0 0.0
  %454 = vmatprep.subr.mxu0 0.0
  %455 = vmatpush1.msra.mxu0 0.0
  %456 = vmatprep.subr.mxu0 0.0
  %457 = vmatpush1.msra.mxu0 0.0
  %458 = vmatprep.subr.mxu0 0.0
  %459 = vmatpush1.msra.mxu0 0.0
  %460 = vmatprep.subr.mxu0 0.0
  %461 = vmatpush1.msra.mxu0 0.0
  %462 = vmatprep.subr.mxu0 0.0
  %463 = vmatpush1.msra.mxu0 0.0
  %464 = vmatprep.subr.mxu0 0.0
  %465 = vmatpush1.msra.mxu0 0.0
  %466 = vmatprep.subr.mxu0 0.0
  %467 = vmatpush1.msra.mxu0 0.0
  %468 = vmatprep.mubr.f32.mxu0 0.0
  %v469 = vand.u32 %v29, 4294901760
  %470 = vmatmul.mubr.f32.gmra.mrb[0].mxu0 %v469
  %v471 = vpop.f32.mrb[0].mxu0
  %v472 = vadd.f32 %v381, %v471
  %v473 = vpop.f32.mrb[0].mxu0
  %474 = vmatprep.mubr.f32.mxu0 0.0
  %v475 = vand.u32 %v32, 4294901760
  %476 = vmatmul.mubr.f32.gmra.mrb[0].mxu0 %v475
  %v477 = vpop.f32.mrb[0].mxu0
  %v478 = vadd.f32 %v389, %v477
  %v479 = vpop.f32.mrb[0].mxu0
  %480 = vdwg.mxu0
  %481 = vmatprep.subr.mxu0 0.0
  %v482 = vand.u32 %v16, 4294901760
  %483 = vmatpush1.msra.mxu0 %v482
  %484 = vmatprep.subr.mxu0 0.0
  %v485 = vand.u32 %v17, 4294901760
  %486 = vmatpush1.msra.mxu0 %v485
  %487 = vmatprep.subr.mxu0 0.0
  %v488 = vand.u32 %v18, 4294901760
  %489 = vmatpush1.msra.mxu0 %v488
  %490 = vmatprep.subr.mxu0 0.0
  %v491 = vand.u32 %v19, 4294901760
  %492 = vmatpush1.msra.mxu0 %v491
  %493 = vmatprep.subr.mxu0 0.0
  %494 = vmatpush1.msra.mxu0 0.0
  %495 = vmatprep.subr.mxu0 0.0
  %496 = vmatpush1.msra.mxu0 0.0
  %497 = vmatprep.subr.mxu0 0.0
  %498 = vmatpush1.msra.mxu0 0.0
  %499 = vmatprep.subr.mxu0 0.0
  %500 = vmatpush1.msra.mxu0 0.0
  %501 = vmatprep.subr.mxu0 0.0
  %502 = vmatpush1.msra.mxu0 0.0
  %503 = vmatprep.subr.mxu0 0.0
  %504 = vmatpush1.msra.mxu0 0.0
  %505 = vmatprep.subr.mxu0 0.0
  %506 = vmatpush1.msra.mxu0 0.0
  %507 = vmatprep.subr.mxu0 0.0
  %508 = vmatpush1.msra.mxu0 0.0
  %509 = vmatprep.subr.mxu0 0.0
  %510 = vmatpush1.msra.mxu0 0.0
  %511 = vmatprep.subr.mxu0 0.0
  %512 = vmatpush1.msra.mxu0 0.0
  %513 = vmatprep.subr.mxu0 0.0
  %514 = vmatpush1.msra.mxu0 0.0
  %515 = vmatprep.subr.mxu0 0.0
  %516 = vmatpush1.msra.mxu0 0.0
  %517 = vmatprep.subr.mxu0 0.0
  %518 = vmatpush1.msra.mxu0 0.0
  %519 = vmatprep.subr.mxu0 0.0
  %520 = vmatpush1.msra.mxu0 0.0
  %521 = vmatprep.subr.mxu0 0.0
  %522 = vmatpush1.msra.mxu0 0.0
  %523 = vmatprep.subr.mxu0 0.0
  %524 = vmatpush1.msra.mxu0 0.0
  %525 = vmatprep.subr.mxu0 0.0
  %526 = vmatpush1.msra.mxu0 0.0
  %527 = vmatprep.subr.mxu0 0.0
  %528 = vmatpush1.msra.mxu0 0.0
  %529 = vmatprep.subr.mxu0 0.0
  %530 = vmatpush1.msra.mxu0 0.0
  %531 = vmatprep.subr.mxu0 0.0
  %532 = vmatpush1.msra.mxu0 0.0
  %533 = vmatprep.subr.mxu0 0.0
  %534 = vmatpush1.msra.mxu0 0.0
  %535 = vmatprep.subr.mxu0 0.0
  %536 = vmatpush1.msra.mxu0 0.0
  %537 = vmatprep.subr.mxu0 0.0
  %538 = vmatpush1.msra.mxu0 0.0
  %539 = vmatprep.subr.mxu0 0.0
  %540 = vmatpush1.msra.mxu0 0.0
  %541 = vmatprep.subr.mxu0 0.0
  %542 = vmatpush1.msra.mxu0 0.0
  %543 = vmatprep.subr.mxu0 0.0
  %544 = vmatpush1.msra.mxu0 0.0
  %545 = vmatprep.subr.mxu0 0.0
  %546 = vmatpush1.msra.mxu0 0.0
  %547 = vmatprep.subr.mxu0 0.0
  %548 = vmatpush1.msra.mxu0 0.0
  %549 = vmatprep.mubr.f32.mxu0 0.0
  %v550 = vand.u32 %v29, 4294901760
  %551 = vmatmul.mubr.f32.gmra.mrb[0].mxu0 %v550
  %v552 = vpop.f32.mrb[0].mxu0
  %v553 = vadd.f32 %v472, %v552
  %v554 = vpop.f32.mrb[0].mxu0
  %555 = vmatprep.mubr.f32.mxu0 0.0
  %v556 = vand.u32 %v32, 4294901760
  %557 = vmatmul.mubr.f32.gmra.mrb[0].mxu0 %v556
  %v558 = vpop.f32.mrb[0].mxu0
  %v559 = vadd.f32 %v478, %v558
  %v560 = vpop.f32.mrb[0].mxu0
  %561 = vdwg.mxu0
  %562 = vst.msk [vmem:[%s3] sm:$0xff] %vm27, %v553
  %563 = vst.msk [vmem:[%s3 + $0x8] sm:$0xff] %vm27, %v559
  // Predicated region
  $region14: #{transformer_forward.16} parent=0 // pred_check
    _
  $region15: #{transformer_forward.16} parent=0 // pred_check_branch
    %565 = sbr.rel (0) target = $region17
  $region16: #{transformer_forward.16} parent=0 // pred_region
    _
  $region17: #{transformer_forward.16} parent=0 // pred_fallthru
    _
  // Predicated region
  $region18: #{transformer_forward.16} parent=0 // pred_check
    _
  $region19: #{transformer_forward.16} parent=0 // pred_check_branch
    %567 = sbr.rel (0) target = $region21
  $region20: #{transformer_forward.16} parent=0 // pred_region
    _
  $region21: #{transformer_forward.16} parent=0 // pred_fallthru
    _

// kernel: transformer_forward.14
$region0: #{transformer_forward.14}
  #allocation0 [shape = 'u32[]', space=smem, size = 0x4, offset = 0x4, fixed_abs, tag = 'smem constant byte address 0x4 - core index']
  #allocation1 [shape = 'u32[144,128]{1,0:T(1,128)}', space=vmem, size = 0x12000, scoped, tag = 'internal scratch']
  %s0 = inlined_call_operand.vmem [shape: f32[16,32], index: 0, kind: input, shape index: {}]
  %s1 = inlined_call_operand.vmem [shape: f32[32,96], index: 1, kind: input, shape index: {}]
  %s2 = inlined_call_operand.vmem [shape: f32[1,96], index: 2, kind: input, shape index: {}]
  %s3 = inlined_call_operand.vmem [shape: f32[16,96], index: 3, kind: output, shape index: {}]
  %s4 = sld [smem:[#allocation0]]
  $region22: #{transformer_forward.14} parent=0
    _
  %s6 = ssub.s32 1, %s4
  %s7 = scalar_select 0, %s6, %s4
  // Predicated region
  $region2: #{transformer_forward.14} parent=0 // pred_check
    _
  $region3: #{transformer_forward.14} parent=0 // pred_check_branch
    %9 = sbr.rel (0) target = $region5
  $region4: #{transformer_forward.14} parent=0 // pred_region
    _
  $region5: #{transformer_forward.14} parent=0 // pred_fallthru
    _
  // Predicated region
  $region6: #{transformer_forward.14} parent=0 // pred_check
    _
  $region7: #{transformer_forward.14} parent=0 // pred_check_branch
    %11 = sbr.rel (0) target = $region9
  $region8: #{transformer_forward.14} parent=0 // pred_region
    _
  $region9: #{transformer_forward.14} parent=0 // pred_fallthru
    _
  // Predicated region
  $region10: #{transformer_forward.14} parent=0 // pred_check
    _
  $region11: #{transformer_forward.14} parent=0 // pred_check_branch
    %13 = sbr.rel (0) target = $region13
  $region12: #{transformer_forward.14} parent=0 // pred_region
    _
  $region13: #{transformer_forward.14} parent=0 // pred_fallthru
    _
  %v14 = vld [vmem:[%s0] sm:$0xff]
  %v15 = vld [vmem:[%s0 + $0x8] sm:$0xff]
  %v16 = vld [vmem:[%s1] sm:$0xff]
  %v17 = vld [vmem:[%s1 + $0x8] sm:$0xff]
  %v18 = vld [vmem:[%s1 + $0x10] sm:$0xff]
  %v19 = vld [vmem:[%s1 + $0x18] sm:$0xff]
  %v20 = vld [vmem:[%s2] sm:$0x1]
  %v22 = vlaneseq
  %v23 = vshrl.u32 %v22, 7
  %v24 = vsub.s32 0, %v23
  %v25 = vrot.slane %v20, %v24
  %vm27 = vcmask 261120
  %v29 = vsel %vm27, %v14, 0
  %v32 = vsel %vm27, %v15, 0
  %34 = vmatprep.subr.mxu0 0.0
  %v35 = vand.u32 %v16, 4294901760
  %36 = vmatpush1.msra.mxu0 %v35
  %37 = vmatprep.subr.mxu0 0.0
  %v38 = vand.u32 %v17, 4294901760
  %39 = vmatpush1.msra.mxu0 %v38
  %40 = vmatprep.subr.mxu0 0.0
  %v41 = vand.u32 %v18, 4294901760
  %42 = vmatpush1.msra.mxu0 %v41
  %43 = vmatprep.subr.mxu0 0.0
  %v44 = vand.u32 %v19, 4294901760
  %45 = vmatpush1.msra.mxu0 %v44
  %46 = vmatprep.subr.mxu0 0.0
  %47 = vmatpush1.msra.mxu0 0.0
  %48 = vmatprep.subr.mxu0 0.0
  %49 = vmatpush1.msra.mxu0 0.0
  %50 = vmatprep.subr.mxu0 0.0
  %51 = vmatpush1.msra.mxu0 0.0
  %52 = vmatprep.subr.mxu0 0.0
  %53 = vmatpush1.msra.mxu0 0.0
  %54 = vmatprep.subr.mxu0 0.0
  %55 = vmatpush1.msra.mxu0 0.0
  %56 = vmatprep.subr.mxu0 0.0
  %57 = vmatpush1.msra.mxu0 0.0
  %58 = vmatprep.subr.mxu0 0.0
  %59 = vmatpush1.msra.mxu0 0.0
  %60 = vmatprep.subr.mxu0 0.0
  %61 = vmatpush1.msra.mxu0 0.0
  %62 = vmatprep.subr.mxu0 0.0
  %63 = vmatpush1.msra.mxu0 0.0
  %64 = vmatprep.subr.mxu0 0.0
  %65 = vmatpush1.msra.mxu0 0.0
  %66 = vmatprep.subr.mxu0 0.0
  %67 = vmatpush1.msra.mxu0 0.0
  %68 = vmatprep.subr.mxu0 0.0
  %69 = vmatpush1.msra.mxu0 0.0
  %70 = vmatprep.subr.mxu0 0.0
  %71 = vmatpush1.msra.mxu0 0.0
  %72 = vmatprep.subr.mxu0 0.0
  %73 = vmatpush1.msra.mxu0 0.0
  %74 = vmatprep.subr.mxu0 0.0
  %75 = vmatpush1.msra.mxu0 0.0
  %76 = vmatprep.subr.mxu0 0.0
  %77 = vmatpush1.msra.mxu0 0.0
  %78 = vmatprep.subr.mxu0 0.0
  %79 = vmatpush1.msra.mxu0 0.0
  %80 = vmatprep.subr.mxu0 0.0
  %81 = vmatpush1.msra.mxu0 0.0
  %82 = vmatprep.subr.mxu0 0.0
  %83 = vmatpush1.msra.mxu0 0.0
  %84 = vmatprep.subr.mxu0 0.0
  %85 = vmatpush1.msra.mxu0 0.0
  %86 = vmatprep.subr.mxu0 0.0
  %87 = vmatpush1.msra.mxu0 0.0
  %88 = vmatprep.subr.mxu0 0.0
  %89 = vmatpush1.msra.mxu0 0.0
  %90 = vmatprep.subr.mxu0 0.0
  %91 = vmatpush1.msra.mxu0 0.0
  %92 = vmatprep.subr.mxu0 0.0
  %93 = vmatpush1.msra.mxu0 0.0
  %94 = vmatprep.subr.mxu0 0.0
  %95 = vmatpush1.msra.mxu0 0.0
  %96 = vmatprep.subr.mxu0 0.0
  %97 = vmatpush1.msra.mxu0 0.0
  %98 = vmatprep.subr.mxu0 0.0
  %99 = vmatpush1.msra.mxu0 0.0
  %100 = vmatprep.subr.mxu0 0.0
  %101 = vmatpush1.msra.mxu0 0.0
  %102 = vmatprep.mubr.f32.mxu0 0.0
  %v103 = vand.u32 %v29, 4294901760
  %v104 = vsub.f32 %v29, %v103
  %v105 = vand.u32 %v104, 4294901760
  %v106 = vsub.f32 %v104, %v105
  %v107 = vand.u32 %v106, 4294901760
  %108 = vmatmul.mubr.f32.gmra.mrb[0].mxu0 %v107
  %v109 = vpop.f32.mrb[0].mxu0
  %v110 = vadd.f32 %v25, %v109
  %v111 = vpop.f32.mrb[0].mxu0
  %112 = vmatprep.mubr.f32.mxu0 0.0
  %v113 = vand.u32 %v32, 4294901760
  %v114 = vsub.f32 %v32, %v113
  %v115 = vand.u32 %v114, 4294901760
  %v116 = vsub.f32 %v114, %v115
  %v117 = vand.u32 %v116, 4294901760
  %118 = vmatmul.mubr.f32.gmra.mrb[0].mxu0 %v117
  %v119 = vpop.f32.mrb[0].mxu0
  %v120 = vadd.f32 %v25, %v119
  %v121 = vpop.f32.mrb[0].mxu0
  %122 = vdwg.mxu0
  %123 = vmatprep.subr.mxu0 0.0
  %v124 = vand.u32 %v16, 4294901760
  %v125 = vsub.f32 %v16, %v124
  %v126 = vand.u32 %v125, 4294901760
  %v127 = vsub.f32 %v125, %v126
  %v128 = vand.u32 %v127, 4294901760
  %129 = vmatpush1.msra.mxu0 %v128
  %130 = vmatprep.subr.mxu0 0.0
  %v131 = vand.u32 %v17, 4294901760
  %v132 = vsub.f32 %v17, %v131
  %v133 = vand.u32 %v132, 4294901760
  %v134 = vsub.f32 %v132, %v133
  %v135 = vand.u32 %v134, 4294901760
  %136 = vmatpush1.msra.mxu0 %v135
  %137 = vmatprep.subr.mxu0 0.0
  %v138 = vand.u32 %v18, 4294901760
  %v139 = vsub.f32 %v18, %v138
  %v140 = vand.u32 %v139, 4294901760
  %v141 = vsub.f32 %v139, %v140
  %v142 = vand.u32 %v141, 4294901760
  %143 = vmatpush1.msra.mxu0 %v142
  %144 = vmatprep.subr.mxu0 0.0
  %v145 = vand.u32 %v19, 4294901760
  %v146 = vsub.f32 %v19, %v145
  %v147 = vand.u32 %v146, 4294901760
  %v148 = vsub.f32 %v146, %v147
  %v149 = vand.u32 %v148, 4294901760
  %150 = vmatpush1.msra.mxu0 %v149
  %151 = vmatprep.subr.mxu0 0.0
  %152 = vmatpush1.msra.mxu0 0.0
  %153 = vmatprep.subr.mxu0 0.0
  %154 = vmatpush1.msra.mxu0 0.0
  %155 = vmatprep.subr.mxu0 0.0
  %156 = vmatpush1.msra.mxu0 0.0
  %157 = vmatprep.subr.mxu0 0.0
  %158 = vmatpush1.msra.mxu0 0.0
  %159 = vmatprep.subr.mxu0 0.0
  %160 = vmatpush1.msra.mxu0 0.0
  %161 = vmatprep.subr.mxu0 0.0
  %162 = vmatpush1.msra.mxu0 0.0
  %163 = vmatprep.subr.mxu0 0.0
  %164 = vmatpush1.msra.mxu0 0.0
  %165 = vmatprep.subr.mxu0 0.0
  %166 = vmatpush1.msra.mxu0 0.0
  %167 = vmatprep.subr.mxu0 0.0
  %168 = vmatpush1.msra.mxu0 0.0
  %169 = vmatprep.subr.mxu0 0.0
  %170 = vmatpush1.msra.mxu0 0.0
  %171 = vmatprep.subr.mxu0 0.0
  %172 = vmatpush1.msra.mxu0 0.0
  %173 = vmatprep.subr.mxu0 0.0
  %174 = vmatpush1.msra.mxu0 0.0
  %175 = vmatprep.subr.mxu0 0.0
  %176 = vmatpush1.msra.mxu0 0.0
  %177 = vmatprep.subr.mxu0 0.0
  %178 = vmatpush1.msra.mxu0 0.0
  %179 = vmatprep.subr.mxu0 0.0
  %180 = vmatpush1.msra.mxu0 0.0
  %181 = vmatprep.subr.mxu0 0.0
  %182 = vmatpush1.msra.mxu0 0.0
  %183 = vmatprep.subr.mxu0 0.0
  %184 = vmatpush1.msra.mxu0 0.0
  %185 = vmatprep.subr.mxu0 0.0
  %186 = vmatpush1.msra.mxu0 0.0
  %187 = vmatprep.subr.mxu0 0.0
  %188 = vmatpush1.msra.mxu0 0.0
  %189 = vmatprep.subr.mxu0 0.0
  %190 = vmatpush1.msra.mxu0 0.0
  %191 = vmatprep.subr.mxu0 0.0
  %192 = vmatpush1.msra.mxu0 0.0
  %193 = vmatprep.subr.mxu0 0.0
  %194 = vmatpush1.msra.mxu0 0.0
  %195 = vmatprep.subr.mxu0 0.0
  %196 = vmatpush1.msra.mxu0 0.0
  %197 = vmatprep.subr.mxu0 0.0
  %198 = vmatpush1.msra.mxu0 0.0
  %199 = vmatprep.subr.mxu0 0.0
  %200 = vmatpush1.msra.mxu0 0.0
  %201 = vmatprep.subr.mxu0 0.0
  %202 = vmatpush1.msra.mxu0 0.0
  %203 = vmatprep.subr.mxu0 0.0
  %204 = vmatpush1.msra.mxu0 0.0
  %205 = vmatprep.subr.mxu0 0.0
  %206 = vmatpush1.msra.mxu0 0.0
  %207 = vmatprep.mubr.f32.mxu0 0.0
  %v208 = vand.u32 %v29, 4294901760
  %209 = vmatmul.mubr.f32.gmra.mrb[0].mxu0 %v208
  %v210 = vpop.f32.mrb[0].mxu0
  %v211 = vadd.f32 %v110, %v210
  %v212 = vpop.f32.mrb[0].mxu0
  %213 = vmatprep.mubr.f32.mxu0 0.0
  %v214 = vand.u32 %v32, 4294901760
  %215 = vmatmul.mubr.f32.gmra.mrb[0].mxu0 %v214
  %v216 = vpop.f32.mrb[0].mxu0
  %v217 = vadd.f32 %v120, %v216
  %v218 = vpop.f32.mrb[0].mxu0
  %219 = vdwg.mxu0
  %220 = vmatprep.subr.mxu0 0.0
  %v221 = vand.u32 %v16, 4294901760
  %v222 = vsub.f32 %v16, %v221
  %223 = vmatpush1.msra.mxu0 %v222
  %224 = vmatprep.subr.mxu0 0.0
  %v225 = vand.u32 %v17, 4294901760
  %v226 = vsub.f32 %v17, %v225
  %227 = vmatpush1.msra.mxu0 %v226
  %228 = vmatprep.subr.mxu0 0.0
  %v229 = vand.u32 %v18, 4294901760
  %v230 = vsub.f32 %v18, %v229
  %231 = vmatpush1.msra.mxu0 %v230
  %232 = vmatprep.subr.mxu0 0.0
  %v233 = vand.u32 %v19, 4294901760
  %v234 = vsub.f32 %v19, %v233
  %235 = vmatpush1.msra.mxu0 %v234
  %236 = vmatprep.subr.mxu0 0.0
  %237 = vmatpush1.msra.mxu0 0.0
  %238 = vmatprep.subr.mxu0 0.0
  %239 = vmatpush1.msra.mxu0 0.0
  %240 = vmatprep.subr.mxu0 0.0
  %241 = vmatpush1.msra.mxu0 0.0
  %242 = vmatprep.subr.mxu0 0.0
  %243 = vmatpush1.msra.mxu0 0.0
  %244 = vmatprep.subr.mxu0 0.0
  %245 = vmatpush1.msra.mxu0 0.0
  %246 = vmatprep.subr.mxu0 0.0
  %247 = vmatpush1.msra.mxu0 0.0
  %248 = vmatprep.subr.mxu0 0.0
  %249 = vmatpush1.msra.mxu0 0.0
  %250 = vmatprep.subr.mxu0 0.0
  %251 = vmatpush1.msra.mxu0 0.0
  %252 = vmatprep.subr.mxu0 0.0
  %253 = vmatpush1.msra.mxu0 0.0
  %254 = vmatprep.subr.mxu0 0.0
  %255 = vmatpush1.msra.mxu0 0.0
  %256 = vmatprep.subr.mxu0 0.0
  %257 = vmatpush1.msra.mxu0 0.0
  %258 = vmatprep.subr.mxu0 0.0
  %259 = vmatpush1.msra.mxu0 0.0
  %260 = vmatprep.subr.mxu0 0.0
  %261 = vmatpush1.msra.mxu0 0.0
  %262 = vmatprep.subr.mxu0 0.0
  %263 = vmatpush1.msra.mxu0 0.0
  %264 = vmatprep.subr.mxu0 0.0
  %265 = vmatpush1.msra.mxu0 0.0
  %266 = vmatprep.subr.mxu0 0.0
  %267 = vmatpush1.msra.mxu0 0.0
  %268 = vmatprep.subr.mxu0 0.0
  %269 = vmatpush1.msra.mxu0 0.0
  %270 = vmatprep.subr.mxu0 0.0
  %271 = vmatpush1.msra.mxu0 0.0
  %272 = vmatprep.subr.mxu0 0.0
  %273 = vmatpush1.msra.mxu0 0.0
  %274 = vmatprep.subr.mxu0 0.0
  %275 = vmatpush1.msra.mxu0 0.0
  %276 = vmatprep.subr.mxu0 0.0
  %277 = vmatpush1.msra.mxu0 0.0
  %278 = vmatprep.subr.mxu0 0.0
  %279 = vmatpush1.msra.mxu0 0.0
  %280 = vmatprep.subr.mxu0 0.0
  %281 = vmatpush1.msra.mxu0 0.0
  %282 = vmatprep.subr.mxu0 0.0
  %283 = vmatpush1.msra.mxu0 0.0
  %284 = vmatprep.subr.mxu0 0.0
  %285 = vmatpush1.msra.mxu0 0.0
  %286 = vmatprep.subr.mxu0 0.0
  %287 = vmatpush1.msra.mxu0 0.0
  %288 = vmatprep.subr.mxu0 0.0
  %289 = vmatpush1.msra.mxu0 0.0
  %290 = vmatprep.subr.mxu0 0.0
  %291 = vmatpush1.msra.mxu0 0.0
  %292 = vmatprep.mubr.f32.mxu0 0.0
  %v293 = vand.u32 %v29, 4294901760
  %v294 = vsub.f32 %v29, %v293
  %295 = vmatmul.mubr.f32.gmra.mrb[0].mxu0 %v294
  %v296 = vpop.f32.mrb[0].mxu0
  %v297 = vadd.f32 %v211, %v296
  %v298 = vpop.f32.mrb[0].mxu0
  %299 = vmatprep.mubr.f32.mxu0 0.0
  %v300 = vand.u32 %v32, 4294901760
  %v301 = vsub.f32 %v32, %v300
  %302 = vmatmul.mubr.f32.gmra.mrb[0].mxu0 %v301
  %v303 = vpop.f32.mrb[0].mxu0
  %v304 = vadd.f32 %v217, %v303
  %v305 = vpop.f32.mrb[0].mxu0
  %306 = vdwg.mxu0
  %307 = vmatprep.subr.mxu0 0.0
  %v308 = vand.u32 %v16, 4294901760
  %309 = vmatpush1.msra.mxu0 %v308
  %310 = vmatprep.subr.mxu0 0.0
  %v311 = vand.u32 %v17, 4294901760
  %312 = vmatpush1.msra.mxu0 %v311
  %313 = vmatprep.subr.mxu0 0.0
  %v314 = vand.u32 %v18, 4294901760
  %315 = vmatpush1.msra.mxu0 %v314
  %316 = vmatprep.subr.mxu0 0.0
  %v317 = vand.u32 %v19, 4294901760
  %318 = vmatpush1.msra.mxu0 %v317
  %319 = vmatprep.subr.mxu0 0.0
  %320 = vmatpush1.msra.mxu0 0.0
  %321 = vmatprep.subr.mxu0 0.0
  %322 = vmatpush1.msra.mxu0 0.0
  %323 = vmatprep.subr.mxu0 0.0
  %324 = vmatpush1.msra.mxu0 0.0
  %325 = vmatprep.subr.mxu0 0.0
  %326 = vmatpush1.msra.mxu0 0.0
  %327 = vmatprep.subr.mxu0 0.0
  %328 = vmatpush1.msra.mxu0 0.0
  %329 = vmatprep.subr.mxu0 0.0
  %330 = vmatpush1.msra.mxu0 0.0
  %331 = vmatprep.subr.mxu0 0.0
  %332 = vmatpush1.msra.mxu0 0.0
  %333 = vmatprep.subr.mxu0 0.0
  %334 = vmatpush1.msra.mxu0 0.0
  %335 = vmatprep.subr.mxu0 0.0
  %336 = vmatpush1.msra.mxu0 0.0
  %337 = vmatprep.subr.mxu0 0.0
  %338 = vmatpush1.msra.mxu0 0.0
  %339 = vmatprep.subr.mxu0 0.0
  %340 = vmatpush1.msra.mxu0 0.0
  %341 = vmatprep.subr.mxu0 0.0
  %342 = vmatpush1.msra.mxu0 0.0
  %343 = vmatprep.subr.mxu0 0.0
  %344 = vmatpush1.msra.mxu0 0.0
  %345 = vmatprep.subr.mxu0 0.0
  %346 = vmatpush1.msra.mxu0 0.0
  %347 = vmatprep.subr.mxu0 0.0
  %348 = vmatpush1.msra.mxu0 0.0
  %349 = vmatprep.subr.mxu0 0.0
  %350 = vmatpush1.msra.mxu0 0.0
  %351 = vmatprep.subr.mxu0 0.0
  %352 = vmatpush1.msra.mxu0 0.0
  %353 = vmatprep.subr.mxu0 0.0
  %354 = vmatpush1.msra.mxu0 0.0
  %355 = vmatprep.subr.mxu0 0.0
  %356 = vmatpush1.msra.mxu0 0.0
  %357 = vmatprep.subr.mxu0 0.0
  %358 = vmatpush1.msra.mxu0 0.0
  %359 = vmatprep.subr.mxu0 0.0
  %360 = vmatpush1.msra.mxu0 0.0
  %361 = vmatprep.subr.mxu0 0.0
  %362 = vmatpush1.msra.mxu0 0.0
  %363 = vmatprep.subr.mxu0 0.0
  %364 = vmatpush1.msra.mxu0 0.0
  %365 = vmatprep.subr.mxu0 0.0
  %366 = vmatpush1.msra.mxu0 0.0
  %367 = vmatprep.subr.mxu0 0.0
  %368 = vmatpush1.msra.mxu0 0.0
  %369 = vmatprep.subr.mxu0 0.0
  %370 = vmatpush1.msra.mxu0 0.0
  %371 = vmatprep.subr.mxu0 0.0
  %372 = vmatpush1.msra.mxu0 0.0
  %373 = vmatprep.subr.mxu0 0.0
  %374 = vmatpush1.msra.mxu0 0.0
  %375 = vmatprep.mubr.f32.mxu0 0.0
  %v376 = vand.u32 %v29, 4294901760
  %v377 = vsub.f32 %v29, %v376
  %v378 = vand.u32 %v377, 4294901760
  %379 = vmatmul.mubr.f32.gmra.mrb[0].mxu0 %v378
  %v380 = vpop.f32.mrb[0].mxu0
  %v381 = vadd.f32 %v297, %v380
  %v382 = vpop.f32.mrb[0].mxu0
  %383 = vmatprep.mubr.f32.mxu0 0.0
  %v384 = vand.u32 %v32, 4294901760
  %v385 = vsub.f32 %v32, %v384
  %v386 = vand.u32 %v385, 4294901760
  %387 = vmatmul.mubr.f32.gmra.mrb[0].mxu0 %v386
  %v388 = vpop.f32.mrb[0].mxu0
  %v389 = vadd.f32 %v304, %v388
  %v390 = vpop.f32.mrb[0].mxu0
  %391 = vdwg.mxu0
  %392 = vmatprep.subr.mxu0 0.0
  %v393 = vand.u32 %v16, 4294901760
  %v394 = vsub.f32 %v16, %v393
  %v395 = vand.u32 %v394, 4294901760
  %396 = vmatpush1.msra.mxu0 %v395
  %397 = vmatprep.subr.mxu0 0.0
  %v398 = vand.u32 %v17, 4294901760
  %v399 = vsub.f32 %v17, %v398
  %v400 = vand.u32 %v399, 4294901760
  %401 = vmatpush1.msra.mxu0 %v400
  %402 = vmatprep.subr.mxu0 0.0
  %v403 = vand.u32 %v18, 4294901760
  %v404 = vsub.f32 %v18, %v403
  %v405 = vand.u32 %v404, 4294901760
  %406 = vmatpush1.msra.mxu0 %v405
  %407 = vmatprep.subr.mxu0 0.0
  %v408 = vand.u32 %v19, 4294901760
  %v409 = vsub.f32 %v19, %v408
  %v410 = vand.u32 %v409, 4294901760
  %411 = vmatpush1.msra.mxu0 %v410
  %412 = vmatprep.subr.mxu0 0.0
  %413 = vmatpush1.msra.mxu0 0.0
  %414 = vmatprep.subr.mxu0 0.0
  %415 = vmatpush1.msra.mxu0 0.0
  %416 = vmatprep.subr.mxu0 0.0
  %417 = vmatpush1.msra.mxu0 0.0
  %418 = vmatprep.subr.mxu0 0.0
  %419 = vmatpush1.msra.mxu0 0.0
  %420 = vmatprep.subr.mxu0 0.0
  %421 = vmatpush1.msra.mxu0 0.0
  %422 = vmatprep.subr.mxu0 0.0
  %423 = vmatpush1.msra.mxu0 0.0
  %424 = vmatprep.subr.mxu0 0.0
  %425 = vmatpush1.msra.mxu0 0.0
  %426 = vmatprep.subr.mxu0 0.0
  %427 = vmatpush1.msra.mxu0 0.0
  %428 = vmatprep.subr.mxu0 0.0
  %429 = vmatpush1.msra.mxu0 0.0
  %430 = vmatprep.subr.mxu0 0.0
  %431 = vmatpush1.msra.mxu0 0.0
  %432 = vmatprep.subr.mxu0 0.0
  %433 = vmatpush1.msra.mxu0 0.0
  %434 = vmatprep.subr.mxu0 0.0
  %435 = vmatpush1.msra.mxu0 0.0
  %436 = vmatprep.subr.mxu0 0.0
  %437 = vmatpush1.msra.mxu0 0.0
  %438 = vmatprep.subr.mxu0 0.0
  %439 = vmatpush1.msra.mxu0 0.0
  %440 = vmatprep.subr.mxu0 0.0
  %441 = vmatpush1.msra.mxu0 0.0
  %442 = vmatprep.subr.mxu0 0.0
  %443 = vmatpush1.msra.mxu0 0.0
  %444 = vmatprep.subr.mxu0 0.0
  %445 = vmatpush1.msra.mxu0 0.0
  %446 = vmatprep.subr.mxu0 0.0
  %447 = vmatpush1.msra.mxu0 0.0
  %448 = vmatprep.subr.mxu0 0.0
  %449 = vmatpush1.msra.mxu0 0.0
  %450 = vmatprep.subr.mxu0 0.0
  %451 = vmatpush1.msra.mxu0 0.0
  %452 = vmatprep.subr.mxu0 0.0
  %453 = vmatpush1.msra.mxu0 0.0
  %454 = vmatprep.subr.mxu0 0.0
  %455 = vmatpush1.msra.mxu0 0.0
  %456 = vmatprep.subr.mxu0 0.0
  %457 = vmatpush1.msra.mxu0 0.0
  %458 = vmatprep.subr.mxu0 0.0
  %459 = vmatpush1.msra.mxu0 0.0
  %460 = vmatprep.subr.mxu0 0.0
  %461 = vmatpush1.msra.mxu0 0.0
  %462 = vmatprep.subr.mxu0 0.0
  %463 = vmatpush1.msra.mxu0 0.0
  %464 = vmatprep.subr.mxu0 0.0
  %465 = vmatpush1.msra.mxu0 0.0
  %466 = vmatprep.subr.mxu0 0.0
  %467 = vmatpush1.msra.mxu0 0.0
  %468 = vmatprep.mubr.f32.mxu0 0.0
  %v469 = vand.u32 %v29, 4294901760
  %470 = vmatmul.mubr.f32.gmra.mrb[0].mxu0 %v469
  %v471 = vpop.f32.mrb[0].mxu0
  %v472 = vadd.f32 %v381, %v471
  %v473 = vpop.f32.mrb[0].mxu0
  %474 = vmatprep.mubr.f32.mxu0 0.0
  %v475 = vand.u32 %v32, 4294901760
  %476 = vmatmul.mubr.f32.gmra.mrb[0].mxu0 %v475
  %v477 = vpop.f32.mrb[0].mxu0
  %v478 = vadd.f32 %v389, %v477
  %v479 = vpop.f32.mrb[0].mxu0
  %480 = vdwg.mxu0
  %481 = vmatprep.subr.mxu0 0.0
  %v482 = vand.u32 %v16, 4294901760
  %483 = vmatpush1.msra.mxu0 %v482
  %484 = vmatprep.subr.mxu0 0.0
  %v485 = vand.u32 %v17, 4294901760
  %486 = vmatpush1.msra.mxu0 %v485
  %487 = vmatprep.subr.mxu0 0.0
  %v488 = vand.u32 %v18, 4294901760
  %489 = vmatpush1.msra.mxu0 %v488
  %490 = vmatprep.subr.mxu0 0.0
  %v491 = vand.u32 %v19, 4294901760
  %492 = vmatpush1.msra.mxu0 %v491
  %493 = vmatprep.subr.mxu0 0.0
  %494 = vmatpush1.msra.mxu0 0.0
  %495 = vmatprep.subr.mxu0 0.0
  %496 = vmatpush1.msra.mxu0 0.0
  %497 = vmatprep.subr.mxu0 0.0
  %498 = vmatpush1.msra.mxu0 0.0
  %499 = vmatprep.subr.mxu0 0.0
  %500 = vmatpush1.msra.mxu0 0.0
  %501 = vmatprep.subr.mxu0 0.0
  %502 = vmatpush1.msra.mxu0 0.0
  %503 = vmatprep.subr.mxu0 0.0
  %504 = vmatpush1.msra.mxu0 0.0
  %505 = vmatprep.subr.mxu0 0.0
  %506 = vmatpush1.msra.mxu0 0.0
  %507 = vmatprep.subr.mxu0 0.0
  %508 = vmatpush1.msra.mxu0 0.0
  %509 = vmatprep.subr.mxu0 0.0
  %510 = vmatpush1.msra.mxu0 0.0
  %511 = vmatprep.subr.mxu0 0.0
  %512 = vmatpush1.msra.mxu0 0.0
  %513 = vmatprep.subr.mxu0 0.0
  %514 = vmatpush1.msra.mxu0 0.0
  %515 = vmatprep.subr.mxu0 0.0
  %516 = vmatpush1.msra.mxu0 0.0
  %517 = vmatprep.subr.mxu0 0.0
  %518 = vmatpush1.msra.mxu0 0.0
  %519 = vmatprep.subr.mxu0 0.0
  %520 = vmatpush1.msra.mxu0 0.0
  %521 = vmatprep.subr.mxu0 0.0
  %522 = vmatpush1.msra.mxu0 0.0
  %523 = vmatprep.subr.mxu0 0.0
  %524 = vmatpush1.msra.mxu0 0.0
  %525 = vmatprep.subr.mxu0 0.0
  %526 = vmatpush1.msra.mxu0 0.0
  %527 = vmatprep.subr.mxu0 0.0
  %528 = vmatpush1.msra.mxu0 0.0
  %529 = vmatprep.subr.mxu0 0.0
  %530 = vmatpush1.msra.mxu0 0.0
  %531 = vmatprep.subr.mxu0 0.0
  %532 = vmatpush1.msra.mxu0 0.0
  %533 = vmatprep.subr.mxu0 0.0
  %534 = vmatpush1.msra.mxu0 0.0
  %535 = vmatprep.subr.mxu0 0.0
  %536 = vmatpush1.msra.mxu0 0.0
  %537 = vmatprep.subr.mxu0 0.0
  %538 = vmatpush1.msra.mxu0 0.0
  %539 = vmatprep.subr.mxu0 0.0
  %540 = vmatpush1.msra.mxu0 0.0
  %541 = vmatprep.subr.mxu0 0.0
  %542 = vmatpush1.msra.mxu0 0.0
  %543 = vmatprep.subr.mxu0 0.0
  %544 = vmatpush1.msra.mxu0 0.0
  %545 = vmatprep.subr.mxu0 0.0
  %546 = vmatpush1.msra.mxu0 0.0
  %547 = vmatprep.subr.mxu0 0.0
  %548 = vmatpush1.msra.mxu0 0.0
  %549 = vmatprep.mubr.f32.mxu0 0.0
  %v550 = vand.u32 %v29, 4294901760
  %551 = vmatmul.mubr.f32.gmra.mrb[0].mxu0 %v550
  %v552 = vpop.f32.mrb[0].mxu0
  %v553 = vadd.f32 %v472, %v552
  %v554 = vpop.f32.mrb[0].mxu0
  %555 = vmatprep.mubr.f32.mxu0 0.0
  %v556 = vand.u32 %v32, 4294901760
  %557 = vmatmul.mubr.f32.gmra.mrb[0].mxu0 %v556
  %v558 = vpop.f32.mrb[0].mxu0
  %v559 = vadd.f32 %v478, %v558
  %v560 = vpop.f32.mrb[0].mxu0
  %561 = vdwg.mxu0
  %vm562 = vcmask 785408
  %563 = vst.msk [vmem:[%s3] sm:$0xff] %vm562, %v553
  %564 = vst.msk [vmem:[%s3 + $0x8] sm:$0xff] %vm562, %v559
  // Predicated region
  $region14: #{transformer_forward.14} parent=0 // pred_check
    _
  $region15: #{transformer_forward.14} parent=0 // pred_check_branch
    %566 = sbr.rel (0) target = $region17
  $region16: #{transformer_forward.14} parent=0 // pred_region
    _
  $region17: #{transformer_forward.14} parent=0 // pred_fallthru
    _
  // Predicated region
  $region18: #{transformer_forward.14} parent=0 // pred_check
    _
  $region19: #{transformer_forward.14} parent=0 // pred_check_branch
    %568 = sbr.rel (0) target = $region21
  $region20: #{transformer_forward.14} parent=0 // pred_region
    _
  $region21: #{transformer_forward.14} parent=0 // pred_fallthru
    _

// kernel: transformer_forward.25
$region0: #{transformer_forward.25}
  #allocation0 [shape = 'u32[]', space=smem, size = 0x4, offset = 0x4, fixed_abs, tag = 'smem constant byte address 0x4 - core index']
  #allocation1 [shape = 'u32[144,128]{1,0:T(1,128)}', space=vmem, size = 0x12000, scoped, tag = 'internal scratch']
  %s0 = inlined_call_operand.vmem [shape: f32[16,32], index: 0, kind: input, shape index: {}]
  %s1 = inlined_call_operand.vmem [shape: f32[1,32], index: 1, kind: input, shape index: {}]
  %s2 = inlined_call_operand.vmem [shape: f32[1,32], index: 2, kind: input, shape index: {}]
  %s3 = inlined_call_operand.hbm [shape: f32[16,32], index: 3, kind: output, shape index: {}]
  %s4 = sld [smem:[#allocation0]]
  $region22: #{transformer_forward.25} parent=0
    _
  %s6 = ssub.s32 1, %s4
  %s7 = scalar_select 0, %s6, %s4
  $region1: #{transformer_forward.25} parent=0
    #allocation2 [shape = 'u8[8192]{0}', space=vmem, size = 0x2000, scoped, tag = 'output window, operand 0, single buffered']
    #allocation3 [shape = 's32[1]{0}', space=sflag, size = 0x4, scoped, tag = 'scoped memory for transformer_forward.25']
    %8 = vsyncpa [#allocation3], 0
    // Predicated region
    $region2: #{transformer_forward.25} parent=1 // pred_check
      _
    $region3: #{transformer_forward.25} parent=1 // pred_check_branch
      %10 = sbr.rel (0) target = $region5
    $region4: #{transformer_forward.25} parent=1 // pred_region
      _
    $region5: #{transformer_forward.25} parent=1 // pred_fallthru
      _
    // Predicated region
    $region6: #{transformer_forward.25} parent=1 // pred_check
      _
    $region7: #{transformer_forward.25} parent=1 // pred_check_branch
      %12 = sbr.rel (0) target = $region9
    $region8: #{transformer_forward.25} parent=1 // pred_region
      _
    $region9: #{transformer_forward.25} parent=1 // pred_fallthru
      _
    // Predicated region
    $region10: #{transformer_forward.25} parent=1 // pred_check
      _
    $region11: #{transformer_forward.25} parent=1 // pred_check_branch
      %14 = sbr.rel (0) target = $region13
    $region12: #{transformer_forward.25} parent=1 // pred_region
      _
    $region13: #{transformer_forward.25} parent=1 // pred_fallthru
      _
    %v15 = vld [vmem:[%s0] sm:$0xff]
    %v16 = vld [vmem:[%s0 + $0x8] sm:$0xff]
    %vm17 = vcmask 261120
    %v18 = vsel %vm17, %v15, 0.0
    %19 = vadd.xlane.f32.xlu0 %v18
    %v20 = vpop.xlane.xlu0 %19
    %v21 = vsel %vm17, %v16, 0.0
    %22 = vadd.xlane.f32.xlu0 %v21
    %v23 = vpop.xlane.xlu0 %22
    %v24 = vrcp.pop 32.0
    %v25 = vmul.f32 %v20, %v24
    %v26 = vmul.f32 %v23, %v24
    %v27 = vsub.f32 %v15, %v25
    %v28 = vsub.f32 %v16, %v26
    %v29 = vmul.f32 %v27, %v27
    %v30 = vmul.f32 %v28, %v28
    %v31 = vsel %vm17, %v29, 0.0
    %32 = vadd.xlane.f32.xlu0 %v31
    %v33 = vpop.xlane.xlu0 %32
    %v34 = vsel %vm17, %v30, 0.0
    %35 = vadd.xlane.f32.xlu0 %v34
    %v36 = vpop.xlane.xlu0 %35
    %v37 = vmul.f32 %v33, %v24
    %v38 = vmul.f32 %v36, %v24
    %v39 = vadd.f32 %v37, 1e-05
    %v40 = vadd.f32 %v38, 1e-05
    %v41 = vrsqrt.pop %v39
    %v42 = vrsqrt.pop %v40
    %v43 = vmul.f32 %v27, %v41
    %v44 = vmul.f32 %v28, %v42
    %v45 = vld [vmem:[%s1] sm:$0x1]
    %v47 = vlaneseq
    %v48 = vshrl.u32 %v47, 7
    %v49 = vsub.s32 0, %v48
    %v50 = vrot.slane %v45, %v49
    %v52 = vmul.f32 %v43, %v50
    %v53 = vmul.f32 %v44, %v50
    %v54 = vld [vmem:[%s2] sm:$0x1]
    %v56 = vlaneseq
    %v57 = vshrl.u32 %v56, 7
    %v58 = vsub.s32 0, %v57
    %v59 = vrot.slane %v54, %v58
    %v61 = vadd.f32 %v52, %v59
    %v62 = vadd.f32 %v53, %v59
    %63 = vst.msk [vmem:[#allocation2] sm:$0xff] %vm17, %v61
    %64 = vst.msk [vmem:[#allocation2 + $0x8] sm:$0xff] %vm17, %v62
    // Predicated region
    $region14: #{transformer_forward.25} parent=1 // pred_check
      _
    $region15: #{transformer_forward.25} parent=1 // pred_check_branch
      %66 = sbr.rel (0) target = $region17
    $region16: #{transformer_forward.25} parent=1 // pred_region
      %s68 = ssub.s32 256, 256
      %69 = vsyncadd [#allocation3], %s68
      %s70 = sshll.u32 [#allocation2], 4
      %s71 = int_to_ptr.vmem [resolvable:$true] %s70
      %76 = dma.vmem_to_hbm [thread:$0]  %s71, 256, %s3, [#allocation3], 128, 128, 8
    $region17: #{transformer_forward.25} parent=1 // pred_fallthru
      _
    // Predicated region
    $region18: #{transformer_forward.25} parent=1 // pred_check
      _
    $region19: #{transformer_forward.25} parent=1 // pred_check_branch
      %78 = sbr.rel (0) target = $region21
    $region20: #{transformer_forward.25} parent=1 // pred_region
      %79 = dma.done [#allocation3], 256
    $region21: #{transformer_forward.25} parent=1 // pred_fallthru
      _
    %80 = vsyncpa [#allocation3], 1

// kernel: transformer_forward.15
$region0: #{transformer_forward.15}
  #allocation0 [shape = 'u32[]', space=smem, size = 0x4, offset = 0x4, fixed_abs, tag = 'smem constant byte address 0x4 - core index']
  #allocation1 [shape = 'u32[144,128]{1,0:T(1,128)}', space=vmem, size = 0x12000, scoped, tag = 'internal scratch']
  %s0 = inlined_call_operand.vmem [shape: f32[2,4,8,8], index: 0, kind: input, shape index: {}]
  %s1 = inlined_call_operand.vmem [shape: f32[2,4,8,8], index: 1, kind: input, shape index: {}]
  %s2 = inlined_call_operand.vmem [shape: f32[2,4,8,8], index: 2, kind: input, shape index: {}]
  %s3 = inlined_call_operand.vmem [shape: f32[2,4,8,8], index: 3, kind: output, shape index: {}]
  %s4 = sld [smem:[#allocation0]]
  $region45: #{transformer_forward.15} parent=0
    _
  %s6 = ssub.s32 1, %s4
  %s7 = scalar_select 0, %s6, %s4
  loop: start=0, step=1, limit=4
  $region2: #{transformer_forward.15} parent=0 // loop_pre_header
    _
  $region3: #{transformer_forward.15} parent=0 // loop_header
    %s9 = sphi 0, %s13
    %p10 = scmp.ge.s32.totalorder %s9, 4
    %s19 = sphi 0, %s21
    %s22 = sphi 0, %s19
    %s23 = sphi 0, %s22
    %s39 = sphi 0, %s23
    %s45 = sphi 0, %s47
    %s48 = sphi 0, %s45
    %s49 = sphi 0, %s48
    %s65 = sphi 0, %s49
    %s71 = sphi 0, %s73
    %s74 = sphi 0, %s71
    %s75 = sphi 0, %s74
    %s91 = sphi 0, %s75
    %s97 = sphi 0, %s99
    %s100 = sphi 0, %s97
    %s101 = sphi 0, %s100
    %s117 = sphi 0, %s101
  $region4: #{transformer_forward.15} parent=0 // loop_header_branch
    %12 = sbr.rel (%p10) target = $region8
  $region5: #{transformer_forward.15} parent=0 // loop_body
    %s14 = ssub.s32 %s9, 1
    %s15 = ssub.s32 %s9, 2
    %s16 = sadd.s32 %s9, 1
    %s17 = ssub.s32 %s9, %s16
    %p18 = scmp.eq.s32.totalorder %s17, 0
    %s20 = sadd.s32 %s19, 1
    %s21 = scalar_select %p18, %s19, %s20
    %p24 = pneg %p18
    %p25 = scmp.eq.s32.totalorder %s9, 1
    %p26 = por %p24, %p25
    %p27 = scmp.ne.s32.totalorder %s19, %s22
    %p28 = scmp.eq.s32.totalorder %s9, 0
    %p29 = por %p27, %p28
    %p30 = scmp.ne.s32.totalorder %s19, %s22
    %p31 = scmp.eq.s32.totalorder %s14, 1
    %p32 = por %p30, %p31
    %p33 = scmp.ne.s32.totalorder %s22, %s23
    %p34 = scmp.eq.s32.totalorder %s14, 0
    %p35 = por %p33, %p34
    %p36 = scmp.ne.s32.totalorder %s22, %s23
    %p37 = scmp.eq.s32.totalorder %s15, 1
    %p38 = por %p36, %p37
    %p40 = scmp.ne.s32.totalorder %s23, %s39
    %p41 = scmp.eq.s32.totalorder %s15, 0
    %p42 = por %p40, %p41
    %s43 = ssub.s32 %s9, %s16
    %p44 = scmp.eq.s32.totalorder %s43, 0
    %s46 = sadd.s32 %s45, 1
    %s47 = scalar_select %p44, %s45, %s46
    %p50 = pneg %p44
    %p51 = scmp.eq.s32.totalorder %s9, 1
    %p52 = por %p50, %p51
    %p53 = scmp.ne.s32.totalorder %s45, %s48
    %p54 = scmp.eq.s32.totalorder %s9, 0
    %p55 = por %p53, %p54
    %p56 = scmp.ne.s32.totalorder %s45, %s48
    %p57 = scmp.eq.s32.totalorder %s14, 1
    %p58 = por %p56, %p57
    %p59 = scmp.ne.s32.totalorder %s48, %s49
    %p60 = scmp.eq.s32.totalorder %s14, 0
    %p61 = por %p59, %p60
    %p62 = scmp.ne.s32.totalorder %s48, %s49
    %p63 = scmp.eq.s32.totalorder %s15, 1
    %p64 = por %p62, %p63
    %p66 = scmp.ne.s32.totalorder %s49, %s65
    %p67 = scmp.eq.s32.totalorder %s15, 0
    %p68 = por %p66, %p67
    %s69 = ssub.s32 %s9, %s16
    %p70 = scmp.eq.s32.totalorder %s69, 0
    %s72 = sadd.s32 %s71, 1
    %s73 = scalar_select %p70, %s71, %s72
    %p76 = pneg %p70
    %p77 = scmp.eq.s32.totalorder %s9, 1
    %p78 = por %p76, %p77
    %p79 = scmp.ne.s32.totalorder %s71, %s74
    %p80 = scmp.eq.s32.totalorder %s9, 0
    %p81 = por %p79, %p80
    %p82 = scmp.ne.s32.totalorder %s71, %s74
    %p83 = scmp.eq.s32.totalorder %s14, 1
    %p84 = por %p82, %p83
    %p85 = scmp.ne.s32.totalorder %s74, %s75
    %p86 = scmp.eq.s32.totalorder %s14, 0
    %p87 = por %p85, %p86
    %p88 = scmp.ne.s32.totalorder %s74, %s75
    %p89 = scmp.eq.s32.totalorder %s15, 1
    %p90 = por %p88, %p89
    %p92 = scmp.ne.s32.totalorder %s75, %s91
    %p93 = scmp.eq.s32.totalorder %s15, 0
    %p94 = por %p92, %p93
    %s95 = ssub.s32 %s9, %s16
    %p96 = scmp.eq.s32.totalorder %s95, 0
    %s98 = sadd.s32 %s97, 1
    %s99 = scalar_select %p96, %s97, %s98
    %p102 = pneg %p96
    %p103 = scmp.eq.s32.totalorder %s9, 1
    %p104 = por %p102, %p103
    %p105 = scmp.ne.s32.totalorder %s97, %s100
    %p106 = scmp.eq.s32.totalorder %s9, 0
    %p107 = por %p105, %p106
    %p108 = scmp.ne.s32.totalorder %s97, %s100
    %p109 = scmp.eq.s32.totalorder %s14, 1
    %p110 = por %p108, %p109
    %p111 = scmp.ne.s32.totalorder %s100, %s101
    %p112 = scmp.eq.s32.totalorder %s14, 0
    %p113 = por %p111, %p112
    %p114 = scmp.ne.s32.totalorder %s100, %s101
    %p115 = scmp.eq.s32.totalorder %s15, 1
    %p116 = por %p114, %p115
    %p118 = scmp.ne.s32.totalorder %s101, %s117
    %p119 = scmp.eq.s32.totalorder %s15, 0
    %p120 = por %p118, %p119
    %p121 = scmp.le.s32.totalorder 1, %s9
    %p122 = scmp.lt.s32.totalorder %s9, 3
    %p123 = pnand %p121, %p122
    %p124 = pneg %p123
    // Predicated region
    $region9: #{transformer_forward.15} parent=5 // pred_check
      _
    $region10: #{transformer_forward.15} parent=5 // pred_check_branch
      %126 = sbr.rel (%p123) target = $region12
    $region11: #{transformer_forward.15} parent=5 // pred_region
      %s127 = ssub.s32 %s9, 1
    $region12: #{transformer_forward.15} parent=5 // pred_fallthru
      _
    %p128 = scmp.lt.s32.totalorder %s9, 2
    // Predicated region
    $region13: #{transformer_forward.15} parent=5 // pred_check
      %p129 = pneg %p128
    $region14: #{transformer_forward.15} parent=5 // pred_check_branch
      %131 = sbr.rel (%p129) target = $region16
    $region15: #{transformer_forward.15} parent=5 // pred_region
      // Predicated region
      $region17: #{transformer_forward.15} parent=15 // pred_check
        %p132 = pneg %p29
      $region18: #{transformer_forward.15} parent=15 // pred_check_branch
        %134 = sbr.rel (%p132) target = $region20
      $region19: #{transformer_forward.15} parent=15 // pred_region
        %p135 = scmp.lt.s32.totalorder %s9, 1
        %s136 = scalar_select %p135, %s9, 1
        %s137 = smul.addr %s136, 4
        %s138 = smul.addr %s137, 8
        %s139 = scalar_lea.vmem %s0, %s138
      $region20: #{transformer_forward.15} parent=15 // pred_fallthru
        _
      // Predicated region
      $region21: #{transformer_forward.15} parent=15 // pred_check
        %p140 = pneg %p55
      $region22: #{transformer_forward.15} parent=15 // pred_check_branch
        %142 = sbr.rel (%p140) target = $region24
      $region23: #{transformer_forward.15} parent=15 // pred_region
        %p143 = scmp.lt.s32.totalorder %s9, 1
        %s144 = scalar_select %p143, %s9, 1
        %s145 = smul.addr %s144, 4
        %s146 = smul.addr %s145, 8
        %s147 = scalar_lea.vmem %s1, %s146
      $region24: #{transformer_forward.15} parent=15 // pred_fallthru
        _
      // Predicated region
      $region25: #{transformer_forward.15} parent=15 // pred_check
        %p148 = pneg %p81
      $region26: #{transformer_forward.15} parent=15 // pred_check_branch
        %150 = sbr.rel (%p148) target = $region28
      $region27: #{transformer_forward.15} parent=15 // pred_region
        %p151 = scmp.lt.s32.totalorder %s9, 1
        %s152 = scalar_select %p151, %s9, 1
        %s153 = smul.addr %s152, 4
        %s154 = smul.addr %s153, 8
        %s155 = scalar_lea.vmem %s2, %s154
      $region28: #{transformer_forward.15} parent=15 // pred_fallthru
        _
    $region16: #{transformer_forward.15} parent=5 // pred_fallthru
      _
    %p156 = scmp.le.s32.totalorder 1, %s9
    %p157 = scmp.lt.s32.totalorder %s9, 3
    %p158 = pnand %p156, %p157
    %p159 = pneg %p158
    // Predicated region
    $region29: #{transformer_forward.15} parent=5 // pred_check
      _
    $region30: #{transformer_forward.15} parent=5 // pred_check_branch
      %161 = sbr.rel (%p158) target = $region32
    $region31: #{transformer_forward.15} parent=5 // pred_region
      %s162 = ssub.s32 %s9, 1
      %p163 = scmp.lt.s32.totalorder %s14, 1
      %s164 = scalar_select %p163, %s14, 1
      %s165 = smul.addr %s164, 4
      %s166 = smul.addr %s165, 8
      %s167 = scalar_lea.vmem %s0, %s166
      %p168 = pneg %p35
      %p169 = pneg %p32
      %p170 = scmp.lt.s32.totalorder %s14, 1
      %s171 = scalar_select %p170, %s14, 1
      %s172 = smul.addr %s171, 4
      %s173 = smul.addr %s172, 8
      %s174 = scalar_lea.vmem %s1, %s173
      %p175 = pneg %p61
      %p176 = pneg %p58
      %p177 = scmp.lt.s32.totalorder %s14, 1
      %s178 = scalar_select %p177, %s14, 1
      %s179 = smul.addr %s178, 4
      %s180 = smul.addr %s179, 8
      %s181 = scalar_lea.vmem %s2, %s180
      %p182 = pneg %p87
      %p183 = pneg %p84
      %p184 = pneg %p113
      %p185 = pneg %p110
      %p186 = scmp.lt.s32.totalorder %s14, 1
      %s187 = scalar_select %p186, %s14, 1
      %s188 = smul.addr %s187, 4
      %s189 = smul.addr %s188, 8
      %s190 = scalar_lea.vmem %s3, %s189
      %p191 = scmp.lt.s32.totalorder %s14, 1
      %s192 = scalar_select %p191, %s14, 1
      %s193 = smul.addr %s192, 4
      %s194 = smul.addr %s193, 8
      %s195 = scalar_lea.vmem %s0, %s194
      %p196 = scmp.lt.s32.totalorder %s14, 1
      %s197 = scalar_select %p196, %s14, 1
      %s198 = smul.addr %s197, 4
      %s199 = smul.addr %s198, 8
      %s200 = scalar_lea.vmem %s1, %s199
      %p201 = scmp.lt.s32.totalorder %s14, 1
      %s202 = scalar_select %p201, %s14, 1
      %s203 = smul.addr %s202, 4
      %s204 = smul.addr %s203, 8
      %s205 = scalar_lea.vmem %s2, %s204
      %p206 = scmp.lt.s32.totalorder %s14, 1
      %s207 = scalar_select %p206, %s14, 1
      %s208 = smul.addr %s207, 4
      %s209 = smul.addr %s208, 8
      %s210 = scalar_lea.vmem %s3, %s209
      %v211 = vld [vmem:[%s195] sm:$0xff]
      %v212 = vld [vmem:[%s195 + $0x8] sm:$0xff]
      %v213 = vld [vmem:[%s195 + $0x10] sm:$0xff]
      %v214 = vld [vmem:[%s195 + $0x18] sm:$0xff]
      %v215 = vld [vmem:[%s200] sm:$0xff]
      %v216 = vld [vmem:[%s200 + $0x8] sm:$0xff]
      %v217 = vld [vmem:[%s200 + $0x10] sm:$0xff]
      %v218 = vld [vmem:[%s200 + $0x18] sm:$0xff]
      %v219 = vld [vmem:[%s205] sm:$0xff]
      %v220 = vld [vmem:[%s205 + $0x8] sm:$0xff]
      %v221 = vld [vmem:[%s205 + $0x10] sm:$0xff]
      %v222 = vld [vmem:[%s205 + $0x18] sm:$0xff]
      %vm223 = vcmask 64512
      %v225 = vsel %vm223, %v211, 0
      %v228 = vsel %vm223, %v215, 0
      %230 = vmatprep.subr.mxu0 0.0
      %v231 = vand.u32 %v228, 4294901760
      %232 = vmatpush1.xpose.msra.mxu0 %v231
      %233 = vmatprep.subr.mxu0 0.0
      %234 = vmatpush1.xpose.msra.mxu0 0.0
      %235 = vmatprep.subr.mxu0 0.0
      %236 = vmatpush1.xpose.msra.mxu0 0.0
      %237 = vmatprep.subr.mxu0 0.0
      %238 = vmatpush1.xpose.msra.mxu0 0.0
      %239 = vmatprep.subr.mxu0 0.0
      %240 = vmatpush1.xpose.msra.mxu0 0.0
      %241 = vmatprep.subr.mxu0 0.0
      %242 = vmatpush1.xpose.msra.mxu0 0.0
      %243 = vmatprep.subr.mxu0 0.0
      %244 = vmatpush1.xpose.msra.mxu0 0.0
      %245 = vmatprep.subr.mxu0 0.0
      %246 = vmatpush1.xpose.msra.mxu0 0.0
      %247 = vmatprep.subr.mxu0 0.0
      %248 = vmatpush1.xpose.msra.mxu0 0.0
      %249 = vmatprep.subr.mxu0 0.0
      %250 = vmatpush1.xpose.msra.mxu0 0.0
      %251 = vmatprep.subr.mxu0 0.0
      %252 = vmatpush1.xpose.msra.mxu0 0.0
      %253 = vmatprep.subr.mxu0 0.0
      %254 = vmatpush1.xpose.msra.mxu0 0.0
      %255 = vmatprep.subr.mxu0 0.0
      %256 = vmatpush1.xpose.msra.mxu0 0.0
      %257 = vmatprep.subr.mxu0 0.0
      %258 = vmatpush1.xpose.msra.mxu0 0.0
      %259 = vmatprep.subr.mxu0 0.0
      %260 = vmatpush1.xpose.msra.mxu0 0.0
      %261 = vmatprep.subr.mxu0 0.0
      %262 = vmatpush1.xpose.msra.mxu0 0.0
      %263 = vmatprep.subr.mxu0 0.0
      %264 = vmatpush1.xpose.msra.mxu0 0.0
      %265 = vmatprep.subr.mxu0 0.0
      %266 = vmatpush1.xpose.msra.mxu0 0.0
      %267 = vmatprep.subr.mxu0 0.0
      %268 = vmatpush1.xpose.msra.mxu0 0.0
      %269 = vmatprep.subr.mxu0 0.0
      %270 = vmatpush1.xpose.msra.mxu0 0.0
      %271 = vmatprep.subr.mxu0 0.0
      %272 = vmatpush1.xpose.msra.mxu0 0.0
      %273 = vmatprep.subr.mxu0 0.0
      %274 = vmatpush1.xpose.msra.mxu0 0.0
      %275 = vmatprep.subr.mxu0 0.0
      %276 = vmatpush1.xpose.msra.mxu0 0.0
      %277 = vmatprep.subr.mxu0 0.0
      %278 = vmatpush1.xpose.msra.mxu0 0.0
      %279 = vmatprep.subr.mxu0 0.0
      %280 = vmatpush1.xpose.msra.mxu0 0.0
      %281 = vmatprep.subr.mxu0 0.0
      %282 = vmatpush1.xpose.msra.mxu0 0.0
      %283 = vmatprep.subr.mxu0 0.0
      %284 = vmatpush1.xpose.msra.mxu0 0.0
      %285 = vmatprep.subr.mxu0 0.0
      %286 = vmatpush1.xpose.msra.mxu0 0.0
      %287 = vmatprep.subr.mxu0 0.0
      %288 = vmatpush1.xpose.msra.mxu0 0.0
      %289 = vmatprep.subr.mxu0 0.0
      %290 = vmatpush1.xpose.msra.mxu0 0.0
      %291 = vmatprep.subr.mxu0 0.0
      %292 = vmatpush1.xpose.msra.mxu0 0.0
      %293 = vmatprep.subr.mxu0 0.0
      %294 = vmatpush1.xpose.msra.mxu0 0.0
      %295 = vmatprep.mubr.f32.mxu0 0.0
      %v296 = vand.u32 %v225, 4294901760
      %v297 = vsub.f32 %v225, %v296
      %v298 = vand.u32 %v297, 4294901760
      %v299 = vsub.f32 %v297, %v298
      %v300 = vand.u32 %v299, 4294901760
      %301 = vmatmul.mubr.f32.gmra.mrb[0].mxu0 %v300
      %v302 = vpop.f32.mrb[0].mxu0
      %v303 = vadd.f32 0.0, %v302
      %v304 = vpop.f32.mrb[0].mxu0
      %305 = vdwg.mxu0
      %306 = vmatprep.subr.mxu0 0.0
      %v307 = vand.u32 %v228, 4294901760
      %v308 = vsub.f32 %v228, %v307
      %v309 = vand.u32 %v308, 4294901760
      %v310 = vsub.f32 %v308, %v309
      %v311 = vand.u32 %v310, 4294901760
      %312 = vmatpush1.xpose.msra.mxu0 %v311
      %313 = vmatprep.subr.mxu0 0.0
      %314 = vmatpush1.xpose.msra.mxu0 0.0
      %315 = vmatprep.subr.mxu0 0.0
      %316 = vmatpush1.xpose.msra.mxu0 0.0
      %317 = vmatprep.subr.mxu0 0.0
      %318 = vmatpush1.xpose.msra.mxu0 0.0
      %319 = vmatprep.subr.mxu0 0.0
      %320 = vmatpush1.xpose.msra.mxu0 0.0
      %321 = vmatprep.subr.mxu0 0.0
      %322 = vmatpush1.xpose.msra.mxu0 0.0
      %323 = vmatprep.subr.mxu0 0.0
      %324 = vmatpush1.xpose.msra.mxu0 0.0
      %325 = vmatprep.subr.mxu0 0.0
      %326 = vmatpush1.xpose.msra.mxu0 0.0
      %327 = vmatprep.subr.mxu0 0.0
      %328 = vmatpush1.xpose.msra.mxu0 0.0
      %329 = vmatprep.subr.mxu0 0.0
      %330 = vmatpush1.xpose.msra.mxu0 0.0
      %331 = vmatprep.subr.mxu0 0.0
      %332 = vmatpush1.xpose.msra.mxu0 0.0
      %333 = vmatprep.subr.mxu0 0.0
      %334 = vmatpush1.xpose.msra.mxu0 0.0
      %335 = vmatprep.subr.mxu0 0.0
      %336 = vmatpush1.xpose.msra.mxu0 0.0
      %337 = vmatprep.subr.mxu0 0.0
      %338 = vmatpush1.xpose.msra.mxu0 0.0
      %339 = vmatprep.subr.mxu0 0.0
      %340 = vmatpush1.xpose.msra.mxu0 0.0
      %341 = vmatprep.subr.mxu0 0.0
      %342 = vmatpush1.xpose.msra.mxu0 0.0
      %343 = vmatprep.subr.mxu0 0.0
      %344 = vmatpush1.xpose.msra.mxu0 0.0
      %345 = vmatprep.subr.mxu0 0.0
      %346 = vmatpush1.xpose.msra.mxu0 0.0
      %347 = vmatprep.subr.mxu0 0.0
      %348 = vmatpush1.xpose.msra.mxu0 0.0
      %349 = vmatprep.subr.mxu0 0.0
      %350 = vmatpush1.xpose.msra.mxu0 0.0
      %351 = vmatprep.subr.mxu0 0.0
      %352 = vmatpush1.xpose.msra.mxu0 0.0
      %353 = vmatprep.subr.mxu0 0.0
      %354 = vmatpush1.xpose.msra.mxu0 0.0
      %355 = vmatprep.subr.mxu0 0.0
      %356 = vmatpush1.xpose.msra.mxu0 0.0
      %357 = vmatprep.subr.mxu0 0.0
      %358 = vmatpush1.xpose.msra.mxu0 0.0
      %359 = vmatprep.subr.mxu0 0.0
      %360 = vmatpush1.xpose.msra.mxu0 0.0
      %361 = vmatprep.subr.mxu0 0.0
      %362 = vmatpush1.xpose.msra.mxu0 0.0
      %363 = vmatprep.subr.mxu0 0.0
      %364 = vmatpush1.xpose.msra.mxu0 0.0
      %365 = vmatprep.subr.mxu0 0.0
      %366 = vmatpush1.xpose.msra.mxu0 0.0
      %367 = vmatprep.subr.mxu0 0.0
      %368 = vmatpush1.xpose.msra.mxu0 0.0
      %369 = vmatprep.subr.mxu0 0.0
      %370 = vmatpush1.xpose.msra.mxu0 0.0
      %371 = vmatprep.subr.mxu0 0.0
      %372 = vmatpush1.xpose.msra.mxu0 0.0
      %373 = vmatprep.subr.mxu0 0.0
      %374 = vmatpush1.xpose.msra.mxu0 0.0
      %375 = vmatprep.mubr.f32.mxu0 0.0
      %v376 = vand.u32 %v225, 4294901760
      %377 = vmatmul.mubr.f32.gmra.mrb[0].mxu0 %v376
      %v378 = vpop.f32.mrb[0].mxu0
      %v379 = vadd.f32 %v303, %v378
      %v380 = vpop.f32.mrb[0].mxu0
      %381 = vdwg.mxu0
      %382 = vmatprep.subr.mxu0 0.0
      %v383 = vand.u32 %v228, 4294901760
      %v384 = vsub.f32 %v228, %v383
      %385 = vmatpush1.xpose.msra.mxu0 %v384
      %386 = vmatprep.subr.mxu0 0.0
      %387 = vmatpush1.xpose.msra.mxu0 0.0
      %388 = vmatprep.subr.mxu0 0.0
      %389 = vmatpush1.xpose.msra.mxu0 0.0
      %390 = vmatprep.subr.mxu0 0.0
      %391 = vmatpush1.xpose.msra.mxu0 0.0
      %392 = vmatprep.subr.mxu0 0.0
      %393 = vmatpush1.xpose.msra.mxu0 0.0
      %394 = vmatprep.subr.mxu0 0.0
      %395 = vmatpush1.xpose.msra.mxu0 0.0
      %396 = vmatprep.subr.mxu0 0.0
      %397 = vmatpush1.xpose.msra.mxu0 0.0
      %398 = vmatprep.subr.mxu0 0.0
      %399 = vmatpush1.xpose.msra.mxu0 0.0
      %400 = vmatprep.subr.mxu0 0.0
      %401 = vmatpush1.xpose.msra.mxu0 0.0
      %402 = vmatprep.subr.mxu0 0.0
      %403 = vmatpush1.xpose.msra.mxu0 0.0
      %404 = vmatprep.subr.mxu0 0.0
      %405 = vmatpush1.xpose.msra.mxu0 0.0
      %406 = vmatprep.subr.mxu0 0.0
      %407 = vmatpush1.xpose.msra.mxu0 0.0
      %408 = vmatprep.subr.mxu0 0.0
      %409 = vmatpush1.xpose.msra.mxu0 0.0
      %410 = vmatprep.subr.mxu0 0.0
      %411 = vmatpush1.xpose.msra.mxu0 0.0
      %412 = vmatprep.subr.mxu0 0.0
      %413 = vmatpush1.xpose.msra.mxu0 0.0
      %414 = vmatprep.subr.mxu0 0.0
      %415 = vmatpush1.xpose.msra.mxu0 0.0
      %416 = vmatprep.subr.mxu0 0.0
      %417 = vmatpush1.xpose.msra.mxu0 0.0
      %418 = vmatprep.subr.mxu0 0.0
      %419 = vmatpush1.xpose.msra.mxu0 0.0
      %420 = vmatprep.subr.mxu0 0.0
      %421 = vmatpush1.xpose.msra.mxu0 0.0
      %422 = vmatprep.subr.mxu0 0.0
      %423 = vmatpush1.xpose.msra.mxu0 0.0
      %424 = vmatprep.subr.mxu0 0.0
      %425 = vmatpush1.xpose.msra.mxu0 0.0
      %426 = vmatprep.subr.mxu0 0.0
      %427 = vmatpush1.xpose.msra.mxu0 0.0
      %428 = vmatprep.subr.mxu0 0.0
      %429 = vmatpush1.xpose.msra.mxu0 0.0
      %430 = vmatprep.subr.mxu0 0.0
      %431 = vmatpush1.xpose.msra.mxu0 0.0
      %432 = vmatprep.subr.mxu0 0.0
      %433 = vmatpush1.xpose.msra.mxu0 0.0
      %434 = vmatprep.subr.mxu0 0.0
      %435 = vmatpush1.xpose.msra.mxu0 0.0
      %436 = vmatprep.subr.mxu0 0.0
      %437 = vmatpush1.xpose.msra.mxu0 0.0
      %438 = vmatprep.subr.mxu0 0.0
      %439 = vmatpush1.xpose.msra.mxu0 0.0
      %440 = vmatprep.subr.mxu0 0.0
      %441 = vmatpush1.xpose.msra.mxu0 0.0
      %442 = vmatprep.subr.mxu0 0.0
      %443 = vmatpush1.xpose.msra.mxu0 0.0
      %444 = vmatprep.subr.mxu0 0.0
      %445 = vmatpush1.xpose.msra.mxu0 0.0
      %446 = vmatprep.subr.mxu0 0.0
      %447 = vmatpush1.xpose.msra.mxu0 0.0
      %448 = vmatprep.mubr.f32.mxu0 0.0
      %v449 = vand.u32 %v225, 4294901760
      %v450 = vsub.f32 %v225, %v449
      %451 = vmatmul.mubr.f32.gmra.mrb[0].mxu0 %v450
      %v452 = vpop.f32.mrb[0].mxu0
      %v453 = vadd.f32 %v379, %v452
      %v454 = vpop.f32.mrb[0].mxu0
      %455 = vdwg.mxu0
      %456 = vmatprep.subr.mxu0 0.0
      %v457 = vand.u32 %v228, 4294901760
      %458 = vmatpush1.xpose.msra.mxu0 %v457
      %459 = vmatprep.subr.mxu0 0.0
      %460 = vmatpush1.xpose.msra.mxu0 0.0
      %461 = vmatprep.subr.mxu0 0.0
      %462 = vmatpush1.xpose.msra.mxu0 0.0
      %463 = vmatprep.subr.mxu0 0.0
      %464 = vmatpush1.xpose.msra.mxu0 0.0
      %465 = vmatprep.subr.mxu0 0.0
      %466 = vmatpush1.xpose.msra.mxu0 0.0
      %467 = vmatprep.subr.mxu0 0.0
      %468 = vmatpush1.xpose.msra.mxu0 0.0
      %469 = vmatprep.subr.mxu0 0.0
      %470 = vmatpush1.xpose.msra.mxu0 0.0
      %471 = vmatprep.subr.mxu0 0.0
      %472 = vmatpush1.xpose.msra.mxu0 0.0
      %473 = vmatprep.subr.mxu0 0.0
      %474 = vmatpush1.xpose.msra.mxu0 0.0
      %475 = vmatprep.subr.mxu0 0.0
      %476 = vmatpush1.xpose.msra.mxu0 0.0
      %477 = vmatprep.subr.mxu0 0.0
      %478 = vmatpush1.xpose.msra.mxu0 0.0
      %479 = vmatprep.subr.mxu0 0.0
      %480 = vmatpush1.xpose.msra.mxu0 0.0
      %481 = vmatprep.subr.mxu0 0.0
      %482 = vmatpush1.xpose.msra.mxu0 0.0
      %483 = vmatprep.subr.mxu0 0.0
      %484 = vmatpush1.xpose.msra.mxu0 0.0
      %485 = vmatprep.subr.mxu0 0.0
      %486 = vmatpush1.xpose.msra.mxu0 0.0
      %487 = vmatprep.subr.mxu0 0.0
      %488 = vmatpush1.xpose.msra.mxu0 0.0
      %489 = vmatprep.subr.mxu0 0.0
      %490 = vmatpush1.xpose.msra.mxu0 0.0
      %491 = vmatprep.subr.mxu0 0.0
      %492 = vmatpush1.xpose.msra.mxu0 0.0
      %493 = vmatprep.subr.mxu0 0.0
      %494 = vmatpush1.xpose.msra.mxu0 0.0
      %495 = vmatprep.subr.mxu0 0.0
      %496 = vmatpush1.xpose.msra.mxu0 0.0
      %497 = vmatprep.subr.mxu0 0.0
      %498 = vmatpush1.xpose.msra.mxu0 0.0
      %499 = vmatprep.subr.mxu0 0.0
      %500 = vmatpush1.xpose.msra.mxu0 0.0
      %501 = vmatprep.subr.mxu0 0.0
      %502 = vmatpush1.xpose.msra.mxu0 0.0
      %503 = vmatprep.subr.mxu0 0.0
      %504 = vmatpush1.xpose.msra.mxu0 0.0
      %505 = vmatprep.subr.mxu0 0.0
      %506 = vmatpush1.xpose.msra.mxu0 0.0
      %507 = vmatprep.subr.mxu0 0.0
      %508 = vmatpush1.xpose.msra.mxu0 0.0
      %509 = vmatprep.subr.mxu0 0.0
      %510 = vmatpush1.xpose.msra.mxu0 0.0
      %511 = vmatprep.subr.mxu0 0.0
      %512 = vmatpush1.xpose.msra.mxu0 0.0
      %513 = vmatprep.subr.mxu0 0.0
      %514 = vmatpush1.xpose.msra.mxu0 0.0
      %515 = vmatprep.subr.mxu0 0.0
      %516 = vmatpush1.xpose.msra.mxu0 0.0
      %517 = vmatprep.subr.mxu0 0.0
      %518 = vmatpush1.xpose.msra.mxu0 0.0
      %519 = vmatprep.subr.mxu0 0.0
      %520 = vmatpush1.xpose.msra.mxu0 0.0
      %521 = vmatprep.mubr.f32.mxu0 0.0
      %v522 = vand.u32 %v225, 4294901760
      %v523 = vsub.f32 %v225, %v522
      %v524 = vand.u32 %v523, 4294901760
      %525 = vmatmul.mubr.f32.gmra.mrb[0].mxu0 %v524
      %v526 = vpop.f32.mrb[0].mxu0
      %v527 = vadd.f32 %v453, %v526
      %v528 = vpop.f32.mrb[0].mxu0
      %529 = vdwg.mxu0
      %530 = vmatprep.subr.mxu0 0.0
      %v531 = vand.u32 %v228, 4294901760
      %v532 = vsub.f32 %v228, %v531
      %v533 = vand.u32 %v532, 4294901760
      %534 = vmatpush1.xpose.msra.mxu0 %v533
      %535 = vmatprep.subr.mxu0 0.0
      %536 = vmatpush1.xpose.msra.mxu0 0.0
      %537 = vmatprep.subr.mxu0 0.0
      %538 = vmatpush1.xpose.msra.mxu0 0.0
      %539 = vmatprep.subr.mxu0 0.0
      %540 = vmatpush1.xpose.msra.mxu0 0.0
      %541 = vmatprep.subr.mxu0 0.0
      %542 = vmatpush1.xpose.msra.mxu0 0.0
      %543 = vmatprep.subr.mxu0 0.0
      %544 = vmatpush1.xpose.msra.mxu0 0.0
      %545 = vmatprep.subr.mxu0 0.0
      %546 = vmatpush1.xpose.msra.mxu0 0.0
      %547 = vmatprep.subr.mxu0 0.0
      %548 = vmatpush1.xpose.msra.mxu0 0.0
      %549 = vmatprep.subr.mxu0 0.0
      %550 = vmatpush1.xpose.msra.mxu0 0.0
      %551 = vmatprep.subr.mxu0 0.0
      %552 = vmatpush1.xpose.msra.mxu0 0.0
      %553 = vmatprep.subr.mxu0 0.0
      %554 = vmatpush1.xpose.msra.mxu0 0.0
      %555 = vmatprep.subr.mxu0 0.0
      %556 = vmatpush1.xpose.msra.mxu0 0.0
      %557 = vmatprep.subr.mxu0 0.0
      %558 = vmatpush1.xpose.msra.mxu0 0.0
      %559 = vmatprep.subr.mxu0 0.0
      %560 = vmatpush1.xpose.msra.mxu0 0.0
      %561 = vmatprep.subr.mxu0 0.0
      %562 = vmatpush1.xpose.msra.mxu0 0.0
      %563 = vmatprep.subr.mxu0 0.0
      %564 = vmatpush1.xpose.msra.mxu0 0.0
      %565 = vmatprep.subr.mxu0 0.0
      %566 = vmatpush1.xpose.msra.mxu0 0.0
      %567 = vmatprep.subr.mxu0 0.0
      %568 = vmatpush1.xpose.msra.mxu0 0.0
      %569 = vmatprep.subr.mxu0 0.0
      %570 = vmatpush1.xpose.msra.mxu0 0.0
      %571 = vmatprep.subr.mxu0 0.0
      %572 = vmatpush1.xpose.msra.mxu0 0.0
      %573 = vmatprep.subr.mxu0 0.0
      %574 = vmatpush1.xpose.msra.mxu0 0.0
      %575 = vmatprep.subr.mxu0 0.0
      %576 = vmatpush1.xpose.msra.mxu0 0.0
      %577 = vmatprep.subr.mxu0 0.0
      %578 = vmatpush1.xpose.msra.mxu0 0.0
      %579 = vmatprep.subr.mxu0 0.0
      %580 = vmatpush1.xpose.msra.mxu0 0.0
      %581 = vmatprep.subr.mxu0 0.0
      %582 = vmatpush1.xpose.msra.mxu0 0.0
      %583 = vmatprep.subr.mxu0 0.0
      %584 = vmatpush1.xpose.msra.mxu0 0.0
      %585 = vmatprep.subr.mxu0 0.0
      %586 = vmatpush1.xpose.msra.mxu0 0.0
      %587 = vmatprep.subr.mxu0 0.0
      %588 = vmatpush1.xpose.msra.mxu0 0.0
      %589 = vmatprep.subr.mxu0 0.0
      %590 = vmatpush1.xpose.msra.mxu0 0.0
      %591 = vmatprep.subr.mxu0 0.0
      %592 = vmatpush1.xpose.msra.mxu0 0.0
      %593 = vmatprep.subr.mxu0 0.0
      %594 = vmatpush1.xpose.msra.mxu0 0.0
      %595 = vmatprep.subr.mxu0 0.0
      %596 = vmatpush1.xpose.msra.mxu0 0.0
      %597 = vmatprep.mubr.f32.mxu0 0.0
      %v598 = vand.u32 %v225, 4294901760
      %599 = vmatmul.mubr.f32.gmra.mrb[0].mxu0 %v598
      %v600 = vpop.f32.mrb[0].mxu0
      %v601 = vadd.f32 %v527, %v600
      %v602 = vpop.f32.mrb[0].mxu0
      %603 = vdwg.mxu0
      %604 = vmatprep.subr.mxu0 0.0
      %v605 = vand.u32 %v228, 4294901760
      %606 = vmatpush1.xpose.msra.mxu0 %v605
      %607 = vmatprep.subr.mxu0 0.0
      %608 = vmatpush1.xpose.msra.mxu0 0.0
      %609 = vmatprep.subr.mxu0 0.0
      %610 = vmatpush1.xpose.msra.mxu0 0.0
      %611 = vmatprep.subr.mxu0 0.0
      %612 = vmatpush1.xpose.msra.mxu0 0.0
      %613 = vmatprep.subr.mxu0 0.0
      %614 = vmatpush1.xpose.msra.mxu0 0.0
      %615 = vmatprep.subr.mxu0 0.0
      %616 = vmatpush1.xpose.msra.mxu0 0.0
      %617 = vmatprep.subr.mxu0 0.0
      %618 = vmatpush1.xpose.msra.mxu0 0.0
      %619 = vmatprep.subr.mxu0 0.0
      %620 = vmatpush1.xpose.msra.mxu0 0.0
      %621 = vmatprep.subr.mxu0 0.0
      %622 = vmatpush1.xpose.msra.mxu0 0.0
      %623 = vmatprep.subr.mxu0 0.0
      %624 = vmatpush1.xpose.msra.mxu0 0.0
      %625 = vmatprep.subr.mxu0 0.0
      %626 = vmatpush1.xpose.msra.mxu0 0.0
      %627 = vmatprep.subr.mxu0 0.0
      %628 = vmatpush1.xpose.msra.mxu0 0.0
      %629 = vmatprep.subr.mxu0 0.0
      %630 = vmatpush1.xpose.msra.mxu0 0.0
      %631 = vmatprep.subr.mxu0 0.0
      %632 = vmatpush1.xpose.msra.mxu0 0.0
      %633 = vmatprep.subr.mxu0 0.0
      %634 = vmatpush1.xpose.msra.mxu0 0.0
      %635 = vmatprep.subr.mxu0 0.0
      %636 = vmatpush1.xpose.msra.mxu0 0.0
      %637 = vmatprep.subr.mxu0 0.0
      %638 = vmatpush1.xpose.msra.mxu0 0.0
      %639 = vmatprep.subr.mxu0 0.0
      %640 = vmatpush1.xpose.msra.mxu0 0.0
      %641 = vmatprep.subr.mxu0 0.0
      %642 = vmatpush1.xpose.msra.mxu0 0.0
      %643 = vmatprep.subr.mxu0 0.0
      %644 = vmatpush1.xpose.msra.mxu0 0.0
      %645 = vmatprep.subr.mxu0 0.0
      %646 = vmatpush1.xpose.msra.mxu0 0.0
      %647 = vmatprep.subr.mxu0 0.0
      %648 = vmatpush1.xpose.msra.mxu0 0.0
      %649 = vmatprep.subr.mxu0 0.0
      %650 = vmatpush1.xpose.msra.mxu0 0.0
      %651 = vmatprep.subr.mxu0 0.0
      %652 = vmatpush1.xpose.msra.mxu0 0.0
      %653 = vmatprep.subr.mxu0 0.0
      %654 = vmatpush1.xpose.msra.mxu0 0.0
      %655 = vmatprep.subr.mxu0 0.0
      %656 = vmatpush1.xpose.msra.mxu0 0.0
      %657 = vmatprep.subr.mxu0 0.0
      %658 = vmatpush1.xpose.msra.mxu0 0.0
      %659 = vmatprep.subr.mxu0 0.0
      %660 = vmatpush1.xpose.msra.mxu0 0.0
      %661 = vmatprep.subr.mxu0 0.0
      %662 = vmatpush1.xpose.msra.mxu0 0.0
      %663 = vmatprep.subr.mxu0 0.0
      %664 = vmatpush1.xpose.msra.mxu0 0.0
      %665 = vmatprep.subr.mxu0 0.0
      %666 = vmatpush1.xpose.msra.mxu0 0.0
      %667 = vmatprep.subr.mxu0 0.0
      %668 = vmatpush1.xpose.msra.mxu0 0.0
      %669 = vmatprep.mubr.f32.mxu0 0.0
      %v670 = vand.u32 %v225, 4294901760
      %671 = vmatmul.mubr.f32.gmra.mrb[0].mxu0 %v670
      %v672 = vpop.f32.mrb[0].mxu0
      %v673 = vadd.f32 %v601, %v672
      %v674 = vpop.f32.mrb[0].mxu0
      %675 = vdwg.mxu0
      %v677 = vsel %vm223, %v212, 0
      %v680 = vsel %vm223, %v216, 0
      %682 = vmatprep.subr.mxu0 0.0
      %v683 = vand.u32 %v680, 4294901760
      %684 = vmatpush1.xpose.msra.mxu0 %v683
      %685 = vmatprep.subr.mxu0 0.0
      %686 = vmatpush1.xpose.msra.mxu0 0.0
      %687 = vmatprep.subr.mxu0 0.0
      %688 = vmatpush1.xpose.msra.mxu0 0.0
      %689 = vmatprep.subr.mxu0 0.0
      %690 = vmatpush1.xpose.msra.mxu0 0.0
      %691 = vmatprep.subr.mxu0 0.0
      %692 = vmatpush1.xpose.msra.mxu0 0.0
      %693 = vmatprep.subr.mxu0 0.0
      %694 = vmatpush1.xpose.msra.mxu0 0.0
      %695 = vmatprep.subr.mxu0 0.0
      %696 = vmatpush1.xpose.msra.mxu0 0.0
      %697 = vmatprep.subr.mxu0 0.0
      %698 = vmatpush1.xpose.msra.mxu0 0.0
      %699 = vmatprep.subr.mxu0 0.0
      %700 = vmatpush1.xpose.msra.mxu0 0.0
      %701 = vmatprep.subr.mxu0 0.0
      %702 = vmatpush1.xpose.msra.mxu0 0.0
      %703 = vmatprep.subr.mxu0 0.0
      %704 = vmatpush1.xpose.msra.mxu0 0.0
      %705 = vmatprep.subr.mxu0 0.0
      %706 = vmatpush1.xpose.msra.mxu0 0.0
      %707 = vmatprep.subr.mxu0 0.0
      %708 = vmatpush1.xpose.msra.mxu0 0.0
      %709 = vmatprep.subr.mxu0 0.0
      %710 = vmatpush1.xpose.msra.mxu0 0.0
      %711 = vmatprep.subr.mxu0 0.0
      %712 = vmatpush1.xpose.msra.mxu0 0.0
      %713 = vmatprep.subr.mxu0 0.0
      %714 = vmatpush1.xpose.msra.mxu0 0.0
      %715 = vmatprep.subr.mxu0 0.0
      %716 = vmatpush1.xpose.msra.mxu0 0.0
      %717 = vmatprep.subr.mxu0 0.0
      %718 = vmatpush1.xpose.msra.mxu0 0.0
      %719 = vmatprep.subr.mxu0 0.0
      %720 = vmatpush1.xpose.msra.mxu0 0.0
      %721 = vmatprep.subr.mxu0 0.0
      %722 = vmatpush1.xpose.msra.mxu0 0.0
      %723 = vmatprep.subr.mxu0 0.0
      %724 = vmatpush1.xpose.msra.mxu0 0.0
      %725 = vmatprep.subr.mxu0 0.0
      %726 = vmatpush1.xpose.msra.mxu0 0.0
      %727 = vmatprep.subr.mxu0 0.0
      %728 = vmatpush1.xpose.msra.mxu0 0.0
      %729 = vmatprep.subr.mxu0 0.0
      %730 = vmatpush1.xpose.msra.mxu0 0.0
      %731 = vmatprep.subr.mxu0 0.0
      %732 = vmatpush1.xpose.msra.mxu0 0.0
      %733 = vmatprep.subr.mxu0 0.0
      %734 = vmatpush1.xpose.msra.mxu0 0.0
      %735 = vmatprep.subr.mxu0 0.0
      %736 = vmatpush1.xpose.msra.mxu0 0.0
      %737 = vmatprep.subr.mxu0 0.0
      %738 = vmatpush1.xpose.msra.mxu0 0.0
      %739 = vmatprep.subr.mxu0 0.0
      %740 = vmatpush1.xpose.msra.mxu0 0.0
      %741 = vmatprep.subr.mxu0 0.0
      %742 = vmatpush1.xpose.msra.mxu0 0.0
      %743 = vmatprep.subr.mxu0 0.0
      %744 = vmatpush1.xpose.msra.mxu0 0.0
      %745 = vmatprep.subr.mxu0 0.0
      %746 = vmatpush1.xpose.msra.mxu0 0.0
      %747 = vmatprep.mubr.f32.mxu0 0.0
      %v748 = vand.u32 %v677, 4294901760
      %v749 = vsub.f32 %v677, %v748
      %v750 = vand.u32 %v749, 4294901760
      %v751 = vsub.f32 %v749, %v750
      %v752 = vand.u32 %v751, 4294901760
      %753 = vmatmul.mubr.f32.gmra.mrb[0].mxu0 %v752
      %v754 = vpop.f32.mrb[0].mxu0
      %v755 = vadd.f32 0.0, %v754
      %v756 = vpop.f32.mrb[0].mxu0
      %757 = vdwg.mxu0
      %758 = vmatprep.subr.mxu0 0.0
      %v759 = vand.u32 %v680, 4294901760
      %v760 = vsub.f32 %v680, %v759
      %v761 = vand.u32 %v760, 4294901760
      %v762 = vsub.f32 %v760, %v761
      %v763 = vand.u32 %v762, 4294901760
      %764 = vmatpush1.xpose.msra.mxu0 %v763
      %765 = vmatprep.subr.mxu0 0.0
      %766 = vmatpush1.xpose.msra.mxu0 0.0
      %767 = vmatprep.subr.mxu0 0.0
      %768 = vmatpush1.xpose.msra.mxu0 0.0
      %769 = vmatprep.subr.mxu0 0.0
      %770 = vmatpush1.xpose.msra.mxu0 0.0
      %771 = vmatprep.subr.mxu0 0.0
      %772 = vmatpush1.xpose.msra.mxu0 0.0
      %773 = vmatprep.subr.mxu0 0.0
      %774 = vmatpush1.xpose.msra.mxu0 0.0
      %775 = vmatprep.subr.mxu0 0.0
      %776 = vmatpush1.xpose.msra.mxu0 0.0
      %777 = vmatprep.subr.mxu0 0.0
      %778 = vmatpush1.xpose.msra.mxu0 0.0
      %779 = vmatprep.subr.mxu0 0.0
      %780 = vmatpush1.xpose.msra.mxu0 0.0
      %781 = vmatprep.subr.mxu0 0.0
      %782 = vmatpush1.xpose.msra.mxu0 0.0
      %783 = vmatprep.subr.mxu0 0.0
      %784 = vmatpush1.xpose.msra.mxu0 0.0
      %785 = vmatprep.subr.mxu0 0.0
      %786 = vmatpush1.xpose.msra.mxu0 0.0
      %787 = vmatprep.subr.mxu0 0.0
      %788 = vmatpush1.xpose.msra.mxu0 0.0
      %789 = vmatprep.subr.mxu0 0.0
      %790 = vmatpush1.xpose.msra.mxu0 0.0
      %791 = vmatprep.subr.mxu0 0.0
      %792 = vmatpush1.xpose.msra.mxu0 0.0
      %793 = vmatprep.subr.mxu0 0.0
      %794 = vmatpush1.xpose.msra.mxu0 0.0
      %795 = vmatprep.subr.mxu0 0.0
      %796 = vmatpush1.xpose.msra.mxu0 0.0
      %797 = vmatprep.subr.mxu0 0.0
      %798 = vmatpush1.xpose.msra.mxu0 0.0
      %799 = vmatprep.subr.mxu0 0.0
      %800 = vmatpush1.xpose.msra.mxu0 0.0
      %801 = vmatprep.subr.mxu0 0.0
      %802 = vmatpush1.xpose.msra.mxu0 0.0
      %803 = vmatprep.subr.mxu0 0.0
      %804 = vmatpush1.xpose.msra.mxu0 0.0
      %805 = vmatprep.subr.mxu0 0.0
      %806 = vmatpush1.xpose.msra.mxu0 0.0
      %807 = vmatprep.subr.mxu0 0.0
      %808 = vmatpush1.xpose.msra.mxu0 0.0
      %809 = vmatprep.subr.mxu0 0.0
      %810 = vmatpush1.xpose.msra.mxu0 0.0
      %811 = vmatprep.subr.mxu0 0.0
      %812 = vmatpush1.xpose.msra.mxu0 0.0
      %813 = vmatprep.subr.mxu0 0.0
      %814 = vmatpush1.xpose.msra.mxu0 0.0
      %815 = vmatprep.subr.mxu0 0.0
      %816 = vmatpush1.xpose.msra.mxu0 0.0
      %817 = vmatprep.subr.mxu0 0.0
      %818 = vmatpush1.xpose.msra.mxu0 0.0
      %819 = vmatprep.subr.mxu0 0.0
      %820 = vmatpush1.xpose.msra.mxu0 0.0
      %821 = vmatprep.subr.mxu0 0.0
      %822 = vmatpush1.xpose.msra.mxu0 0.0
      %823 = vmatprep.subr.mxu0 0.0
      %824 = vmatpush1.xpose.msra.mxu0 0.0
      %825 = vmatprep.subr.mxu0 0.0
      %826 = vmatpush1.xpose.msra.mxu0 0.0
      %827 = vmatprep.mubr.f32.mxu0 0.0
      %v828 = vand.u32 %v677, 4294901760
      %829 = vmatmul.mubr.f32.gmra.mrb[0].mxu0 %v828
      %v830 = vpop.f32.mrb[0].mxu0
      %v831 = vadd.f32 %v755, %v830
      %v832 = vpop.f32.mrb[0].mxu0
      %833 = vdwg.mxu0
      %834 = vmatprep.subr.mxu0 0.0
      %v835 = vand.u32 %v680, 4294901760
      %v836 = vsub.f32 %v680, %v835
      %837 = vmatpush1.xpose.msra.mxu0 %v836
      %838 = vmatprep.subr.mxu0 0.0
      %839 = vmatpush1.xpose.msra.mxu0 0.0
      %840 = vmatprep.subr.mxu0 0.0
      %841 = vmatpush1.xpose.msra.mxu0 0.0
      %842 = vmatprep.subr.mxu0 0.0
      %843 = vmatpush1.xpose.msra.mxu0 0.0
      %844 = vmatprep.subr.mxu0 0.0
      %845 = vmatpush1.xpose.msra.mxu0 0.0
      %846 = vmatprep.subr.mxu0 0.0
      %847 = vmatpush1.xpose.msra.mxu0 0.0
      %848 = vmatprep.subr.mxu0 0.0
      %849 = vmatpush1.xpose.msra.mxu0 0.0
      %850 = vmatprep.subr.mxu0 0.0
      %851 = vmatpush1.xpose.msra.mxu0 0.0
      %852 = vmatprep.subr.mxu0 0.0
      %853 = vmatpush1.xpose.msra.mxu0 0.0
      %854 = vmatprep.subr.mxu0 0.0
      %855 = vmatpush1.xpose.msra.mxu0 0.0
      %856 = vmatprep.subr.mxu0 0.0
      %857 = vmatpush1.xpose.msra.mxu0 0.0
      %858 = vmatprep.subr.mxu0 0.0
      %859 = vmatpush1.xpose.msra.mxu0 0.0
      %860 = vmatprep.subr.mxu0 0.0
      %861 = vmatpush1.xpose.msra.mxu0 0.0
      %862 = vmatprep.subr.mxu0 0.0
      %863 = vmatpush1.xpose.msra.mxu0 0.0
      %864 = vmatprep.subr.mxu0 0.0
      %865 = vmatpush1.xpose.msra.mxu0 0.0
      %866 = vmatprep.subr.mxu0 0.0
      %867 = vmatpush1.xpose.msra.mxu0 0.0
      %868 = vmatprep.subr.mxu0 0.0
      %869 = vmatpush1.xpose.msra.mxu0 0.0
      %870 = vmatprep.subr.mxu0 0.0
      %871 = vmatpush1.xpose.msra.mxu0 0.0
      %872 = vmatprep.subr.mxu0 0.0
      %873 = vmatpush1.xpose.msra.mxu0 0.0
      %874 = vmatprep.subr.mxu0 0.0
      %875 = vmatpush1.xpose.msra.mxu0 0.0
      %876 = vmatprep.subr.mxu0 0.0
      %877 = vmatpush1.xpose.msra.mxu0 0.0
      %878 = vmatprep.subr.mxu0 0.0
      %879 = vmatpush1.xpose.msra.mxu0 0.0
      %880 = vmatprep.subr.mxu0 0.0
      %881 = vmatpush1.xpose.msra.mxu0 0.0
      %882 = vmatprep.subr.mxu0 0.0
      %883 = vmatpush1.xpose.msra.mxu0 0.0
      %884 = vmatprep.subr.mxu0 0.0
      %885 = vmatpush1.xpose.msra.mxu0 0.0
      %886 = vmatprep.subr.mxu0 0.0
      %887 = vmatpush1.xpose.msra.mxu0 0.0
      %888 = vmatprep.subr.mxu0 0.0
      %889 = vmatpush1.xpose.msra.mxu0 0.0
      %890 = vmatprep.subr.mxu0 0.0
      %891 = vmatpush1.xpose.msra.mxu0 0.0
      %892 = vmatprep.subr.mxu0 0.0
      %893 = vmatpush1.xpose.msra.mxu0 0.0
      %894 = vmatprep.subr.mxu0 0.0
      %895 = vmatpush1.xpose.msra.mxu0 0.0
      %896 = vmatprep.subr.mxu0 0.0
      %897 = vmatpush1.xpose.msra.mxu0 0.0
      %898 = vmatprep.subr.mxu0 0.0
      %899 = vmatpush1.xpose.msra.mxu0 0.0
      %900 = vmatprep.mubr.f32.mxu0 0.0
      %v901 = vand.u32 %v677, 4294901760
      %v902 = vsub.f32 %v677, %v901
      %903 = vmatmul.mubr.f32.gmra.mrb[0].mxu0 %v902
      %v904 = vpop.f32.mrb[0].mxu0
      %v905 = vadd.f32 %v831, %v904
      %v906 = vpop.f32.mrb[0].mxu0
      %907 = vdwg.mxu0
      %908 = vmatprep.subr.mxu0 0.0
      %v909 = vand.u32 %v680, 4294901760
      %910 = vmatpush1.xpose.msra.mxu0 %v909
      %911 = vmatprep.subr.mxu0 0.0
      %912 = vmatpush1.xpose.msra.mxu0 0.0
      %913 = vmatprep.subr.mxu0 0.0
      %914 = vmatpush1.xpose.msra.mxu0 0.0
      %915 = vmatprep.subr.mxu0 0.0
      %916 = vmatpush1.xpose.msra.mxu0 0.0
      %917 = vmatprep.subr.mxu0 0.0
      %918 = vmatpush1.xpose.msra.mxu0 0.0
      %919 = vmatprep.subr.mxu0 0.0
      %920 = vmatpush1.xpose.msra.mxu0 0.0
      %921 = vmatprep.subr.mxu0 0.0
      %922 = vmatpush1.xpose.msra.mxu0 0.0
      %923 = vmatprep.subr.mxu0 0.0
      %924 = vmatpush1.xpose.msra.mxu0 0.0
      %925 = vmatprep.subr.mxu0 0.0
      %926 = vmatpush1.xpose.msra.mxu0 0.0
      %927 = vmatprep.subr.mxu0 0.0
      %928 = vmatpush1.xpose.msra.mxu0 0.0
      %929 = vmatprep.subr.mxu0 0.0
      %930 = vmatpush1.xpose.msra.mxu0 0.0
      %931 = vmatprep.subr.mxu0 0.0
      %932 = vmatpush1.xpose.msra.mxu0 0.0
      %933 = vmatprep.subr.mxu0 0.0
      %934 = vmatpush1.xpose.msra.mxu0 0.0
      %935 = vmatprep.subr.mxu0 0.0
      %936 = vmatpush1.xpose.msra.mxu0 0.0
      %937 = vmatprep.subr.mxu0 0.0
      %938 = vmatpush1.xpose.msra.mxu0 0.0
      %939 = vmatprep.subr.mxu0 0.0
      %940 = vmatpush1.xpose.msra.mxu0 0.0
      %941 = vmatprep.subr.mxu0 0.0
      %942 = vmatpush1.xpose.msra.mxu0 0.0
      %943 = vmatprep.subr.mxu0 0.0
      %944 = vmatpush1.xpose.msra.mxu0 0.0
      %945 = vmatprep.subr.mxu0 0.0
      %946 = vmatpush1.xpose.msra.mxu0 0.0
      %947 = vmatprep.subr.mxu0 0.0
      %948 = vmatpush1.xpose.msra.mxu0 0.0
      %949 = vmatprep.subr.mxu0 0.0
      %950 = vmatpush1.xpose.msra.mxu0 0.0
      %951 = vmatprep.subr.mxu0 0.0
      %952 = vmatpush1.xpose.msra.mxu0 0.0
      %953 = vmatprep.subr.mxu0 0.0
      %954 = vmatpush1.xpose.msra.mxu0 0.0
      %955 = vmatprep.subr.mxu0 0.0
      %956 = vmatpush1.xpose.msra.mxu0 0.0
      %957 = vmatprep.subr.mxu0 0.0
      %958 = vmatpush1.xpose.msra.mxu0 0.0
      %959 = vmatprep.subr.mxu0 0.0
      %960 = vmatpush1.xpose.msra.mxu0 0.0
      %961 = vmatprep.subr.mxu0 0.0
      %962 = vmatpush1.xpose.msra.mxu0 0.0
      %963 = vmatprep.subr.mxu0 0.0
      %964 = vmatpush1.xpose.msra.mxu0 0.0
      %965 = vmatprep.subr.mxu0 0.0
      %966 = vmatpush1.xpose.msra.mxu0 0.0
      %967 = vmatprep.subr.mxu0 0.0
      %968 = vmatpush1.xpose.msra.mxu0 0.0
      %969 = vmatprep.subr.mxu0 0.0
      %970 = vmatpush1.xpose.msra.mxu0 0.0
      %971 = vmatprep.subr.mxu0 0.0
      %972 = vmatpush1.xpose.msra.mxu0 0.0
      %973 = vmatprep.mubr.f32.mxu0 0.0
      %v974 = vand.u32 %v677, 4294901760
      %v975 = vsub.f32 %v677, %v974
      %v976 = vand.u32 %v975, 4294901760
      %977 = vmatmul.mubr.f32.gmra.mrb[0].mxu0 %v976
      %v978 = vpop.f32.mrb[0].mxu0
      %v979 = vadd.f32 %v905, %v978
      %v980 = vpop.f32.mrb[0].mxu0
      %981 = vdwg.mxu0
      %982 = vmatprep.subr.mxu0 0.0
      %v983 = vand.u32 %v680, 4294901760
      %v984 = vsub.f32 %v680, %v983
      %v985 = vand.u32 %v984, 4294901760
      %986 = vmatpush1.xpose.msra.mxu0 %v985
      %987 = vmatprep.subr.mxu0 0.0
      %988 = vmatpush1.xpose.msra.mxu0 0.0
      %989 = vmatprep.subr.mxu0 0.0
      %990 = vmatpush1.xpose.msra.mxu0 0.0
      %991 = vmatprep.subr.mxu0 0.0
      %992 = vmatpush1.xpose.msra.mxu0 0.0
      %993 = vmatprep.subr.mxu0 0.0
      %994 = vmatpush1.xpose.msra.mxu0 0.0
      %995 = vmatprep.subr.mxu0 0.0
      %996 = vmatpush1.xpose.msra.mxu0 0.0
      %997 = vmatprep.subr.mxu0 0.0
      %998 = vmatpush1.xpose.msra.mxu0 0.0
      %999 = vmatprep.subr.mxu0 0.0
      %1000 = vmatpush1.xpose.msra.mxu0 0.0
      %1001 = vmatprep.subr.mxu0 0.0
      %1002 = vmatpush1.xpose.msra.mxu0 0.0
      %1003 = vmatprep.subr.mxu0 0.0
      %1004 = vmatpush1.xpose.msra.mxu0 0.0
      %1005 = vmatprep.subr.mxu0 0.0
      %1006 = vmatpush1.xpose.msra.mxu0 0.0
      %1007 = vmatprep.subr.mxu0 0.0
      %1008 = vmatpush1.xpose.msra.mxu0 0.0
      %1009 = vmatprep.subr.mxu0 0.0
      %1010 = vmatpush1.xpose.msra.mxu0 0.0
      %1011 = vmatprep.subr.mxu0 0.0
      %1012 = vmatpush1.xpose.msra.mxu0 0.0
      %1013 = vmatprep.subr.mxu0 0.0
      %1014 = vmatpush1.xpose.msra.mxu0 0.0
      %1015 = vmatprep.subr.mxu0 0.0
      %1016 = vmatpush1.xpose.msra.mxu0 0.0
      %1017 = vmatprep.subr.mxu0 0.0
      %1018 = vmatpush1.xpose.msra.mxu0 0.0
      %1019 = vmatprep.subr.mxu0 0.0
      %1020 = vmatpush1.xpose.msra.mxu0 0.0
      %1021 = vmatprep.subr.mxu0 0.0
      %1022 = vmatpush1.xpose.msra.mxu0 0.0
      %1023 = vmatprep.subr.mxu0 0.0
      %1024 = vmatpush1.xpose.msra.mxu0 0.0
      %1025 = vmatprep.subr.mxu0 0.0
      %1026 = vmatpush1.xpose.msra.mxu0 0.0
      %1027 = vmatprep.subr.mxu0 0.0
      %1028 = vmatpush1.xpose.msra.mxu0 0.0
      %1029 = vmatprep.subr.mxu0 0.0
      %1030 = vmatpush1.xpose.msra.mxu0 0.0
      %1031 = vmatprep.subr.mxu0 0.0
      %1032 = vmatpush1.xpose.msra.mxu0 0.0
      %1033 = vmatprep.subr.mxu0 0.0
      %1034 = vmatpush1.xpose.msra.mxu0 0.0
      %1035 = vmatprep.subr.mxu0 0.0
      %1036 = vmatpush1.xpose.msra.mxu0 0.0
      %1037 = vmatprep.subr.mxu0 0.0
      %1038 = vmatpush1.xpose.msra.mxu0 0.0
      %1039 = vmatprep.subr.mxu0 0.0
      %1040 = vmatpush1.xpose.msra.mxu0 0.0
      %1041 = vmatprep.subr.mxu0 0.0
      %1042 = vmatpush1.xpose.msra.mxu0 0.0
      %1043 = vmatprep.subr.mxu0 0.0
      %1044 = vmatpush1.xpose.msra.mxu0 0.0
      %1045 = vmatprep.subr.mxu0 0.0
      %1046 = vmatpush1.xpose.msra.mxu0 0.0
      %1047 = vmatprep.subr.mxu0 0.0
      %1048 = vmatpush1.xpose.msra.mxu0 0.0
      %1049 = vmatprep.mubr.f32.mxu0 0.0
      %v1050 = vand.u32 %v677, 4294901760
      %1051 = vmatmul.mubr.f32.gmra.mrb[0].mxu0 %v1050
      %v1052 = vpop.f32.mrb[0].mxu0
      %v1053 = vadd.f32 %v979, %v1052
      %v1054 = vpop.f32.mrb[0].mxu0
      %1055 = vdwg.mxu0
      %1056 = vmatprep.subr.mxu0 0.0
      %v1057 = vand.u32 %v680, 4294901760
      %1058 = vmatpush1.xpose.msra.mxu0 %v1057
      %1059 = vmatprep.subr.mxu0 0.0
      %1060 = vmatpush1.xpose.msra.mxu0 0.0
      %1061 = vmatprep.subr.mxu0 0.0
      %1062 = vmatpush1.xpose.msra.mxu0 0.0
      %1063 = vmatprep.subr.mxu0 0.0
      %1064 = vmatpush1.xpose.msra.mxu0 0.0
      %1065 = vmatprep.subr.mxu0 0.0
      %1066 = vmatpush1.xpose.msra.mxu0 0.0
      %1067 = vmatprep.subr.mxu0 0.0
      %1068 = vmatpush1.xpose.msra.mxu0 0.0
      %1069 = vmatprep.subr.mxu0 0.0
      %1070 = vmatpush1.xpose.msra.mxu0 0.0
      %1071 = vmatprep.subr.mxu0 0.0
      %1072 = vmatpush1.xpose.msra.mxu0 0.0
      %1073 = vmatprep.subr.mxu0 0.0
      %1074 = vmatpush1.xpose.msra.mxu0 0.0
      %1075 = vmatprep.subr.mxu0 0.0
      %1076 = vmatpush1.xpose.msra.mxu0 0.0
      %1077 = vmatprep.subr.mxu0 0.0
      %1078 = vmatpush1.xpose.msra.mxu0 0.0
      %1079 = vmatprep.subr.mxu0 0.0
      %1080 = vmatpush1.xpose.msra.mxu0 0.0
      %1081 = vmatprep.subr.mxu0 0.0
      %1082 = vmatpush1.xpose.msra.mxu0 0.0
      %1083 = vmatprep.subr.mxu0 0.0
      %1084 = vmatpush1.xpose.msra.mxu0 0.0
      %1085 = vmatprep.subr.mxu0 0.0
      %1086 = vmatpush1.xpose.msra.mxu0 0.0
      %1087 = vmatprep.subr.mxu0 0.0
      %1088 = vmatpush1.xpose.msra.mxu0 0.0
      %1089 = vmatprep.subr.mxu0 0.0
      %1090 = vmatpush1.xpose.msra.mxu0 0.0
      %1091 = vmatprep.subr.mxu0 0.0
      %1092 = vmatpush1.xpose.msra.mxu0 0.0
      %1093 = vmatprep.subr.mxu0 0.0
      %1094 = vmatpush1.xpose.msra.mxu0 0.0
      %1095 = vmatprep.subr.mxu0 0.0
      %1096 = vmatpush1.xpose.msra.mxu0 0.0
      %1097 = vmatprep.subr.mxu0 0.0
      %1098 = vmatpush1.xpose.msra.mxu0 0.0
      %1099 = vmatprep.subr.mxu0 0.0
      %1100 = vmatpush1.xpose.msra.mxu0 0.0
      %1101 = vmatprep.subr.mxu0 0.0
      %1102 = vmatpush1.xpose.msra.mxu0 0.0
      %1103 = vmatprep.subr.mxu0 0.0
      %1104 = vmatpush1.xpose.msra.mxu0 0.0
      %1105 = vmatprep.subr.mxu0 0.0
      %1106 = vmatpush1.xpose.msra.mxu0 0.0
      %1107 = vmatprep.subr.mxu0 0.0
      %1108 = vmatpush1.xpose.msra.mxu0 0.0
      %1109 = vmatprep.subr.mxu0 0.0
      %1110 = vmatpush1.xpose.msra.mxu0 0.0
      %1111 = vmatprep.subr.mxu0 0.0
      %1112 = vmatpush1.xpose.msra.mxu0 0.0
      %1113 = vmatprep.subr.mxu0 0.0
      %1114 = vmatpush1.xpose.msra.mxu0 0.0
      %1115 = vmatprep.subr.mxu0 0.0
      %1116 = vmatpush1.xpose.msra.mxu0 0.0
      %1117 = vmatprep.subr.mxu0 0.0
      %1118 = vmatpush1.xpose.msra.mxu0 0.0
      %1119 = vmatprep.subr.mxu0 0.0
      %1120 = vmatpush1.xpose.msra.mxu0 0.0
      %1121 = vmatprep.mubr.f32.mxu0 0.0
      %v1122 = vand.u32 %v677, 4294901760
      %1123 = vmatmul.mubr.f32.gmra.mrb[0].mxu0 %v1122
      %v1124 = vpop.f32.mrb[0].mxu0
      %v1125 = vadd.f32 %v1053, %v1124
      %v1126 = vpop.f32.mrb[0].mxu0
      %1127 = vdwg.mxu0
      %v1129 = vsel %vm223, %v213, 0
      %v1132 = vsel %vm223, %v217, 0
      %1134 = vmatprep.subr.mxu0 0.0
      %v1135 = vand.u32 %v1132, 4294901760
      %1136 = vmatpush1.xpose.msra.mxu0 %v1135
      %1137 = vmatprep.subr.mxu0 0.0
      %1138 = vmatpush1.xpose.msra.mxu0 0.0
      %1139 = vmatprep.subr.mxu0 0.0
      %1140 = vmatpush1.xpose.msra.mxu0 0.0
      %1141 = vmatprep.subr.mxu0 0.0
      %1142 = vmatpush1.xpose.msra.mxu0 0.0
      %1143 = vmatprep.subr.mxu0 0.0
      %1144 = vmatpush1.xpose.msra.mxu0 0.0
      %1145 = vmatprep.subr.mxu0 0.0
      %1146 = vmatpush1.xpose.msra.mxu0 0.0
      %1147 = vmatprep.subr.mxu0 0.0
      %1148 = vmatpush1.xpose.msra.mxu0 0.0
      %1149 = vmatprep.subr.mxu0 0.0
      %1150 = vmatpush1.xpose.msra.mxu0 0.0
      %1151 = vmatprep.subr.mxu0 0.0
      %1152 = vmatpush1.xpose.msra.mxu0 0.0
      %1153 = vmatprep.subr.mxu0 0.0
      %1154 = vmatpush1.xpose.msra.mxu0 0.0
      %1155 = vmatprep.subr.mxu0 0.0
      %1156 = vmatpush1.xpose.msra.mxu0 0.0
      %1157 = vmatprep.subr.mxu0 0.0
      %1158 = vmatpush1.xpose.msra.mxu0 0.0
      %1159 = vmatprep.subr.mxu0 0.0
      %1160 = vmatpush1.xpose.msra.mxu0 0.0
      %1161 = vmatprep.subr.mxu0 0.0
      %1162 = vmatpush1.xpose.msra.mxu0 0.0
      %1163 = vmatprep.subr.mxu0 0.0
      %1164 = vmatpush1.xpose.msra.mxu0 0.0
      %1165 = vmatprep.subr.mxu0 0.0
      %1166 = vmatpush1.xpose.msra.mxu0 0.0
      %1167 = vmatprep.subr.mxu0 0.0
      %1168 = vmatpush1.xpose.msra.mxu0 0.0
      %1169 = vmatprep.subr.mxu0 0.0
      %1170 = vmatpush1.xpose.msra.mxu0 0.0
      %1171 = vmatprep.subr.mxu0 0.0
      %1172 = vmatpush1.xpose.msra.mxu0 0.0
      %1173 = vmatprep.subr.mxu0 0.0
      %1174 = vmatpush1.xpose.msra.mxu0 0.0
      %1175 = vmatprep.subr.mxu0 0.0
      %1176 = vmatpush1.xpose.msra.mxu0 0.0
      %1177 = vmatprep.subr.mxu0 0.0
      %1178 = vmatpush1.xpose.msra.mxu0 0.0
      %1179 = vmatprep.subr.mxu0 0.0
      %1180 = vmatpush1.xpose.msra.mxu0 0.0
      %1181 = vmatprep.subr.mxu0 0.0
      %1182 = vmatpush1.xpose.msra.mxu0 0.0
      %1183 = vmatprep.subr.mxu0 0.0
      %1184 = vmatpush1.xpose.msra.mxu0 0.0
      %1185 = vmatprep.subr.mxu0 0.0
      %1186 = vmatpush1.xpose.msra.mxu0 0.0
      %1187 = vmatprep.subr.mxu0 0.0
      %1188 = vmatpush1.xpose.msra.mxu0 0.0
      %1189 = vmatprep.subr.mxu0 0.0
      %1190 = vmatpush1.xpose.msra.mxu0 0.0
      %1191 = vmatprep.subr.mxu0 0.0
      %1192 = vmatpush1.xpose.msra.mxu0 0.0
      %1193 = vmatprep.subr.mxu0 0.0
      %1194 = vmatpush1.xpose.msra.mxu0 0.0
      %1195 = vmatprep.subr.mxu0 0.0
      %1196 = vmatpush1.xpose.msra.mxu0 0.0
      %1197 = vmatprep.subr.mxu0 0.0
      %1198 = vmatpush1.xpose.msra.mxu0 0.0
      %1199 = vmatprep.mubr.f32.mxu0 0.0
      %v1200 = vand.u32 %v1129, 4294901760
      %v1201 = vsub.f32 %v1129, %v1200
      %v1202 = vand.u32 %v1201, 4294901760
      %v1203 = vsub.f32 %v1201, %v1202
      %v1204 = vand.u32 %v1203, 4294901760
      %1205 = vmatmul.mubr.f32.gmra.mrb[0].mxu0 %v1204
      %v1206 = vpop.f32.mrb[0].mxu0
      %v1207 = vadd.f32 0.0, %v1206
      %v1208 = vpop.f32.mrb[0].mxu0
      %1209 = vdwg.mxu0
      %1210 = vmatprep.subr.mxu0 0.0
      %v1211 = vand.u32 %v1132, 4294901760
      %v1212 = vsub.f32 %v1132, %v1211
      %v1213 = vand.u32 %v1212, 4294901760
      %v1214 = vsub.f32 %v1212, %v1213
      %v1215 = vand.u32 %v1214, 4294901760
      %1216 = vmatpush1.xpose.msra.mxu0 %v1215
      %1217 = vmatprep.subr.mxu0 0.0
      %1218 = vmatpush1.xpose.msra.mxu0 0.0
      %1219 = vmatprep.subr.mxu0 0.0
      %1220 = vmatpush1.xpose.msra.mxu0 0.0
      %1221 = vmatprep.subr.mxu0 0.0
      %1222 = vmatpush1.xpose.msra.mxu0 0.0
      %1223 = vmatprep.subr.mxu0 0.0
      %1224 = vmatpush1.xpose.msra.mxu0 0.0
      %1225 = vmatprep.subr.mxu0 0.0
      %1226 = vmatpush1.xpose.msra.mxu0 0.0
      %1227 = vmatprep.subr.mxu0 0.0
      %1228 = vmatpush1.xpose.msra.mxu0 0.0
      %1229 = vmatprep.subr.mxu0 0.0
      %1230 = vmatpush1.xpose.msra.mxu0 0.0
      %1231 = vmatprep.subr.mxu0 0.0
      %1232 = vmatpush1.xpose.msra.mxu0 0.0
      %1233 = vmatprep.subr.mxu0 0.0
      %1234 = vmatpush1.xpose.msra.mxu0 0.0
      %1235 = vmatprep.subr.mxu0 0.0
      %1236 = vmatpush1.xpose.msra.mxu0 0.0
      %1237 = vmatprep.subr.mxu0 0.0
      %1238 = vmatpush1.xpose.msra.mxu0 0.0
      %1239 = vmatprep.subr.mxu0 0.0
      %1240 = vmatpush1.xpose.msra.mxu0 0.0
      %1241 = vmatprep.subr.mxu0 0.0
      %1242 = vmatpush1.xpose.msra.mxu0 0.0
      %1243 = vmatprep.subr.mxu0 0.0
      %1244 = vmatpush1.xpose.msra.mxu0 0.0
      %1245 = vmatprep.subr.mxu0 0.0
      %1246 = vmatpush1.xpose.msra.mxu0 0.0
      %1247 = vmatprep.subr.mxu0 0.0
      %1248 = vmatpush1.xpose.msra.mxu0 0.0
      %1249 = vmatprep.subr.mxu0 0.0
      %1250 = vmatpush1.xpose.msra.mxu0 0.0
      %1251 = vmatprep.subr.mxu0 0.0
      %1252 = vmatpush1.xpose.msra.mxu0 0.0
      %1253 = vmatprep.subr.mxu0 0.0
      %1254 = vmatpush1.xpose.msra.mxu0 0.0
      %1255 = vmatprep.subr.mxu0 0.0
      %1256 = vmatpush1.xpose.msra.mxu0 0.0
      %1257 = vmatprep.subr.mxu0 0.0
      %1258 = vmatpush1.xpose.msra.mxu0 0.0
      %1259 = vmatprep.subr.mxu0 0.0
      %1260 = vmatpush1.xpose.msra.mxu0 0.0
      %1261 = vmatprep.subr.mxu0 0.0
      %1262 = vmatpush1.xpose.msra.mxu0 0.0
      %1263 = vmatprep.subr.mxu0 0.0
      %1264 = vmatpush1.xpose.msra.mxu0 0.0
      %1265 = vmatprep.subr.mxu0 0.0
      %1266 = vmatpush1.xpose.msra.mxu0 0.0
      %1267 = vmatprep.subr.mxu0 0.0
      %1268 = vmatpush1.xpose.msra.mxu0 0.0
      %1269 = vmatprep.subr.mxu0 0.0
      %1270 = vmatpush1.xpose.msra.mxu0 0.0
      %1271 = vmatprep.subr.mxu0 0.0
      %1272 = vmatpush1.xpose.msra.mxu0 0.0
      %1273 = vmatprep.subr.mxu0 0.0
      %1274 = vmatpush1.xpose.msra.mxu0 0.0
      %1275 = vmatprep.subr.mxu0 0.0
      %1276 = vmatpush1.xpose.msra.mxu0 0.0
      %1277 = vmatprep.subr.mxu0 0.0
      %1278 = vmatpush1.xpose.msra.mxu0 0.0
      %1279 = vmatprep.mubr.f32.mxu0 0.0
      %v1280 = vand.u32 %v1129, 4294901760
      %1281 = vmatmul.mubr.f32.gmra.mrb[0].mxu0 %v1280
      %v1282 = vpop.f32.mrb[0].mxu0
      %v1283 = vadd.f32 %v1207, %v1282
      %v1284 = vpop.f32.mrb[0].mxu0
      %1285 = vdwg.mxu0
      %1286 = vmatprep.subr.mxu0 0.0
      %v1287 = vand.u32 %v1132, 4294901760
      %v1288 = vsub.f32 %v1132, %v1287
      %1289 = vmatpush1.xpose.msra.mxu0 %v1288
      %1290 = vmatprep.subr.mxu0 0.0
      %1291 = vmatpush1.xpose.msra.mxu0 0.0
      %1292 = vmatprep.subr.mxu0 0.0
      %1293 = vmatpush1.xpose.msra.mxu0 0.0
      %1294 = vmatprep.subr.mxu0 0.0
      %1295 = vmatpush1.xpose.msra.mxu0 0.0
      %1296 = vmatprep.subr.mxu0 0.0
      %1297 = vmatpush1.xpose.msra.mxu0 0.0
      %1298 = vmatprep.subr.mxu0 0.0
      %1299 = vmatpush1.xpose.msra.mxu0 0.0
      %1300 = vmatprep.subr.mxu0 0.0
      %1301 = vmatpush1.xpose.msra.mxu0 0.0
      %1302 = vmatprep.subr.mxu0 0.0
      %1303 = vmatpush1.xpose.msra.mxu0 0.0
      %1304 = vmatprep.subr.mxu0 0.0
      %1305 = vmatpush1.xpose.msra.mxu0 0.0
      %1306 = vmatprep.subr.mxu0 0.0
      %1307 = vmatpush1.xpose.msra.mxu0 0.0
      %1308 = vmatprep.subr.mxu0 0.0
      %1309 = vmatpush1.xpose.msra.mxu0 0.0
      %1310 = vmatprep.subr.mxu0 0.0
      %1311 = vmatpush1.xpose.msra.mxu0 0.0
      %1312 = vmatprep.subr.mxu0 0.0
      %1313 = vmatpush1.xpose.msra.mxu0 0.0
      %1314 = vmatprep.subr.mxu0 0.0
      %1315 = vmatpush1.xpose.msra.mxu0 0.0
      %1316 = vmatprep.subr.mxu0 0.0
      %1317 = vmatpush1.xpose.msra.mxu0 0.0
      %1318 = vmatprep.subr.mxu0 0.0
      %1319 = vmatpush1.xpose.msra.mxu0 0.0
      %1320 = vmatprep.subr.mxu0 0.0
      %1321 = vmatpush1.xpose.msra.mxu0 0.0
      %1322 = vmatprep.subr.mxu0 0.0
      %1323 = vmatpush1.xpose.msra.mxu0 0.0
      %1324 = vmatprep.subr.mxu0 0.0
      %1325 = vmatpush1.xpose.msra.mxu0 0.0
      %1326 = vmatprep.subr.mxu0 0.0
      %1327 = vmatpush1.xpose.msra.mxu0 0.0
      %1328 = vmatprep.subr.mxu0 0.0
      %1329 = vmatpush1.xpose.msra.mxu0 0.0
      %1330 = vmatprep.subr.mxu0 0.0
      %1331 = vmatpush1.xpose.msra.mxu0 0.0
      %1332 = vmatprep.subr.mxu0 0.0
      %1333 = vmatpush1.xpose.msra.mxu0 0.0
      %1334 = vmatprep.subr.mxu0 0.0
      %1335 = vmatpush1.xpose.msra.mxu0 0.0
      %1336 = vmatprep.subr.mxu0 0.0
      %1337 = vmatpush1.xpose.msra.mxu0 0.0
      %1338 = vmatprep.subr.mxu0 0.0
      %1339 = vmatpush1.xpose.msra.mxu0 0.0
      %1340 = vmatprep.subr.mxu0 0.0
      %1341 = vmatpush1.xpose.msra.mxu0 0.0
      %1342 = vmatprep.subr.mxu0 0.0
      %1343 = vmatpush1.xpose.msra.mxu0 0.0
      %1344 = vmatprep.subr.mxu0 0.0
      %1345 = vmatpush1.xpose.msra.mxu0 0.0
      %1346 = vmatprep.subr.mxu0 0.0
      %1347 = vmatpush1.xpose.msra.mxu0 0.0
      %1348 = vmatprep.subr.mxu0 0.0
      %1349 = vmatpush1.xpose.msra.mxu0 0.0
      %1350 = vmatprep.subr.mxu0 0.0
      %1351 = vmatpush1.xpose.msra.mxu0 0.0
      %1352 = vmatprep.mubr.f32.mxu0 0.0
      %v1353 = vand.u32 %v1129, 4294901760
      %v1354 = vsub.f32 %v1129, %v1353
      %1355 = vmatmul.mubr.f32.gmra.mrb[0].mxu0 %v1354
      %v1356 = vpop.f32.mrb[0].mxu0
      %v1357 = vadd.f32 %v1283, %v1356
      %v1358 = vpop.f32.mrb[0].mxu0
      %1359 = vdwg.mxu0
      %1360 = vmatprep.subr.mxu0 0.0
      %v1361 = vand.u32 %v1132, 4294901760
      %1362 = vmatpush1.xpose.msra.mxu0 %v1361
      %1363 = vmatprep.subr.mxu0 0.0
      %1364 = vmatpush1.xpose.msra.mxu0 0.0
      %1365 = vmatprep.subr.mxu0 0.0
      %1366 = vmatpush1.xpose.msra.mxu0 0.0
      %1367 = vmatprep.subr.mxu0 0.0
      %1368 = vmatpush1.xpose.msra.mxu0 0.0
      %1369 = vmatprep.subr.mxu0 0.0
      %1370 = vmatpush1.xpose.msra.mxu0 0.0
      %1371 = vmatprep.subr.mxu0 0.0
      %1372 = vmatpush1.xpose.msra.mxu0 0.0
      %1373 = vmatprep.subr.mxu0 0.0
      %1374 = vmatpush1.xpose.msra.mxu0 0.0
      %1375 = vmatprep.subr.mxu0 0.0
      %1376 = vmatpush1.xpose.msra.mxu0 0.0
      %1377 = vmatprep.subr.mxu0 0.0
      %1378 = vmatpush1.xpose.msra.mxu0 0.0
      %1379 = vmatprep.subr.mxu0 0.0
      %1380 = vmatpush1.xpose.msra.mxu0 0.0
      %1381 = vmatprep.subr.mxu0 0.0
      %1382 = vmatpush1.xpose.msra.mxu0 0.0
      %1383 = vmatprep.subr.mxu0 0.0
      %1384 = vmatpush1.xpose.msra.mxu0 0.0
      %1385 = vmatprep.subr.mxu0 0.0
      %1386 = vmatpush1.xpose.msra.mxu0 0.0
      %1387 = vmatprep.subr.mxu0 0.0
      %1388 = vmatpush1.xpose.msra.mxu0 0.0
      %1389 = vmatprep.subr.mxu0 0.0
      %1390 = vmatpush1.xpose.msra.mxu0 0.0
      %1391 = vmatprep.subr.mxu0 0.0
      %1392 = vmatpush1.xpose.msra.mxu0 0.0
      %1393 = vmatprep.subr.mxu0 0.0
      %1394 = vmatpush1.xpose.msra.mxu0 0.0
      %1395 = vmatprep.subr.mxu0 0.0
      %1396 = vmatpush1.xpose.msra.mxu0 0.0
      %1397 = vmatprep.subr.mxu0 0.0
      %1398 = vmatpush1.xpose.msra.mxu0 0.0
      %1399 = vmatprep.subr.mxu0 0.0
      %1400 = vmatpush1.xpose.msra.mxu0 0.0
      %1401 = vmatprep.subr.mxu0 0.0
      %1402 = vmatpush1.xpose.msra.mxu0 0.0
      %1403 = vmatprep.subr.mxu0 0.0
      %1404 = vmatpush1.xpose.msra.mxu0 0.0
      %1405 = vmatprep.subr.mxu0 0.0
      %1406 = vmatpush1.xpose.msra.mxu0 0.0
      %1407 = vmatprep.subr.mxu0 0.0
      %1408 = vmatpush1.xpose.msra.mxu0 0.0
      %1409 = vmatprep.subr.mxu0 0.0
      %1410 = vmatpush1.xpose.msra.mxu0 0.0
      %1411 = vmatprep.subr.mxu0 0.0
      %1412 = vmatpush1.xpose.msra.mxu0 0.0
      %1413 = vmatprep.subr.mxu0 0.0
      %1414 = vmatpush1.xpose.msra.mxu0 0.0
      %1415 = vmatprep.subr.mxu0 0.0
      %1416 = vmatpush1.xpose.msra.mxu0 0.0
      %1417 = vmatprep.subr.mxu0 0.0
      %1418 = vmatpush1.xpose.msra.mxu0 0.0
      %1419 = vmatprep.subr.mxu0 0.0
      %1420 = vmatpush1.xpose.msra.mxu0 0.0
      %1421 = vmatprep.subr.mxu0 0.0
      %1422 = vmatpush1.xpose.msra.mxu0 0.0
      %1423 = vmatprep.subr.mxu0 0.0
      %1424 = vmatpush1.xpose.msra.mxu0 0.0
      %1425 = vmatprep.mubr.f32.mxu0 0.0
      %v1426 = vand.u32 %v1129, 4294901760
      %v1427 = vsub.f32 %v1129, %v1426
      %v1428 = vand.u32 %v1427, 4294901760
      %1429 = vmatmul.mubr.f32.gmra.mrb[0].mxu0 %v1428
      %v1430 = vpop.f32.mrb[0].mxu0
      %v1431 = vadd.f32 %v1357, %v1430
      %v1432 = vpop.f32.mrb[0].mxu0
      %1433 = vdwg.mxu0
      %1434 = vmatprep.subr.mxu0 0.0
      %v1435 = vand.u32 %v1132, 4294901760
      %v1436 = vsub.f32 %v1132, %v1435
      %v1437 = vand.u32 %v1436, 4294901760
      %1438 = vmatpush1.xpose.msra.mxu0 %v1437
      %1439 = vmatprep.subr.mxu0 0.0
      %1440 = vmatpush1.xpose.msra.mxu0 0.0
      %1441 = vmatprep.subr.mxu0 0.0
      %1442 = vmatpush1.xpose.msra.mxu0 0.0
      %1443 = vmatprep.subr.mxu0 0.0
      %1444 = vmatpush1.xpose.msra.mxu0 0.0
      %1445 = vmatprep.subr.mxu0 0.0
      %1446 = vmatpush1.xpose.msra.mxu0 0.0
      %1447 = vmatprep.subr.mxu0 0.0
      %1448 = vmatpush1.xpose.msra.mxu0 0.0
      %1449 = vmatprep.subr.mxu0 0.0
      %1450 = vmatpush1.xpose.msra.mxu0 0.0
      %1451 = vmatprep.subr.mxu0 0.0
      %1452 = vmatpush1.xpose.msra.mxu0 0.0
      %1453 = vmatprep.subr.mxu0 0.0
      %1454 = vmatpush1.xpose.msra.mxu0 0.0
      %1455 = vmatprep.subr.mxu0 0.0
      %1456 = vmatpush1.xpose.msra.mxu0 0.0
      %1457 = vmatprep.subr.mxu0 0.0
      %1458 = vmatpush1.xpose.msra.mxu0 0.0
      %1459 = vmatprep.subr.mxu0 0.0
      %1460 = vmatpush1.xpose.msra.mxu0 0.0
      %1461 = vmatprep.subr.mxu0 0.0
      %1462 = vmatpush1.xpose.msra.mxu0 0.0
      %1463 = vmatprep.subr.mxu0 0.0
      %1464 = vmatpush1.xpose.msra.mxu0 0.0
      %1465 = vmatprep.subr.mxu0 0.0
      %1466 = vmatpush1.xpose.msra.mxu0 0.0
      %1467 = vmatprep.subr.mxu0 0.0
      %1468 = vmatpush1.xpose.msra.mxu0 0.0
      %1469 = vmatprep.subr.mxu0 0.0
      %1470 = vmatpush1.xpose.msra.mxu0 0.0
      %1471 = vmatprep.subr.mxu0 0.0
      %1472 = vmatpush1.xpose.msra.mxu0 0.0
      %1473 = vmatprep.subr.mxu0 0.0
      %1474 = vmatpush1.xpose.msra.mxu0 0.0
      %1475 = vmatprep.subr.mxu0 0.0
      %1476 = vmatpush1.xpose.msra.mxu0 0.0
      %1477 = vmatprep.subr.mxu0 0.0
      %1478 = vmatpush1.xpose.msra.mxu0 0.0
      %1479 = vmatprep.subr.mxu0 0.0
      %1480 = vmatpush1.xpose.msra.mxu0 0.0
      %1481 = vmatprep.subr.mxu0 0.0
      %1482 = vmatpush1.xpose.msra.mxu0 0.0
      %1483 = vmatprep.subr.mxu0 0.0
      %1484 = vmatpush1.xpose.msra.mxu0 0.0
      %1485 = vmatprep.subr.mxu0 0.0
      %1486 = vmatpush1.xpose.msra.mxu0 0.0
      %1487 = vmatprep.subr.mxu0 0.0
      %1488 = vmatpush1.xpose.msra.mxu0 0.0
      %1489 = vmatprep.subr.mxu0 0.0
      %1490 = vmatpush1.xpose.msra.mxu0 0.0
      %1491 = vmatprep.subr.mxu0 0.0
      %1492 = vmatpush1.xpose.msra.mxu0 0.0
      %1493 = vmatprep.subr.mxu0 0.0
      %1494 = vmatpush1.xpose.msra.mxu0 0.0
      %1495 = vmatprep.subr.mxu0 0.0
      %1496 = vmatpush1.xpose.msra.mxu0 0.0
      %1497 = vmatprep.subr.mxu0 0.0
      %1498 = vmatpush1.xpose.msra.mxu0 0.0
      %1499 = vmatprep.subr.mxu0 0.0
      %1500 = vmatpush1.xpose.msra.mxu0 0.0
      %1501 = vmatprep.mubr.f32.mxu0 0.0
      %v1502 = vand.u32 %v1129, 4294901760
      %1503 = vmatmul.mubr.f32.gmra.mrb[0].mxu0 %v1502
      %v1504 = vpop.f32.mrb[0].mxu0
      %v1505 = vadd.f32 %v1431, %v1504
      %v1506 = vpop.f32.mrb[0].mxu0
      %1507 = vdwg.mxu0
      %1508 = vmatprep.subr.mxu0 0.0
      %v1509 = vand.u32 %v1132, 4294901760
      %1510 = vmatpush1.xpose.msra.mxu0 %v1509
      %1511 = vmatprep.subr.mxu0 0.0
      %1512 = vmatpush1.xpose.msra.mxu0 0.0
      %1513 = vmatprep.subr.mxu0 0.0
      %1514 = vmatpush1.xpose.msra.mxu0 0.0
      %1515 = vmatprep.subr.mxu0 0.0
      %1516 = vmatpush1.xpose.msra.mxu0 0.0
      %1517 = vmatprep.subr.mxu0 0.0
      %1518 = vmatpush1.xpose.msra.mxu0 0.0
      %1519 = vmatprep.subr.mxu0 0.0
      %1520 = vmatpush1.xpose.msra.mxu0 0.0
      %1521 = vmatprep.subr.mxu0 0.0
      %1522 = vmatpush1.xpose.msra.mxu0 0.0
      %1523 = vmatprep.subr.mxu0 0.0
      %1524 = vmatpush1.xpose.msra.mxu0 0.0
      %1525 = vmatprep.subr.mxu0 0.0
      %1526 = vmatpush1.xpose.msra.mxu0 0.0
      %1527 = vmatprep.subr.mxu0 0.0
      %1528 = vmatpush1.xpose.msra.mxu0 0.0
      %1529 = vmatprep.subr.mxu0 0.0
      %1530 = vmatpush1.xpose.msra.mxu0 0.0
      %1531 = vmatprep.subr.mxu0 0.0
      %1532 = vmatpush1.xpose.msra.mxu0 0.0
      %1533 = vmatprep.subr.mxu0 0.0
      %1534 = vmatpush1.xpose.msra.mxu0 0.0
      %1535 = vmatprep.subr.mxu0 0.0
      %1536 = vmatpush1.xpose.msra.mxu0 0.0
      %1537 = vmatprep.subr.mxu0 0.0
      %1538 = vmatpush1.xpose.msra.mxu0 0.0
      %1539 = vmatprep.subr.mxu0 0.0
      %1540 = vmatpush1.xpose.msra.mxu0 0.0
      %1541 = vmatprep.subr.mxu0 0.0
      %1542 = vmatpush1.xpose.msra.mxu0 0.0
      %1543 = vmatprep.subr.mxu0 0.0
      %1544 = vmatpush1.xpose.msra.mxu0 0.0
      %1545 = vmatprep.subr.mxu0 0.0
      %1546 = vmatpush1.xpose.msra.mxu0 0.0
      %1547 = vmatprep.subr.mxu0 0.0
      %1548 = vmatpush1.xpose.msra.mxu0 0.0
      %1549 = vmatprep.subr.mxu0 0.0
      %1550 = vmatpush1.xpose.msra.mxu0 0.0
      %1551 = vmatprep.subr.mxu0 0.0
      %1552 = vmatpush1.xpose.msra.mxu0 0.0
      %1553 = vmatprep.subr.mxu0 0.0
      %1554 = vmatpush1.xpose.msra.mxu0 0.0
      %1555 = vmatprep.subr.mxu0 0.0
      %1556 = vmatpush1.xpose.msra.mxu0 0.0
      %1557 = vmatprep.subr.mxu0 0.0
      %1558 = vmatpush1.xpose.msra.mxu0 0.0
      %1559 = vmatprep.subr.mxu0 0.0
      %1560 = vmatpush1.xpose.msra.mxu0 0.0
      %1561 = vmatprep.subr.mxu0 0.0
      %1562 = vmatpush1.xpose.msra.mxu0 0.0
      %1563 = vmatprep.subr.mxu0 0.0
      %1564 = vmatpush1.xpose.msra.mxu0 0.0
      %1565 = vmatprep.subr.mxu0 0.0
      %1566 = vmatpush1.xpose.msra.mxu0 0.0
      %1567 = vmatprep.subr.mxu0 0.0
      %1568 = vmatpush1.xpose.msra.mxu0 0.0
      %1569 = vmatprep.subr.mxu0 0.0
      %1570 = vmatpush1.xpose.msra.mxu0 0.0
      %1571 = vmatprep.subr.mxu0 0.0
      %1572 = vmatpush1.xpose.msra.mxu0 0.0
      %1573 = vmatprep.mubr.f32.mxu0 0.0
      %v1574 = vand.u32 %v1129, 4294901760
      %1575 = vmatmul.mubr.f32.gmra.mrb[0].mxu0 %v1574
      %v1576 = vpop.f32.mrb[0].mxu0
      %v1577 = vadd.f32 %v1505, %v1576
      %v1578 = vpop.f32.mrb[0].mxu0
      %1579 = vdwg.mxu0
      %v1581 = vsel %vm223, %v214, 0
      %v1584 = vsel %vm223, %v218, 0
      %1586 = vmatprep.subr.mxu0 0.0
      %v1587 = vand.u32 %v1584, 4294901760
      %1588 = vmatpush1.xpose.msra.mxu0 %v1587
      %1589 = vmatprep.subr.mxu0 0.0
      %1590 = vmatpush1.xpose.msra.mxu0 0.0
      %1591 = vmatprep.subr.mxu0 0.0
      %1592 = vmatpush1.xpose.msra.mxu0 0.0
      %1593 = vmatprep.subr.mxu0 0.0
      %1594 = vmatpush1.xpose.msra.mxu0 0.0
      %1595 = vmatprep.subr.mxu0 0.0
      %1596 = vmatpush1.xpose.msra.mxu0 0.0
      %1597 = vmatprep.subr.mxu0 0.0
      %1598 = vmatpush1.xpose.msra.mxu0 0.0
      %1599 = vmatprep.subr.mxu0 0.0
      %1600 = vmatpush1.xpose.msra.mxu0 0.0
      %1601 = vmatprep.subr.mxu0 0.0
      %1602 = vmatpush1.xpose.msra.mxu0 0.0
      %1603 = vmatprep.subr.mxu0 0.0
      %1604 = vmatpush1.xpose.msra.mxu0 0.0
      %1605 = vmatprep.subr.mxu0 0.0
      %1606 = vmatpush1.xpose.msra.mxu0 0.0
      %1607 = vmatprep.subr.mxu0 0.0
      %1608 = vmatpush1.xpose.msra.mxu0 0.0
      %1609 = vmatprep.subr.mxu0 0.0
      %1610 = vmatpush1.xpose.msra.mxu0 0.0
      %1611 = vmatprep.subr.mxu0 0.0
      %1612 = vmatpush1.xpose.msra.mxu0 0.0
      %1613 = vmatprep.subr.mxu0 0.0
      %1614 = vmatpush1.xpose.msra.mxu0 0.0
      %1615 = vmatprep.subr.mxu0 0.0
      %1616 = vmatpush1.xpose.msra.mxu0 0.0
      %1617 = vmatprep.subr.mxu0 0.0
      %1618 = vmatpush1.xpose.msra.mxu0 0.0
      %1619 = vmatprep.subr.mxu0 0.0
      %1620 = vmatpush1.xpose.msra.mxu0 0.0
      %1621 = vmatprep.subr.mxu0 0.0
      %1622 = vmatpush1.xpose.msra.mxu0 0.0
      %1623 = vmatprep.subr.mxu0 0.0
      %1624 = vmatpush1.xpose.msra.mxu0 0.0
      %1625 = vmatprep.subr.mxu0 0.0
      %1626 = vmatpush1.xpose.msra.mxu0 0.0
      %1627 = vmatprep.subr.mxu0 0.0
      %1628 = vmatpush1.xpose.msra.mxu0 0.0
      %1629 = vmatprep.subr.mxu0 0.0
      %1630 = vmatpush1.xpose.msra.mxu0 0.0
      %1631 = vmatprep.subr.mxu0 0.0
      %1632 = vmatpush1.xpose.msra.mxu0 0.0
      %1633 = vmatprep.subr.mxu0 0.0
      %1634 = vmatpush1.xpose.msra.mxu0 0.0
      %1635 = vmatprep.subr.mxu0 0.0
      %1636 = vmatpush1.xpose.msra.mxu0 0.0
      %1637 = vmatprep.subr.mxu0 0.0
      %1638 = vmatpush1.xpose.msra.mxu0 0.0
      %1639 = vmatprep.subr.mxu0 0.0
      %1640 = vmatpush1.xpose.msra.mxu0 0.0
      %1641 = vmatprep.subr.mxu0 0.0
      %1642 = vmatpush1.xpose.msra.mxu0 0.0
      %1643 = vmatprep.subr.mxu0 0.0
      %1644 = vmatpush1.xpose.msra.mxu0 0.0
      %1645 = vmatprep.subr.mxu0 0.0
      %1646 = vmatpush1.xpose.msra.mxu0 0.0
      %1647 = vmatprep.subr.mxu0 0.0
      %1648 = vmatpush1.xpose.msra.mxu0 0.0
      %1649 = vmatprep.subr.mxu0 0.0
      %1650 = vmatpush1.xpose.msra.mxu0 0.0
      %1651 = vmatprep.mubr.f32.mxu0 0.0
      %v1652 = vand.u32 %v1581, 4294901760
      %v1653 = vsub.f32 %v1581, %v1652
      %v1654 = vand.u32 %v1653, 4294901760
      %v1655 = vsub.f32 %v1653, %v1654
      %v1656 = vand.u32 %v1655, 4294901760
      %1657 = vmatmul.mubr.f32.gmra.mrb[0].mxu0 %v1656
      %v1658 = vpop.f32.mrb[0].mxu0
      %v1659 = vadd.f32 0.0, %v1658
      %v1660 = vpop.f32.mrb[0].mxu0
      %1661 = vdwg.mxu0
      %1662 = vmatprep.subr.mxu0 0.0
      %v1663 = vand.u32 %v1584, 4294901760
      %v1664 = vsub.f32 %v1584, %v1663
      %v1665 = vand.u32 %v1664, 4294901760
      %v1666 = vsub.f32 %v1664, %v1665
      %v1667 = vand.u32 %v1666, 4294901760
      %1668 = vmatpush1.xpose.msra.mxu0 %v1667
      %1669 = vmatprep.subr.mxu0 0.0
      %1670 = vmatpush1.xpose.msra.mxu0 0.0
      %1671 = vmatprep.subr.mxu0 0.0
      %1672 = vmatpush1.xpose.msra.mxu0 0.0
      %1673 = vmatprep.subr.mxu0 0.0
      %1674 = vmatpush1.xpose.msra.mxu0 0.0
      %1675 = vmatprep.subr.mxu0 0.0
      %1676 = vmatpush1.xpose.msra.mxu0 0.0
      %1677 = vmatprep.subr.mxu0 0.0
      %1678 = vmatpush1.xpose.msra.mxu0 0.0
      %1679 = vmatprep.subr.mxu0 0.0
      %1680 = vmatpush1.xpose.msra.mxu0 0.0
      %1681 = vmatprep.subr.mxu0 0.0
      %1682 = vmatpush1.xpose.msra.mxu0 0.0
      %1683 = vmatprep.subr.mxu0 0.0
      %1684 = vmatpush1.xpose.msra.mxu0 0.0
      %1685 = vmatprep.subr.mxu0 0.0
      %1686 = vmatpush1.xpose.msra.mxu0 0.0
      %1687 = vmatprep.subr.mxu0 0.0
      %1688 = vmatpush1.xpose.msra.mxu0 0.0
      %1689 = vmatprep.subr.mxu0 0.0
      %1690 = vmatpush1.xpose.msra.mxu0 0.0
      %1691 = vmatprep.subr.mxu0 0.0
      %1692 = vmatpush1.xpose.msra.mxu0 0.0
      %1693 = vmatprep.subr.mxu0 0.0
      %1694 = vmatpush1.xpose.msra.mxu0 0.0
      %1695 = vmatprep.subr.mxu0 0.0
      %1696 = vmatpush1.xpose.msra.mxu0 0.0
      %1697 = vmatprep.subr.mxu0 0.0
      %1698 = vmatpush1.xpose.msra.mxu0 0.0
      %1699 = vmatprep.subr.mxu0 0.0
      %1700 = vmatpush1.xpose.msra.mxu0 0.0
      %1701 = vmatprep.subr.mxu0 0.0
      %1702 = vmatpush1.xpose.msra.mxu0 0.0
      %1703 = vmatprep.subr.mxu0 0.0
      %1704 = vmatpush1.xpose.msra.mxu0 0.0
      %1705 = vmatprep.subr.mxu0 0.0
      %1706 = vmatpush1.xpose.msra.mxu0 0.0
      %1707 = vmatprep.subr.mxu0 0.0
      %1708 = vmatpush1.xpose.msra.mxu0 0.0
      %1709 = vmatprep.subr.mxu0 0.0
      %1710 = vmatpush1.xpose.msra.mxu0 0.0
      %1711 = vmatprep.subr.mxu0 0.0
      %1712 = vmatpush1.xpose.msra.mxu0 0.0
      %1713 = vmatprep.subr.mxu0 0.0
      %1714 = vmatpush1.xpose.msra.mxu0 0.0
      %1715 = vmatprep.subr.mxu0 0.0
      %1716 = vmatpush1.xpose.msra.mxu0 0.0
      %1717 = vmatprep.subr.mxu0 0.0
      %1718 = vmatpush1.xpose.msra.mxu0 0.0
      %1719 = vmatprep.subr.mxu0 0.0
      %1720 = vmatpush1.xpose.msra.mxu0 0.0
      %1721 = vmatprep.subr.mxu0 0.0
      %1722 = vmatpush1.xpose.msra.mxu0 0.0
      %1723 = vmatprep.subr.mxu0 0.0
      %1724 = vmatpush1.xpose.msra.mxu0 0.0
      %1725 = vmatprep.subr.mxu0 0.0
      %1726 = vmatpush1.xpose.msra.mxu0 0.0
      %1727 = vmatprep.subr.mxu0 0.0
      %1728 = vmatpush1.xpose.msra.mxu0 0.0
      %1729 = vmatprep.subr.mxu0 0.0
      %1730 = vmatpush1.xpose.msra.mxu0 0.0
      %1731 = vmatprep.mubr.f32.mxu0 0.0
      %v1732 = vand.u32 %v1581, 4294901760
      %1733 = vmatmul.mubr.f32.gmra.mrb[0].mxu0 %v1732
      %v1734 = vpop.f32.mrb[0].mxu0
      %v1735 = vadd.f32 %v1659, %v1734
      %v1736 = vpop.f32.mrb[0].mxu0
      %1737 = vdwg.mxu0
      %1738 = vmatprep.subr.mxu0 0.0
      %v1739 = vand.u32 %v1584, 4294901760
      %v1740 = vsub.f32 %v1584, %v1739
      %1741 = vmatpush1.xpose.msra.mxu0 %v1740
      %1742 = vmatprep.subr.mxu0 0.0
      %1743 = vmatpush1.xpose.msra.mxu0 0.0
      %1744 = vmatprep.subr.mxu0 0.0
      %1745 = vmatpush1.xpose.msra.mxu0 0.0
      %1746 = vmatprep.subr.mxu0 0.0
      %1747 = vmatpush1.xpose.msra.mxu0 0.0
      %1748 = vmatprep.subr.mxu0 0.0
      %1749 = vmatpush1.xpose.msra.mxu0 0.0
      %1750 = vmatprep.subr.mxu0 0.0
      %1751 = vmatpush1.xpose.msra.mxu0 0.0
      %1752 = vmatprep.subr.mxu0 0.0
      %1753 = vmatpush1.xpose.msra.mxu0 0.0
      %1754 = vmatprep.subr.mxu0 0.0
      %1755 = vmatpush1.xpose.msra.mxu0 0.0
      %1756 = vmatprep.subr.mxu0 0.0
      %1757 = vmatpush1.xpose.msra.mxu0 0.0
      %1758 = vmatprep.subr.mxu0 0.0
      %1759 = vmatpush1.xpose.msra.mxu0 0.0
      %1760 = vmatprep.subr.mxu0 0.0
      %1761 = vmatpush1.xpose.msra.mxu0 0.0
      %1762 = vmatprep.subr.mxu0 0.0
      %1763 = vmatpush1.xpose.msra.mxu0 0.0
      %1764 = vmatprep.subr.mxu0 0.0
      %1765 = vmatpush1.xpose.msra.mxu0 0.0
      %1766 = vmatprep.subr.mxu0 0.0
      %1767 = vmatpush1.xpose.msra.mxu0 0.0
      %1768 = vmatprep.subr.mxu0 0.0
      %1769 = vmatpush1.xpose.msra.mxu0 0.0
      %1770 = vmatprep.subr.mxu0 0.0
      %1771 = vmatpush1.xpose.msra.mxu0 0.0
      %1772 = vmatprep.subr.mxu0 0.0
      %1773 = vmatpush1.xpose.msra.mxu0 0.0
      %1774 = vmatprep.subr.mxu0 0.0
      %1775 = vmatpush1.xpose.msra.mxu0 0.0
      %1776 = vmatprep.subr.mxu0 0.0
      %1777 = vmatpush1.xpose.msra.mxu0 0.0
      %1778 = vmatprep.subr.mxu0 0.0
      %1779 = vmatpush1.xpose.msra.mxu0 0.0
      %1780 = vmatprep.subr.mxu0 0.0
      %1781 = vmatpush1.xpose.msra.mxu0 0.0
      %1782 = vmatprep.subr.mxu0 0.0
      %1783 = vmatpush1.xpose.msra.mxu0 0.0
      %1784 = vmatprep.subr.mxu0 0.0
      %1785 = vmatpush1.xpose.msra.mxu0 0.0
      %1786 = vmatprep.subr.mxu0 0.0
      %1787 = vmatpush1.xpose.msra.mxu0 0.0
      %1788 = vmatprep.subr.mxu0 0.0
      %1789 = vmatpush1.xpose.msra.mxu0 0.0
      %1790 = vmatprep.subr.mxu0 0.0
      %1791 = vmatpush1.xpose.msra.mxu0 0.0
      %1792 = vmatprep.subr.mxu0 0.0
      %1793 = vmatpush1.xpose.msra.mxu0 0.0
      %1794 = vmatprep.subr.mxu0 0.0
      %1795 = vmatpush1.xpose.msra.mxu0 0.0
      %1796 = vmatprep.subr.mxu0 0.0
      %1797 = vmatpush1.xpose.msra.mxu0 0.0
      %1798 = vmatprep.subr.mxu0 0.0
      %1799 = vmatpush1.xpose.msra.mxu0 0.0
      %1800 = vmatprep.subr.mxu0 0.0
      %1801 = vmatpush1.xpose.msra.mxu0 0.0
      %1802 = vmatprep.subr.mxu0 0.0
      %1803 = vmatpush1.xpose.msra.mxu0 0.0
      %1804 = vmatprep.mubr.f32.mxu0 0.0
      %v1805 = vand.u32 %v1581, 4294901760
      %v1806 = vsub.f32 %v1581, %v1805
      %1807 = vmatmul.mubr.f32.gmra.mrb[0].mxu0 %v1806
      %v1808 = vpop.f32.mrb[0].mxu0
      %v1809 = vadd.f32 %v1735, %v1808
      %v1810 = vpop.f32.mrb[0].mxu0
      %1811 = vdwg.mxu0
      %1812 = vmatprep.subr.mxu0 0.0
      %v1813 = vand.u32 %v1584, 4294901760
      %1814 = vmatpush1.xpose.msra.mxu0 %v1813
      %1815 = vmatprep.subr.mxu0 0.0
      %1816 = vmatpush1.xpose.msra.mxu0 0.0
      %1817 = vmatprep.subr.mxu0 0.0
      %1818 = vmatpush1.xpose.msra.mxu0 0.0
      %1819 = vmatprep.subr.mxu0 0.0
      %1820 = vmatpush1.xpose.msra.mxu0 0.0
      %1821 = vmatprep.subr.mxu0 0.0
      %1822 = vmatpush1.xpose.msra.mxu0 0.0
      %1823 = vmatprep.subr.mxu0 0.0
      %1824 = vmatpush1.xpose.msra.mxu0 0.0
      %1825 = vmatprep.subr.mxu0 0.0
      %1826 = vmatpush1.xpose.msra.mxu0 0.0
      %1827 = vmatprep.subr.mxu0 0.0
      %1828 = vmatpush1.xpose.msra.mxu0 0.0
      %1829 = vmatprep.subr.mxu0 0.0
      %1830 = vmatpush1.xpose.msra.mxu0 0.0
      %1831 = vmatprep.subr.mxu0 0.0
      %1832 = vmatpush1.xpose.msra.mxu0 0.0
      %1833 = vmatprep.subr.mxu0 0.0
      %1834 = vmatpush1.xpose.msra.mxu0 0.0
      %1835 = vmatprep.subr.mxu0 0.0
      %1836 = vmatpush1.xpose.msra.mxu0 0.0
      %1837 = vmatprep.subr.mxu0 0.0
      %1838 = vmatpush1.xpose.msra.mxu0 0.0
      %1839 = vmatprep.subr.mxu0 0.0
      %1840 = vmatpush1.xpose.msra.mxu0 0.0
      %1841 = vmatprep.subr.mxu0 0.0
      %1842 = vmatpush1.xpose.msra.mxu0 0.0
      %1843 = vmatprep.subr.mxu0 0.0
      %1844 = vmatpush1.xpose.msra.mxu0 0.0
      %1845 = vmatprep.subr.mxu0 0.0
      %1846 = vmatpush1.xpose.msra.mxu0 0.0
      %1847 = vmatprep.subr.mxu0 0.0
      %1848 = vmatpush1.xpose.msra.mxu0 0.0
      %1849 = vmatprep.subr.mxu0 0.0
      %1850 = vmatpush1.xpose.msra.mxu0 0.0
      %1851 = vmatprep.subr.mxu0 0.0
      %1852 = vmatpush1.xpose.msra.mxu0 0.0
      %1853 = vmatprep.subr.mxu0 0.0
      %1854 = vmatpush1.xpose.msra.mxu0 0.0
      %1855 = vmatprep.subr.mxu0 0.0
      %1856 = vmatpush1.xpose.msra.mxu0 0.0
      %1857 = vmatprep.subr.mxu0 0.0
      %1858 = vmatpush1.xpose.msra.mxu0 0.0
      %1859 = vmatprep.subr.mxu0 0.0
      %1860 = vmatpush1.xpose.msra.mxu0 0.0
      %1861 = vmatprep.subr.mxu0 0.0
      %1862 = vmatpush1.xpose.msra.mxu0 0.0
      %1863 = vmatprep.subr.mxu0 0.0
      %1864 = vmatpush1.xpose.msra.mxu0 0.0
      %1865 = vmatprep.subr.mxu0 0.0
      %1866 = vmatpush1.xpose.msra.mxu0 0.0
      %1867 = vmatprep.subr.mxu0 0.0
      %1868 = vmatpush1.xpose.msra.mxu0 0.0
      %1869 = vmatprep.subr.mxu0 0.0
      %1870 = vmatpush1.xpose.msra.mxu0 0.0
      %1871 = vmatprep.subr.mxu0 0.0
      %1872 = vmatpush1.xpose.msra.mxu0 0.0
      %1873 = vmatprep.subr.mxu0 0.0
      %1874 = vmatpush1.xpose.msra.mxu0 0.0
      %1875 = vmatprep.subr.mxu0 0.0
      %1876 = vmatpush1.xpose.msra.mxu0 0.0
      %1877 = vmatprep.mubr.f32.mxu0 0.0
      %v1878 = vand.u32 %v1581, 4294901760
      %v1879 = vsub.f32 %v1581, %v1878
      %v1880 = vand.u32 %v1879, 4294901760
      %1881 = vmatmul.mubr.f32.gmra.mrb[0].mxu0 %v1880
      %v1882 = vpop.f32.mrb[0].mxu0
      %v1883 = vadd.f32 %v1809, %v1882
      %v1884 = vpop.f32.mrb[0].mxu0
      %1885 = vdwg.mxu0
      %1886 = vmatprep.subr.mxu0 0.0
      %v1887 = vand.u32 %v1584, 4294901760
      %v1888 = vsub.f32 %v1584, %v1887
      %v1889 = vand.u32 %v1888, 4294901760
      %1890 = vmatpush1.xpose.msra.mxu0 %v1889
      %1891 = vmatprep.subr.mxu0 0.0
      %1892 = vmatpush1.xpose.msra.mxu0 0.0
      %1893 = vmatprep.subr.mxu0 0.0
      %1894 = vmatpush1.xpose.msra.mxu0 0.0
      %1895 = vmatprep.subr.mxu0 0.0
      %1896 = vmatpush1.xpose.msra.mxu0 0.0
      %1897 = vmatprep.subr.mxu0 0.0
      %1898 = vmatpush1.xpose.msra.mxu0 0.0
      %1899 = vmatprep.subr.mxu0 0.0
      %1900 = vmatpush1.xpose.msra.mxu0 0.0
      %1901 = vmatprep.subr.mxu0 0.0
      %1902 = vmatpush1.xpose.msra.mxu0 0.0
      %1903 = vmatprep.subr.mxu0 0.0
      %1904 = vmatpush1.xpose.msra.mxu0 0.0
      %1905 = vmatprep.subr.mxu0 0.0
      %1906 = vmatpush1.xpose.msra.mxu0 0.0
      %1907 = vmatprep.subr.mxu0 0.0
      %1908 = vmatpush1.xpose.msra.mxu0 0.0
      %1909 = vmatprep.subr.mxu0 0.0
      %1910 = vmatpush1.xpose.msra.mxu0 0.0
      %1911 = vmatprep.subr.mxu0 0.0
      %1912 = vmatpush1.xpose.msra.mxu0 0.0
      %1913 = vmatprep.subr.mxu0 0.0
      %1914 = vmatpush1.xpose.msra.mxu0 0.0
      %1915 = vmatprep.subr.mxu0 0.0
      %1916 = vmatpush1.xpose.msra.mxu0 0.0
      %1917 = vmatprep.subr.mxu0 0.0
      %1918 = vmatpush1.xpose.msra.mxu0 0.0
      %1919 = vmatprep.subr.mxu0 0.0
      %1920 = vmatpush1.xpose.msra.mxu0 0.0
      %1921 = vmatprep.subr.mxu0 0.0
      %1922 = vmatpush1.xpose.msra.mxu0 0.0
      %1923 = vmatprep.subr.mxu0 0.0
      %1924 = vmatpush1.xpose.msra.mxu0 0.0
      %1925 = vmatprep.subr.mxu0 0.0
      %1926 = vmatpush1.xpose.msra.mxu0 0.0
      %1927 = vmatprep.subr.mxu0 0.0
      %1928 = vmatpush1.xpose.msra.mxu0 0.0
      %1929 = vmatprep.subr.mxu0 0.0
      %1930 = vmatpush1.xpose.msra.mxu0 0.0
      %1931 = vmatprep.subr.mxu0 0.0
      %1932 = vmatpush1.xpose.msra.mxu0 0.0
      %1933 = vmatprep.subr.mxu0 0.0
      %1934 = vmatpush1.xpose.msra.mxu0 0.0
      %1935 = vmatprep.subr.mxu0 0.0
      %1936 = vmatpush1.xpose.msra.mxu0 0.0
      %1937 = vmatprep.subr.mxu0 0.0
      %1938 = vmatpush1.xpose.msra.mxu0 0.0
      %1939 = vmatprep.subr.mxu0 0.0
      %1940 = vmatpush1.xpose.msra.mxu0 0.0
      %1941 = vmatprep.subr.mxu0 0.0
      %1942 = vmatpush1.xpose.msra.mxu0 0.0
      %1943 = vmatprep.subr.mxu0 0.0
      %1944 = vmatpush1.xpose.msra.mxu0 0.0
      %1945 = vmatprep.subr.mxu0 0.0
      %1946 = vmatpush1.xpose.msra.mxu0 0.0
      %1947 = vmatprep.subr.mxu0 0.0
      %1948 = vmatpush1.xpose.msra.mxu0 0.0
      %1949 = vmatprep.subr.mxu0 0.0
      %1950 = vmatpush1.xpose.msra.mxu0 0.0
      %1951 = vmatprep.subr.mxu0 0.0
      %1952 = vmatpush1.xpose.msra.mxu0 0.0
      %1953 = vmatprep.mubr.f32.mxu0 0.0
      %v1954 = vand.u32 %v1581, 4294901760
      %1955 = vmatmul.mubr.f32.gmra.mrb[0].mxu0 %v1954
      %v1956 = vpop.f32.mrb[0].mxu0
      %v1957 = vadd.f32 %v1883, %v1956
      %v1958 = vpop.f32.mrb[0].mxu0
      %1959 = vdwg.mxu0
      %1960 = vmatprep.subr.mxu0 0.0
      %v1961 = vand.u32 %v1584, 4294901760
      %1962 = vmatpush1.xpose.msra.mxu0 %v1961
      %1963 = vmatprep.subr.mxu0 0.0
      %1964 = vmatpush1.xpose.msra.mxu0 0.0
      %1965 = vmatprep.subr.mxu0 0.0
      %1966 = vmatpush1.xpose.msra.mxu0 0.0
      %1967 = vmatprep.subr.mxu0 0.0
      %1968 = vmatpush1.xpose.msra.mxu0 0.0
      %1969 = vmatprep.subr.mxu0 0.0
      %1970 = vmatpush1.xpose.msra.mxu0 0.0
      %1971 = vmatprep.subr.mxu0 0.0
      %1972 = vmatpush1.xpose.msra.mxu0 0.0
      %1973 = vmatprep.subr.mxu0 0.0
      %1974 = vmatpush1.xpose.msra.mxu0 0.0
      %1975 = vmatprep.subr.mxu0 0.0
      %1976 = vmatpush1.xpose.msra.mxu0 0.0
      %1977 = vmatprep.subr.mxu0 0.0
      %1978 = vmatpush1.xpose.msra.mxu0 0.0
      %1979 = vmatprep.subr.mxu0 0.0
      %1980 = vmatpush1.xpose.msra.mxu0 0.0
      %1981 = vmatprep.subr.mxu0 0.0
      %1982 = vmatpush1.xpose.msra.mxu0 0.0
      %1983 = vmatprep.subr.mxu0 0.0
      %1984 = vmatpush1.xpose.msra.mxu0 0.0
      %1985 = vmatprep.subr.mxu0 0.0
      %1986 = vmatpush1.xpose.msra.mxu0 0.0
      %1987 = vmatprep.subr.mxu0 0.0
      %1988 = vmatpush1.xpose.msra.mxu0 0.0
      %1989 = vmatprep.subr.mxu0 0.0
      %1990 = vmatpush1.xpose.msra.mxu0 0.0
      %1991 = vmatprep.subr.mxu0 0.0
      %1992 = vmatpush1.xpose.msra.mxu0 0.0
      %1993 = vmatprep.subr.mxu0 0.0
      %1994 = vmatpush1.xpose.msra.mxu0 0.0
      %1995 = vmatprep.subr.mxu0 0.0
      %1996 = vmatpush1.xpose.msra.mxu0 0.0
      %1997 = vmatprep.subr.mxu0 0.0
      %1998 = vmatpush1.xpose.msra.mxu0 0.0
      %1999 = vmatprep.subr.mxu0 0.0
      %2000 = vmatpush1.xpose.msra.mxu0 0.0
      %2001 = vmatprep.subr.mxu0 0.0
      %2002 = vmatpush1.xpose.msra.mxu0 0.0
      %2003 = vmatprep.subr.mxu0 0.0
      %2004 = vmatpush1.xpose.msra.mxu0 0.0
      %2005 = vmatprep.subr.mxu0 0.0
      %2006 = vmatpush1.xpose.msra.mxu0 0.0
      %2007 = vmatprep.subr.mxu0 0.0
      %2008 = vmatpush1.xpose.msra.mxu0 0.0
      %2009 = vmatprep.subr.mxu0 0.0
      %2010 = vmatpush1.xpose.msra.mxu0 0.0
      %2011 = vmatprep.subr.mxu0 0.0
      %2012 = vmatpush1.xpose.msra.mxu0 0.0
      %2013 = vmatprep.subr.mxu0 0.0
      %2014 = vmatpush1.xpose.msra.mxu0 0.0
      %2015 = vmatprep.subr.mxu0 0.0
      %2016 = vmatpush1.xpose.msra.mxu0 0.0
      %2017 = vmatprep.subr.mxu0 0.0
      %2018 = vmatpush1.xpose.msra.mxu0 0.0
      %2019 = vmatprep.subr.mxu0 0.0
      %2020 = vmatpush1.xpose.msra.mxu0 0.0
      %2021 = vmatprep.subr.mxu0 0.0
      %2022 = vmatpush1.xpose.msra.mxu0 0.0
      %2023 = vmatprep.subr.mxu0 0.0
      %2024 = vmatpush1.xpose.msra.mxu0 0.0
      %2025 = vmatprep.mubr.f32.mxu0 0.0
      %v2026 = vand.u32 %v1581, 4294901760
      %2027 = vmatmul.mubr.f32.gmra.mrb[0].mxu0 %v2026
      %v2028 = vpop.f32.mrb[0].mxu0
      %v2029 = vadd.f32 %v1957, %v2028
      %v2030 = vpop.f32.mrb[0].mxu0
      %2031 = vdwg.mxu0
      %v2032 = vmul.f32 %v673, 0.35355338
      %v2033 = vmul.f32 %v1125, 0.35355338
      %v2034 = vmul.f32 %v1577, 0.35355338
      %v2035 = vmul.f32 %v2029, 0.35355338
      %v2036 = vlaneseq
      %v2037 = vshrl.u32 %v2036, 7
      %v2038 = vlaneseq
      %v2039 = vand.u32 %v2038, 127
      %vm2040 = vcmp.ge.s32.totalorder %v2037, %v2039
      %v2041 = vsel %vm2040, %v2032, -3.4028235e+38
      %v2042 = vsel %vm2040, %v2033, -3.4028235e+38
      %v2043 = vsel %vm2040, %v2034, -3.4028235e+38
      %v2044 = vsel %vm2040, %v2035, -3.4028235e+38
      %v2045 = vsel %vm223, %v2041, -inf
      %2046 = vmax.xlane.f32.xlu0 %v2045
      %v2047 = vpop.xlane.xlu0 %2046
      %v2048 = vsel %vm223, %v2042, -inf
      %2049 = vmax.xlane.f32.xlu0 %v2048
      %v2050 = vpop.xlane.xlu0 %2049
      %v2051 = vsel %vm223, %v2043, -inf
      %2052 = vmax.xlane.f32.xlu0 %v2051
      %v2053 = vpop.xlane.xlu0 %2052
      %v2054 = vsel %vm223, %v2044, -inf
      %2055 = vmax.xlane.f32.xlu0 %v2054
      %v2056 = vpop.xlane.xlu0 %2055
      %v2057 = vsub.f32 %v2041, %v2047
      %v2058 = vsub.f32 %v2042, %v2050
      %v2059 = vsub.f32 %v2043, %v2053
      %v2060 = vsub.f32 %v2044, %v2056
      %v2061 = vmul.f32 %v2057, 1.442695
      %v2062 = vpow.pop %v2061
      %v2063 = vmul.f32 %v2058, 1.442695
      %v2064 = vpow.pop %v2063
      %v2065 = vmul.f32 %v2059, 1.442695
      %v2066 = vpow.pop %v2065
      %v2067 = vmul.f32 %v2060, 1.442695
      %v2068 = vpow.pop %v2067
      %v2069 = vsel %vm223, %v2062, 0.0
      %2070 = vadd.xlane.f32.xlu0 %v2069
      %v2071 = vpop.xlane.xlu0 %2070
      %v2072 = vsel %vm223, %v2064, 0.0
      %2073 = vadd.xlane.f32.xlu0 %v2072
      %v2074 = vpop.xlane.xlu0 %2073
      %v2075 = vsel %vm223, %v2066, 0.0
      %2076 = vadd.xlane.f32.xlu0 %v2075
      %v2077 = vpop.xlane.xlu0 %2076
      %v2078 = vsel %vm223, %v2068, 0.0
      %2079 = vadd.xlane.f32.xlu0 %v2078
      %v2080 = vpop.xlane.xlu0 %2079
      %v2081 = vrcp.pop %v2071
      %v2082 = vmul.f32 %v2062, %v2081
      %v2083 = vrcp.pop %v2074
      %v2084 = vmul.f32 %v2064, %v2083
      %v2085 = vrcp.pop %v2077
      %v2086 = vmul.f32 %v2066, %v2085
      %v2087 = vrcp.pop %v2080
      %v2088 = vmul.f32 %v2068, %v2087
      %v2090 = vsel %vm223, %v2082, 0
      %2092 = vmatprep.subr.mxu0 0.0
      %v2093 = vand.u32 %v219, 4294901760
      %2094 = vmatpush1.msra.mxu0 %v2093
      %2095 = vmatprep.subr.mxu0 0.0
      %2096 = vmatpush1.msra.mxu0 0.0
      %2097 = vmatprep.subr.mxu0 0.0
      %2098 = vmatpush1.msra.mxu0 0.0
      %2099 = vmatprep.subr.mxu0 0.0
      %2100 = vmatpush1.msra.mxu0 0.0
      %2101 = vmatprep.subr.mxu0 0.0
      %2102 = vmatpush1.msra.mxu0 0.0
      %2103 = vmatprep.subr.mxu0 0.0
      %2104 = vmatpush1.msra.mxu0 0.0
      %2105 = vmatprep.subr.mxu0 0.0
      %2106 = vmatpush1.msra.mxu0 0.0
      %2107 = vmatprep.subr.mxu0 0.0
      %2108 = vmatpush1.msra.mxu0 0.0
      %2109 = vmatprep.subr.mxu0 0.0
      %2110 = vmatpush1.msra.mxu0 0.0
      %2111 = vmatprep.subr.mxu0 0.0
      %2112 = vmatpush1.msra.mxu0 0.0
      %2113 = vmatprep.subr.mxu0 0.0
      %2114 = vmatpush1.msra.mxu0 0.0
      %2115 = vmatprep.subr.mxu0 0.0
      %2116 = vmatpush1.msra.mxu0 0.0
      %2117 = vmatprep.subr.mxu0 0.0
      %2118 = vmatpush1.msra.mxu0 0.0
      %2119 = vmatprep.subr.mxu0 0.0
      %2120 = vmatpush1.msra.mxu0 0.0
      %2121 = vmatprep.subr.mxu0 0.0
      %2122 = vmatpush1.msra.mxu0 0.0
      %2123 = vmatprep.subr.mxu0 0.0
      %2124 = vmatpush1.msra.mxu0 0.0
      %2125 = vmatprep.subr.mxu0 0.0
      %2126 = vmatpush1.msra.mxu0 0.0
      %2127 = vmatprep.subr.mxu0 0.0
      %2128 = vmatpush1.msra.mxu0 0.0
      %2129 = vmatprep.subr.mxu0 0.0
      %2130 = vmatpush1.msra.mxu0 0.0
      %2131 = vmatprep.subr.mxu0 0.0
      %2132 = vmatpush1.msra.mxu0 0.0
      %2133 = vmatprep.subr.mxu0 0.0
      %2134 = vmatpush1.msra.mxu0 0.0
      %2135 = vmatprep.subr.mxu0 0.0
      %2136 = vmatpush1.msra.mxu0 0.0
      %2137 = vmatprep.subr.mxu0 0.0
      %2138 = vmatpush1.msra.mxu0 0.0
      %2139 = vmatprep.subr.mxu0 0.0
      %2140 = vmatpush1.msra.mxu0 0.0
      %2141 = vmatprep.subr.mxu0 0.0
      %2142 = vmatpush1.msra.mxu0 0.0
      %2143 = vmatprep.subr.mxu0 0.0
      %2144 = vmatpush1.msra.mxu0 0.0
      %2145 = vmatprep.subr.mxu0 0.0
      %2146 = vmatpush1.msra.mxu0 0.0
      %2147 = vmatprep.subr.mxu0 0.0
      %2148 = vmatpush1.msra.mxu0 0.0
      %2149 = vmatprep.subr.mxu0 0.0
      %2150 = vmatpush1.msra.mxu0 0.0
      %2151 = vmatprep.subr.mxu0 0.0
      %2152 = vmatpush1.msra.mxu0 0.0
      %2153 = vmatprep.subr.mxu0 0.0
      %2154 = vmatpush1.msra.mxu0 0.0
      %2155 = vmatprep.subr.mxu0 0.0
      %2156 = vmatpush1.msra.mxu0 0.0
      %2157 = vmatprep.mubr.f32.mxu0 0.0
      %v2158 = vand.u32 %v2090, 4294901760
      %v2159 = vsub.f32 %v2090, %v2158
      %v2160 = vand.u32 %v2159, 4294901760
      %v2161 = vsub.f32 %v2159, %v2160
      %v2162 = vand.u32 %v2161, 4294901760
      %2163 = vmatmul.mubr.f32.gmra.mrb[0].mxu0 %v2162
      %v2164 = vpop.f32.mrb[0].mxu0
      %v2165 = vadd.f32 0.0, %v2164
      %v2166 = vpop.f32.mrb[0].mxu0
      %2167 = vdwg.mxu0
      %2168 = vmatprep.subr.mxu0 0.0
      %v2169 = vand.u32 %v219, 4294901760
      %v2170 = vsub.f32 %v219, %v2169
      %v2171 = vand.u32 %v2170, 4294901760
      %v2172 = vsub.f32 %v2170, %v2171
      %v2173 = vand.u32 %v2172, 4294901760
      %2174 = vmatpush1.msra.mxu0 %v2173
      %2175 = vmatprep.subr.mxu0 0.0
      %2176 = vmatpush1.msra.mxu0 0.0
      %2177 = vmatprep.subr.mxu0 0.0
      %2178 = vmatpush1.msra.mxu0 0.0
      %2179 = vmatprep.subr.mxu0 0.0
      %2180 = vmatpush1.msra.mxu0 0.0
      %2181 = vmatprep.subr.mxu0 0.0
      %2182 = vmatpush1.msra.mxu0 0.0
      %2183 = vmatprep.subr.mxu0 0.0
      %2184 = vmatpush1.msra.mxu0 0.0
      %2185 = vmatprep.subr.mxu0 0.0
      %2186 = vmatpush1.msra.mxu0 0.0
      %2187 = vmatprep.subr.mxu0 0.0
      %2188 = vmatpush1.msra.mxu0 0.0
      %2189 = vmatprep.subr.mxu0 0.0
      %2190 = vmatpush1.msra.mxu0 0.0
      %2191 = vmatprep.subr.mxu0 0.0
      %2192 = vmatpush1.msra.mxu0 0.0
      %2193 = vmatprep.subr.mxu0 0.0
      %2194 = vmatpush1.msra.mxu0 0.0
      %2195 = vmatprep.subr.mxu0 0.0
      %2196 = vmatpush1.msra.mxu0 0.0
      %2197 = vmatprep.subr.mxu0 0.0
      %2198 = vmatpush1.msra.mxu0 0.0
      %2199 = vmatprep.subr.mxu0 0.0
      %2200 = vmatpush1.msra.mxu0 0.0
      %2201 = vmatprep.subr.mxu0 0.0
      %2202 = vmatpush1.msra.mxu0 0.0
      %2203 = vmatprep.subr.mxu0 0.0
      %2204 = vmatpush1.msra.mxu0 0.0
      %2205 = vmatprep.subr.mxu0 0.0
      %2206 = vmatpush1.msra.mxu0 0.0
      %2207 = vmatprep.subr.mxu0 0.0
      %2208 = vmatpush1.msra.mxu0 0.0
      %2209 = vmatprep.subr.mxu0 0.0
      %2210 = vmatpush1.msra.mxu0 0.0
      %2211 = vmatprep.subr.mxu0 0.0
      %2212 = vmatpush1.msra.mxu0 0.0
      %2213 = vmatprep.subr.mxu0 0.0
      %2214 = vmatpush1.msra.mxu0 0.0
      %2215 = vmatprep.subr.mxu0 0.0
      %2216 = vmatpush1.msra.mxu0 0.0
      %2217 = vmatprep.subr.mxu0 0.0
      %2218 = vmatpush1.msra.mxu0 0.0
      %2219 = vmatprep.subr.mxu0 0.0
      %2220 = vmatpush1.msra.mxu0 0.0
      %2221 = vmatprep.subr.mxu0 0.0
      %2222 = vmatpush1.msra.mxu0 0.0
      %2223 = vmatprep.subr.mxu0 0.0
      %2224 = vmatpush1.msra.mxu0 0.0
      %2225 = vmatprep.subr.mxu0 0.0
      %2226 = vmatpush1.msra.mxu0 0.0
      %2227 = vmatprep.subr.mxu0 0.0
      %2228 = vmatpush1.msra.mxu0 0.0
      %2229 = vmatprep.subr.mxu0 0.0
      %2230 = vmatpush1.msra.mxu0 0.0
      %2231 = vmatprep.subr.mxu0 0.0
      %2232 = vmatpush1.msra.mxu0 0.0
      %2233 = vmatprep.subr.mxu0 0.0
      %2234 = vmatpush1.msra.mxu0 0.0
      %2235 = vmatprep.subr.mxu0 0.0
      %2236 = vmatpush1.msra.mxu0 0.0
      %2237 = vmatprep.mubr.f32.mxu0 0.0
      %v2238 = vand.u32 %v2090, 4294901760
      %2239 = vmatmul.mubr.f32.gmra.mrb[0].mxu0 %v2238
      %v2240 = vpop.f32.mrb[0].mxu0
      %v2241 = vadd.f32 %v2165, %v2240
      %v2242 = vpop.f32.mrb[0].mxu0
      %2243 = vdwg.mxu0
      %2244 = vmatprep.subr.mxu0 0.0
      %v2245 = vand.u32 %v219, 4294901760
      %v2246 = vsub.f32 %v219, %v2245
      %2247 = vmatpush1.msra.mxu0 %v2246
      %2248 = vmatprep.subr.mxu0 0.0
      %2249 = vmatpush1.msra.mxu0 0.0
      %2250 = vmatprep.subr.mxu0 0.0
      %2251 = vmatpush1.msra.mxu0 0.0
      %2252 = vmatprep.subr.mxu0 0.0
      %2253 = vmatpush1.msra.mxu0 0.0
      %2254 = vmatprep.subr.mxu0 0.0
      %2255 = vmatpush1.msra.mxu0 0.0
      %2256 = vmatprep.subr.mxu0 0.0
      %2257 = vmatpush1.msra.mxu0 0.0
      %2258 = vmatprep.subr.mxu0 0.0
      %2259 = vmatpush1.msra.mxu0 0.0
      %2260 = vmatprep.subr.mxu0 0.0
      %2261 = vmatpush1.msra.mxu0 0.0
      %2262 = vmatprep.subr.mxu0 0.0
      %2263 = vmatpush1.msra.mxu0 0.0
      %2264 = vmatprep.subr.mxu0 0.0
      %2265 = vmatpush1.msra.mxu0 0.0
      %2266 = vmatprep.subr.mxu0 0.0
      %2267 = vmatpush1.msra.mxu0 0.0
      %2268 = vmatprep.subr.mxu0 0.0
      %2269 = vmatpush1.msra.mxu0 0.0
      %2270 = vmatprep.subr.mxu0 0.0
      %2271 = vmatpush1.msra.mxu0 0.0
      %2272 = vmatprep.subr.mxu0 0.0
      %2273 = vmatpush1.msra.mxu0 0.0
      %2274 = vmatprep.subr.mxu0 0.0
      %2275 = vmatpush1.msra.mxu0 0.0
      %2276 = vmatprep.subr.mxu0 0.0
      %2277 = vmatpush1.msra.mxu0 0.0
      %2278 = vmatprep.subr.mxu0 0.0
      %2279 = vmatpush1.msra.mxu0 0.0
      %2280 = vmatprep.subr.mxu0 0.0
      %2281 = vmatpush1.msra.mxu0 0.0
      %2282 = vmatprep.subr.mxu0 0.0
      %2283 = vmatpush1.msra.mxu0 0.0
      %2284 = vmatprep.subr.mxu0 0.0
      %2285 = vmatpush1.msra.mxu0 0.0
      %2286 = vmatprep.subr.mxu0 0.0
      %2287 = vmatpush1.msra.mxu0 0.0
      %2288 = vmatprep.subr.mxu0 0.0
      %2289 = vmatpush1.msra.mxu0 0.0
      %2290 = vmatprep.subr.mxu0 0.0
      %2291 = vmatpush1.msra.mxu0 0.0
      %2292 = vmatprep.subr.mxu0 0.0
      %2293 = vmatpush1.msra.mxu0 0.0
      %2294 = vmatprep.subr.mxu0 0.0
      %2295 = vmatpush1.msra.mxu0 0.0
      %2296 = vmatprep.subr.mxu0 0.0
      %2297 = vmatpush1.msra.mxu0 0.0
      %2298 = vmatprep.subr.mxu0 0.0
      %2299 = vmatpush1.msra.mxu0 0.0
      %2300 = vmatprep.subr.mxu0 0.0
      %2301 = vmatpush1.msra.mxu0 0.0
      %2302 = vmatprep.subr.mxu0 0.0
      %2303 = vmatpush1.msra.mxu0 0.0
      %2304 = vmatprep.subr.mxu0 0.0
      %2305 = vmatpush1.msra.mxu0 0.0
      %2306 = vmatprep.subr.mxu0 0.0
      %2307 = vmatpush1.msra.mxu0 0.0
      %2308 = vmatprep.subr.mxu0 0.0
      %2309 = vmatpush1.msra.mxu0 0.0
      %2310 = vmatprep.mubr.f32.mxu0 0.0
      %v2311 = vand.u32 %v2090, 4294901760
      %v2312 = vsub.f32 %v2090, %v2311
      %2313 = vmatmul.mubr.f32.gmra.mrb[0].mxu0 %v2312
      %v2314 = vpop.f32.mrb[0].mxu0
      %v2315 = vadd.f32 %v2241, %v2314
      %v2316 = vpop.f32.mrb[0].mxu0
      %2317 = vdwg.mxu0
      %2318 = vmatprep.subr.mxu0 0.0
      %v2319 = vand.u32 %v219, 4294901760
      %2320 = vmatpush1.msra.mxu0 %v2319
      %2321 = vmatprep.subr.mxu0 0.0
      %2322 = vmatpush1.msra.mxu0 0.0
      %2323 = vmatprep.subr.mxu0 0.0
      %2324 = vmatpush1.msra.mxu0 0.0
      %2325 = vmatprep.subr.mxu0 0.0
      %2326 = vmatpush1.msra.mxu0 0.0
      %2327 = vmatprep.subr.mxu0 0.0
      %2328 = vmatpush1.msra.mxu0 0.0
      %2329 = vmatprep.subr.mxu0 0.0
      %2330 = vmatpush1.msra.mxu0 0.0
      %2331 = vmatprep.subr.mxu0 0.0
      %2332 = vmatpush1.msra.mxu0 0.0
      %2333 = vmatprep.subr.mxu0 0.0
      %2334 = vmatpush1.msra.mxu0 0.0
      %2335 = vmatprep.subr.mxu0 0.0
      %2336 = vmatpush1.msra.mxu0 0.0
      %2337 = vmatprep.subr.mxu0 0.0
      %2338 = vmatpush1.msra.mxu0 0.0
      %2339 = vmatprep.subr.mxu0 0.0
      %2340 = vmatpush1.msra.mxu0 0.0
      %2341 = vmatprep.subr.mxu0 0.0
      %2342 = vmatpush1.msra.mxu0 0.0
      %2343 = vmatprep.subr.mxu0 0.0
      %2344 = vmatpush1.msra.mxu0 0.0
      %2345 = vmatprep.subr.mxu0 0.0
      %2346 = vmatpush1.msra.mxu0 0.0
      %2347 = vmatprep.subr.mxu0 0.0
      %2348 = vmatpush1.msra.mxu0 0.0
      %2349 = vmatprep.subr.mxu0 0.0
      %2350 = vmatpush1.msra.mxu0 0.0
      %2351 = vmatprep.subr.mxu0 0.0
      %2352 = vmatpush1.msra.mxu0 0.0
      %2353 = vmatprep.subr.mxu0 0.0
      %2354 = vmatpush1.msra.mxu0 0.0
      %2355 = vmatprep.subr.mxu0 0.0
      %2356 = vmatpush1.msra.mxu0 0.0
      %2357 = vmatprep.subr.mxu0 0.0
      %2358 = vmatpush1.msra.mxu0 0.0
      %2359 = vmatprep.subr.mxu0 0.0
      %2360 = vmatpush1.msra.mxu0 0.0
      %2361 = vmatprep.subr.mxu0 0.0
      %2362 = vmatpush1.msra.mxu0 0.0
      %2363 = vmatprep.subr.mxu0 0.0
      %2364 = vmatpush1.msra.mxu0 0.0
      %2365 = vmatprep.subr.mxu0 0.0
      %2366 = vmatpush1.msra.mxu0 0.0
      %2367 = vmatprep.subr.mxu0 0.0
      %2368 = vmatpush1.msra.mxu0 0.0
      %2369 = vmatprep.subr.mxu0 0.0
      %2370 = vmatpush1.msra.mxu0 0.0
      %2371 = vmatprep.subr.mxu0 0.0
      %2372 = vmatpush1.msra.mxu0 0.0
      %2373 = vmatprep.subr.mxu0 0.0
      %2374 = vmatpush1.msra.mxu0 0.0
      %2375 = vmatprep.subr.mxu0 0.0
      %2376 = vmatpush1.msra.mxu0 0.0
      %2377 = vmatprep.subr.mxu0 0.0
      %2378 = vmatpush1.msra.mxu0 0.0
      %2379 = vmatprep.subr.mxu0 0.0
      %2380 = vmatpush1.msra.mxu0 0.0
      %2381 = vmatprep.subr.mxu0 0.0
      %2382 = vmatpush1.msra.mxu0 0.0
      %2383 = vmatprep.mubr.f32.mxu0 0.0
      %v2384 = vand.u32 %v2090, 4294901760
      %v2385 = vsub.f32 %v2090, %v2384
      %v2386 = vand.u32 %v2385, 4294901760
      %2387 = vmatmul.mubr.f32.gmra.mrb[0].mxu0 %v2386
      %v2388 = vpop.f32.mrb[0].mxu0
      %v2389 = vadd.f32 %v2315, %v2388
      %v2390 = vpop.f32.mrb[0].mxu0
      %2391 = vdwg.mxu0
      %2392 = vmatprep.subr.mxu0 0.0
      %v2393 = vand.u32 %v219, 4294901760
      %v2394 = vsub.f32 %v219, %v2393
      %v2395 = vand.u32 %v2394, 4294901760
      %2396 = vmatpush1.msra.mxu0 %v2395
      %2397 = vmatprep.subr.mxu0 0.0
      %2398 = vmatpush1.msra.mxu0 0.0
      %2399 = vmatprep.subr.mxu0 0.0
      %2400 = vmatpush1.msra.mxu0 0.0
      %2401 = vmatprep.subr.mxu0 0.0
      %2402 = vmatpush1.msra.mxu0 0.0
      %2403 = vmatprep.subr.mxu0 0.0
      %2404 = vmatpush1.msra.mxu0 0.0
      %2405 = vmatprep.subr.mxu0 0.0
      %2406 = vmatpush1.msra.mxu0 0.0
      %2407 = vmatprep.subr.mxu0 0.0
      %2408 = vmatpush1.msra.mxu0 0.0
      %2409 = vmatprep.subr.mxu0 0.0
      %2410 = vmatpush1.msra.mxu0 0.0
      %2411 = vmatprep.subr.mxu0 0.0
      %2412 = vmatpush1.msra.mxu0 0.0
      %2413 = vmatprep.subr.mxu0 0.0
      %2414 = vmatpush1.msra.mxu0 0.0
      %2415 = vmatprep.subr.mxu0 0.0
      %2416 = vmatpush1.msra.mxu0 0.0
      %2417 = vmatprep.subr.mxu0 0.0
      %2418 = vmatpush1.msra.mxu0 0.0
      %2419 = vmatprep.subr.mxu0 0.0
      %2420 = vmatpush1.msra.mxu0 0.0
      %2421 = vmatprep.subr.mxu0 0.0
      %2422 = vmatpush1.msra.mxu0 0.0
      %2423 = vmatprep.subr.mxu0 0.0
      %2424 = vmatpush1.msra.mxu0 0.0
      %2425 = vmatprep.subr.mxu0 0.0
      %2426 = vmatpush1.msra.mxu0 0.0
      %2427 = vmatprep.subr.mxu0 0.0
      %2428 = vmatpush1.msra.mxu0 0.0
      %2429 = vmatprep.subr.mxu0 0.0
      %2430 = vmatpush1.msra.mxu0 0.0
      %2431 = vmatprep.subr.mxu0 0.0
      %2432 = vmatpush1.msra.mxu0 0.0
      %2433 = vmatprep.subr.mxu0 0.0
      %2434 = vmatpush1.msra.mxu0 0.0
      %2435 = vmatprep.subr.mxu0 0.0
      %2436 = vmatpush1.msra.mxu0 0.0
      %2437 = vmatprep.subr.mxu0 0.0
      %2438 = vmatpush1.msra.mxu0 0.0
      %2439 = vmatprep.subr.mxu0 0.0
      %2440 = vmatpush1.msra.mxu0 0.0
      %2441 = vmatprep.subr.mxu0 0.0
      %2442 = vmatpush1.msra.mxu0 0.0
      %2443 = vmatprep.subr.mxu0 0.0
      %2444 = vmatpush1.msra.mxu0 0.0
      %2445 = vmatprep.subr.mxu0 0.0
      %2446 = vmatpush1.msra.mxu0 0.0
      %2447 = vmatprep.subr.mxu0 0.0
      %2448 = vmatpush1.msra.mxu0 0.0
      %2449 = vmatprep.subr.mxu0 0.0
      %2450 = vmatpush1.msra.mxu0 0.0
      %2451 = vmatprep.subr.mxu0 0.0
      %2452 = vmatpush1.msra.mxu0 0.0
      %2453 = vmatprep.subr.mxu0 0.0
      %2454 = vmatpush1.msra.mxu0 0.0
      %2455 = vmatprep.subr.mxu0 0.0
      %2456 = vmatpush1.msra.mxu0 0.0
      %2457 = vmatprep.subr.mxu0 0.0
      %2458 = vmatpush1.msra.mxu0 0.0
      %2459 = vmatprep.mubr.f32.mxu0 0.0
      %v2460 = vand.u32 %v2090, 4294901760
      %2461 = vmatmul.mubr.f32.gmra.mrb[0].mxu0 %v2460
      %v2462 = vpop.f32.mrb[0].mxu0
      %v2463 = vadd.f32 %v2389, %v2462
      %v2464 = vpop.f32.mrb[0].mxu0
      %2465 = vdwg.mxu0
      %2466 = vmatprep.subr.mxu0 0.0
      %v2467 = vand.u32 %v219, 4294901760
      %2468 = vmatpush1.msra.mxu0 %v2467
      %2469 = vmatprep.subr.mxu0 0.0
      %2470 = vmatpush1.msra.mxu0 0.0
      %2471 = vmatprep.subr.mxu0 0.0
      %2472 = vmatpush1.msra.mxu0 0.0
      %2473 = vmatprep.subr.mxu0 0.0
      %2474 = vmatpush1.msra.mxu0 0.0
      %2475 = vmatprep.subr.mxu0 0.0
      %2476 = vmatpush1.msra.mxu0 0.0
      %2477 = vmatprep.subr.mxu0 0.0
      %2478 = vmatpush1.msra.mxu0 0.0
      %2479 = vmatprep.subr.mxu0 0.0
      %2480 = vmatpush1.msra.mxu0 0.0
      %2481 = vmatprep.subr.mxu0 0.0
      %2482 = vmatpush1.msra.mxu0 0.0
      %2483 = vmatprep.subr.mxu0 0.0
      %2484 = vmatpush1.msra.mxu0 0.0
      %2485 = vmatprep.subr.mxu0 0.0
      %2486 = vmatpush1.msra.mxu0 0.0
      %2487 = vmatprep.subr.mxu0 0.0
      %2488 = vmatpush1.msra.mxu0 0.0
      %2489 = vmatprep.subr.mxu0 0.0
      %2490 = vmatpush1.msra.mxu0 0.0
      %2491 = vmatprep.subr.mxu0 0.0
      %2492 = vmatpush1.msra.mxu0 0.0
      %2493 = vmatprep.subr.mxu0 0.0
      %2494 = vmatpush1.msra.mxu0 0.0
      %2495 = vmatprep.subr.mxu0 0.0
      %2496 = vmatpush1.msra.mxu0 0.0
      %2497 = vmatprep.subr.mxu0 0.0
      %2498 = vmatpush1.msra.mxu0 0.0
      %2499 = vmatprep.subr.mxu0 0.0
      %2500 = vmatpush1.msra.mxu0 0.0
      %2501 = vmatprep.subr.mxu0 0.0
      %2502 = vmatpush1.msra.mxu0 0.0
      %2503 = vmatprep.subr.mxu0 0.0
      %2504 = vmatpush1.msra.mxu0 0.0
      %2505 = vmatprep.subr.mxu0 0.0
      %2506 = vmatpush1.msra.mxu0 0.0
      %2507 = vmatprep.subr.mxu0 0.0
      %2508 = vmatpush1.msra.mxu0 0.0
      %2509 = vmatprep.subr.mxu0 0.0
      %2510 = vmatpush1.msra.mxu0 0.0
      %2511 = vmatprep.subr.mxu0 0.0
      %2512 = vmatpush1.msra.mxu0 0.0
      %2513 = vmatprep.subr.mxu0 0.0
      %2514 = vmatpush1.msra.mxu0 0.0
      %2515 = vmatprep.subr.mxu0 0.0
      %2516 = vmatpush1.msra.mxu0 0.0
      %2517 = vmatprep.subr.mxu0 0.0
      %2518 = vmatpush1.msra.mxu0 0.0
      %2519 = vmatprep.subr.mxu0 0.0
      %2520 = vmatpush1.msra.mxu0 0.0
      %2521 = vmatprep.subr.mxu0 0.0
      %2522 = vmatpush1.msra.mxu0 0.0
      %2523 = vmatprep.subr.mxu0 0.0
      %2524 = vmatpush1.msra.mxu0 0.0
      %2525 = vmatprep.subr.mxu0 0.0
      %2526 = vmatpush1.msra.mxu0 0.0
      %2527 = vmatprep.subr.mxu0 0.0
      %2528 = vmatpush1.msra.mxu0 0.0
      %2529 = vmatprep.subr.mxu0 0.0
      %2530 = vmatpush1.msra.mxu0 0.0
      %2531 = vmatprep.mubr.f32.mxu0 0.0
      %v2532 = vand.u32 %v2090, 4294901760
      %2533 = vmatmul.mubr.f32.gmra.mrb[0].mxu0 %v2532
      %v2534 = vpop.f32.mrb[0].mxu0
      %v2535 = vadd.f32 %v2463, %v2534
      %v2536 = vpop.f32.mrb[0].mxu0
      %2537 = vdwg.mxu0
      %v2539 = vsel %vm223, %v2084, 0
      %2541 = vmatprep.subr.mxu0 0.0
      %v2542 = vand.u32 %v220, 4294901760
      %2543 = vmatpush1.msra.mxu0 %v2542
      %2544 = vmatprep.subr.mxu0 0.0
      %2545 = vmatpush1.msra.mxu0 0.0
      %2546 = vmatprep.subr.mxu0 0.0
      %2547 = vmatpush1.msra.mxu0 0.0
      %2548 = vmatprep.subr.mxu0 0.0
      %2549 = vmatpush1.msra.mxu0 0.0
      %2550 = vmatprep.subr.mxu0 0.0
      %2551 = vmatpush1.msra.mxu0 0.0
      %2552 = vmatprep.subr.mxu0 0.0
      %2553 = vmatpush1.msra.mxu0 0.0
      %2554 = vmatprep.subr.mxu0 0.0
      %2555 = vmatpush1.msra.mxu0 0.0
      %2556 = vmatprep.subr.mxu0 0.0
      %2557 = vmatpush1.msra.mxu0 0.0
      %2558 = vmatprep.subr.mxu0 0.0
      %2559 = vmatpush1.msra.mxu0 0.0
      %2560 = vmatprep.subr.mxu0 0.0
      %2561 = vmatpush1.msra.mxu0 0.0
      %2562 = vmatprep.subr.mxu0 0.0
      %2563 = vmatpush1.msra.mxu0 0.0
      %2564 = vmatprep.subr.mxu0 0.0
      %2565 = vmatpush1.msra.mxu0 0.0
      %2566 = vmatprep.subr.mxu0 0.0
      %2567 = vmatpush1.msra.mxu0 0.0
      %2568 = vmatprep.subr.mxu0 0.0
      %2569 = vmatpush1.msra.mxu0 0.0
      %2570 = vmatprep.subr.mxu0 0.0
      %2571 = vmatpush1.msra.mxu0 0.0
      %2572 = vmatprep.subr.mxu0 0.0
      %2573 = vmatpush1.msra.mxu0 0.0
      %2574 = vmatprep.subr.mxu0 0.0
      %2575 = vmatpush1.msra.mxu0 0.0
      %2576 = vmatprep.subr.mxu0 0.0
      %2577 = vmatpush1.msra.mxu0 0.0
      %2578 = vmatprep.subr.mxu0 0.0
      %2579 = vmatpush1.msra.mxu0 0.0
      %2580 = vmatprep.subr.mxu0 0.0
      %2581 = vmatpush1.msra.mxu0 0.0
      %2582 = vmatprep.subr.mxu0 0.0
      %2583 = vmatpush1.msra.mxu0 0.0
      %2584 = vmatprep.subr.mxu0 0.0
      %2585 = vmatpush1.msra.mxu0 0.0
      %2586 = vmatprep.subr.mxu0 0.0
      %2587 = vmatpush1.msra.mxu0 0.0
      %2588 = vmatprep.subr.mxu0 0.0
      %2589 = vmatpush1.msra.mxu0 0.0
      %2590 = vmatprep.subr.mxu0 0.0
      %2591 = vmatpush1.msra.mxu0 0.0
      %2592 = vmatprep.subr.mxu0 0.0
      %2593 = vmatpush1.msra.mxu0 0.0
      %2594 = vmatprep.subr.mxu0 0.0
      %2595 = vmatpush1.msra.mxu0 0.0
      %2596 = vmatprep.subr.mxu0 0.0
      %2597 = vmatpush1.msra.mxu0 0.0
      %2598 = vmatprep.subr.mxu0 0.0
      %2599 = vmatpush1.msra.mxu0 0.0
      %2600 = vmatprep.subr.mxu0 0.0
      %2601 = vmatpush1.msra.mxu0 0.0
      %2602 = vmatprep.subr.mxu0 0.0
      %2603 = vmatpush1.msra.mxu0 0.0
      %2604 = vmatprep.subr.mxu0 0.0
      %2605 = vmatpush1.msra.mxu0 0.0
      %2606 = vmatprep.mubr.f32.mxu0 0.0
      %v2607 = vand.u32 %v2539, 4294901760
      %v2608 = vsub.f32 %v2539, %v2607
      %v2609 = vand.u32 %v2608, 4294901760
      %v2610 = vsub.f32 %v2608, %v2609
      %v2611 = vand.u32 %v2610, 4294901760
      %2612 = vmatmul.mubr.f32.gmra.mrb[0].mxu0 %v2611
      %v2613 = vpop.f32.mrb[0].mxu0
      %v2614 = vadd.f32 0.0, %v2613
      %v2615 = vpop.f32.mrb[0].mxu0
      %2616 = vdwg.mxu0
      %2617 = vmatprep.subr.mxu0 0.0
      %v2618 = vand.u32 %v220, 4294901760
      %v2619 = vsub.f32 %v220, %v2618
      %v2620 = vand.u32 %v2619, 4294901760
      %v2621 = vsub.f32 %v2619, %v2620
      %v2622 = vand.u32 %v2621, 4294901760
      %2623 = vmatpush1.msra.mxu0 %v2622
      %2624 = vmatprep.subr.mxu0 0.0
      %2625 = vmatpush1.msra.mxu0 0.0
      %2626 = vmatprep.subr.mxu0 0.0
      %2627 = vmatpush1.msra.mxu0 0.0
      %2628 = vmatprep.subr.mxu0 0.0
      %2629 = vmatpush1.msra.mxu0 0.0
      %2630 = vmatprep.subr.mxu0 0.0
      %2631 = vmatpush1.msra.mxu0 0.0
      %2632 = vmatprep.subr.mxu0 0.0
      %2633 = vmatpush1.msra.mxu0 0.0
      %2634 = vmatprep.subr.mxu0 0.0
      %2635 = vmatpush1.msra.mxu0 0.0
      %2636 = vmatprep.subr.mxu0 0.0
      %2637 = vmatpush1.msra.mxu0 0.0
      %2638 = vmatprep.subr.mxu0 0.0
      %2639 = vmatpush1.msra.mxu0 0.0
      %2640 = vmatprep.subr.mxu0 0.0
      %2641 = vmatpush1.msra.mxu0 0.0
      %2642 = vmatprep.subr.mxu0 0.0
      %2643 = vmatpush1.msra.mxu0 0.0
      %2644 = vmatprep.subr.mxu0 0.0
      %2645 = vmatpush1.msra.mxu0 0.0
      %2646 = vmatprep.subr.mxu0 0.0
      %2647 = vmatpush1.msra.mxu0 0.0
      %2648 = vmatprep.subr.mxu0 0.0
      %2649 = vmatpush1.msra.mxu0 0.0
      %2650 = vmatprep.subr.mxu0 0.0
      %2651 = vmatpush1.msra.mxu0 0.0
      %2652 = vmatprep.subr.mxu0 0.0
      %2653 = vmatpush1.msra.mxu0 0.0
      %2654 = vmatprep.subr.mxu0 0.0
      %2655 = vmatpush1.msra.mxu0 0.0
      %2656 = vmatprep.subr.mxu0 0.0
      %2657 = vmatpush1.msra.mxu0 0.0
      %2658 = vmatprep.subr.mxu0 0.0
      %2659 = vmatpush1.msra.mxu0 0.0
      %2660 = vmatprep.subr.mxu0 0.0
      %2661 = vmatpush1.msra.mxu0 0.0
      %2662 = vmatprep.subr.mxu0 0.0
      %2663 = vmatpush1.msra.mxu0 0.0
      %2664 = vmatprep.subr.mxu0 0.0
      %2665 = vmatpush1.msra.mxu0 0.0
      %2666 = vmatprep.subr.mxu0 0.0
      %2667 = vmatpush1.msra.mxu0 0.0
      %2668 = vmatprep.subr.mxu0 0.0
      %2669 = vmatpush1.msra.mxu0 0.0
      %2670 = vmatprep.subr.mxu0 0.0
      %2671 = vmatpush1.msra.mxu0 0.0
      %2672 = vmatprep.subr.mxu0 0.0
      %2673 = vmatpush1.msra.mxu0 0.0
      %2674 = vmatprep.subr.mxu0 0.0
      %2675 = vmatpush1.msra.mxu0 0.0
      %2676 = vmatprep.subr.mxu0 0.0
      %2677 = vmatpush1.msra.mxu0 0.0
      %2678 = vmatprep.subr.mxu0 0.0
      %2679 = vmatpush1.msra.mxu0 0.0
      %2680 = vmatprep.subr.mxu0 0.0
      %2681 = vmatpush1.msra.mxu0 0.0
      %2682 = vmatprep.subr.mxu0 0.0
      %2683 = vmatpush1.msra.mxu0 0.0
      %2684 = vmatprep.subr.mxu0 0.0
      %2685 = vmatpush1.msra.mxu0 0.0
      %2686 = vmatprep.mubr.f32.mxu0 0.0
      %v2687 = vand.u32 %v2539, 4294901760
      %2688 = vmatmul.mubr.f32.gmra.mrb[0].mxu0 %v2687
      %v2689 = vpop.f32.mrb[0].mxu0
      %v2690 = vadd.f32 %v2614, %v2689
      %v2691 = vpop.f32.mrb[0].mxu0
      %2692 = vdwg.mxu0
      %2693 = vmatprep.subr.mxu0 0.0
      %v2694 = vand.u32 %v220, 4294901760
      %v2695 = vsub.f32 %v220, %v2694
      %2696 = vmatpush1.msra.mxu0 %v2695
      %2697 = vmatprep.subr.mxu0 0.0
      %2698 = vmatpush1.msra.mxu0 0.0
      %2699 = vmatprep.subr.mxu0 0.0
      %2700 = vmatpush1.msra.mxu0 0.0
      %2701 = vmatprep.subr.mxu0 0.0
      %2702 = vmatpush1.msra.mxu0 0.0
      %2703 = vmatprep.subr.mxu0 0.0
      %2704 = vmatpush1.msra.mxu0 0.0
      %2705 = vmatprep.subr.mxu0 0.0
      %2706 = vmatpush1.msra.mxu0 0.0
      %2707 = vmatprep.subr.mxu0 0.0
      %2708 = vmatpush1.msra.mxu0 0.0
      %2709 = vmatprep.subr.mxu0 0.0
      %2710 = vmatpush1.msra.mxu0 0.0
      %2711 = vmatprep.subr.mxu0 0.0
      %2712 = vmatpush1.msra.mxu0 0.0
      %2713 = vmatprep.subr.mxu0 0.0
      %2714 = vmatpush1.msra.mxu0 0.0
      %2715 = vmatprep.subr.mxu0 0.0
      %2716 = vmatpush1.msra.mxu0 0.0
      %2717 = vmatprep.subr.mxu0 0.0
      %2718 = vmatpush1.msra.mxu0 0.0
      %2719 = vmatprep.subr.mxu0 0.0
      %2720 = vmatpush1.msra.mxu0 0.0
      %2721 = vmatprep.subr.mxu0 0.0
      %2722 = vmatpush1.msra.mxu0 0.0
      %2723 = vmatprep.subr.mxu0 0.0
      %2724 = vmatpush1.msra.mxu0 0.0
      %2725 = vmatprep.subr.mxu0 0.0
      %2726 = vmatpush1.msra.mxu0 0.0
      %2727 = vmatprep.subr.mxu0 0.0
      %2728 = vmatpush1.msra.mxu0 0.0
      %2729 = vmatprep.subr.mxu0 0.0
      %2730 = vmatpush1.msra.mxu0 0.0
      %2731 = vmatprep.subr.mxu0 0.0
      %2732 = vmatpush1.msra.mxu0 0.0
      %2733 = vmatprep.subr.mxu0 0.0
      %2734 = vmatpush1.msra.mxu0 0.0
      %2735 = vmatprep.subr.mxu0 0.0
      %2736 = vmatpush1.msra.mxu0 0.0
      %2737 = vmatprep.subr.mxu0 0.0
      %2738 = vmatpush1.msra.mxu0 0.0
      %2739 = vmatprep.subr.mxu0 0.0
      %2740 = vmatpush1.msra.mxu0 0.0
      %2741 = vmatprep.subr.mxu0 0.0
      %2742 = vmatpush1.msra.mxu0 0.0
      %2743 = vmatprep.subr.mxu0 0.0
      %2744 = vmatpush1.msra.mxu0 0.0
      %2745 = vmatprep.subr.mxu0 0.0
      %2746 = vmatpush1.msra.mxu0 0.0
      %2747 = vmatprep.subr.mxu0 0.0
      %2748 = vmatpush1.msra.mxu0 0.0
      %2749 = vmatprep.subr.mxu0 0.0
      %2750 = vmatpush1.msra.mxu0 0.0
      %2751 = vmatprep.subr.mxu0 0.0
      %2752 = vmatpush1.msra.mxu0 0.0
      %2753 = vmatprep.subr.mxu0 0.0
      %2754 = vmatpush1.msra.mxu0 0.0
      %2755 = vmatprep.subr.mxu0 0.0
      %2756 = vmatpush1.msra.mxu0 0.0
      %2757 = vmatprep.subr.mxu0 0.0
      %2758 = vmatpush1.msra.mxu0 0.0
      %2759 = vmatprep.mubr.f32.mxu0 0.0
      %v2760 = vand.u32 %v2539, 4294901760
      %v2761 = vsub.f32 %v2539, %v2760
      %2762 = vmatmul.mubr.f32.gmra.mrb[0].mxu0 %v2761
      %v2763 = vpop.f32.mrb[0].mxu0
      %v2764 = vadd.f32 %v2690, %v2763
      %v2765 = vpop.f32.mrb[0].mxu0
      %2766 = vdwg.mxu0
      %2767 = vmatprep.subr.mxu0 0.0
      %v2768 = vand.u32 %v220, 4294901760
      %2769 = vmatpush1.msra.mxu0 %v2768
      %2770 = vmatprep.subr.mxu0 0.0
      %2771 = vmatpush1.msra.mxu0 0.0
      %2772 = vmatprep.subr.mxu0 0.0
      %2773 = vmatpush1.msra.mxu0 0.0
      %2774 = vmatprep.subr.mxu0 0.0
      %2775 = vmatpush1.msra.mxu0 0.0
      %2776 = vmatprep.subr.mxu0 0.0
      %2777 = vmatpush1.msra.mxu0 0.0
      %2778 = vmatprep.subr.mxu0 0.0
      %2779 = vmatpush1.msra.mxu0 0.0
      %2780 = vmatprep.subr.mxu0 0.0
      %2781 = vmatpush1.msra.mxu0 0.0
      %2782 = vmatprep.subr.mxu0 0.0
      %2783 = vmatpush1.msra.mxu0 0.0
      %2784 = vmatprep.subr.mxu0 0.0
      %2785 = vmatpush1.msra.mxu0 0.0
      %2786 = vmatprep.subr.mxu0 0.0
      %2787 = vmatpush1.msra.mxu0 0.0
      %2788 = vmatprep.subr.mxu0 0.0
      %2789 = vmatpush1.msra.mxu0 0.0
      %2790 = vmatprep.subr.mxu0 0.0
      %2791 = vmatpush1.msra.mxu0 0.0
      %2792 = vmatprep.subr.mxu0 0.0
      %2793 = vmatpush1.msra.mxu0 0.0
      %2794 = vmatprep.subr.mxu0 0.0
      %2795 = vmatpush1.msra.mxu0 0.0
      %2796 = vmatprep.subr.mxu0 0.0
      %2797 = vmatpush1.msra.mxu0 0.0
      %2798 = vmatprep.subr.mxu0 0.0
      %2799 = vmatpush1.msra.mxu0 0.0
      %2800 = vmatprep.subr.mxu0 0.0
      %2801 = vmatpush1.msra.mxu0 0.0
      %2802 = vmatprep.subr.mxu0 0.0
      %2803 = vmatpush1.msra.mxu0 0.0
      %2804 = vmatprep.subr.mxu0 0.0
      %2805 = vmatpush1.msra.mxu0 0.0
      %2806 = vmatprep.subr.mxu0 0.0
      %2807 = vmatpush1.msra.mxu0 0.0
      %2808 = vmatprep.subr.mxu0 0.0
      %2809 = vmatpush1.msra.mxu0 0.0
      %2810 = vmatprep.subr.mxu0 0.0
      %2811 = vmatpush1.msra.mxu0 0.0
      %2812 = vmatprep.subr.mxu0 0.0
      %2813 = vmatpush1.msra.mxu0 0.0
      %2814 = vmatprep.subr.mxu0 0.0
      %2815 = vmatpush1.msra.mxu0 0.0
      %2816 = vmatprep.subr.mxu0 0.0
      %2817 = vmatpush1.msra.mxu0 0.0
      %2818 = vmatprep.subr.mxu0 0.0
      %2819 = vmatpush1.msra.mxu0 0.0
      %2820 = vmatprep.subr.mxu0 0.0
      %2821 = vmatpush1.msra.mxu0 0.0
      %2822 = vmatprep.subr.mxu0 0.0
      %2823 = vmatpush1.msra.mxu0 0.0
      %2824 = vmatprep.subr.mxu0 0.0
      %2825 = vmatpush1.msra.mxu0 0.0
      %2826 = vmatprep.subr.mxu0 0.0
      %2827 = vmatpush1.msra.mxu0 0.0
      %2828 = vmatprep.subr.mxu0 0.0
      %2829 = vmatpush1.msra.mxu0 0.0
      %2830 = vmatprep.subr.mxu0 0.0
      %2831 = vmatpush1.msra.mxu0 0.0
      %2832 = vmatprep.mubr.f32.mxu0 0.0
      %v2833 = vand.u32 %v2539, 4294901760
      %v2834 = vsub.f32 %v2539, %v2833
      %v2835 = vand.u32 %v2834, 4294901760
      %2836 = vmatmul.mubr.f32.gmra.mrb[0].mxu0 %v2835
      %v2837 = vpop.f32.mrb[0].mxu0
      %v2838 = vadd.f32 %v2764, %v2837
      %v2839 = vpop.f32.mrb[0].mxu0
      %2840 = vdwg.mxu0
      %2841 = vmatprep.subr.mxu0 0.0
      %v2842 = vand.u32 %v220, 4294901760
      %v2843 = vsub.f32 %v220, %v2842
      %v2844 = vand.u32 %v2843, 4294901760
      %2845 = vmatpush1.msra.mxu0 %v2844
      %2846 = vmatprep.subr.mxu0 0.0
      %2847 = vmatpush1.msra.mxu0 0.0
      %2848 = vmatprep.subr.mxu0 0.0
      %2849 = vmatpush1.msra.mxu0 0.0
      %2850 = vmatprep.subr.mxu0 0.0
      %2851 = vmatpush1.msra.mxu0 0.0
      %2852 = vmatprep.subr.mxu0 0.0
      %2853 = vmatpush1.msra.mxu0 0.0
      %2854 = vmatprep.subr.mxu0 0.0
      %2855 = vmatpush1.msra.mxu0 0.0
      %2856 = vmatprep.subr.mxu0 0.0
      %2857 = vmatpush1.msra.mxu0 0.0
      %2858 = vmatprep.subr.mxu0 0.0
      %2859 = vmatpush1.msra.mxu0 0.0
      %2860 = vmatprep.subr.mxu0 0.0
      %2861 = vmatpush1.msra.mxu0 0.0
      %2862 = vmatprep.subr.mxu0 0.0
      %2863 = vmatpush1.msra.mxu0 0.0
      %2864 = vmatprep.subr.mxu0 0.0
      %2865 = vmatpush1.msra.mxu0 0.0
      %2866 = vmatprep.subr.mxu0 0.0
      %2867 = vmatpush1.msra.mxu0 0.0
      %2868 = vmatprep.subr.mxu0 0.0
      %2869 = vmatpush1.msra.mxu0 0.0
      %2870 = vmatprep.subr.mxu0 0.0
      %2871 = vmatpush1.msra.mxu0 0.0
      %2872 = vmatprep.subr.mxu0 0.0
      %2873 = vmatpush1.msra.mxu0 0.0
      %2874 = vmatprep.subr.mxu0 0.0
      %2875 = vmatpush1.msra.mxu0 0.0
      %2876 = vmatprep.subr.mxu0 0.0
      %2877 = vmatpush1.msra.mxu0 0.0
      %2878 = vmatprep.subr.mxu0 0.0
      %2879 = vmatpush1.msra.mxu0 0.0
      %2880 = vmatprep.subr.mxu0 0.0
      %2881 = vmatpush1.msra.mxu0 0.0
      %2882 = vmatprep.subr.mxu0 0.0
      %2883 = vmatpush1.msra.mxu0 0.0
      %2884 = vmatprep.subr.mxu0 0.0
      %2885 = vmatpush1.msra.mxu0 0.0
      %2886 = vmatprep.subr.mxu0 0.0
      %2887 = vmatpush1.msra.mxu0 0.0
      %2888 = vmatprep.subr.mxu0 0.0
      %2889 = vmatpush1.msra.mxu0 0.0
      %2890 = vmatprep.subr.mxu0 0.0
      %2891 = vmatpush1.msra.mxu0 0.0
      %2892 = vmatprep.subr.mxu0 0.0
      %2893 = vmatpush1.msra.mxu0 0.0
      %2894 = vmatprep.subr.mxu0 0.0
      %2895 = vmatpush1.msra.mxu0 0.0
      %2896 = vmatprep.subr.mxu0 0.0
      %2897 = vmatpush1.msra.mxu0 0.0
      %2898 = vmatprep.subr.mxu0 0.0
      %2899 = vmatpush1.msra.mxu0 0.0
      %2900 = vmatprep.subr.mxu0 0.0
      %2901 = vmatpush1.msra.mxu0 0.0
      %2902 = vmatprep.subr.mxu0 0.0
      %2903 = vmatpush1.msra.mxu0 0.0
      %2904 = vmatprep.subr.mxu0 0.0
      %2905 = vmatpush1.msra.mxu0 0.0
      %2906 = vmatprep.subr.mxu0 0.0
      %2907 = vmatpush1.msra.mxu0 0.0
      %2908 = vmatprep.mubr.f32.mxu0 0.0
      %v2909 = vand.u32 %v2539, 4294901760
      %2910 = vmatmul.mubr.f32.gmra.mrb[0].mxu0 %v2909
      %v2911 = vpop.f32.mrb[0].mxu0
      %v2912 = vadd.f32 %v2838, %v2911
      %v2913 = vpop.f32.mrb[0].mxu0
      %2914 = vdwg.mxu0
      %2915 = vmatprep.subr.mxu0 0.0
      %v2916 = vand.u32 %v220, 4294901760
      %2917 = vmatpush1.msra.mxu0 %v2916
      %2918 = vmatprep.subr.mxu0 0.0
      %2919 = vmatpush1.msra.mxu0 0.0
      %2920 = vmatprep.subr.mxu0 0.0
      %2921 = vmatpush1.msra.mxu0 0.0
      %2922 = vmatprep.subr.mxu0 0.0
      %2923 = vmatpush1.msra.mxu0 0.0
      %2924 = vmatprep.subr.mxu0 0.0
      %2925 = vmatpush1.msra.mxu0 0.0
      %2926 = vmatprep.subr.mxu0 0.0
      %2927 = vmatpush1.msra.mxu0 0.0
      %2928 = vmatprep.subr.mxu0 0.0
      %2929 = vmatpush1.msra.mxu0 0.0
      %2930 = vmatprep.subr.mxu0 0.0
      %2931 = vmatpush1.msra.mxu0 0.0
      %2932 = vmatprep.subr.mxu0 0.0
      %2933 = vmatpush1.msra.mxu0 0.0
      %2934 = vmatprep.subr.mxu0 0.0
      %2935 = vmatpush1.msra.mxu0 0.0
      %2936 = vmatprep.subr.mxu0 0.0
      %2937 = vmatpush1.msra.mxu0 0.0
      %2938 = vmatprep.subr.mxu0 0.0
      %2939 = vmatpush1.msra.mxu0 0.0
      %2940 = vmatprep.subr.mxu0 0.0
      %2941 = vmatpush1.msra.mxu0 0.0
      %2942 = vmatprep.subr.mxu0 0.0
      %2943 = vmatpush1.msra.mxu0 0.0
      %2944 = vmatprep.subr.mxu0 0.0
      %2945 = vmatpush1.msra.mxu0 0.0
      %2946 = vmatprep.subr.mxu0 0.0
      %2947 = vmatpush1.msra.mxu0 0.0
      %2948 = vmatprep.subr.mxu0 0.0
      %2949 = vmatpush1.msra.mxu0 0.0
      %2950 = vmatprep.subr.mxu0 0.0
      %2951 = vmatpush1.msra.mxu0 0.0
      %2952 = vmatprep.subr.mxu0 0.0
      %2953 = vmatpush1.msra.mxu0 0.0
      %2954 = vmatprep.subr.mxu0 0.0
      %2955 = vmatpush1.msra.mxu0 0.0
      %2956 = vmatprep.subr.mxu0 0.0
      %2957 = vmatpush1.msra.mxu0 0.0
      %2958 = vmatprep.subr.mxu0 0.0
      %2959 = vmatpush1.msra.mxu0 0.0
      %2960 = vmatprep.subr.mxu0 0.0
      %2961 = vmatpush1.msra.mxu0 0.0
      %2962 = vmatprep.subr.mxu0 0.0
      %2963 = vmatpush1.msra.mxu0 0.0
      %2964 = vmatprep.subr.mxu0 0.0
      %2965 = vmatpush1.msra.mxu0 0.0
      %2966 = vmatprep.subr.mxu0 0.0
      %2967 = vmatpush1.msra.mxu0 0.0
      %2968 = vmatprep.subr.mxu0 0.0
      %2969 = vmatpush1.msra.mxu0 0.0
      %2970 = vmatprep.subr.mxu0 0.0
      %2971 = vmatpush1.msra.mxu0 0.0
      %2972 = vmatprep.subr.mxu0 0.0
      %2973 = vmatpush1.msra.mxu0 0.0
      %2974 = vmatprep.subr.mxu0 0.0
      %2975 = vmatpush1.msra.mxu0 0.0
      %2976 = vmatprep.subr.mxu0 0.0
      %2977 = vmatpush1.msra.mxu0 0.0
      %2978 = vmatprep.subr.mxu0 0.0
      %2979 = vmatpush1.msra.mxu0 0.0
      %2980 = vmatprep.mubr.f32.mxu0 0.0
      %v2981 = vand.u32 %v2539, 4294901760
      %2982 = vmatmul.mubr.f32.gmra.mrb[0].mxu0 %v2981
      %v2983 = vpop.f32.mrb[0].mxu0
      %v2984 = vadd.f32 %v2912, %v2983
      %v2985 = vpop.f32.mrb[0].mxu0
      %2986 = vdwg.mxu0
      %v2988 = vsel %vm223, %v2086, 0
      %2990 = vmatprep.subr.mxu0 0.0
      %v2991 = vand.u32 %v221, 4294901760
      %2992 = vmatpush1.msra.mxu0 %v2991
      %2993 = vmatprep.subr.mxu0 0.0
      %2994 = vmatpush1.msra.mxu0 0.0
      %2995 = vmatprep.subr.mxu0 0.0
      %2996 = vmatpush1.msra.mxu0 0.0
      %2997 = vmatprep.subr.mxu0 0.0
      %2998 = vmatpush1.msra.mxu0 0.0
      %2999 = vmatprep.subr.mxu0 0.0
      %3000 = vmatpush1.msra.mxu0 0.0
      %3001 = vmatprep.subr.mxu0 0.0
      %3002 = vmatpush1.msra.mxu0 0.0
      %3003 = vmatprep.subr.mxu0 0.0
      %3004 = vmatpush1.msra.mxu0 0.0
      %3005 = vmatprep.subr.mxu0 0.0
      %3006 = vmatpush1.msra.mxu0 0.0
      %3007 = vmatprep.subr.mxu0 0.0
      %3008 = vmatpush1.msra.mxu0 0.0
      %3009 = vmatprep.subr.mxu0 0.0
      %3010 = vmatpush1.msra.mxu0 0.0
      %3011 = vmatprep.subr.mxu0 0.0
      %3012 = vmatpush1.msra.mxu0 0.0
      %3013 = vmatprep.subr.mxu0 0.0
      %3014 = vmatpush1.msra.mxu0 0.0
      %3015 = vmatprep.subr.mxu0 0.0
      %3016 = vmatpush1.msra.mxu0 0.0
      %3017 = vmatprep.subr.mxu0 0.0
      %3018 = vmatpush1.msra.mxu0 0.0
      %3019 = vmatprep.subr.mxu0 0.0
      %3020 = vmatpush1.msra.mxu0 0.0
      %3021 = vmatprep.subr.mxu0 0.0
      %3022 = vmatpush1.msra.mxu0 0.0
      %3023 = vmatprep.subr.mxu0 0.0
      %3024 = vmatpush1.msra.mxu0 0.0
      %3025 = vmatprep.subr.mxu0 0.0
      %3026 = vmatpush1.msra.mxu0 0.0
      %3027 = vmatprep.subr.mxu0 0.0
      %3028 = vmatpush1.msra.mxu0 0.0
      %3029 = vmatprep.subr.mxu0 0.0
      %3030 = vmatpush1.msra.mxu0 0.0
      %3031 = vmatprep.subr.mxu0 0.0
      %3032 = vmatpush1.msra.mxu0 0.0
      %3033 = vmatprep.subr.mxu0 0.0
      %3034 = vmatpush1.msra.mxu0 0.0
      %3035 = vmatprep.subr.mxu0 0.0
      %3036 = vmatpush1.msra.mxu0 0.0
      %3037 = vmatprep.subr.mxu0 0.0
      %3038 = vmatpush1.msra.mxu0 0.0
      %3039 = vmatprep.subr.mxu0 0.0
      %3040 = vmatpush1.msra.mxu0 0.0
      %3041 = vmatprep.subr.mxu0 0.0
      %3042 = vmatpush1.msra.mxu0 0.0
      %3043 = vmatprep.subr.mxu0 0.0
      %3044 = vmatpush1.msra.mxu0 0.0
      %3045 = vmatprep.subr.mxu0 0.0
      %3046 = vmatpush1.msra.mxu0 0.0
      %3047 = vmatprep.subr.mxu0 0.0
      %3048 = vmatpush1.msra.mxu0 0.0
      %3049 = vmatprep.subr.mxu0 0.0
      %3050 = vmatpush1.msra.mxu0 0.0
      %3051 = vmatprep.subr.mxu0 0.0
      %3052 = vmatpush1.msra.mxu0 0.0
      %3053 = vmatprep.subr.mxu0 0.0
      %3054 = vmatpush1.msra.mxu0 0.0
      %3055 = vmatprep.mubr.f32.mxu0 0.0
      %v3056 = vand.u32 %v2988, 4294901760
      %v3057 = vsub.f32 %v2988, %v3056
      %v3058 = vand.u32 %v3057, 4294901760
      %v3059 = vsub.f32 %v3057, %v3058
      %v3060 = vand.u32 %v3059, 4294901760
      %3061 = vmatmul.mubr.f32.gmra.mrb[0].mxu0 %v3060
      %v3062 = vpop.f32.mrb[0].mxu0
      %v3063 = vadd.f32 0.0, %v3062
      %v3064 = vpop.f32.mrb[0].mxu0
      %3065 = vdwg.mxu0
      %3066 = vmatprep.subr.mxu0 0.0
      %v3067 = vand.u32 %v221, 4294901760
      %v3068 = vsub.f32 %v221, %v3067
      %v3069 = vand.u32 %v3068, 4294901760
      %v3070 = vsub.f32 %v3068, %v3069
      %v3071 = vand.u32 %v3070, 4294901760
      %3072 = vmatpush1.msra.mxu0 %v3071
      %3073 = vmatprep.subr.mxu0 0.0
      %3074 = vmatpush1.msra.mxu0 0.0
      %3075 = vmatprep.subr.mxu0 0.0
      %3076 = vmatpush1.msra.mxu0 0.0
      %3077 = vmatprep.subr.mxu0 0.0
      %3078 = vmatpush1.msra.mxu0 0.0
      %3079 = vmatprep.subr.mxu0 0.0
      %3080 = vmatpush1.msra.mxu0 0.0
      %3081 = vmatprep.subr.mxu0 0.0
      %3082 = vmatpush1.msra.mxu0 0.0
      %3083 = vmatprep.subr.mxu0 0.0
      %3084 = vmatpush1.msra.mxu0 0.0
      %3085 = vmatprep.subr.mxu0 0.0
      %3086 = vmatpush1.msra.mxu0 0.0
      %3087 = vmatprep.subr.mxu0 0.0
      %3088 = vmatpush1.msra.mxu0 0.0
      %3089 = vmatprep.subr.mxu0 0.0
      %3090 = vmatpush1.msra.mxu0 0.0
      %3091 = vmatprep.subr.mxu0 0.0
      %3092 = vmatpush1.msra.mxu0 0.0
      %3093 = vmatprep.subr.mxu0 0.0
      %3094 = vmatpush1.msra.mxu0 0.0
      %3095 = vmatprep.subr.mxu0 0.0
      %3096 = vmatpush1.msra.mxu0 0.0
      %3097 = vmatprep.subr.mxu0 0.0
      %3098 = vmatpush1.msra.mxu0 0.0
      %3099 = vmatprep.subr.mxu0 0.0
      %3100 = vmatpush1.msra.mxu0 0.0
      %3101 = vmatprep.subr.mxu0 0.0
      %3102 = vmatpush1.msra.mxu0 0.0
      %3103 = vmatprep.subr.mxu0 0.0
      %3104 = vmatpush1.msra.mxu0 0.0
      %3105 = vmatprep.subr.mxu0 0.0
      %3106 = vmatpush1.msra.mxu0 0.0
      %3107 = vmatprep.subr.mxu0 0.0
      %3108 = vmatpush1.msra.mxu0 0.0
      %3109 = vmatprep.subr.mxu0 0.0
      %3110 = vmatpush1.msra.mxu0 0.0
      %3111 = vmatprep.subr.mxu0 0.0
      %3112 = vmatpush1.msra.mxu0 0.0
      %3113 = vmatprep.subr.mxu0 0.0
      %3114 = vmatpush1.msra.mxu0 0.0
      %3115 = vmatprep.subr.mxu0 0.0
      %3116 = vmatpush1.msra.mxu0 0.0
      %3117 = vmatprep.subr.mxu0 0.0
      %3118 = vmatpush1.msra.mxu0 0.0
      %3119 = vmatprep.subr.mxu0 0.0
      %3120 = vmatpush1.msra.mxu0 0.0
      %3121 = vmatprep.subr.mxu0 0.0
      %3122 = vmatpush1.msra.mxu0 0.0
      %3123 = vmatprep.subr.mxu0 0.0
      %3124 = vmatpush1.msra.mxu0 0.0
      %3125 = vmatprep.subr.mxu0 0.0
      %3126 = vmatpush1.msra.mxu0 0.0
      %3127 = vmatprep.subr.mxu0 0.0
      %3128 = vmatpush1.msra.mxu0 0.0
      %3129 = vmatprep.subr.mxu0 0.0
      %3130 = vmatpush1.msra.mxu0 0.0
      %3131 = vmatprep.subr.mxu0 0.0
      %3132 = vmatpush1.msra.mxu0 0.0
      %3133 = vmatprep.subr.mxu0 0.0
      %3134 = vmatpush1.msra.mxu0 0.0
      %3135 = vmatprep.mubr.f32.mxu0 0.0
      %v3136 = vand.u32 %v2988, 4294901760
      %3137 = vmatmul.mubr.f32.gmra.mrb[0].mxu0 %v3136
      %v3138 = vpop.f32.mrb[0].mxu0
      %v3139 = vadd.f32 %v3063, %v3138
      %v3140 = vpop.f32.mrb[0].mxu0
      %3141 = vdwg.mxu0
      %3142 = vmatprep.subr.mxu0 0.0
      %v3143 = vand.u32 %v221, 4294901760
      %v3144 = vsub.f32 %v221, %v3143
      %3145 = vmatpush1.msra.mxu0 %v3144
      %3146 = vmatprep.subr.mxu0 0.0
      %3147 = vmatpush1.msra.mxu0 0.0
      %3148 = vmatprep.subr.mxu0 0.0
      %3149 = vmatpush1.msra.mxu0 0.0
      %3150 = vmatprep.subr.mxu0 0.0
      %3151 = vmatpush1.msra.mxu0 0.0
      %3152 = vmatprep.subr.mxu0 0.0
      %3153 = vmatpush1.msra.mxu0 0.0
      %3154 = vmatprep.subr.mxu0 0.0
      %3155 = vmatpush1.msra.mxu0 0.0
      %3156 = vmatprep.subr.mxu0 0.0
      %3157 = vmatpush1.msra.mxu0 0.0
      %3158 = vmatprep.subr.mxu0 0.0
      %3159 = vmatpush1.msra.mxu0 0.0
      %3160 = vmatprep.subr.mxu0 0.0
      %3161 = vmatpush1.msra.mxu0 0.0
      %3162 = vmatprep.subr.mxu0 0.0
      %3163 = vmatpush1.msra.mxu0 0.0
      %3164 = vmatprep.subr.mxu0 0.0
      %3165 = vmatpush1.msra.mxu0 0.0
      %3166 = vmatprep.subr.mxu0 0.0
      %3167 = vmatpush1.msra.mxu0 0.0
      %3168 = vmatprep.subr.mxu0 0.0
      %3169 = vmatpush1.msra.mxu0 0.0
      %3170 = vmatprep.subr.mxu0 0.0
      %3171 = vmatpush1.msra.mxu0 0.0
      %3172 = vmatprep.subr.mxu0 0.0
      %3173 = vmatpush1.msra.mxu0 0.0
      %3174 = vmatprep.subr.mxu0 0.0
      %3175 = vmatpush1.msra.mxu0 0.0
      %3176 = vmatprep.subr.mxu0 0.0
      %3177 = vmatpush1.msra.mxu0 0.0
      %3178 = vmatprep.subr.mxu0 0.0
      %3179 = vmatpush1.msra.mxu0 0.0
      %3180 = vmatprep.subr.mxu0 0.0
      %3181 = vmatpush1.msra.mxu0 0.0
      %3182 = vmatprep.subr.mxu0 0.0
      %3183 = vmatpush1.msra.mxu0 0.0
      %3184 = vmatprep.subr.mxu0 0.0
      %3185 = vmatpush1.msra.mxu0 0.0
      %3186 = vmatprep.subr.mxu0 0.0
      %3187 = vmatpush1.msra.mxu0 0.0
      %3188 = vmatprep.subr.mxu0 0.0
      %3189 = vmatpush1.msra.mxu0 0.0
      %3190 = vmatprep.subr.mxu0 0.0
      %3191 = vmatpush1.msra.mxu0 0.0
      %3192 = vmatprep.subr.mxu0 0.0
      %3193 = vmatpush1.msra.mxu0 0.0
      %3194 = vmatprep.subr.mxu0 0.0
      %3195 = vmatpush1.msra.mxu0 0.0
      %3196 = vmatprep.subr.mxu0 0.0
      %3197 = vmatpush1.msra.mxu0 0.0
      %3198 = vmatprep.subr.mxu0 0.0
      %3199 = vmatpush1.msra.mxu0 0.0
      %3200 = vmatprep.subr.mxu0 0.0
      %3201 = vmatpush1.msra.mxu0 0.0
      %3202 = vmatprep.subr.mxu0 0.0
      %3203 = vmatpush1.msra.mxu0 0.0
      %3204 = vmatprep.subr.mxu0 0.0
      %3205 = vmatpush1.msra.mxu0 0.0
      %3206 = vmatprep.subr.mxu0 0.0
      %3207 = vmatpush1.msra.mxu0 0.0
      %3208 = vmatprep.mubr.f32.mxu0 0.0
      %v3209 = vand.u32 %v2988, 4294901760
      %v3210 = vsub.f32 %v2988, %v3209
      %3211 = vmatmul.mubr.f32.gmra.mrb[0].mxu0 %v3210
      %v3212 = vpop.f32.mrb[0].mxu0
      %v3213 = vadd.f32 %v3139, %v3212
      %v3214 = vpop.f32.mrb[0].mxu0
      %3215 = vdwg.mxu0
      %3216 = vmatprep.subr.mxu0 0.0
      %v3217 = vand.u32 %v221, 4294901760
      %3218 = vmatpush1.msra.mxu0 %v3217
      %3219 = vmatprep.subr.mxu0 0.0
      %3220 = vmatpush1.msra.mxu0 0.0
      %3221 = vmatprep.subr.mxu0 0.0
      %3222 = vmatpush1.msra.mxu0 0.0
      %3223 = vmatprep.subr.mxu0 0.0
      %3224 = vmatpush1.msra.mxu0 0.0
      %3225 = vmatprep.subr.mxu0 0.0
      %3226 = vmatpush1.msra.mxu0 0.0
      %3227 = vmatprep.subr.mxu0 0.0
      %3228 = vmatpush1.msra.mxu0 0.0
      %3229 = vmatprep.subr.mxu0 0.0
      %3230 = vmatpush1.msra.mxu0 0.0
      %3231 = vmatprep.subr.mxu0 0.0
      %3232 = vmatpush1.msra.mxu0 0.0
      %3233 = vmatprep.subr.mxu0 0.0
      %3234 = vmatpush1.msra.mxu0 0.0
      %3235 = vmatprep.subr.mxu0 0.0
      %3236 = vmatpush1.msra.mxu0 0.0
      %3237 = vmatprep.subr.mxu0 0.0
      %3238 = vmatpush1.msra.mxu0 0.0
      %3239 = vmatprep.subr.mxu0 0.0
      %3240 = vmatpush1.msra.mxu0 0.0
      %3241 = vmatprep.subr.mxu0 0.0
      %3242 = vmatpush1.msra.mxu0 0.0
      %3243 = vmatprep.subr.mxu0 0.0
      %3244 = vmatpush1.msra.mxu0 0.0
      %3245 = vmatprep.subr.mxu0 0.0
      %3246 = vmatpush1.msra.mxu0 0.0
      %3247 = vmatprep.subr.mxu0 0.0
      %3248 = vmatpush1.msra.mxu0 0.0
      %3249 = vmatprep.subr.mxu0 0.0
      %3250 = vmatpush1.msra.mxu0 0.0
      %3251 = vmatprep.subr.mxu0 0.0
      %3252 = vmatpush1.msra.mxu0 0.0
      %3253 = vmatprep.subr.mxu0 0.0
      %3254 = vmatpush1.msra.mxu0 0.0
      %3255 = vmatprep.subr.mxu0 0.0
      %3256 = vmatpush1.msra.mxu0 0.0
      %3257 = vmatprep.subr.mxu0 0.0
      %3258 = vmatpush1.msra.mxu0 0.0
      %3259 = vmatprep.subr.mxu0 0.0
      %3260 = vmatpush1.msra.mxu0 0.0
      %3261 = vmatprep.subr.mxu0 0.0
      %3262 = vmatpush1.msra.mxu0 0.0
      %3263 = vmatprep.subr.mxu0 0.0
      %3264 = vmatpush1.msra.mxu0 0.0
      %3265 = vmatprep.subr.mxu0 0.0
      %3266 = vmatpush1.msra.mxu0 0.0
      %3267 = vmatprep.subr.mxu0 0.0
      %3268 = vmatpush1.msra.mxu0 0.0
      %3269 = vmatprep.subr.mxu0 0.0
      %3270 = vmatpush1.msra.mxu0 0.0
      %3271 = vmatprep.subr.mxu0 0.0
      %3272 = vmatpush1.msra.mxu0 0.0
      %3273 = vmatprep.subr.mxu0 0.0
      %3274 = vmatpush1.msra.mxu0 0.0
      %3275 = vmatprep.subr.mxu0 0.0
      %3276 = vmatpush1.msra.mxu0 0.0
      %3277 = vmatprep.subr.mxu0 0.0
      %3278 = vmatpush1.msra.mxu0 0.0
      %3279 = vmatprep.subr.mxu0 0.0
      %3280 = vmatpush1.msra.mxu0 0.0
      %3281 = vmatprep.mubr.f32.mxu0 0.0
      %v3282 = vand.u32 %v2988, 4294901760
      %v3283 = vsub.f32 %v2988, %v3282
      %v3284 = vand.u32 %v3283, 4294901760
      %3285 = vmatmul.mubr.f32.gmra.mrb[0].mxu0 %v3284
      %v3286 = vpop.f32.mrb[0].mxu0
      %v3287 = vadd.f32 %v3213, %v3286
      %v3288 = vpop.f32.mrb[0].mxu0
      %3289 = vdwg.mxu0
      %3290 = vmatprep.subr.mxu0 0.0
      %v3291 = vand.u32 %v221, 4294901760
      %v3292 = vsub.f32 %v221, %v3291
      %v3293 = vand.u32 %v3292, 4294901760
      %3294 = vmatpush1.msra.mxu0 %v3293
      %3295 = vmatprep.subr.mxu0 0.0
      %3296 = vmatpush1.msra.mxu0 0.0
      %3297 = vmatprep.subr.mxu0 0.0
      %3298 = vmatpush1.msra.mxu0 0.0
      %3299 = vmatprep.subr.mxu0 0.0
      %3300 = vmatpush1.msra.mxu0 0.0
      %3301 = vmatprep.subr.mxu0 0.0
      %3302 = vmatpush1.msra.mxu0 0.0
      %3303 = vmatprep.subr.mxu0 0.0
      %3304 = vmatpush1.msra.mxu0 0.0
      %3305 = vmatprep.subr.mxu0 0.0
      %3306 = vmatpush1.msra.mxu0 0.0
      %3307 = vmatprep.subr.mxu0 0.0
      %3308 = vmatpush1.msra.mxu0 0.0
      %3309 = vmatprep.subr.mxu0 0.0
      %3310 = vmatpush1.msra.mxu0 0.0
      %3311 = vmatprep.subr.mxu0 0.0
      %3312 = vmatpush1.msra.mxu0 0.0
      %3313 = vmatprep.subr.mxu0 0.0
      %3314 = vmatpush1.msra.mxu0 0.0
      %3315 = vmatprep.subr.mxu0 0.0
      %3316 = vmatpush1.msra.mxu0 0.0
      %3317 = vmatprep.subr.mxu0 0.0
      %3318 = vmatpush1.msra.mxu0 0.0
      %3319 = vmatprep.subr.mxu0 0.0
      %3320 = vmatpush1.msra.mxu0 0.0
      %3321 = vmatprep.subr.mxu0 0.0
      %3322 = vmatpush1.msra.mxu0 0.0
      %3323 = vmatprep.subr.mxu0 0.0
      %3324 = vmatpush1.msra.mxu0 0.0
      %3325 = vmatprep.subr.mxu0 0.0
      %3326 = vmatpush1.msra.mxu0 0.0
      %3327 = vmatprep.subr.mxu0 0.0
      %3328 = vmatpush1.msra.mxu0 0.0
      %3329 = vmatprep.subr.mxu0 0.0
      %3330 = vmatpush1.msra.mxu0 0.0
      %3331 = vmatprep.subr.mxu0 0.0
      %3332 = vmatpush1.msra.mxu0 0.0
      %3333 = vmatprep.subr.mxu0 0.0
      %3334 = vmatpush1.msra.mxu0 0.0
      %3335 = vmatprep.subr.mxu0 0.0
      %3336 = vmatpush1.msra.mxu0 0.0
      %3337 = vmatprep.subr.mxu0 0.0
      %3338 = vmatpush1.msra.mxu0 0.0
      %3339 = vmatprep.subr.mxu0 0.0
      %3340 = vmatpush1.msra.mxu0 0.0
      %3341 = vmatprep.subr.mxu0 0.0
      %3342 = vmatpush1.msra.mxu0 0.0
      %3343 = vmatprep.subr.mxu0 0.0
      %3344 = vmatpush1.msra.mxu0 0.0
      %3345 = vmatprep.subr.mxu0 0.0
      %3346 = vmatpush1.msra.mxu0 0.0
      %3347 = vmatprep.subr.mxu0 0.0
      %3348 = vmatpush1.msra.mxu0 0.0
      %3349 = vmatprep.subr.mxu0 0.0
      %3350 = vmatpush1.msra.mxu0 0.0
      %3351 = vmatprep.subr.mxu0 0.0
      %3352 = vmatpush1.msra.mxu0 0.0
      %3353 = vmatprep.subr.mxu0 0.0
      %3354 = vmatpush1.msra.mxu0 0.0
      %3355 = vmatprep.subr.mxu0 0.0
      %3356 = vmatpush1.msra.mxu0 0.0
      %3357 = vmatprep.mubr.f32.mxu0 0.0
      %v3358 = vand.u32 %v2988, 4294901760
      %3359 = vmatmul.mubr.f32.gmra.mrb[0].mxu0 %v3358
      %v3360 = vpop.f32.mrb[0].mxu0
      %v3361 = vadd.f32 %v3287, %v3360
      %v3362 = vpop.f32.mrb[0].mxu0
      %3363 = vdwg.mxu0
      %3364 = vmatprep.subr.mxu0 0.0
      %v3365 = vand.u32 %v221, 4294901760
      %3366 = vmatpush1.msra.mxu0 %v3365
      %3367 = vmatprep.subr.mxu0 0.0
      %3368 = vmatpush1.msra.mxu0 0.0
      %3369 = vmatprep.subr.mxu0 0.0
      %3370 = vmatpush1.msra.mxu0 0.0
      %3371 = vmatprep.subr.mxu0 0.0
      %3372 = vmatpush1.msra.mxu0 0.0
      %3373 = vmatprep.subr.mxu0 0.0
      %3374 = vmatpush1.msra.mxu0 0.0
      %3375 = vmatprep.subr.mxu0 0.0
      %3376 = vmatpush1.msra.mxu0 0.0
      %3377 = vmatprep.subr.mxu0 0.0
      %3378 = vmatpush1.msra.mxu0 0.0
      %3379 = vmatprep.subr.mxu0 0.0
      %3380 = vmatpush1.msra.mxu0 0.0
      %3381 = vmatprep.subr.mxu0 0.0
      %3382 = vmatpush1.msra.mxu0 0.0
      %3383 = vmatprep.subr.mxu0 0.0
      %3384 = vmatpush1.msra.mxu0 0.0
      %3385 = vmatprep.subr.mxu0 0.0
      %3386 = vmatpush1.msra.mxu0 0.0
      %3387 = vmatprep.subr.mxu0 0.0
      %3388 = vmatpush1.msra.mxu0 0.0
      %3389 = vmatprep.subr.mxu0 0.0
      %3390 = vmatpush1.msra.mxu0 0.0
      %3391 = vmatprep.subr.mxu0 0.0
      %3392 = vmatpush1.msra.mxu0 0.0
      %3393 = vmatprep.subr.mxu0 0.0
      %3394 = vmatpush1.msra.mxu0 0.0
      %3395 = vmatprep.subr.mxu0 0.0
      %3396 = vmatpush1.msra.mxu0 0.0
      %3397 = vmatprep.subr.mxu0 0.0
      %3398 = vmatpush1.msra.mxu0 0.0
      %3399 = vmatprep.subr.mxu0 0.0
      %3400 = vmatpush1.msra.mxu0 0.0
      %3401 = vmatprep.subr.mxu0 0.0
      %3402 = vmatpush1.msra.mxu0 0.0
      %3403 = vmatprep.subr.mxu0 0.0
      %3404 = vmatpush1.msra.mxu0 0.0
      %3405 = vmatprep.subr.mxu0 0.0
      %3406 = vmatpush1.msra.mxu0 0.0
      %3407 = vmatprep.subr.mxu0 0.0
      %3408 = vmatpush1.msra.mxu0 0.0
      %3409 = vmatprep.subr.mxu0 0.0
      %3410 = vmatpush1.msra.mxu0 0.0
      %3411 = vmatprep.subr.mxu0 0.0
      %3412 = vmatpush1.msra.mxu0 0.0
      %3413 = vmatprep.subr.mxu0 0.0
      %3414 = vmatpush1.msra.mxu0 0.0
      %3415 = vmatprep.subr.mxu0 0.0
      %3416 = vmatpush1.msra.mxu0 0.0
      %3417 = vmatprep.subr.mxu0 0.0
      %3418 = vmatpush1.msra.mxu0 0.0
      %3419 = vmatprep.subr.mxu0 0.0
      %3420 = vmatpush1.msra.mxu0 0.0
      %3421 = vmatprep.subr.mxu0 0.0
      %3422 = vmatpush1.msra.mxu0 0.0
      %3423 = vmatprep.subr.mxu0 0.0
      %3424 = vmatpush1.msra.mxu0 0.0
      %3425 = vmatprep.subr.mxu0 0.0
      %3426 = vmatpush1.msra.mxu0 0.0
      %3427 = vmatprep.subr.mxu0 0.0
      %3428 = vmatpush1.msra.mxu0 0.0
      %3429 = vmatprep.mubr.f32.mxu0 0.0
      %v3430 = vand.u32 %v2988, 4294901760
      %3431 = vmatmul.mubr.f32.gmra.mrb[0].mxu0 %v3430
      %v3432 = vpop.f32.mrb[0].mxu0
      %v3433 = vadd.f32 %v3361, %v3432
      %v3434 = vpop.f32.mrb[0].mxu0
      %3435 = vdwg.mxu0
      %v3437 = vsel %vm223, %v2088, 0
      %3439 = vmatprep.subr.mxu0 0.0
      %v3440 = vand.u32 %v222, 4294901760
      %3441 = vmatpush1.msra.mxu0 %v3440
      %3442 = vmatprep.subr.mxu0 0.0
      %3443 = vmatpush1.msra.mxu0 0.0
      %3444 = vmatprep.subr.mxu0 0.0
      %3445 = vmatpush1.msra.mxu0 0.0
      %3446 = vmatprep.subr.mxu0 0.0
      %3447 = vmatpush1.msra.mxu0 0.0
      %3448 = vmatprep.subr.mxu0 0.0
      %3449 = vmatpush1.msra.mxu0 0.0
      %3450 = vmatprep.subr.mxu0 0.0
      %3451 = vmatpush1.msra.mxu0 0.0
      %3452 = vmatprep.subr.mxu0 0.0
      %3453 = vmatpush1.msra.mxu0 0.0
      %3454 = vmatprep.subr.mxu0 0.0
      %3455 = vmatpush1.msra.mxu0 0.0
      %3456 = vmatprep.subr.mxu0 0.0
      %3457 = vmatpush1.msra.mxu0 0.0
      %3458 = vmatprep.subr.mxu0 0.0
      %3459 = vmatpush1.msra.mxu0 0.0
      %3460 = vmatprep.subr.mxu0 0.0
      %3461 = vmatpush1.msra.mxu0 0.0
      %3462 = vmatprep.subr.mxu0 0.0
      %3463 = vmatpush1.msra.mxu0 0.0
      %3464 = vmatprep.subr.mxu0 0.0
      %3465 = vmatpush1.msra.mxu0 0.0
      %3466 = vmatprep.subr.mxu0 0.0
      %3467 = vmatpush1.msra.mxu0 0.0
      %3468 = vmatprep.subr.mxu0 0.0
      %3469 = vmatpush1.msra.mxu0 0.0
      %3470 = vmatprep.subr.mxu0 0.0
      %3471 = vmatpush1.msra.mxu0 0.0
      %3472 = vmatprep.subr.mxu0 0.0
      %3473 = vmatpush1.msra.mxu0 0.0
      %3474 = vmatprep.subr.mxu0 0.0
      %3475 = vmatpush1.msra.mxu0 0.0
      %3476 = vmatprep.subr.mxu0 0.0
      %3477 = vmatpush1.msra.mxu0 0.0
      %3478 = vmatprep.subr.mxu0 0.0
      %3479 = vmatpush1.msra.mxu0 0.0
      %3480 = vmatprep.subr.mxu0 0.0
      %3481 = vmatpush1.msra.mxu0 0.0
      %3482 = vmatprep.subr.mxu0 0.0
      %3483 = vmatpush1.msra.mxu0 0.0
      %3484 = vmatprep.subr.mxu0 0.0
      %3485 = vmatpush1.msra.mxu0 0.0
      %3486 = vmatprep.subr.mxu0 0.0
      %3487 = vmatpush1.msra.mxu0 0.0
      %3488 = vmatprep.subr.mxu0 0.0
      %3489 = vmatpush1.msra.mxu0 0.0
      %3490 = vmatprep.subr.mxu0 0.0
      %3491 = vmatpush1.msra.mxu0 0.0
      %3492 = vmatprep.subr.mxu0 0.0
      %3493 = vmatpush1.msra.mxu0 0.0
      %3494 = vmatprep.subr.mxu0 0.0
      %3495 = vmatpush1.msra.mxu0 0.0
      %3496 = vmatprep.subr.mxu0 0.0
      %3497 = vmatpush1.msra.mxu0 0.0
      %3498 = vmatprep.subr.mxu0 0.0
      %3499 = vmatpush1.msra.mxu0 0.0
      %3500 = vmatprep.subr.mxu0 0.0
      %3501 = vmatpush1.msra.mxu0 0.0
      %3502 = vmatprep.subr.mxu0 0.0
      %3503 = vmatpush1.msra.mxu0 0.0
      %3504 = vmatprep.mubr.f32.mxu0 0.0
      %v3505 = vand.u32 %v3437, 4294901760
      %v3506 = vsub.f32 %v3437, %v3505
      %v3507 = vand.u32 %v3506, 4294901760
      %v3508 = vsub.f32 %v3506, %v3507
      %v3509 = vand.u32 %v3508, 4294901760
      %3510 = vmatmul.mubr.f32.gmra.mrb[0].mxu0 %v3509
      %v3511 = vpop.f32.mrb[0].mxu0
      %v3512 = vadd.f32 0.0, %v3511
      %v3513 = vpop.f32.mrb[0].mxu0
      %3514 = vdwg.mxu0
      %3515 = vmatprep.subr.mxu0 0.0
      %v3516 = vand.u32 %v222, 4294901760
      %v3517 = vsub.f32 %v222, %v3516
      %v3518 = vand.u32 %v3517, 4294901760
      %v3519 = vsub.f32 %v3517, %v3518
      %v3520 = vand.u32 %v3519, 4294901760
      %3521 = vmatpush1.msra.mxu0 %v3520
      %3522 = vmatprep.subr.mxu0 0.0
      %3523 = vmatpush1.msra.mxu0 0.0
      %3524 = vmatprep.subr.mxu0 0.0
      %3525 = vmatpush1.msra.mxu0 0.0
      %3526 = vmatprep.subr.mxu0 0.0
      %3527 = vmatpush1.msra.mxu0 0.0
      %3528 = vmatprep.subr.mxu0 0.0
      %3529 = vmatpush1.msra.mxu0 0.0
      %3530 = vmatprep.subr.mxu0 0.0
      %3531 = vmatpush1.msra.mxu0 0.0
      %3532 = vmatprep.subr.mxu0 0.0
      %3533 = vmatpush1.msra.mxu0 0.0
      %3534 = vmatprep.subr.mxu0 0.0
      %3535 = vmatpush1.msra.mxu0 0.0
      %3536 = vmatprep.subr.mxu0 0.0
      %3537 = vmatpush1.msra.mxu0 0.0
      %3538 = vmatprep.subr.mxu0 0.0
      %3539 = vmatpush1.msra.mxu0 0.0
      %3540 = vmatprep.subr.mxu0 0.0
      %3541 = vmatpush1.msra.mxu0 0.0
      %3542 = vmatprep.subr.mxu0 0.0
      %3543 = vmatpush1.msra.mxu0 0.0
      %3544 = vmatprep.subr.mxu0 0.0
      %3545 = vmatpush1.msra.mxu0 0.0
      %3546 = vmatprep.subr.mxu0 0.0
      %3547 = vmatpush1.msra.mxu0 0.0
      %3548 = vmatprep.subr.mxu0 0.0
      %3549 = vmatpush1.msra.mxu0 0.0
      %3550 = vmatprep.subr.mxu0 0.0
      %3551 = vmatpush1.msra.mxu0 0.0
      %3552 = vmatprep.subr.mxu0 0.0
      %3553 = vmatpush1.msra.mxu0 0.0
      %3554 = vmatprep.subr.mxu0 0.0
      %3555 = vmatpush1.msra.mxu0 0.0
      %3556 = vmatprep.subr.mxu0 0.0
      %3557 = vmatpush1.msra.mxu0 0.0
      %3558 = vmatprep.subr.mxu0 0.0
      %3559 = vmatpush1.msra.mxu0 0.0
      %3560 = vmatprep.subr.mxu0 0.0
      %3561 = vmatpush1.msra.mxu0 0.0
      %3562 = vmatprep.subr.mxu0 0.0
      %3563 = vmatpush1.msra.mxu0 0.0
      %3564 = vmatprep.subr.mxu0 0.0
      %3565 = vmatpush1.msra.mxu0 0.0
      %3566 = vmatprep.subr.mxu0 0.0
      %3567 = vmatpush1.msra.mxu0 0.0
      %3568 = vmatprep.subr.mxu0 0.0
      %3569 = vmatpush1.msra.mxu0 0.0
      %3570 = vmatprep.subr.mxu0 0.0
      %3571 = vmatpush1.msra.mxu0 0.0
      %3572 = vmatprep.subr.mxu0 0.0
      %3573 = vmatpush1.msra.mxu0 0.0
      %3574 = vmatprep.subr.mxu0 0.0
      %3575 = vmatpush1.msra.mxu0 0.0
      %3576 = vmatprep.subr.mxu0 0.0
      %3577 = vmatpush1.msra.mxu0 0.0
      %3578 = vmatprep.subr.mxu0 0.0
      %3579 = vmatpush1.msra.mxu0 0.0
      %3580 = vmatprep.subr.mxu0 0.0
      %3581 = vmatpush1.msra.mxu0 0.0
      %3582 = vmatprep.subr.mxu0 0.0
      %3583 = vmatpush1.msra.mxu0 0.0
      %3584 = vmatprep.mubr.f32.mxu0 0.0
      %v3585 = vand.u32 %v3437, 4294901760
      %3586 = vmatmul.mubr.f32.gmra.mrb[0].mxu0 %v3585
      %v3587 = vpop.f32.mrb[0].mxu0
      %v3588 = vadd.f32 %v3512, %v3587
      %v3589 = vpop.f32.mrb[0].mxu0
      %3590 = vdwg.mxu0
      %3591 = vmatprep.subr.mxu0 0.0
      %v3592 = vand.u32 %v222, 4294901760
      %v3593 = vsub.f32 %v222, %v3592
      %3594 = vmatpush1.msra.mxu0 %v3593
      %3595 = vmatprep.subr.mxu0 0.0
      %3596 = vmatpush1.msra.mxu0 0.0
      %3597 = vmatprep.subr.mxu0 0.0
      %3598 = vmatpush1.msra.mxu0 0.0
      %3599 = vmatprep.subr.mxu0 0.0
      %3600 = vmatpush1.msra.mxu0 0.0
      %3601 = vmatprep.subr.mxu0 0.0
      %3602 = vmatpush1.msra.mxu0 0.0
      %3603 = vmatprep.subr.mxu0 0.0
      %3604 = vmatpush1.msra.mxu0 0.0
      %3605 = vmatprep.subr.mxu0 0.0
      %3606 = vmatpush1.msra.mxu0 0.0
      %3607 = vmatprep.subr.mxu0 0.0
      %3608 = vmatpush1.msra.mxu0 0.0
      %3609 = vmatprep.subr.mxu0 0.0
      %3610 = vmatpush1.msra.mxu0 0.0
      %3611 = vmatprep.subr.mxu0 0.0
      %3612 = vmatpush1.msra.mxu0 0.0
      %3613 = vmatprep.subr.mxu0 0.0
      %3614 = vmatpush1.msra.mxu0 0.0
      %3615 = vmatprep.subr.mxu0 0.0
      %3616 = vmatpush1.msra.mxu0 0.0
      %3617 = vmatprep.subr.mxu0 0.0
      %3618 = vmatpush1.msra.mxu0 0.0
      %3619 = vmatprep.subr.mxu0 0.0
      %3620 = vmatpush1.msra.mxu0 0.0
      %3621 = vmatprep.subr.mxu0 0.0
      %3622 = vmatpush1.msra.mxu0 0.0
      %3623 = vmatprep.subr.mxu0 0.0
      %3624 = vmatpush1.msra.mxu0 0.0
      %3625 = vmatprep.subr.mxu0 0.0
      %3626 = vmatpush1.msra.mxu0 0.0
      %3627 = vmatprep.subr.mxu0 0.0
      %3628 = vmatpush1.msra.mxu0 0.0
      %3629 = vmatprep.subr.mxu0 0.0
      %3630 = vmatpush1.msra.mxu0 0.0
      %3631 = vmatprep.subr.mxu0 0.0
      %3632 = vmatpush1.msra.mxu0 0.0
      %3633 = vmatprep.subr.mxu0 0.0
      %3634 = vmatpush1.msra.mxu0 0.0
      %3635 = vmatprep.subr.mxu0 0.0
      %3636 = vmatpush1.msra.mxu0 0.0
      %3637 = vmatprep.subr.mxu0 0.0
      %3638 = vmatpush1.msra.mxu0 0.0
      %3639 = vmatprep.subr.mxu0 0.0
      %3640 = vmatpush1.msra.mxu0 0.0
      %3641 = vmatprep.subr.mxu0 0.0
      %3642 = vmatpush1.msra.mxu0 0.0
      %3643 = vmatprep.subr.mxu0 0.0
      %3644 = vmatpush1.msra.mxu0 0.0
      %3645 = vmatprep.subr.mxu0 0.0
      %3646 = vmatpush1.msra.mxu0 0.0
      %3647 = vmatprep.subr.mxu0 0.0
      %3648 = vmatpush1.msra.mxu0 0.0
      %3649 = vmatprep.subr.mxu0 0.0
      %3650 = vmatpush1.msra.mxu0 0.0
      %3651 = vmatprep.subr.mxu0 0.0
      %3652 = vmatpush1.msra.mxu0 0.0
      %3653 = vmatprep.subr.mxu0 0.0
      %3654 = vmatpush1.msra.mxu0 0.0
      %3655 = vmatprep.subr.mxu0 0.0
      %3656 = vmatpush1.msra.mxu0 0.0
      %3657 = vmatprep.mubr.f32.mxu0 0.0
      %v3658 = vand.u32 %v3437, 4294901760
      %v3659 = vsub.f32 %v3437, %v3658
      %3660 = vmatmul.mubr.f32.gmra.mrb[0].mxu0 %v3659
      %v3661 = vpop.f32.mrb[0].mxu0
      %v3662 = vadd.f32 %v3588, %v3661
      %v3663 = vpop.f32.mrb[0].mxu0
      %3664 = vdwg.mxu0
      %3665 = vmatprep.subr.mxu0 0.0
      %v3666 = vand.u32 %v222, 4294901760
      %3667 = vmatpush1.msra.mxu0 %v3666
      %3668 = vmatprep.subr.mxu0 0.0
      %3669 = vmatpush1.msra.mxu0 0.0
      %3670 = vmatprep.subr.mxu0 0.0
      %3671 = vmatpush1.msra.mxu0 0.0
      %3672 = vmatprep.subr.mxu0 0.0
      %3673 = vmatpush1.msra.mxu0 0.0
      %3674 = vmatprep.subr.mxu0 0.0
      %3675 = vmatpush1.msra.mxu0 0.0
      %3676 = vmatprep.subr.mxu0 0.0
      %3677 = vmatpush1.msra.mxu0 0.0
      %3678 = vmatprep.subr.mxu0 0.0
      %3679 = vmatpush1.msra.mxu0 0.0
      %3680 = vmatprep.subr.mxu0 0.0
      %3681 = vmatpush1.msra.mxu0 0.0
      %3682 = vmatprep.subr.mxu0 0.0
      %3683 = vmatpush1.msra.mxu0 0.0
      %3684 = vmatprep.subr.mxu0 0.0
      %3685 = vmatpush1.msra.mxu0 0.0
      %3686 = vmatprep.subr.mxu0 0.0
      %3687 = vmatpush1.msra.mxu0 0.0
      %3688 = vmatprep.subr.mxu0 0.0
      %3689 = vmatpush1.msra.mxu0 0.0
      %3690 = vmatprep.subr.mxu0 0.0
      %3691 = vmatpush1.msra.mxu0 0.0
      %3692 = vmatprep.subr.mxu0 0.0
      %3693 = vmatpush1.msra.mxu0 0.0
      %3694 = vmatprep.subr.mxu0 0.0
      %3695 = vmatpush1.msra.mxu0 0.0
      %3696 = vmatprep.subr.mxu0 0.0
      %3697 = vmatpush1.msra.mxu0 0.0
      %3698 = vmatprep.subr.mxu0 0.0
      %3699 = vmatpush1.msra.mxu0 0.0
      %3700 = vmatprep.subr.mxu0 0.0
      %3701 = vmatpush1.msra.mxu0 0.0
      %3702 = vmatprep.subr.mxu0 0.0
      %3703 = vmatpush1.msra.mxu0 0.0
      %3704 = vmatprep.subr.mxu0 0.0
      %3705 = vmatpush1.msra.mxu0 0.0
      %3706 = vmatprep.subr.mxu0 0.0
      %3707 = vmatpush1.msra.mxu0 0.0
      %3708 = vmatprep.subr.mxu0 0.0
      %3709 = vmatpush1.msra.mxu0 0.0
      %3710 = vmatprep.subr.mxu0 0.0
      %3711 = vmatpush1.msra.mxu0 0.0
      %3712 = vmatprep.subr.mxu0 0.0
      %3713 = vmatpush1.msra.mxu0 0.0
      %3714 = vmatprep.subr.mxu0 0.0
      %3715 = vmatpush1.msra.mxu0 0.0
      %3716 = vmatprep.subr.mxu0 0.0
      %3717 = vmatpush1.msra.mxu0 0.0
      %3718 = vmatprep.subr.mxu0 0.0
      %3719 = vmatpush1.msra.mxu0 0.0
      %3720 = vmatprep.subr.mxu0 0.0
      %3721 = vmatpush1.msra.mxu0 0.0
      %3722 = vmatprep.subr.mxu0 0.0
      %3723 = vmatpush1.msra.mxu0 0.0
      %3724 = vmatprep.subr.mxu0 0.0
      %3725 = vmatpush1.msra.mxu0 0.0
      %3726 = vmatprep.subr.mxu0 0.0
      %3727 = vmatpush1.msra.mxu0 0.0
      %3728 = vmatprep.subr.mxu0 0.0
      %3729 = vmatpush1.msra.mxu0 0.0
      %3730 = vmatprep.mubr.f32.mxu0 0.0
      %v3731 = vand.u32 %v3437, 4294901760
      %v3732 = vsub.f32 %v3437, %v3731
      %v3733 = vand.u32 %v3732, 4294901760
      %3734 = vmatmul.mubr.f32.gmra.mrb[0].mxu0 %v3733
      %v3735 = vpop.f32.mrb[0].mxu0
      %v3736 = vadd.f32 %v3662, %v3735
      %v3737 = vpop.f32.mrb[0].mxu0
      %3738 = vdwg.mxu0
      %3739 = vmatprep.subr.mxu0 0.0
      %v3740 = vand.u32 %v222, 4294901760
      %v3741 = vsub.f32 %v222, %v3740
      %v3742 = vand.u32 %v3741, 4294901760
      %3743 = vmatpush1.msra.mxu0 %v3742
      %3744 = vmatprep.subr.mxu0 0.0
      %3745 = vmatpush1.msra.mxu0 0.0
      %3746 = vmatprep.subr.mxu0 0.0
      %3747 = vmatpush1.msra.mxu0 0.0
      %3748 = vmatprep.subr.mxu0 0.0
      %3749 = vmatpush1.msra.mxu0 0.0
      %3750 = vmatprep.subr.mxu0 0.0
      %3751 = vmatpush1.msra.mxu0 0.0
      %3752 = vmatprep.subr.mxu0 0.0
      %3753 = vmatpush1.msra.mxu0 0.0
      %3754 = vmatprep.subr.mxu0 0.0
      %3755 = vmatpush1.msra.mxu0 0.0
      %3756 = vmatprep.subr.mxu0 0.0
      %3757 = vmatpush1.msra.mxu0 0.0
      %3758 = vmatprep.subr.mxu0 0.0
      %3759 = vmatpush1.msra.mxu0 0.0
      %3760 = vmatprep.subr.mxu0 0.0
      %3761 = vmatpush1.msra.mxu0 0.0
      %3762 = vmatprep.subr.mxu0 0.0
      %3763 = vmatpush1.msra.mxu0 0.0
      %3764 = vmatprep.subr.mxu0 0.0
      %3765 = vmatpush1.msra.mxu0 0.0
      %3766 = vmatprep.subr.mxu0 0.0
      %3767 = vmatpush1.msra.mxu0 0.0
      %3768 = vmatprep.subr.mxu0 0.0
      %3769 = vmatpush1.msra.mxu0 0.0
      %3770 = vmatprep.subr.mxu0 0.0
      %3771 = vmatpush1.msra.mxu0 0.0
      %3772 = vmatprep.subr.mxu0 0.0
      %3773 = vmatpush1.msra.mxu0 0.0
      %3774 = vmatprep.subr.mxu0 0.0
      %3775 = vmatpush1.msra.mxu0 0.0
      %3776 = vmatprep.subr.mxu0 0.0
      %3777 = vmatpush1.msra.mxu0 0.0
      %3778 = vmatprep.subr.mxu0 0.0
      %3779 = vmatpush1.msra.mxu0 0.0
      %3780 = vmatprep.subr.mxu0 0.0
      %3781 = vmatpush1.msra.mxu0 0.0
      %3782 = vmatprep.subr.mxu0 0.0
      %3783 = vmatpush1.msra.mxu0 0.0
      %3784 = vmatprep.subr.mxu0 0.0
      %3785 = vmatpush1.msra.mxu0 0.0
      %3786 = vmatprep.subr.mxu0 0.0
      %3787 = vmatpush1.msra.mxu0 0.0
      %3788 = vmatprep.subr.mxu0 0.0
      %3789 = vmatpush1.msra.mxu0 0.0
      %3790 = vmatprep.subr.mxu0 0.0
      %3791 = vmatpush1.msra.mxu0 0.0
      %3792 = vmatprep.subr.mxu0 0.0
      %3793 = vmatpush1.msra.mxu0 0.0
      %3794 = vmatprep.subr.mxu0 0.0
      %3795 = vmatpush1.msra.mxu0 0.0
      %3796 = vmatprep.subr.mxu0 0.0
      %3797 = vmatpush1.msra.mxu0 0.0
      %3798 = vmatprep.subr.mxu0 0.0
      %3799 = vmatpush1.msra.mxu0 0.0
      %3800 = vmatprep.subr.mxu0 0.0
      %3801 = vmatpush1.msra.mxu0 0.0
      %3802 = vmatprep.subr.mxu0 0.0
      %3803 = vmatpush1.msra.mxu0 0.0
      %3804 = vmatprep.subr.mxu0 0.0
      %3805 = vmatpush1.msra.mxu0 0.0
      %3806 = vmatprep.mubr.f32.mxu0 0.0
      %v3807 = vand.u32 %v3437, 4294901760
      %3808 = vmatmul.mubr.f32.gmra.mrb[0].mxu0 %v3807
      %v3809 = vpop.f32.mrb[0].mxu0
      %v3810 = vadd.f32 %v3736, %v3809
      %v3811 = vpop.f32.mrb[0].mxu0
      %3812 = vdwg.mxu0
      %3813 = vmatprep.subr.mxu0 0.0
      %v3814 = vand.u32 %v222, 4294901760
      %3815 = vmatpush1.msra.mxu0 %v3814
      %3816 = vmatprep.subr.mxu0 0.0
      %3817 = vmatpush1.msra.mxu0 0.0
      %3818 = vmatprep.subr.mxu0 0.0
      %3819 = vmatpush1.msra.mxu0 0.0
      %3820 = vmatprep.subr.mxu0 0.0
      %3821 = vmatpush1.msra.mxu0 0.0
      %3822 = vmatprep.subr.mxu0 0.0
      %3823 = vmatpush1.msra.mxu0 0.0
      %3824 = vmatprep.subr.mxu0 0.0
      %3825 = vmatpush1.msra.mxu0 0.0
      %3826 = vmatprep.subr.mxu0 0.0
      %3827 = vmatpush1.msra.mxu0 0.0
      %3828 = vmatprep.subr.mxu0 0.0
      %3829 = vmatpush1.msra.mxu0 0.0
      %3830 = vmatprep.subr.mxu0 0.0
      %3831 = vmatpush1.msra.mxu0 0.0
      %3832 = vmatprep.subr.mxu0 0.0
      %3833 = vmatpush1.msra.mxu0 0.0
      %3834 = vmatprep.subr.mxu0 0.0
      %3835 = vmatpush1.msra.mxu0 0.0
      %3836 = vmatprep.subr.mxu0 0.0
      %3837 = vmatpush1.msra.mxu0 0.0
      %3838 = vmatprep.subr.mxu0 0.0
      %3839 = vmatpush1.msra.mxu0 0.0
      %3840 = vmatprep.subr.mxu0 0.0
      %3841 = vmatpush1.msra.mxu0 0.0
      %3842 = vmatprep.subr.mxu0 0.0
      %3843 = vmatpush1.msra.mxu0 0.0
      %3844 = vmatprep.subr.mxu0 0.0
      %3845 = vmatpush1.msra.mxu0 0.0
      %3846 = vmatprep.subr.mxu0 0.0
      %3847 = vmatpush1.msra.mxu0 0.0
      %3848 = vmatprep.subr.mxu0 0.0
      %3849 = vmatpush1.msra.mxu0 0.0
      %3850 = vmatprep.subr.mxu0 0.0
      %3851 = vmatpush1.msra.mxu0 0.0
      %3852 = vmatprep.subr.mxu0 0.0
      %3853 = vmatpush1.msra.mxu0 0.0
      %3854 = vmatprep.subr.mxu0 0.0
      %3855 = vmatpush1.msra.mxu0 0.0
      %3856 = vmatprep.subr.mxu0 0.0
      %3857 = vmatpush1.msra.mxu0 0.0
      %3858 = vmatprep.subr.mxu0 0.0
      %3859 = vmatpush1.msra.mxu0 0.0
      %3860 = vmatprep.subr.mxu0 0.0
      %3861 = vmatpush1.msra.mxu0 0.0
      %3862 = vmatprep.subr.mxu0 0.0
      %3863 = vmatpush1.msra.mxu0 0.0
      %3864 = vmatprep.subr.mxu0 0.0
      %3865 = vmatpush1.msra.mxu0 0.0
      %3866 = vmatprep.subr.mxu0 0.0
      %3867 = vmatpush1.msra.mxu0 0.0
      %3868 = vmatprep.subr.mxu0 0.0
      %3869 = vmatpush1.msra.mxu0 0.0
      %3870 = vmatprep.subr.mxu0 0.0
      %3871 = vmatpush1.msra.mxu0 0.0
      %3872 = vmatprep.subr.mxu0 0.0
      %3873 = vmatpush1.msra.mxu0 0.0
      %3874 = vmatprep.subr.mxu0 0.0
      %3875 = vmatpush1.msra.mxu0 0.0
      %3876 = vmatprep.subr.mxu0 0.0
      %3877 = vmatpush1.msra.mxu0 0.0
      %3878 = vmatprep.mubr.f32.mxu0 0.0
      %v3879 = vand.u32 %v3437, 4294901760
      %3880 = vmatmul.mubr.f32.gmra.mrb[0].mxu0 %v3879
      %v3881 = vpop.f32.mrb[0].mxu0
      %v3882 = vadd.f32 %v3810, %v3881
      %v3883 = vpop.f32.mrb[0].mxu0
      %3884 = vdwg.mxu0
      %3885 = vst.msk [vmem:[%s210] sm:$0xff] %vm223, %v2535
      %3886 = vst.msk [vmem:[%s210 + $0x8] sm:$0xff] %vm223, %v2984
      %3887 = vst.msk [vmem:[%s210 + $0x10] sm:$0xff] %vm223, %v3433
      %3888 = vst.msk [vmem:[%s210 + $0x18] sm:$0xff] %vm223, %v3882
      %p3889 = scmp.lt.s32.totalorder %s14, 1
      %s3890 = scalar_select %p3889, %s14, 1
      %s3891 = smul.addr %s3890, 4
      %s3892 = smul.addr %s3891, 8
      %s3893 = scalar_lea.vmem %s3, %s3892
      // Predicated region
      $region33: #{transformer_forward.15} parent=31 // pred_check
        %p3894 = pneg %p110
      $region34: #{transformer_forward.15} parent=31 // pred_check_branch
        %3896 = sbr.rel (%p3894) target = $region36
      $region35: #{transformer_forward.15} parent=31 // pred_region
        _
      $region36: #{transformer_forward.15} parent=31 // pred_fallthru
        _
    $region32: #{transformer_forward.15} parent=5 // pred_fallthru
      _
    %p3897 = scmp.le.s32.totalorder 2, %s9
    // Predicated region
    $region37: #{transformer_forward.15} parent=5 // pred_check
      %p3898 = pneg %p3897
    $region38: #{transformer_forward.15} parent=5 // pred_check_branch
      %3900 = sbr.rel (%p3898) target = $region40
    $region39: #{transformer_forward.15} parent=5 // pred_region
      %s3901 = ssub.s32 %s9, 2
      // Predicated region
      $region41: #{transformer_forward.15} parent=39 // pred_check
        %p3902 = pneg %p116
      $region42: #{transformer_forward.15} parent=39 // pred_check_branch
        %3904 = sbr.rel (%p3902) target = $region44
      $region43: #{transformer_forward.15} parent=39 // pred_region
        %p3905 = scmp.lt.s32.totalorder %s15, 1
        %s3906 = scalar_select %p3905, %s15, 1
        %s3907 = smul.addr %s3906, 4
        %s3908 = smul.addr %s3907, 8
        %s3909 = scalar_lea.vmem %s3, %s3908
      $region44: #{transformer_forward.15} parent=39 // pred_fallthru
        _
    $region40: #{transformer_forward.15} parent=5 // pred_fallthru
      _
  $region6: #{transformer_forward.15} parent=0 // loop_footer
    %s13 = sadd.s32 1, %s9
  $region7: #{transformer_forward.15} parent=0 // loop_footer_branch
    %8 = sbr.rel target = $region3
  $region8: #{transformer_forward.15} parent=0 // loop_exit
    _

// kernel: transformer_forward.18
$region0: #{transformer_forward.18}
  #allocation0 [shape = 'u32[]', space=smem, size = 0x4, offset = 0x4, fixed_abs, tag = 'smem constant byte address 0x4 - core index']
  #allocation1 [shape = 'u32[144,128]{1,0:T(1,128)}', space=vmem, size = 0x12000, scoped, tag = 'internal scratch']
  %s0 = inlined_call_operand.vmem [shape: f32[16,32], index: 0, kind: input, shape index: {}]
  %s1 = inlined_call_operand.vmem [shape: f32[32,32], index: 1, kind: input, shape index: {}]
  %s2 = inlined_call_operand.vmem [shape: f32[1,32], index: 2, kind: input, shape index: {}]
  %s3 = inlined_call_operand.vmem [shape: f32[32,32], index: 3, kind: input, shape index: {}]
  %s4 = inlined_call_operand.vmem [shape: f32[1,32], index: 4, kind: input, shape index: {}]
  %s5 = inlined_call_operand.vmem [shape: f32[16,32], index: 5, kind: output, shape index: {}]
  %s6 = sld [smem:[#allocation0]]
  $region30: #{transformer_forward.18} parent=0
    _
  %s8 = ssub.s32 1, %s6
  %s9 = scalar_select 0, %s8, %s6
  // Predicated region
  $region2: #{transformer_forward.18} parent=0 // pred_check
    _
  $region3: #{transformer_forward.18} parent=0 // pred_check_branch
    %11 = sbr.rel (0) target = $region5
  $region4: #{transformer_forward.18} parent=0 // pred_region
    _
  $region5: #{transformer_forward.18} parent=0 // pred_fallthru
    _
  // Predicated region
  $region6: #{transformer_forward.18} parent=0 // pred_check
    _
  $region7: #{transformer_forward.18} parent=0 // pred_check_branch
    %13 = sbr.rel (0) target = $region9
  $region8: #{transformer_forward.18} parent=0 // pred_region
    _
  $region9: #{transformer_forward.18} parent=0 // pred_fallthru
    _
  // Predicated region
  $region10: #{transformer_forward.18} parent=0 // pred_check
    _
  $region11: #{transformer_forward.18} parent=0 // pred_check_branch
    %15 = sbr.rel (0) target = $region13
  $region12: #{transformer_forward.18} parent=0 // pred_region
    _
  $region13: #{transformer_forward.18} parent=0 // pred_fallthru
    _
  // Predicated region
  $region14: #{transformer_forward.18} parent=0 // pred_check
    _
  $region15: #{transformer_forward.18} parent=0 // pred_check_branch
    %17 = sbr.rel (0) target = $region17
  $region16: #{transformer_forward.18} parent=0 // pred_region
    _
  $region17: #{transformer_forward.18} parent=0 // pred_fallthru
    _
  // Predicated region
  $region18: #{transformer_forward.18} parent=0 // pred_check
    _
  $region19: #{transformer_forward.18} parent=0 // pred_check_branch
    %19 = sbr.rel (0) target = $region21
  $region20: #{transformer_forward.18} parent=0 // pred_region
    _
  $region21: #{transformer_forward.18} parent=0 // pred_fallthru
    _
  %v20 = vld [vmem:[%s0] sm:$0xff]
  %v21 = vld [vmem:[%s0 + $0x8] sm:$0xff]
  %v22 = vld [vmem:[%s1] sm:$0xff]
  %v23 = vld [vmem:[%s1 + $0x8] sm:$0xff]
  %v24 = vld [vmem:[%s1 + $0x10] sm:$0xff]
  %v25 = vld [vmem:[%s1 + $0x18] sm:$0xff]
  %v26 = vld [vmem:[%s2] sm:$0x1]
  %v28 = vlaneseq
  %v29 = vshrl.u32 %v28, 7
  %v30 = vsub.s32 0, %v29
  %v31 = vrot.slane %v26, %v30
  %vm33 = vcmask 261120
  %v35 = vsel %vm33, %v20, 0
  %v38 = vsel %vm33, %v21, 0
  %40 = vmatprep.subr.mxu0 0.0
  %v41 = vand.u32 %v22, 4294901760
  %42 = vmatpush1.msra.mxu0 %v41
  %43 = vmatprep.subr.mxu0 0.0
  %v44 = vand.u32 %v23, 4294901760
  %45 = vmatpush1.msra.mxu0 %v44
  %46 = vmatprep.subr.mxu0 0.0
  %v47 = vand.u32 %v24, 4294901760
  %48 = vmatpush1.msra.mxu0 %v47
  %49 = vmatprep.subr.mxu0 0.0
  %v50 = vand.u32 %v25, 4294901760
  %51 = vmatpush1.msra.mxu0 %v50
  %52 = vmatprep.subr.mxu0 0.0
  %53 = vmatpush1.msra.mxu0 0.0
  %54 = vmatprep.subr.mxu0 0.0
  %55 = vmatpush1.msra.mxu0 0.0
  %56 = vmatprep.subr.mxu0 0.0
  %57 = vmatpush1.msra.mxu0 0.0
  %58 = vmatprep.subr.mxu0 0.0
  %59 = vmatpush1.msra.mxu0 0.0
  %60 = vmatprep.subr.mxu0 0.0
  %61 = vmatpush1.msra.mxu0 0.0
  %62 = vmatprep.subr.mxu0 0.0
  %63 = vmatpush1.msra.mxu0 0.0
  %64 = vmatprep.subr.mxu0 0.0
  %65 = vmatpush1.msra.mxu0 0.0
  %66 = vmatprep.subr.mxu0 0.0
  %67 = vmatpush1.msra.mxu0 0.0
  %68 = vmatprep.subr.mxu0 0.0
  %69 = vmatpush1.msra.mxu0 0.0
  %70 = vmatprep.subr.mxu0 0.0
  %71 = vmatpush1.msra.mxu0 0.0
  %72 = vmatprep.subr.mxu0 0.0
  %73 = vmatpush1.msra.mxu0 0.0
  %74 = vmatprep.subr.mxu0 0.0
  %75 = vmatpush1.msra.mxu0 0.0
  %76 = vmatprep.subr.mxu0 0.0
  %77 = vmatpush1.msra.mxu0 0.0
  %78 = vmatprep.subr.mxu0 0.0
  %79 = vmatpush1.msra.mxu0 0.0
  %80 = vmatprep.subr.mxu0 0.0
  %81 = vmatpush1.msra.mxu0 0.0
  %82 = vmatprep.subr.mxu0 0.0
  %83 = vmatpush1.msra.mxu0 0.0
  %84 = vmatprep.subr.mxu0 0.0
  %85 = vmatpush1.msra.mxu0 0.0
  %86 = vmatprep.subr.mxu0 0.0
  %87 = vmatpush1.msra.mxu0 0.0
  %88 = vmatprep.subr.mxu0 0.0
  %89 = vmatpush1.msra.mxu0 0.0
  %90 = vmatprep.subr.mxu0 0.0
  %91 = vmatpush1.msra.mxu0 0.0
  %92 = vmatprep.subr.mxu0 0.0
  %93 = vmatpush1.msra.mxu0 0.0
  %94 = vmatprep.subr.mxu0 0.0
  %95 = vmatpush1.msra.mxu0 0.0
  %96 = vmatprep.subr.mxu0 0.0
  %97 = vmatpush1.msra.mxu0 0.0
  %98 = vmatprep.subr.mxu0 0.0
  %99 = vmatpush1.msra.mxu0 0.0
  %100 = vmatprep.subr.mxu0 0.0
  %101 = vmatpush1.msra.mxu0 0.0
  %102 = vmatprep.subr.mxu0 0.0
  %103 = vmatpush1.msra.mxu0 0.0
  %104 = vmatprep.subr.mxu0 0.0
  %105 = vmatpush1.msra.mxu0 0.0
  %106 = vmatprep.subr.mxu0 0.0
  %107 = vmatpush1.msra.mxu0 0.0
  %108 = vmatprep.mubr.f32.mxu0 0.0
  %v109 = vand.u32 %v35, 4294901760
  %v110 = vsub.f32 %v35, %v109
  %v111 = vand.u32 %v110, 4294901760
  %v112 = vsub.f32 %v110, %v111
  %v113 = vand.u32 %v112, 4294901760
  %114 = vmatmul.mubr.f32.gmra.mrb[0].mxu0 %v113
  %v115 = vpop.f32.mrb[0].mxu0
  %v116 = vadd.f32 %v31, %v115
  %v117 = vpop.f32.mrb[0].mxu0
  %118 = vmatprep.mubr.f32.mxu0 0.0
  %v119 = vand.u32 %v38, 4294901760
  %v120 = vsub.f32 %v38, %v119
  %v121 = vand.u32 %v120, 4294901760
  %v122 = vsub.f32 %v120, %v121
  %v123 = vand.u32 %v122, 4294901760
  %124 = vmatmul.mubr.f32.gmra.mrb[0].mxu0 %v123
  %v125 = vpop.f32.mrb[0].mxu0
  %v126 = vadd.f32 %v31, %v125
  %v127 = vpop.f32.mrb[0].mxu0
  %128 = vdwg.mxu0
  %129 = vmatprep.subr.mxu0 0.0
  %v130 = vand.u32 %v22, 4294901760
  %v131 = vsub.f32 %v22, %v130
  %v132 = vand.u32 %v131, 4294901760
  %v133 = vsub.f32 %v131, %v132
  %v134 = vand.u32 %v133, 4294901760
  %135 = vmatpush1.msra.mxu0 %v134
  %136 = vmatprep.subr.mxu0 0.0
  %v137 = vand.u32 %v23, 4294901760
  %v138 = vsub.f32 %v23, %v137
  %v139 = vand.u32 %v138, 4294901760
  %v140 = vsub.f32 %v138, %v139
  %v141 = vand.u32 %v140, 4294901760
  %142 = vmatpush1.msra.mxu0 %v141
  %143 = vmatprep.subr.mxu0 0.0
  %v144 = vand.u32 %v24, 4294901760
  %v145 = vsub.f32 %v24, %v144
  %v146 = vand.u32 %v145, 4294901760
  %v147 = vsub.f32 %v145, %v146
  %v148 = vand.u32 %v147, 4294901760
  %149 = vmatpush1.msra.mxu0 %v148
  %150 = vmatprep.subr.mxu0 0.0
  %v151 = vand.u32 %v25, 4294901760
  %v152 = vsub.f32 %v25, %v151
  %v153 = vand.u32 %v152, 4294901760
  %v154 = vsub.f32 %v152, %v153
  %v155 = vand.u32 %v154, 4294901760
  %156 = vmatpush1.msra.mxu0 %v155
  %157 = vmatprep.subr.mxu0 0.0
  %158 = vmatpush1.msra.mxu0 0.0
  %159 = vmatprep.subr.mxu0 0.0
  %160 = vmatpush1.msra.mxu0 0.0
  %161 = vmatprep.subr.mxu0 0.0
  %162 = vmatpush1.msra.mxu0 0.0
  %163 = vmatprep.subr.mxu0 0.0
  %164 = vmatpush1.msra.mxu0 0.0
  %165 = vmatprep.subr.mxu0 0.0
  %166 = vmatpush1.msra.mxu0 0.0
  %167 = vmatprep.subr.mxu0 0.0
  %168 = vmatpush1.msra.mxu0 0.0
  %169 = vmatprep.subr.mxu0 0.0
  %170 = vmatpush1.msra.mxu0 0.0
  %171 = vmatprep.subr.mxu0 0.0
  %172 = vmatpush1.msra.mxu0 0.0
  %173 = vmatprep.subr.mxu0 0.0
  %174 = vmatpush1.msra.mxu0 0.0
  %175 = vmatprep.subr.mxu0 0.0
  %176 = vmatpush1.msra.mxu0 0.0
  %177 = vmatprep.subr.mxu0 0.0
  %178 = vmatpush1.msra.mxu0 0.0
  %179 = vmatprep.subr.mxu0 0.0
  %180 = vmatpush1.msra.mxu0 0.0
  %181 = vmatprep.subr.mxu0 0.0
  %182 = vmatpush1.msra.mxu0 0.0
  %183 = vmatprep.subr.mxu0 0.0
  %184 = vmatpush1.msra.mxu0 0.0
  %185 = vmatprep.subr.mxu0 0.0
  %186 = vmatpush1.msra.mxu0 0.0
  %187 = vmatprep.subr.mxu0 0.0
  %188 = vmatpush1.msra.mxu0 0.0
  %189 = vmatprep.subr.mxu0 0.0
  %190 = vmatpush1.msra.mxu0 0.0
  %191 = vmatprep.subr.mxu0 0.0
  %192 = vmatpush1.msra.mxu0 0.0
  %193 = vmatprep.subr.mxu0 0.0
  %194 = vmatpush1.msra.mxu0 0.0
  %195 = vmatprep.subr.mxu0 0.0
  %196 = vmatpush1.msra.mxu0 0.0
  %197 = vmatprep.subr.mxu0 0.0
  %198 = vmatpush1.msra.mxu0 0.0
  %199 = vmatprep.subr.mxu0 0.0
  %200 = vmatpush1.msra.mxu0 0.0
  %201 = vmatprep.subr.mxu0 0.0
  %202 = vmatpush1.msra.mxu0 0.0
  %203 = vmatprep.subr.mxu0 0.0
  %204 = vmatpush1.msra.mxu0 0.0
  %205 = vmatprep.subr.mxu0 0.0
  %206 = vmatpush1.msra.mxu0 0.0
  %207 = vmatprep.subr.mxu0 0.0
  %208 = vmatpush1.msra.mxu0 0.0
  %209 = vmatprep.subr.mxu0 0.0
  %210 = vmatpush1.msra.mxu0 0.0
  %211 = vmatprep.subr.mxu0 0.0
  %212 = vmatpush1.msra.mxu0 0.0
  %213 = vmatprep.mubr.f32.mxu0 0.0
  %v214 = vand.u32 %v35, 4294901760
  %215 = vmatmul.mubr.f32.gmra.mrb[0].mxu0 %v214
  %v216 = vpop.f32.mrb[0].mxu0
  %v217 = vadd.f32 %v116, %v216
  %v218 = vpop.f32.mrb[0].mxu0
  %219 = vmatprep.mubr.f32.mxu0 0.0
  %v220 = vand.u32 %v38, 4294901760
  %221 = vmatmul.mubr.f32.gmra.mrb[0].mxu0 %v220
  %v222 = vpop.f32.mrb[0].mxu0
  %v223 = vadd.f32 %v126, %v222
  %v224 = vpop.f32.mrb[0].mxu0
  %225 = vdwg.mxu0
  %226 = vmatprep.subr.mxu0 0.0
  %v227 = vand.u32 %v22, 4294901760
  %v228 = vsub.f32 %v22, %v227
  %229 = vmatpush1.msra.mxu0 %v228
  %230 = vmatprep.subr.mxu0 0.0
  %v231 = vand.u32 %v23, 4294901760
  %v232 = vsub.f32 %v23, %v231
  %233 = vmatpush1.msra.mxu0 %v232
  %234 = vmatprep.subr.mxu0 0.0
  %v235 = vand.u32 %v24, 4294901760
  %v236 = vsub.f32 %v24, %v235
  %237 = vmatpush1.msra.mxu0 %v236
  %238 = vmatprep.subr.mxu0 0.0
  %v239 = vand.u32 %v25, 4294901760
  %v240 = vsub.f32 %v25, %v239
  %241 = vmatpush1.msra.mxu0 %v240
  %242 = vmatprep.subr.mxu0 0.0
  %243 = vmatpush1.msra.mxu0 0.0
  %244 = vmatprep.subr.mxu0 0.0
  %245 = vmatpush1.msra.mxu0 0.0
  %246 = vmatprep.subr.mxu0 0.0
  %247 = vmatpush1.msra.mxu0 0.0
  %248 = vmatprep.subr.mxu0 0.0
  %249 = vmatpush1.msra.mxu0 0.0
  %250 = vmatprep.subr.mxu0 0.0
  %251 = vmatpush1.msra.mxu0 0.0
  %252 = vmatprep.subr.mxu0 0.0
  %253 = vmatpush1.msra.mxu0 0.0
  %254 = vmatprep.subr.mxu0 0.0
  %255 = vmatpush1.msra.mxu0 0.0
  %256 = vmatprep.subr.mxu0 0.0
  %257 = vmatpush1.msra.mxu0 0.0
  %258 = vmatprep.subr.mxu0 0.0
  %259 = vmatpush1.msra.mxu0 0.0
  %260 = vmatprep.subr.mxu0 0.0
  %261 = vmatpush1.msra.mxu0 0.0
  %262 = vmatprep.subr.mxu0 0.0
  %263 = vmatpush1.msra.mxu0 0.0
  %264 = vmatprep.subr.mxu0 0.0
  %265 = vmatpush1.msra.mxu0 0.0
  %266 = vmatprep.subr.mxu0 0.0
  %267 = vmatpush1.msra.mxu0 0.0
  %268 = vmatprep.subr.mxu0 0.0
  %269 = vmatpush1.msra.mxu0 0.0
  %270 = vmatprep.subr.mxu0 0.0
  %271 = vmatpush1.msra.mxu0 0.0
  %272 = vmatprep.subr.mxu0 0.0
  %273 = vmatpush1.msra.mxu0 0.0
  %274 = vmatprep.subr.mxu0 0.0
  %275 = vmatpush1.msra.mxu0 0.0
  %276 = vmatprep.subr.mxu0 0.0
  %277 = vmatpush1.msra.mxu0 0.0
  %278 = vmatprep.subr.mxu0 0.0
  %279 = vmatpush1.msra.mxu0 0.0
  %280 = vmatprep.subr.mxu0 0.0
  %281 = vmatpush1.msra.mxu0 0.0
  %282 = vmatprep.subr.mxu0 0.0
  %283 = vmatpush1.msra.mxu0 0.0
  %284 = vmatprep.subr.mxu0 0.0
  %285 = vmatpush1.msra.mxu0 0.0
  %286 = vmatprep.subr.mxu0 0.0
  %287 = vmatpush1.msra.mxu0 0.0
  %288 = vmatprep.subr.mxu0 0.0
  %289 = vmatpush1.msra.mxu0 0.0
  %290 = vmatprep.subr.mxu0 0.0
  %291 = vmatpush1.msra.mxu0 0.0
  %292 = vmatprep.subr.mxu0 0.0
  %293 = vmatpush1.msra.mxu0 0.0
  %294 = vmatprep.subr.mxu0 0.0
  %295 = vmatpush1.msra.mxu0 0.0
  %296 = vmatprep.subr.mxu0 0.0
  %297 = vmatpush1.msra.mxu0 0.0
  %298 = vmatprep.mubr.f32.mxu0 0.0
  %v299 = vand.u32 %v35, 4294901760
  %v300 = vsub.f32 %v35, %v299
  %301 = vmatmul.mubr.f32.gmra.mrb[0].mxu0 %v300
  %v302 = vpop.f32.mrb[0].mxu0
  %v303 = vadd.f32 %v217, %v302
  %v304 = vpop.f32.mrb[0].mxu0
  %305 = vmatprep.mubr.f32.mxu0 0.0
  %v306 = vand.u32 %v38, 4294901760
  %v307 = vsub.f32 %v38, %v306
  %308 = vmatmul.mubr.f32.gmra.mrb[0].mxu0 %v307
  %v309 = vpop.f32.mrb[0].mxu0
  %v310 = vadd.f32 %v223, %v309
  %v311 = vpop.f32.mrb[0].mxu0
  %312 = vdwg.mxu0
  %313 = vmatprep.subr.mxu0 0.0
  %v314 = vand.u32 %v22, 4294901760
  %315 = vmatpush1.msra.mxu0 %v314
  %316 = vmatprep.subr.mxu0 0.0
  %v317 = vand.u32 %v23, 4294901760
  %318 = vmatpush1.msra.mxu0 %v317
  %319 = vmatprep.subr.mxu0 0.0
  %v320 = vand.u32 %v24, 4294901760
  %321 = vmatpush1.msra.mxu0 %v320
  %322 = vmatprep.subr.mxu0 0.0
  %v323 = vand.u32 %v25, 4294901760
  %324 = vmatpush1.msra.mxu0 %v323
  %325 = vmatprep.subr.mxu0 0.0
  %326 = vmatpush1.msra.mxu0 0.0
  %327 = vmatprep.subr.mxu0 0.0
  %328 = vmatpush1.msra.mxu0 0.0
  %329 = vmatprep.subr.mxu0 0.0
  %330 = vmatpush1.msra.mxu0 0.0
  %331 = vmatprep.subr.mxu0 0.0
  %332 = vmatpush1.msra.mxu0 0.0
  %333 = vmatprep.subr.mxu0 0.0
  %334 = vmatpush1.msra.mxu0 0.0
  %335 = vmatprep.subr.mxu0 0.0
  %336 = vmatpush1.msra.mxu0 0.0
  %337 = vmatprep.subr.mxu0 0.0
  %338 = vmatpush1.msra.mxu0 0.0
  %339 = vmatprep.subr.mxu0 0.0
  %340 = vmatpush1.msra.mxu0 0.0
  %341 = vmatprep.subr.mxu0 0.0
  %342 = vmatpush1.msra.mxu0 0.0
  %343 = vmatprep.subr.mxu0 0.0
  %344 = vmatpush1.msra.mxu0 0.0
  %345 = vmatprep.subr.mxu0 0.0
  %346 = vmatpush1.msra.mxu0 0.0
  %347 = vmatprep.subr.mxu0 0.0
  %348 = vmatpush1.msra.mxu0 0.0
  %349 = vmatprep.subr.mxu0 0.0
  %350 = vmatpush1.msra.mxu0 0.0
  %351 = vmatprep.subr.mxu0 0.0
  %352 = vmatpush1.msra.mxu0 0.0
  %353 = vmatprep.subr.mxu0 0.0
  %354 = vmatpush1.msra.mxu0 0.0
  %355 = vmatprep.subr.mxu0 0.0
  %356 = vmatpush1.msra.mxu0 0.0
  %357 = vmatprep.subr.mxu0 0.0
  %358 = vmatpush1.msra.mxu0 0.0
  %359 = vmatprep.subr.mxu0 0.0
  %360 = vmatpush1.msra.mxu0 0.0
  %361 = vmatprep.subr.mxu0 0.0
  %362 = vmatpush1.msra.mxu0 0.0
  %363 = vmatprep.subr.mxu0 0.0
  %364 = vmatpush1.msra.mxu0 0.0
  %365 = vmatprep.subr.mxu0 0.0
  %366 = vmatpush1.msra.mxu0 0.0
  %367 = vmatprep.subr.mxu0 0.0
  %368 = vmatpush1.msra.mxu0 0.0
  %369 = vmatprep.subr.mxu0 0.0
  %370 = vmatpush1.msra.mxu0 0.0
  %371 = vmatprep.subr.mxu0 0.0
  %372 = vmatpush1.msra.mxu0 0.0
  %373 = vmatprep.subr.mxu0 0.0
  %374 = vmatpush1.msra.mxu0 0.0
  %375 = vmatprep.subr.mxu0 0.0
  %376 = vmatpush1.msra.mxu0 0.0
  %377 = vmatprep.subr.mxu0 0.0
  %378 = vmatpush1.msra.mxu0 0.0
  %379 = vmatprep.subr.mxu0 0.0
  %380 = vmatpush1.msra.mxu0 0.0
  %381 = vmatprep.mubr.f32.mxu0 0.0
  %v382 = vand.u32 %v35, 4294901760
  %v383 = vsub.f32 %v35, %v382
  %v384 = vand.u32 %v383, 4294901760
  %385 = vmatmul.mubr.f32.gmra.mrb[0].mxu0 %v384
  %v386 = vpop.f32.mrb[0].mxu0
  %v387 = vadd.f32 %v303, %v386
  %v388 = vpop.f32.mrb[0].mxu0
  %389 = vmatprep.mubr.f32.mxu0 0.0
  %v390 = vand.u32 %v38, 4294901760
  %v391 = vsub.f32 %v38, %v390
  %v392 = vand.u32 %v391, 4294901760
  %393 = vmatmul.mubr.f32.gmra.mrb[0].mxu0 %v392
  %v394 = vpop.f32.mrb[0].mxu0
  %v395 = vadd.f32 %v310, %v394
  %v396 = vpop.f32.mrb[0].mxu0
  %397 = vdwg.mxu0
  %398 = vmatprep.subr.mxu0 0.0
  %v399 = vand.u32 %v22, 4294901760
  %v400 = vsub.f32 %v22, %v399
  %v401 = vand.u32 %v400, 4294901760
  %402 = vmatpush1.msra.mxu0 %v401
  %403 = vmatprep.subr.mxu0 0.0
  %v404 = vand.u32 %v23, 4294901760
  %v405 = vsub.f32 %v23, %v404
  %v406 = vand.u32 %v405, 4294901760
  %407 = vmatpush1.msra.mxu0 %v406
  %408 = vmatprep.subr.mxu0 0.0
  %v409 = vand.u32 %v24, 4294901760
  %v410 = vsub.f32 %v24, %v409
  %v411 = vand.u32 %v410, 4294901760
  %412 = vmatpush1.msra.mxu0 %v411
  %413 = vmatprep.subr.mxu0 0.0
  %v414 = vand.u32 %v25, 4294901760
  %v415 = vsub.f32 %v25, %v414
  %v416 = vand.u32 %v415, 4294901760
  %417 = vmatpush1.msra.mxu0 %v416
  %418 = vmatprep.subr.mxu0 0.0
  %419 = vmatpush1.msra.mxu0 0.0
  %420 = vmatprep.subr.mxu0 0.0
  %421 = vmatpush1.msra.mxu0 0.0
  %422 = vmatprep.subr.mxu0 0.0
  %423 = vmatpush1.msra.mxu0 0.0
  %424 = vmatprep.subr.mxu0 0.0
  %425 = vmatpush1.msra.mxu0 0.0
  %426 = vmatprep.subr.mxu0 0.0
  %427 = vmatpush1.msra.mxu0 0.0
  %428 = vmatprep.subr.mxu0 0.0
  %429 = vmatpush1.msra.mxu0 0.0
  %430 = vmatprep.subr.mxu0 0.0
  %431 = vmatpush1.msra.mxu0 0.0
  %432 = vmatprep.subr.mxu0 0.0
  %433 = vmatpush1.msra.mxu0 0.0
  %434 = vmatprep.subr.mxu0 0.0
  %435 = vmatpush1.msra.mxu0 0.0
  %436 = vmatprep.subr.mxu0 0.0
  %437 = vmatpush1.msra.mxu0 0.0
  %438 = vmatprep.subr.mxu0 0.0
  %439 = vmatpush1.msra.mxu0 0.0
  %440 = vmatprep.subr.mxu0 0.0
  %441 = vmatpush1.msra.mxu0 0.0
  %442 = vmatprep.subr.mxu0 0.0
  %443 = vmatpush1.msra.mxu0 0.0
  %444 = vmatprep.subr.mxu0 0.0
  %445 = vmatpush1.msra.mxu0 0.0
  %446 = vmatprep.subr.mxu0 0.0
  %447 = vmatpush1.msra.mxu0 0.0
  %448 = vmatprep.subr.mxu0 0.0
  %449 = vmatpush1.msra.mxu0 0.0
  %450 = vmatprep.subr.mxu0 0.0
  %451 = vmatpush1.msra.mxu0 0.0
  %452 = vmatprep.subr.mxu0 0.0
  %453 = vmatpush1.msra.mxu0 0.0
  %454 = vmatprep.subr.mxu0 0.0
  %455 = vmatpush1.msra.mxu0 0.0
  %456 = vmatprep.subr.mxu0 0.0
  %457 = vmatpush1.msra.mxu0 0.0
  %458 = vmatprep.subr.mxu0 0.0
  %459 = vmatpush1.msra.mxu0 0.0
  %460 = vmatprep.subr.mxu0 0.0
  %461 = vmatpush1.msra.mxu0 0.0
  %462 = vmatprep.subr.mxu0 0.0
  %463 = vmatpush1.msra.mxu0 0.0
  %464 = vmatprep.subr.mxu0 0.0
  %465 = vmatpush1.msra.mxu0 0.0
  %466 = vmatprep.subr.mxu0 0.0
  %467 = vmatpush1.msra.mxu0 0.0
  %468 = vmatprep.subr.mxu0 0.0
  %469 = vmatpush1.msra.mxu0 0.0
  %470 = vmatprep.subr.mxu0 0.0
  %471 = vmatpush1.msra.mxu0 0.0
  %472 = vmatprep.subr.mxu0 0.0
  %473 = vmatpush1.msra.mxu0 0.0
  %474 = vmatprep.mubr.f32.mxu0 0.0
  %v475 = vand.u32 %v35, 4294901760
  %476 = vmatmul.mubr.f32.gmra.mrb[0].mxu0 %v475
  %v477 = vpop.f32.mrb[0].mxu0
  %v478 = vadd.f32 %v387, %v477
  %v479 = vpop.f32.mrb[0].mxu0
  %480 = vmatprep.mubr.f32.mxu0 0.0
  %v481 = vand.u32 %v38, 4294901760
  %482 = vmatmul.mubr.f32.gmra.mrb[0].mxu0 %v481
  %v483 = vpop.f32.mrb[0].mxu0
  %v484 = vadd.f32 %v395, %v483
  %v485 = vpop.f32.mrb[0].mxu0
  %486 = vdwg.mxu0
  %487 = vmatprep.subr.mxu0 0.0
  %v488 = vand.u32 %v22, 4294901760
  %489 = vmatpush1.msra.mxu0 %v488
  %490 = vmatprep.subr.mxu0 0.0
  %v491 = vand.u32 %v23, 4294901760
  %492 = vmatpush1.msra.mxu0 %v491
  %493 = vmatprep.subr.mxu0 0.0
  %v494 = vand.u32 %v24, 4294901760
  %495 = vmatpush1.msra.mxu0 %v494
  %496 = vmatprep.subr.mxu0 0.0
  %v497 = vand.u32 %v25, 4294901760
  %498 = vmatpush1.msra.mxu0 %v497
  %499 = vmatprep.subr.mxu0 0.0
  %500 = vmatpush1.msra.mxu0 0.0
  %501 = vmatprep.subr.mxu0 0.0
  %502 = vmatpush1.msra.mxu0 0.0
  %503 = vmatprep.subr.mxu0 0.0
  %504 = vmatpush1.msra.mxu0 0.0
  %505 = vmatprep.subr.mxu0 0.0
  %506 = vmatpush1.msra.mxu0 0.0
  %507 = vmatprep.subr.mxu0 0.0
  %508 = vmatpush1.msra.mxu0 0.0
  %509 = vmatprep.subr.mxu0 0.0
  %510 = vmatpush1.msra.mxu0 0.0
  %511 = vmatprep.subr.mxu0 0.0
  %512 = vmatpush1.msra.mxu0 0.0
  %513 = vmatprep.subr.mxu0 0.0
  %514 = vmatpush1.msra.mxu0 0.0
  %515 = vmatprep.subr.mxu0 0.0
  %516 = vmatpush1.msra.mxu0 0.0
  %517 = vmatprep.subr.mxu0 0.0
  %518 = vmatpush1.msra.mxu0 0.0
  %519 = vmatprep.subr.mxu0 0.0
  %520 = vmatpush1.msra.mxu0 0.0
  %521 = vmatprep.subr.mxu0 0.0
  %522 = vmatpush1.msra.mxu0 0.0
  %523 = vmatprep.subr.mxu0 0.0
  %524 = vmatpush1.msra.mxu0 0.0
  %525 = vmatprep.subr.mxu0 0.0
  %526 = vmatpush1.msra.mxu0 0.0
  %527 = vmatprep.subr.mxu0 0.0
  %528 = vmatpush1.msra.mxu0 0.0
  %529 = vmatprep.subr.mxu0 0.0
  %530 = vmatpush1.msra.mxu0 0.0
  %531 = vmatprep.subr.mxu0 0.0
  %532 = vmatpush1.msra.mxu0 0.0
  %533 = vmatprep.subr.mxu0 0.0
  %534 = vmatpush1.msra.mxu0 0.0
  %535 = vmatprep.subr.mxu0 0.0
  %536 = vmatpush1.msra.mxu0 0.0
  %537 = vmatprep.subr.mxu0 0.0
  %538 = vmatpush1.msra.mxu0 0.0
  %539 = vmatprep.subr.mxu0 0.0
  %540 = vmatpush1.msra.mxu0 0.0
  %541 = vmatprep.subr.mxu0 0.0
  %542 = vmatpush1.msra.mxu0 0.0
  %543 = vmatprep.subr.mxu0 0.0
  %544 = vmatpush1.msra.mxu0 0.0
  %545 = vmatprep.subr.mxu0 0.0
  %546 = vmatpush1.msra.mxu0 0.0
  %547 = vmatprep.subr.mxu0 0.0
  %548 = vmatpush1.msra.mxu0 0.0
  %549 = vmatprep.subr.mxu0 0.0
  %550 = vmatpush1.msra.mxu0 0.0
  %551 = vmatprep.subr.mxu0 0.0
  %552 = vmatpush1.msra.mxu0 0.0
  %553 = vmatprep.subr.mxu0 0.0
  %554 = vmatpush1.msra.mxu0 0.0
  %555 = vmatprep.mubr.f32.mxu0 0.0
  %v556 = vand.u32 %v35, 4294901760
  %557 = vmatmul.mubr.f32.gmra.mrb[0].mxu0 %v556
  %v558 = vpop.f32.mrb[0].mxu0
  %v559 = vadd.f32 %v478, %v558
  %v560 = vpop.f32.mrb[0].mxu0
  %561 = vmatprep.mubr.f32.mxu0 0.0
  %v562 = vand.u32 %v38, 4294901760
  %563 = vmatmul.mubr.f32.gmra.mrb[0].mxu0 %v562
  %v564 = vpop.f32.mrb[0].mxu0
  %v565 = vadd.f32 %v484, %v564
  %v566 = vpop.f32.mrb[0].mxu0
  %567 = vdwg.mxu0
  %v568 = vmul.f32 %v559, 0.5
  %v569 = vmul.f32 %v565, 0.5
  %v570 = vmul.f32 %v559, 0.044715
  %v571 = vmul.f32 %v565, 0.044715
  %v572 = vmul.f32 %v570, %v559
  %v573 = vmul.f32 %v571, %v565
  %v574 = vmul.f32 %v572, %v559
  %v575 = vmul.f32 %v573, %v565
  %v576 = vadd.f32 %v559, %v574
  %v577 = vadd.f32 %v565, %v575
  %v578 = vmul.f32 %v576, 0.7978846
  %v579 = vmul.f32 %v577, 0.7978846
  %v580 = vtanh.pop %v578
  %v581 = vtanh.pop %v579
  %v582 = vadd.f32 %v580, 1.0
  %v583 = vadd.f32 %v581, 1.0
  %v584 = vmul.f32 %v568, %v582
  %v585 = vmul.f32 %v569, %v583
  %v586 = vld [vmem:[%s3] sm:$0xff]
  %v587 = vld [vmem:[%s3 + $0x8] sm:$0xff]
  %v588 = vld [vmem:[%s3 + $0x10] sm:$0xff]
  %v589 = vld [vmem:[%s3 + $0x18] sm:$0xff]
  %v590 = vld [vmem:[%s4] sm:$0x1]
  %v592 = vlaneseq
  %v593 = vshrl.u32 %v592, 7
  %v594 = vsub.s32 0, %v593
  %v595 = vrot.slane %v590, %v594
  %v598 = vsel %vm33, %v584, 0
  %v601 = vsel %vm33, %v585, 0
  %603 = vmatprep.subr.mxu0 0.0
  %v604 = vand.u32 %v586, 4294901760
  %605 = vmatpush1.msra.mxu0 %v604
  %606 = vmatprep.subr.mxu0 0.0
  %v607 = vand.u32 %v587, 4294901760
  %608 = vmatpush1.msra.mxu0 %v607
  %609 = vmatprep.subr.mxu0 0.0
  %v610 = vand.u32 %v588, 4294901760
  %611 = vmatpush1.msra.mxu0 %v610
  %612 = vmatprep.subr.mxu0 0.0
  %v613 = vand.u32 %v589, 4294901760
  %614 = vmatpush1.msra.mxu0 %v613
  %615 = vmatprep.subr.mxu0 0.0
  %616 = vmatpush1.msra.mxu0 0.0
  %617 = vmatprep.subr.mxu0 0.0
  %618 = vmatpush1.msra.mxu0 0.0
  %619 = vmatprep.subr.mxu0 0.0
  %620 = vmatpush1.msra.mxu0 0.0
  %621 = vmatprep.subr.mxu0 0.0
  %622 = vmatpush1.msra.mxu0 0.0
  %623 = vmatprep.subr.mxu0 0.0
  %624 = vmatpush1.msra.mxu0 0.0
  %625 = vmatprep.subr.mxu0 0.0
  %626 = vmatpush1.msra.mxu0 0.0
  %627 = vmatprep.subr.mxu0 0.0
  %628 = vmatpush1.msra.mxu0 0.0
  %629 = vmatprep.subr.mxu0 0.0
  %630 = vmatpush1.msra.mxu0 0.0
  %631 = vmatprep.subr.mxu0 0.0
  %632 = vmatpush1.msra.mxu0 0.0
  %633 = vmatprep.subr.mxu0 0.0
  %634 = vmatpush1.msra.mxu0 0.0
  %635 = vmatprep.subr.mxu0 0.0
  %636 = vmatpush1.msra.mxu0 0.0
  %637 = vmatprep.subr.mxu0 0.0
  %638 = vmatpush1.msra.mxu0 0.0
  %639 = vmatprep.subr.mxu0 0.0
  %640 = vmatpush1.msra.mxu0 0.0
  %641 = vmatprep.subr.mxu0 0.0
  %642 = vmatpush1.msra.mxu0 0.0
  %643 = vmatprep.subr.mxu0 0.0
  %644 = vmatpush1.msra.mxu0 0.0
  %645 = vmatprep.subr.mxu0 0.0
  %646 = vmatpush1.msra.mxu0 0.0
  %647 = vmatprep.subr.mxu0 0.0
  %648 = vmatpush1.msra.mxu0 0.0
  %649 = vmatprep.subr.mxu0 0.0
  %650 = vmatpush1.msra.mxu0 0.0
  %651 = vmatprep.subr.mxu0 0.0
  %652 = vmatpush1.msra.mxu0 0.0
  %653 = vmatprep.subr.mxu0 0.0
  %654 = vmatpush1.msra.mxu0 0.0
  %655 = vmatprep.subr.mxu0 0.0
  %656 = vmatpush1.msra.mxu0 0.0
  %657 = vmatprep.subr.mxu0 0.0
  %658 = vmatpush1.msra.mxu0 0.0
  %659 = vmatprep.subr.mxu0 0.0
  %660 = vmatpush1.msra.mxu0 0.0
  %661 = vmatprep.subr.mxu0 0.0
  %662 = vmatpush1.msra.mxu0 0.0
  %663 = vmatprep.subr.mxu0 0.0
  %664 = vmatpush1.msra.mxu0 0.0
  %665 = vmatprep.subr.mxu0 0.0
  %666 = vmatpush1.msra.mxu0 0.0
  %667 = vmatprep.subr.mxu0 0.0
  %668 = vmatpush1.msra.mxu0 0.0
  %669 = vmatprep.subr.mxu0 0.0
  %670 = vmatpush1.msra.mxu0 0.0
  %671 = vmatprep.mubr.f32.mxu0 0.0
  %v672 = vand.u32 %v598, 4294901760
  %v673 = vsub.f32 %v598, %v672
  %v674 = vand.u32 %v673, 4294901760
  %v675 = vsub.f32 %v673, %v674
  %v676 = vand.u32 %v675, 4294901760
  %677 = vmatmul.mubr.f32.gmra.mrb[0].mxu0 %v676
  %v678 = vpop.f32.mrb[0].mxu0
  %v679 = vadd.f32 %v595, %v678
  %v680 = vpop.f32.mrb[0].mxu0
  %681 = vmatprep.mubr.f32.mxu0 0.0
  %v682 = vand.u32 %v601, 4294901760
  %v683 = vsub.f32 %v601, %v682
  %v684 = vand.u32 %v683, 4294901760
  %v685 = vsub.f32 %v683, %v684
  %v686 = vand.u32 %v685, 4294901760
  %687 = vmatmul.mubr.f32.gmra.mrb[0].mxu0 %v686
  %v688 = vpop.f32.mrb[0].mxu0
  %v689 = vadd.f32 %v595, %v688
  %v690 = vpop.f32.mrb[0].mxu0
  %691 = vdwg.mxu0
  %692 = vmatprep.subr.mxu0 0.0
  %v693 = vand.u32 %v586, 4294901760
  %v694 = vsub.f32 %v586, %v693
  %v695 = vand.u32 %v694, 4294901760
  %v696 = vsub.f32 %v694, %v695
  %v697 = vand.u32 %v696, 4294901760
  %698 = vmatpush1.msra.mxu0 %v697
  %699 = vmatprep.subr.mxu0 0.0
  %v700 = vand.u32 %v587, 4294901760
  %v701 = vsub.f32 %v587, %v700
  %v702 = vand.u32 %v701, 4294901760
  %v703 = vsub.f32 %v701, %v702
  %v704 = vand.u32 %v703, 4294901760
  %705 = vmatpush1.msra.mxu0 %v704
  %706 = vmatprep.subr.mxu0 0.0
  %v707 = vand.u32 %v588, 4294901760
  %v708 = vsub.f32 %v588, %v707
  %v709 = vand.u32 %v708, 4294901760
  %v710 = vsub.f32 %v708, %v709
  %v711 = vand.u32 %v710, 4294901760
  %712 = vmatpush1.msra.mxu0 %v711
  %713 = vmatprep.subr.mxu0 0.0
  %v714 = vand.u32 %v589, 4294901760
  %v715 = vsub.f32 %v589, %v714
  %v716 = vand.u32 %v715, 4294901760
  %v717 = vsub.f32 %v715, %v716
  %v718 = vand.u32 %v717, 4294901760
  %719 = vmatpush1.msra.mxu0 %v718
  %720 = vmatprep.subr.mxu0 0.0
  %721 = vmatpush1.msra.mxu0 0.0
  %722 = vmatprep.subr.mxu0 0.0
  %723 = vmatpush1.msra.mxu0 0.0
  %724 = vmatprep.subr.mxu0 0.0
  %725 = vmatpush1.msra.mxu0 0.0
  %726 = vmatprep.subr.mxu0 0.0
  %727 = vmatpush1.msra.mxu0 0.0
  %728 = vmatprep.subr.mxu0 0.0
  %729 = vmatpush1.msra.mxu0 0.0
  %730 = vmatprep.subr.mxu0 0.0
  %731 = vmatpush1.msra.mxu0 0.0
  %732 = vmatprep.subr.mxu0 0.0
  %733 = vmatpush1.msra.mxu0 0.0
  %734 = vmatprep.subr.mxu0 0.0
  %735 = vmatpush1.msra.mxu0 0.0
  %736 = vmatprep.subr.mxu0 0.0
  %737 = vmatpush1.msra.mxu0 0.0
  %738 = vmatprep.subr.mxu0 0.0
  %739 = vmatpush1.msra.mxu0 0.0
  %740 = vmatprep.subr.mxu0 0.0
  %741 = vmatpush1.msra.mxu0 0.0
  %742 = vmatprep.subr.mxu0 0.0
  %743 = vmatpush1.msra.mxu0 0.0
  %744 = vmatprep.subr.mxu0 0.0
  %745 = vmatpush1.msra.mxu0 0.0
  %746 = vmatprep.subr.mxu0 0.0
  %747 = vmatpush1.msra.mxu0 0.0
  %748 = vmatprep.subr.mxu0 0.0
  %749 = vmatpush1.msra.mxu0 0.0
  %750 = vmatprep.subr.mxu0 0.0
  %751 = vmatpush1.msra.mxu0 0.0
  %752 = vmatprep.subr.mxu0 0.0
  %753 = vmatpush1.msra.mxu0 0.0
  %754 = vmatprep.subr.mxu0 0.0
  %755 = vmatpush1.msra.mxu0 0.0
  %756 = vmatprep.subr.mxu0 0.0
  %757 = vmatpush1.msra.mxu0 0.0
  %758 = vmatprep.subr.mxu0 0.0
  %759 = vmatpush1.msra.mxu0 0.0
  %760 = vmatprep.subr.mxu0 0.0
  %761 = vmatpush1.msra.mxu0 0.0
  %762 = vmatprep.subr.mxu0 0.0
  %763 = vmatpush1.msra.mxu0 0.0
  %764 = vmatprep.subr.mxu0 0.0
  %765 = vmatpush1.msra.mxu0 0.0
  %766 = vmatprep.subr.mxu0 0.0
  %767 = vmatpush1.msra.mxu0 0.0
  %768 = vmatprep.subr.mxu0 0.0
  %769 = vmatpush1.msra.mxu0 0.0
  %770 = vmatprep.subr.mxu0 0.0
  %771 = vmatpush1.msra.mxu0 0.0
  %772 = vmatprep.subr.mxu0 0.0
  %773 = vmatpush1.msra.mxu0 0.0
  %774 = vmatprep.subr.mxu0 0.0
  %775 = vmatpush1.msra.mxu0 0.0
  %776 = vmatprep.mubr.f32.mxu0 0.0
  %v777 = vand.u32 %v598, 4294901760
  %778 = vmatmul.mubr.f32.gmra.mrb[0].mxu0 %v777
  %v779 = vpop.f32.mrb[0].mxu0
  %v780 = vadd.f32 %v679, %v779
  %v781 = vpop.f32.mrb[0].mxu0
  %782 = vmatprep.mubr.f32.mxu0 0.0
  %v783 = vand.u32 %v601, 4294901760
  %784 = vmatmul.mubr.f32.gmra.mrb[0].mxu0 %v783
  %v785 = vpop.f32.mrb[0].mxu0
  %v786 = vadd.f32 %v689, %v785
  %v787 = vpop.f32.mrb[0].mxu0
  %788 = vdwg.mxu0
  %789 = vmatprep.subr.mxu0 0.0
  %v790 = vand.u32 %v586, 4294901760
  %v791 = vsub.f32 %v586, %v790
  %792 = vmatpush1.msra.mxu0 %v791
  %793 = vmatprep.subr.mxu0 0.0
  %v794 = vand.u32 %v587, 4294901760
  %v795 = vsub.f32 %v587, %v794
  %796 = vmatpush1.msra.mxu0 %v795
  %797 = vmatprep.subr.mxu0 0.0
  %v798 = vand.u32 %v588, 4294901760
  %v799 = vsub.f32 %v588, %v798
  %800 = vmatpush1.msra.mxu0 %v799
  %801 = vmatprep.subr.mxu0 0.0
  %v802 = vand.u32 %v589, 4294901760
  %v803 = vsub.f32 %v589, %v802
  %804 = vmatpush1.msra.mxu0 %v803
  %805 = vmatprep.subr.mxu0 0.0
  %806 = vmatpush1.msra.mxu0 0.0
  %807 = vmatprep.subr.mxu0 0.0
  %808 = vmatpush1.msra.mxu0 0.0
  %809 = vmatprep.subr.mxu0 0.0
  %810 = vmatpush1.msra.mxu0 0.0
  %811 = vmatprep.subr.mxu0 0.0
  %812 = vmatpush1.msra.mxu0 0.0
  %813 = vmatprep.subr.mxu0 0.0
  %814 = vmatpush1.msra.mxu0 0.0
  %815 = vmatprep.subr.mxu0 0.0
  %816 = vmatpush1.msra.mxu0 0.0
  %817 = vmatprep.subr.mxu0 0.0
  %818 = vmatpush1.msra.mxu0 0.0
  %819 = vmatprep.subr.mxu0 0.0
  %820 = vmatpush1.msra.mxu0 0.0
  %821 = vmatprep.subr.mxu0 0.0
  %822 = vmatpush1.msra.mxu0 0.0
  %823 = vmatprep.subr.mxu0 0.0
  %824 = vmatpush1.msra.mxu0 0.0
  %825 = vmatprep.subr.mxu0 0.0
  %826 = vmatpush1.msra.mxu0 0.0
  %827 = vmatprep.subr.mxu0 0.0
  %828 = vmatpush1.msra.mxu0 0.0
  %829 = vmatprep.subr.mxu0 0.0
  %830 = vmatpush1.msra.mxu0 0.0
  %831 = vmatprep.subr.mxu0 0.0
  %832 = vmatpush1.msra.mxu0 0.0
  %833 = vmatprep.subr.mxu0 0.0
  %834 = vmatpush1.msra.mxu0 0.0
  %835 = vmatprep.subr.mxu0 0.0
  %836 = vmatpush1.msra.mxu0 0.0
  %837 = vmatprep.subr.mxu0 0.0
  %838 = vmatpush1.msra.mxu0 0.0
  %839 = vmatprep.subr.mxu0 0.0
  %840 = vmatpush1.msra.mxu0 0.0
  %841 = vmatprep.subr.mxu0 0.0
  %842 = vmatpush1.msra.mxu0 0.0
  %843 = vmatprep.subr.mxu0 0.0
  %844 = vmatpush1.msra.mxu0 0.0
  %845 = vmatprep.subr.mxu0 0.0
  %846 = vmatpush1.msra.mxu0 0.0
  %847 = vmatprep.subr.mxu0 0.0
  %848 = vmatpush1.msra.mxu0 0.0
  %849 = vmatprep.subr.mxu0 0.0
  %850 = vmatpush1.msra.mxu0 0.0
  %851 = vmatprep.subr.mxu0 0.0
  %852 = vmatpush1.msra.mxu0 0.0
  %853 = vmatprep.subr.mxu0 0.0
  %854 = vmatpush1.msra.mxu0 0.0
  %855 = vmatprep.subr.mxu0 0.0
  %856 = vmatpush1.msra.mxu0 0.0
  %857 = vmatprep.subr.mxu0 0.0
  %858 = vmatpush1.msra.mxu0 0.0
  %859 = vmatprep.subr.mxu0 0.0
  %860 = vmatpush1.msra.mxu0 0.0
  %861 = vmatprep.mubr.f32.mxu0 0.0
  %v862 = vand.u32 %v598, 4294901760
  %v863 = vsub.f32 %v598, %v862
  %864 = vmatmul.mubr.f32.gmra.mrb[0].mxu0 %v863
  %v865 = vpop.f32.mrb[0].mxu0
  %v866 = vadd.f32 %v780, %v865
  %v867 = vpop.f32.mrb[0].mxu0
  %868 = vmatprep.mubr.f32.mxu0 0.0
  %v869 = vand.u32 %v601, 4294901760
  %v870 = vsub.f32 %v601, %v869
  %871 = vmatmul.mubr.f32.gmra.mrb[0].mxu0 %v870
  %v872 = vpop.f32.mrb[0].mxu0
  %v873 = vadd.f32 %v786, %v872
  %v874 = vpop.f32.mrb[0].mxu0
  %875 = vdwg.mxu0
  %876 = vmatprep.subr.mxu0 0.0
  %v877 = vand.u32 %v586, 4294901760
  %878 = vmatpush1.msra.mxu0 %v877
  %879 = vmatprep.subr.mxu0 0.0
  %v880 = vand.u32 %v587, 4294901760
  %881 = vmatpush1.msra.mxu0 %v880
  %882 = vmatprep.subr.mxu0 0.0
  %v883 = vand.u32 %v588, 4294901760
  %884 = vmatpush1.msra.mxu0 %v883
  %885 = vmatprep.subr.mxu0 0.0
  %v886 = vand.u32 %v589, 4294901760
  %887 = vmatpush1.msra.mxu0 %v886
  %888 = vmatprep.subr.mxu0 0.0
  %889 = vmatpush1.msra.mxu0 0.0
  %890 = vmatprep.subr.mxu0 0.0
  %891 = vmatpush1.msra.mxu0 0.0
  %892 = vmatprep.subr.mxu0 0.0
  %893 = vmatpush1.msra.mxu0 0.0
  %894 = vmatprep.subr.mxu0 0.0
  %895 = vmatpush1.msra.mxu0 0.0
  %896 = vmatprep.subr.mxu0 0.0
  %897 = vmatpush1.msra.mxu0 0.0
  %898 = vmatprep.subr.mxu0 0.0
  %899 = vmatpush1.msra.mxu0 0.0
  %900 = vmatprep.subr.mxu0 0.0
  %901 = vmatpush1.msra.mxu0 0.0
  %902 = vmatprep.subr.mxu0 0.0
  %903 = vmatpush1.msra.mxu0 0.0
  %904 = vmatprep.subr.mxu0 0.0
  %905 = vmatpush1.msra.mxu0 0.0
  %906 = vmatprep.subr.mxu0 0.0
  %907 = vmatpush1.msra.mxu0 0.0
  %908 = vmatprep.subr.mxu0 0.0
  %909 = vmatpush1.msra.mxu0 0.0
  %910 = vmatprep.subr.mxu0 0.0
  %911 = vmatpush1.msra.mxu0 0.0
  %912 = vmatprep.subr.mxu0 0.0
  %913 = vmatpush1.msra.mxu0 0.0
  %914 = vmatprep.subr.mxu0 0.0
  %915 = vmatpush1.msra.mxu0 0.0
  %916 = vmatprep.subr.mxu0 0.0
  %917 = vmatpush1.msra.mxu0 0.0
  %918 = vmatprep.subr.mxu0 0.0
  %919 = vmatpush1.msra.mxu0 0.0
  %920 = vmatprep.subr.mxu0 0.0
  %921 = vmatpush1.msra.mxu0 0.0
  %922 = vmatprep.subr.mxu0 0.0
  %923 = vmatpush1.msra.mxu0 0.0
  %924 = vmatprep.subr.mxu0 0.0
  %925 = vmatpush1.msra.mxu0 0.0
  %926 = vmatprep.subr.mxu0 0.0
  %927 = vmatpush1.msra.mxu0 0.0
  %928 = vmatprep.subr.mxu0 0.0
  %929 = vmatpush1.msra.mxu0 0.0
  %930 = vmatprep.subr.mxu0 0.0
  %931 = vmatpush1.msra.mxu0 0.0
  %932 = vmatprep.subr.mxu0 0.0
  %933 = vmatpush1.msra.mxu0 0.0
  %934 = vmatprep.subr.mxu0 0.0
  %935 = vmatpush1.msra.mxu0 0.0
  %936 = vmatprep.subr.mxu0 0.0
  %937 = vmatpush1.msra.mxu0 0.0
  %938 = vmatprep.subr.mxu0 0.0
  %939 = vmatpush1.msra.mxu0 0.0
  %940 = vmatprep.subr.mxu0 0.0
  %941 = vmatpush1.msra.mxu0 0.0
  %942 = vmatprep.subr.mxu0 0.0
  %943 = vmatpush1.msra.mxu0 0.0
  %944 = vmatprep.mubr.f32.mxu0 0.0
  %v945 = vand.u32 %v598, 4294901760
  %v946 = vsub.f32 %v598, %v945
  %v947 = vand.u32 %v946, 4294901760
  %948 = vmatmul.mubr.f32.gmra.mrb[0].mxu0 %v947
  %v949 = vpop.f32.mrb[0].mxu0
  %v950 = vadd.f32 %v866, %v949
  %v951 = vpop.f32.mrb[0].mxu0
  %952 = vmatprep.mubr.f32.mxu0 0.0
  %v953 = vand.u32 %v601, 4294901760
  %v954 = vsub.f32 %v601, %v953
  %v955 = vand.u32 %v954, 4294901760
  %956 = vmatmul.mubr.f32.gmra.mrb[0].mxu0 %v955
  %v957 = vpop.f32.mrb[0].mxu0
  %v958 = vadd.f32 %v873, %v957
  %v959 = vpop.f32.mrb[0].mxu0
  %960 = vdwg.mxu0
  %961 = vmatprep.subr.mxu0 0.0
  %v962 = vand.u32 %v586, 4294901760
  %v963 = vsub.f32 %v586, %v962
  %v964 = vand.u32 %v963, 4294901760
  %965 = vmatpush1.msra.mxu0 %v964
  %966 = vmatprep.subr.mxu0 0.0
  %v967 = vand.u32 %v587, 4294901760
  %v968 = vsub.f32 %v587, %v967
  %v969 = vand.u32 %v968, 4294901760
  %970 = vmatpush1.msra.mxu0 %v969
  %971 = vmatprep.subr.mxu0 0.0
  %v972 = vand.u32 %v588, 4294901760
  %v973 = vsub.f32 %v588, %v972
  %v974 = vand.u32 %v973, 4294901760
  %975 = vmatpush1.msra.mxu0 %v974
  %976 = vmatprep.subr.mxu0 0.0
  %v977 = vand.u32 %v589, 4294901760
  %v978 = vsub.f32 %v589, %v977
  %v979 = vand.u32 %v978, 4294901760
  %980 = vmatpush1.msra.mxu0 %v979
  %981 = vmatprep.subr.mxu0 0.0
  %982 = vmatpush1.msra.mxu0 0.0
  %983 = vmatprep.subr.mxu0 0.0
  %984 = vmatpush1.msra.mxu0 0.0
  %985 = vmatprep.subr.mxu0 0.0
  %986 = vmatpush1.msra.mxu0 0.0
  %987 = vmatprep.subr.mxu0 0.0
  %988 = vmatpush1.msra.mxu0 0.0
  %989 = vmatprep.subr.mxu0 0.0
  %990 = vmatpush1.msra.mxu0 0.0
  %991 = vmatprep.subr.mxu0 0.0
  %992 = vmatpush1.msra.mxu0 0.0
  %993 = vmatprep.subr.mxu0 0.0
  %994 = vmatpush1.msra.mxu0 0.0
  %995 = vmatprep.subr.mxu0 0.0
  %996 = vmatpush1.msra.mxu0 0.0
  %997 = vmatprep.subr.mxu0 0.0
  %998 = vmatpush1.msra.mxu0 0.0
  %999 = vmatprep.subr.mxu0 0.0
  %1000 = vmatpush1.msra.mxu0 0.0
  %1001 = vmatprep.subr.mxu0 0.0
  %1002 = vmatpush1.msra.mxu0 0.0
  %1003 = vmatprep.subr.mxu0 0.0
  %1004 = vmatpush1.msra.mxu0 0.0
  %1005 = vmatprep.subr.mxu0 0.0
  %1006 = vmatpush1.msra.mxu0 0.0
  %1007 = vmatprep.subr.mxu0 0.0
  %1008 = vmatpush1.msra.mxu0 0.0
  %1009 = vmatprep.subr.mxu0 0.0
  %1010 = vmatpush1.msra.mxu0 0.0
  %1011 = vmatprep.subr.mxu0 0.0
  %1012 = vmatpush1.msra.mxu0 0.0
  %1013 = vmatprep.subr.mxu0 0.0
  %1014 = vmatpush1.msra.mxu0 0.0
  %1015 = vmatprep.subr.mxu0 0.0
  %1016 = vmatpush1.msra.mxu0 0.0
  %1017 = vmatprep.subr.mxu0 0.0
  %1018 = vmatpush1.msra.mxu0 0.0
  %1019 = vmatprep.subr.mxu0 0.0
  %1020 = vmatpush1.msra.mxu0 0.0
  %1021 = vmatprep.subr.mxu0 0.0
  %1022 = vmatpush1.msra.mxu0 0.0
  %1023 = vmatprep.subr.mxu0 0.0
  %1024 = vmatpush1.msra.mxu0 0.0
  %1025 = vmatprep.subr.mxu0 0.0
  %1026 = vmatpush1.msra.mxu0 0.0
  %1027 = vmatprep.subr.mxu0 0.0
  %1028 = vmatpush1.msra.mxu0 0.0
  %1029 = vmatprep.subr.mxu0 0.0
  %1030 = vmatpush1.msra.mxu0 0.0
  %1031 = vmatprep.subr.mxu0 0.0
  %1032 = vmatpush1.msra.mxu0 0.0
  %1033 = vmatprep.subr.mxu0 0.0
  %1034 = vmatpush1.msra.mxu0 0.0
  %1035 = vmatprep.subr.mxu0 0.0
  %1036 = vmatpush1.msra.mxu0 0.0
  %1037 = vmatprep.mubr.f32.mxu0 0.0
  %v1038 = vand.u32 %v598, 4294901760
  %1039 = vmatmul.mubr.f32.gmra.mrb[0].mxu0 %v1038
  %v1040 = vpop.f32.mrb[0].mxu0
  %v1041 = vadd.f32 %v950, %v1040
  %v1042 = vpop.f32.mrb[0].mxu0
  %1043 = vmatprep.mubr.f32.mxu0 0.0
  %v1044 = vand.u32 %v601, 4294901760
  %1045 = vmatmul.mubr.f32.gmra.mrb[0].mxu0 %v1044
  %v1046 = vpop.f32.mrb[0].mxu0
  %v1047 = vadd.f32 %v958, %v1046
  %v1048 = vpop.f32.mrb[0].mxu0
  %1049 = vdwg.mxu0
  %1050 = vmatprep.subr.mxu0 0.0
  %v1051 = vand.u32 %v586, 4294901760
  %1052 = vmatpush1.msra.mxu0 %v1051
  %1053 = vmatprep.subr.mxu0 0.0
  %v1054 = vand.u32 %v587, 4294901760
  %1055 = vmatpush1.msra.mxu0 %v1054
  %1056 = vmatprep.subr.mxu0 0.0
  %v1057 = vand.u32 %v588, 4294901760
  %1058 = vmatpush1.msra.mxu0 %v1057
  %1059 = vmatprep.subr.mxu0 0.0
  %v1060 = vand.u32 %v589, 4294901760
  %1061 = vmatpush1.msra.mxu0 %v1060
  %1062 = vmatprep.subr.mxu0 0.0
  %1063 = vmatpush1.msra.mxu0 0.0
  %1064 = vmatprep.subr.mxu0 0.0
  %1065 = vmatpush1.msra.mxu0 0.0
  %1066 = vmatprep.subr.mxu0 0.0
  %1067 = vmatpush1.msra.mxu0 0.0
  %1068 = vmatprep.subr.mxu0 0.0
  %1069 = vmatpush1.msra.mxu0 0.0
  %1070 = vmatprep.subr.mxu0 0.0
  %1071 = vmatpush1.msra.mxu0 0.0
  %1072 = vmatprep.subr.mxu0 0.0
  %1073 = vmatpush1.msra.mxu0 0.0
  %1074 = vmatprep.subr.mxu0 0.0
  %1075 = vmatpush1.msra.mxu0 0.0
  %1076 = vmatprep.subr.mxu0 0.0
  %1077 = vmatpush1.msra.mxu0 0.0
  %1078 = vmatprep.subr.mxu0 0.0
  %1079 = vmatpush1.msra.mxu0 0.0
  %1080 = vmatprep.subr.mxu0 0.0
  %1081 = vmatpush1.msra.mxu0 0.0
  %1082 = vmatprep.subr.mxu0 0.0
  %1083 = vmatpush1.msra.mxu0 0.0
  %1084 = vmatprep.subr.mxu0 0.0
  %1085 = vmatpush1.msra.mxu0 0.0
  %1086 = vmatprep.subr.mxu0 0.0
  %1087 = vmatpush1.msra.mxu0 0.0
  %1088 = vmatprep.subr.mxu0 0.0
  %1089 = vmatpush1.msra.mxu0 0.0
  %1090 = vmatprep.subr.mxu0 0.0
  %1091 = vmatpush1.msra.mxu0 0.0
  %1092 = vmatprep.subr.mxu0 0.0
  %1093 = vmatpush1.msra.mxu0 0.0
  %1094 = vmatprep.subr.mxu0 0.0
  %1095 = vmatpush1.msra.mxu0 0.0
  %1096 = vmatprep.subr.mxu0 0.0
  %1097 = vmatpush1.msra.mxu0 0.0
  %1098 = vmatprep.subr.mxu0 0.0
  %1099 = vmatpush1.msra.mxu0 0.0
  %1100 = vmatprep.subr.mxu0 0.0
  %1101 = vmatpush1.msra.mxu0 0.0
  %1102 = vmatprep.subr.mxu0 0.0
  %1103 = vmatpush1.msra.mxu0 0.0
  %1104 = vmatprep.subr.mxu0 0.0
  %1105 = vmatpush1.msra.mxu0 0.0
  %1106 = vmatprep.subr.mxu0 0.0
  %1107 = vmatpush1.msra.mxu0 0.0
  %1108 = vmatprep.subr.mxu0 0.0
  %1109 = vmatpush1.msra.mxu0 0.0
  %1110 = vmatprep.subr.mxu0 0.0
  %1111 = vmatpush1.msra.mxu0 0.0
  %1112 = vmatprep.subr.mxu0 0.0
  %1113 = vmatpush1.msra.mxu0 0.0
  %1114 = vmatprep.subr.mxu0 0.0
  %1115 = vmatpush1.msra.mxu0 0.0
  %1116 = vmatprep.subr.mxu0 0.0
  %1117 = vmatpush1.msra.mxu0 0.0
  %1118 = vmatprep.mubr.f32.mxu0 0.0
  %v1119 = vand.u32 %v598, 4294901760
  %1120 = vmatmul.mubr.f32.gmra.mrb[0].mxu0 %v1119
  %v1121 = vpop.f32.mrb[0].mxu0
  %v1122 = vadd.f32 %v1041, %v1121
  %v1123 = vpop.f32.mrb[0].mxu0
  %1124 = vmatprep.mubr.f32.mxu0 0.0
  %v1125 = vand.u32 %v601, 4294901760
  %1126 = vmatmul.mubr.f32.gmra.mrb[0].mxu0 %v1125
  %v1127 = vpop.f32.mrb[0].mxu0
  %v1128 = vadd.f32 %v1047, %v1127
  %v1129 = vpop.f32.mrb[0].mxu0
  %1130 = vdwg.mxu0
  %1131 = vst.msk [vmem:[%s5] sm:$0xff] %vm33, %v1122
  %1132 = vst.msk [vmem:[%s5 + $0x8] sm:$0xff] %vm33, %v1128
  // Predicated region
  $region22: #{transformer_forward.18} parent=0 // pred_check
    _
  $region23: #{transformer_forward.18} parent=0 // pred_check_branch
    %1134 = sbr.rel (0) target = $region25
  $region24: #{transformer_forward.18} parent=0 // pred_region
    _
  $region25: #{transformer_forward.18} parent=0 // pred_fallthru
    _
  // Predicated region
  $region26: #{transformer_forward.18} parent=0 // pred_check
    _
  $region27: #{transformer_forward.18} parent=0 // pred_check_branch
    %1136 = sbr.rel (0) target = $region29
  $region28: #{transformer_forward.18} parent=0 // pred_region
    _
  $region29: #{transformer_forward.18} parent=0 // pred_fallthru
    _

</llo_original>
